<compile_context>
chip_gen: v5e
topology: v5e:2x2
jax: 0.10.0
libtpu: 0.0.40
codegen_flags: <defaults>
</compile_context>

<pallas_src>
import math
import numpy as np
import jax
import jax.numpy as jnp
from jax.experimental import pallas as pl
from jax.experimental.pallas import tpu as pltpu


WINDOW_SIZE = 11
SIGMA = 1.5


def _gaussian_1d(window_size: int, sigma: float) -> np.ndarray:
    """Replicates gaussian(): normalized 1D gaussian (f32)."""
    g = np.array(
        [math.exp(-((x - window_size // 2) ** 2) / float(2 * sigma ** 2))
         for x in range(window_size)],
        dtype=np.float32,
    )
    return (g / g.sum()).astype(np.float32)


def _band_matrix(taps: np.ndarray, n_out: int, n_full: int) -> np.ndarray:
    """Banded Toeplitz matrix M (n_out, n_full): M[o, o+k] = taps[k]."""
    m = np.zeros((n_out, n_full), np.float32)
    for k in range(len(taps)):
        m[np.arange(n_out), np.arange(n_out) + k] = taps[k]
    return m


def _tpu_vmem_budget():
    """(per-step working-set budget, scoped-vmem limit) from physical VMEM."""
    try:
        cap = int(pltpu.get_tpu_info().vmem_capacity_bytes)
    except Exception:
        cap = 64 * 1024 * 1024          # conservative fallback (v7x size)
    return cap // 4, cap // 2


def _min_grid_steps():
    """Ask for >= 8 parallel grid steps on multi-TensorCore parts (v7x)."""
    try:
        kind = jax.devices()[0].device_kind.lower()
    except Exception:
        return 1
    return 8 if ("v7" in kind or "7x" in kind) else 1


def _pick_channel_block(N, C, H, W, ws, in_itemsize, budget_bytes, min_grid_steps=1):
    """Largest divisor of C whose per-step working set fits `budget_bytes`.

    Per-step live-set estimate (channel block of size cb, f32 intermediates):
      inputs (2 arrays x 2 pipeline buffers), f32 casts, 3 square/cross slabs,
      5 vertical-pass outputs, 5 horizontal outputs + ~7 SSIM temporaries, and
      the (double-buffered) banded Gaussian matrices.
    """
    OH, OW = H - ws + 1, W - ws + 1

    def step_bytes(cb):
        slab = cb * H * W
        b = 4 * slab * in_itemsize                 # 2 inputs x 2 pipeline buffers
        b += 4 * (2 * slab + 3 * slab)             # f32 casts + x*x, y*y, x*y
        b += 4 * 5 * cb * OH * W                   # vertical-pass outputs
        b += 4 * 12 * cb * OH * OW                 # horizontal outputs + temps
        b += 4 * 2 * cb * (OH * H + W * OW)        # Gv_b / Gh_b (double-buffered)
        return b

    fitting = [d for d in range(1, C + 1) if C % d == 0 and step_bytes(d) <= budget_bytes]
    if not fitting:
        raise ValueError(
            "SSIM Pallas kernel: a single-channel block does not fit the VMEM "
            f"budget ({step_bytes(1)} > {budget_bytes} bytes). "
            "TODO(synk): add H-halo tiling for megapixel images.")
    best = fitting[-1]                              # largest block that fits
    if min_grid_steps > 1:                          # feed multiple TensorCores
        for d in reversed(fitting):
            if N * (C // d) >= min_grid_steps:
                best = d
                break
    return best


def _make_ssim_kernel(Cb, H, W, ws):
    OH = H - ws + 1
    OW = W - ws + 1
    f32 = jnp.float32
    hi = jax.lax.Precision.HIGHEST

    def kernel(cvals_ref, gv_ref, gh_ref, x_ref, y_ref, out_ref):
        # (Cb, H, W) tiles; cast on-chip only when the input is not f32.
        x = x_ref[...]
        y = y_ref[...]
        if x.dtype != f32:
            x = x.astype(f32)
            y = y.astype(f32)

        gv = gv_ref[...]        # (Cb, OH, H) banded Gaussian (vertical taps)
        gh = gh_ref[...]        # (Cb, W, OW) banded Gaussian (horizontal taps)

        def gconv(s):
            # Separable 11x11 Gaussian as two MXU banded matmuls (f32 in/out,
            # precision=HIGHEST -> full-f32 contract; bf16 would break 2e-5).
            v = jnp.einsum('coh,chw->cow', gv, s,
                           preferred_element_type=f32, precision=hi)
            return jnp.einsum('cow,cwj->coj', v, gh,
                              preferred_element_type=f32, precision=hi)

        mu1 = gconv(x)
        mu2 = gconv(y)
        s11 = gconv(x * x)
        s22 = gconv(y * y)
        s12 = gconv(x * y)

        C1 = cvals_ref[0]
        C2 = cvals_ref[1]

        mu1_sq = mu1 * mu1
        mu2_sq = mu2 * mu2
        mu1_mu2 = mu1 * mu2
        sigma1_sq = s11 - mu1_sq
        sigma2_sq = s22 - mu2_sq
        sigma12 = s12 - mu1_mu2

        v1 = 2.0 * sigma12 + C2
        v2 = sigma1_sq + sigma2_sq + C2
        # Exact divide: approx EUP reciprocal (~2^-14 rel err) would eat into
        # the 2e-5 validation tolerance.
        ssim_map = (2.0 * mu1_mu2 + C1) * v1 / ((mu1_sq + mu2_sq + C1) * v2)

        # One partial sum per (n, channel-block) output block; the mean is
        # finished in the wrapper, keeping both grid axes "parallel".
        out_ref[...] = jnp.sum(ssim_map).reshape(1, 1, 1, 1)

    return kernel


class SSIMPallas:
    """Pallas TPU port of the PyTorch SSIM module (size_average=True)."""

    def __init__(self, window_size=WINDOW_SIZE, size_average=True, val_range=None):
        assert size_average, "only size_average=True is implemented"
        self.window_size = window_size
        self.val_range = val_range
        self.w1d = _gaussian_1d(window_size, SIGMA)                   # separable taps
        self.w2d = np.outer(self.w1d, self.w1d).astype(np.float32)    # for reference

    def __call__(self, img1, img2):
        N, C, H, W = img1.shape
        ws = self.window_size
        assert H >= ws and W >= ws, "image smaller than the SSIM window"

        # Dynamic-range L (data-dependent on img1) -> C1/C2 constants.
        if self.val_range is None:
            max_val = jnp.where(jnp.max(img1) > 128, 255.0, 1.0)
            min_val = jnp.where(jnp.min(img1) < -0.5, -1.0, 0.0)
            L = max_val - min_val
        else:
            L = jnp.float32(self.val_range)
        C1 = (0.01 * L) ** 2
        C2 = (0.03 * L) ** 2
        cvals = jnp.stack([C1, C2]).astype(jnp.float32)   # (2,) scalars -> SMEM

        OH, OW = H - ws + 1, W - ws + 1
        in_itemsize = jnp.dtype(img1.dtype).itemsize

        budget_bytes, vmem_limit = _tpu_vmem_budget()
        Cb = _pick_channel_block(N, C, H, W, ws, in_itemsize, budget_bytes,
                                 min_grid_steps=_min_grid_steps())
        NCB = C // Cb

        # Banded Toeplitz matrices for the separable Gaussian, broadcast across
        # the channel batch dim (constant index_map -> fetched once).
        gv = _band_matrix(self.w1d, OH, H)          # (OH, H)
        gh = _band_matrix(self.w1d, OW, W).T        # (W, OW)
        gv_b = jnp.asarray(np.ascontiguousarray(np.broadcast_to(gv, (Cb, OH, H))))
        gh_b = jnp.asarray(np.ascontiguousarray(np.broadcast_to(gh, (Cb, W, OW))))

        kernel = _make_ssim_kernel(Cb, H, W, ws)

        conv_flops = 2 * 5 * N * C * (OH * H * W + OH * W * OW)
        ew_flops = N * C * (3 * H * W + 20 * OH * OW)
        bytes_accessed = (2 * N * C * H * W * in_itemsize
                          + 4 * Cb * (OH * H + W * OW) + 4 * N * NCB + 8)

        partials = pl.pallas_call(
            kernel,
            out_shape=jax.ShapeDtypeStruct((N, NCB, 1, 1), jnp.float32),
            grid_spec=pltpu.PrefetchScalarGridSpec(
                num_scalar_prefetch=0,
                grid=(N, NCB),
                in_specs=[
                    pl.BlockSpec(memory_space=pltpu.MemorySpace.SMEM),      # C1, C2
                    pl.BlockSpec((Cb, OH, H), lambda n, cb: (0, 0, 0)),     # Gv (banded)
                    pl.BlockSpec((Cb, W, OW), lambda n, cb: (0, 0, 0)),     # Gh (banded)
                    pl.BlockSpec((pl.Squeezed(), Cb, H, W),
                                 lambda n, cb: (n, cb, 0, 0)),              # img1
                    pl.BlockSpec((pl.Squeezed(), Cb, H, W),
                                 lambda n, cb: (n, cb, 0, 0)),              # img2
                ],
                out_specs=pl.BlockSpec((1, 1, 1, 1), lambda n, cb: (n, cb, 0, 0)),
            ),
            compiler_params=pltpu.CompilerParams(
                dimension_semantics=("parallel", "parallel"),
                vmem_limit_bytes=int(vmem_limit)),
            cost_estimate=pl.CostEstimate(flops=int(conv_flops + ew_flops),
                                          transcendentals=0,
                                          bytes_accessed=int(bytes_accessed)),
        )(cvals, gv_b, gh_b, img1, img2)   # native dtype in; f32 on-chip

        return jnp.sum(partials) / float(N * C * OH * OW)


def _ssim_ref(img1, img2, w2d, window_size=WINDOW_SIZE):
    """Pure-JAX reference mirroring the PyTorch ssim() (size_average=True)."""
    N, C, H, W = img1.shape
    window = jnp.broadcast_to(jnp.asarray(w2d)[None, None],
                              (C, 1, window_size, window_size))
    conv = lambda x: jax.lax.conv_general_dilated(
        x, window, window_strides=(1, 1), padding="VALID",
        feature_group_count=C,
        dimension_numbers=("NCHW", "OIHW", "NCHW"),
        precision=jax.lax.Precision.HIGHEST)

    max_val = jnp.where(jnp.max(img1) > 128, 255.0, 1.0)
    min_val = jnp.where(jnp.min(img1) < -0.5, -1.0, 0.0)
    L = max_val - min_val
    C1 = (0.01 * L) ** 2
    C2 = (0.03 * L) ** 2

    mu1, mu2 = conv(img1), conv(img2)
    mu1_sq, mu2_sq, mu1_mu2 = mu1 ** 2, mu2 ** 2, mu1 * mu2
    sigma1_sq = conv(img1 * img1) - mu1_sq
    sigma2_sq = conv(img2 * img2) - mu2_sq
    sigma12 = conv(img1 * img2) - mu1_mu2
    v1 = 2.0 * sigma12 + C2
    v2 = sigma1_sq + sigma2_sq + C2
    ssim_map = (2 * mu1_mu2 + C1) * v1 / ((mu1_sq + mu2_sq + C1) * v2)
    return jnp.mean(ssim_map)


if __name__ == "__main__":
    key = jax.random.PRNGKey(0)
    k1, k2 = jax.random.split(key)
    img1 = jax.random.normal(k1, (2, 4, 16, 16), dtype=jnp.float32)
    img2 = img1 + 0.1 * jax.random.normal(k2, (2, 4, 16, 16), dtype=jnp.float32)

    ssim_mod = SSIMPallas(window_size=11, size_average=True)
    out = jax.block_until_ready(ssim_mod(img1, img2))

    ref = jax.block_until_ready(_ssim_ref(img1, img2, ssim_mod.w2d))
    assert np.isfinite(float(out))
    np.testing.assert_allclose(float(out), float(ref), rtol=2e-5, atol=2e-5)
    print("KERNEL_OK")
</pallas_src>

<mosaic_0001>
module attributes {stable_mosaic.version = 11 : i64} {
  func.func @kernel(%arg0: i32, %arg1: i32, %arg2: memref<2xf32, #tpu.memory_space<smem>>, %arg3: memref<4x6x16xf32, #tpu.memory_space<vmem>>, %arg4: memref<4x16x6xf32, #tpu.memory_space<vmem>>, %arg5: memref<1x4x16x16xf32, #tpu.memory_space<vmem>>, %arg6: memref<1x4x16x16xf32, #tpu.memory_space<vmem>>, %arg7: memref<1x1x1x1xf32, #tpu.memory_space<vmem>>) attributes {dimension_semantics = [#tpu.dimension_semantics<parallel>, #tpu.dimension_semantics<parallel>], iteration_bounds = array<i64: 2, 1>, scalar_prefetch = 0 : i64, scratch_operands = 0 : i64, tpu.core_type = #tpu.core_type<tc>, window_params = [{transform_indices = @transform_0, window_bounds = array<i64: 2>}, {pipeline_mode = #tpu.pipeline_mode<synchronous>, transform_indices = @transform_1, window_bounds = array<i64: 4, 6, 16>}, {pipeline_mode = #tpu.pipeline_mode<synchronous>, transform_indices = @transform_2, window_bounds = array<i64: 4, 16, 6>}, {transform_indices = @transform_3, window_bounds = array<i64: 1, 4, 16, 16>}, {transform_indices = @transform_4, window_bounds = array<i64: 1, 4, 16, 16>}, {transform_indices = @transform_5, window_bounds = array<i64: 1, 1, 1, 1>}]} {
    %c0 = arith.constant 0 : index
    %c0_0 = arith.constant 0 : index
    %c0_1 = arith.constant 0 : index
    %c0_2 = arith.constant 0 : index
    %0 = vector.load %arg5[%c0, %c0_0, %c0_1, %c0_2] : memref<1x4x16x16xf32, #tpu.memory_space<vmem>>, vector<1x4x16x16xf32>
    %1 = vector.shape_cast %0 : vector<1x4x16x16xf32> to vector<4x16x16xf32>
    %c0_3 = arith.constant 0 : index
    %c0_4 = arith.constant 0 : index
    %c0_5 = arith.constant 0 : index
    %c0_6 = arith.constant 0 : index
    %2 = vector.load %arg6[%c0_3, %c0_4, %c0_5, %c0_6] : memref<1x4x16x16xf32, #tpu.memory_space<vmem>>, vector<1x4x16x16xf32>
    %3 = vector.shape_cast %2 : vector<1x4x16x16xf32> to vector<4x16x16xf32>
    %c0_7 = arith.constant 0 : index
    %c0_8 = arith.constant 0 : index
    %c0_9 = arith.constant 0 : index
    %4 = vector.load %arg3[%c0_7, %c0_8, %c0_9] : memref<4x6x16xf32, #tpu.memory_space<vmem>>, vector<4x6x16xf32>
    %c0_10 = arith.constant 0 : index
    %c0_11 = arith.constant 0 : index
    %c0_12 = arith.constant 0 : index
    %5 = vector.load %arg4[%c0_10, %c0_11, %c0_12] : memref<4x16x6xf32, #tpu.memory_space<vmem>>, vector<4x16x6xf32>
    "tpu.trace_start"() <{level = 10 : i32, message = "coh,chw->cow"}> : () -> ()
    %cst = arith.constant dense<0.000000e+00> : vector<4x6x16xf32>
    %6 = tpu.matmul %4, %1, %cst {dimension_numbers = #tpu.dot_dimension_numbers<[2], [1], [1], [2], [0, 0, 0, 1, 1, 2], [0], [0]>, precision = #tpu.contract_precision<fp32>} : vector<4x6x16xf32>, vector<4x16x16xf32>, vector<4x6x16xf32> -> vector<4x6x16xf32>
    "tpu.trace_stop"() : () -> ()
    "tpu.trace_start"() <{level = 10 : i32, message = "cow,cwj->coj"}> : () -> ()
    %cst_13 = arith.constant dense<0.000000e+00> : vector<4x6x6xf32>
    %7 = tpu.matmul %6, %5, %cst_13 {dimension_numbers = #tpu.dot_dimension_numbers<[2], [1], [1], [2], [0, 0, 0, 1, 1, 2], [0], [0]>, precision = #tpu.contract_precision<fp32>} : vector<4x6x16xf32>, vector<4x16x6xf32>, vector<4x6x6xf32> -> vector<4x6x6xf32>
    "tpu.trace_stop"() : () -> ()
    "tpu.trace_start"() <{level = 10 : i32, message = "coh,chw->cow"}> : () -> ()
    %cst_14 = arith.constant dense<0.000000e+00> : vector<4x6x16xf32>
    %8 = tpu.matmul %4, %3, %cst_14 {dimension_numbers = #tpu.dot_dimension_numbers<[2], [1], [1], [2], [0, 0, 0, 1, 1, 2], [0], [0]>, precision = #tpu.contract_precision<fp32>} : vector<4x6x16xf32>, vector<4x16x16xf32>, vector<4x6x16xf32> -> vector<4x6x16xf32>
    "tpu.trace_stop"() : () -> ()
    "tpu.trace_start"() <{level = 10 : i32, message = "cow,cwj->coj"}> : () -> ()
    %cst_15 = arith.constant dense<0.000000e+00> : vector<4x6x6xf32>
    %9 = tpu.matmul %8, %5, %cst_15 {dimension_numbers = #tpu.dot_dimension_numbers<[2], [1], [1], [2], [0, 0, 0, 1, 1, 2], [0], [0]>, precision = #tpu.contract_precision<fp32>} : vector<4x6x16xf32>, vector<4x16x6xf32>, vector<4x6x6xf32> -> vector<4x6x6xf32>
    "tpu.trace_stop"() : () -> ()
    %10 = arith.mulf %1, %1 : vector<4x16x16xf32>
    "tpu.trace_start"() <{level = 10 : i32, message = "coh,chw->cow"}> : () -> ()
    %cst_16 = arith.constant dense<0.000000e+00> : vector<4x6x16xf32>
    %11 = tpu.matmul %4, %10, %cst_16 {dimension_numbers = #tpu.dot_dimension_numbers<[2], [1], [1], [2], [0, 0, 0, 1, 1, 2], [0], [0]>, precision = #tpu.contract_precision<fp32>} : vector<4x6x16xf32>, vector<4x16x16xf32>, vector<4x6x16xf32> -> vector<4x6x16xf32>
    "tpu.trace_stop"() : () -> ()
    "tpu.trace_start"() <{level = 10 : i32, message = "cow,cwj->coj"}> : () -> ()
    %cst_17 = arith.constant dense<0.000000e+00> : vector<4x6x6xf32>
    %12 = tpu.matmul %11, %5, %cst_17 {dimension_numbers = #tpu.dot_dimension_numbers<[2], [1], [1], [2], [0, 0, 0, 1, 1, 2], [0], [0]>, precision = #tpu.contract_precision<fp32>} : vector<4x6x16xf32>, vector<4x16x6xf32>, vector<4x6x6xf32> -> vector<4x6x6xf32>
    "tpu.trace_stop"() : () -> ()
    %13 = arith.mulf %3, %3 : vector<4x16x16xf32>
    "tpu.trace_start"() <{level = 10 : i32, message = "coh,chw->cow"}> : () -> ()
    %cst_18 = arith.constant dense<0.000000e+00> : vector<4x6x16xf32>
    %14 = tpu.matmul %4, %13, %cst_18 {dimension_numbers = #tpu.dot_dimension_numbers<[2], [1], [1], [2], [0, 0, 0, 1, 1, 2], [0], [0]>, precision = #tpu.contract_precision<fp32>} : vector<4x6x16xf32>, vector<4x16x16xf32>, vector<4x6x16xf32> -> vector<4x6x16xf32>
    "tpu.trace_stop"() : () -> ()
    "tpu.trace_start"() <{level = 10 : i32, message = "cow,cwj->coj"}> : () -> ()
    %cst_19 = arith.constant dense<0.000000e+00> : vector<4x6x6xf32>
    %15 = tpu.matmul %14, %5, %cst_19 {dimension_numbers = #tpu.dot_dimension_numbers<[2], [1], [1], [2], [0, 0, 0, 1, 1, 2], [0], [0]>, precision = #tpu.contract_precision<fp32>} : vector<4x6x16xf32>, vector<4x16x6xf32>, vector<4x6x6xf32> -> vector<4x6x6xf32>
    "tpu.trace_stop"() : () -> ()
    %16 = arith.mulf %1, %3 : vector<4x16x16xf32>
    "tpu.trace_start"() <{level = 10 : i32, message = "coh,chw->cow"}> : () -> ()
    %cst_20 = arith.constant dense<0.000000e+00> : vector<4x6x16xf32>
    %17 = tpu.matmul %4, %16, %cst_20 {dimension_numbers = #tpu.dot_dimension_numbers<[2], [1], [1], [2], [0, 0, 0, 1, 1, 2], [0], [0]>, precision = #tpu.contract_precision<fp32>} : vector<4x6x16xf32>, vector<4x16x16xf32>, vector<4x6x16xf32> -> vector<4x6x16xf32>
    "tpu.trace_stop"() : () -> ()
    "tpu.trace_start"() <{level = 10 : i32, message = "cow,cwj->coj"}> : () -> ()
    %cst_21 = arith.constant dense<0.000000e+00> : vector<4x6x6xf32>
    %18 = tpu.matmul %17, %5, %cst_21 {dimension_numbers = #tpu.dot_dimension_numbers<[2], [1], [1], [2], [0, 0, 0, 1, 1, 2], [0], [0]>, precision = #tpu.contract_precision<fp32>} : vector<4x6x16xf32>, vector<4x16x6xf32>, vector<4x6x6xf32> -> vector<4x6x6xf32>
    "tpu.trace_stop"() : () -> ()
    %c0_22 = arith.constant 0 : index
    %19 = memref.load %arg2[%c0_22] : memref<2xf32, #tpu.memory_space<smem>>
    %c1 = arith.constant 1 : index
    %20 = memref.load %arg2[%c1] : memref<2xf32, #tpu.memory_space<smem>>
    %21 = arith.mulf %7, %7 : vector<4x6x6xf32>
    %22 = arith.mulf %9, %9 : vector<4x6x6xf32>
    %23 = arith.mulf %7, %9 : vector<4x6x6xf32>
    %24 = arith.subf %12, %21 : vector<4x6x6xf32>
    %25 = arith.subf %15, %22 : vector<4x6x6xf32>
    %26 = arith.subf %18, %23 : vector<4x6x6xf32>
    %cst_23 = arith.constant 2.000000e+00 : f32
    %27 = vector.broadcast %cst_23 : f32 to vector<4x6x6xf32>
    %28 = arith.mulf %27, %26 : vector<4x6x6xf32>
    %29 = vector.broadcast %20 : f32 to vector<4x6x6xf32>
    %30 = arith.addf %28, %29 : vector<4x6x6xf32>
    %31 = arith.addf %24, %25 : vector<4x6x6xf32>
    %32 = vector.broadcast %20 : f32 to vector<4x6x6xf32>
    %33 = arith.addf %31, %32 : vector<4x6x6xf32>
    %cst_24 = arith.constant 2.000000e+00 : f32
    %34 = vector.broadcast %cst_24 : f32 to vector<4x6x6xf32>
    %35 = arith.mulf %34, %23 : vector<4x6x6xf32>
    %36 = vector.broadcast %19 : f32 to vector<4x6x6xf32>
    %37 = arith.addf %35, %36 : vector<4x6x6xf32>
    %38 = arith.mulf %37, %30 : vector<4x6x6xf32>
    %39 = arith.addf %21, %22 : vector<4x6x6xf32>
    %40 = vector.broadcast %19 : f32 to vector<4x6x6xf32>
    %41 = arith.addf %39, %40 : vector<4x6x6xf32>
    %42 = arith.mulf %41, %33 : vector<4x6x6xf32>
    %43 = arith.divf %38, %42 : vector<4x6x6xf32>
    %44 = vector.shape_cast %43 : vector<4x6x6xf32> to vector<1x4x6x6xf32>
    %cst_25 = arith.constant dense<0.000000e+00> : vector<1xf32>
    %45 = vector.multi_reduction <add>, %44, %cst_25 [1, 2, 3] : vector<1x4x6x6xf32> to vector<1xf32>
    %46 = vector.shape_cast %45 : vector<1xf32> to vector<1x1x1x1xf32>
    %47 = vector.extract %46[0, 0, 0, 0] : f32 from vector<1x1x1x1xf32>
    %48 = vector.broadcast %47 : f32 to vector<1x1x1x1xf32>
    %c0_26 = arith.constant 0 : index
    %c0_27 = arith.constant 0 : index
    %c0_28 = arith.constant 0 : index
    %c0_29 = arith.constant 0 : index
    %49 = vector.load %arg7[%c0_26, %c0_27, %c0_28, %c0_29] : memref<1x1x1x1xf32, #tpu.memory_space<vmem>>, vector<1x1x1x1xf32>
    tpu.vector_store %arg7[%c0_26, %c0_27, %c0_28, %c0_29], %48 {strides = array<i32>} : memref<1x1x1x1xf32, #tpu.memory_space<vmem>>, vector<1x1x1x1xf32>,
    return
  }
  func.func @transform_0(%arg0: i32, %arg1: i32) -> i32 {
    %c0_i32 = arith.constant 0 : i32
    %c0_i32_0 = arith.constant 0 : i32
    return %c0_i32 : i32
  }
  func.func @transform_1(%arg0: i32, %arg1: i32) -> (i32, i32, i32) {
    %c0_i32 = arith.constant 0 : i32
    %c0_i32_0 = arith.constant 0 : i32
    %c0_i32_1 = arith.constant 0 : i32
    %c0_i32_2 = arith.constant 0 : i32
    return %c0_i32, %c0_i32_0, %c0_i32_1 : i32, i32, i32
  }
  func.func @transform_2(%arg0: i32, %arg1: i32) -> (i32, i32, i32) {
    %c0_i32 = arith.constant 0 : i32
    %c0_i32_0 = arith.constant 0 : i32
    %c0_i32_1 = arith.constant 0 : i32
    %c0_i32_2 = arith.constant 0 : i32
    return %c0_i32, %c0_i32_0, %c0_i32_1 : i32, i32, i32
  }
  func.func @transform_3(%arg0: i32, %arg1: i32) -> (i32, i32, i32, i32) {
    %c0_i32 = arith.constant 0 : i32
    %c0_i32_0 = arith.constant 0 : i32
    %c0_i32_1 = arith.constant 0 : i32
    return %arg0, %arg1, %c0_i32, %c0_i32_0 : i32, i32, i32, i32
  }
  func.func @transform_4(%arg0: i32, %arg1: i32) -> (i32, i32, i32, i32) {
    %c0_i32 = arith.constant 0 : i32
    %c0_i32_0 = arith.constant 0 : i32
    %c0_i32_1 = arith.constant 0 : i32
    return %arg0, %arg1, %c0_i32, %c0_i32_0 : i32, i32, i32, i32
  }
  func.func @transform_5(%arg0: i32, %arg1: i32) -> (i32, i32, i32, i32) {
    %c0_i32 = arith.constant 0 : i32
    %c0_i32_0 = arith.constant 0 : i32
    %c0_i32_1 = arith.constant 0 : i32
    return %arg0, %arg1, %c0_i32, %c0_i32_0 : i32, i32, i32, i32
  }
}

</mosaic_0001>

<llo_original>
// kernel: tpu_custom_call.1
$region0: #{tpu_custom_call.1}
  #allocation0 [shape = 'u32[]', space=smem, size = 0x4, offset = 0x4, fixed_abs, tag = 'smem constant byte address 0x4 - core index']
  #allocation1 [shape = 'u32[72,128]{1,0:T(1,128)}', space=vmem, size = 0x9000, scoped, tag = 'internal scratch']
  %s0 = inlined_call_operand.vmem [shape: f32[2], index: 0, kind: input, shape index: {}]
  %s1 = inlined_call_operand.vmem [shape: f32[4,6,16], index: 1, kind: input, shape index: {}]
  %s2 = inlined_call_operand.vmem [shape: f32[4,16,6], index: 2, kind: input, shape index: {}]
  %s3 = inlined_call_operand.vmem [shape: f32[2,4,16,16], index: 3, kind: input, shape index: {}]
  %s4 = inlined_call_operand.hbm [shape: f32[2,4,16,16], index: 4, kind: input, shape index: {}]
  %s5 = inlined_call_operand.vmem [shape: f32[2,1,1,1], index: 5, kind: output, shape index: {}]
  %s6 = sld [smem:[#allocation0]]
  $region61: #{tpu_custom_call.1} parent=0
    _
  %s8 = ssub.s32 1, %s6
  %s9 = scalar_select 0, %s8, %s6
  $region1: #{tpu_custom_call.1} parent=0
    #allocation2 [shape = 'u8[512]{0}', space=smem, size = 0x200, scoped, tag = 'input window, operand 0, single buffered']
    #allocation3 [shape = 's32[2]{0}', space=sflag, size = 0x8, scoped, tag = 'scoped memory for tpu_custom_call.1']
    #allocation4 [shape = 's32[2]{0}', space=sflag, size = 0x8, scoped, tag = 'scoped memory for tpu_custom_call.1']
    #allocation5 [shape = 'u8[65536]{0}', space=vmem, size = 0x10000, scoped, tag = 'input window, operand 4']
    %10 = vsyncpa [#allocation4], 0
    %11 = vsyncpa [#allocation3], 0
    %s12 = scalar_lea.sflag [#allocation3], 1
    %13 = vsyncpa %s12, 0
    loop: start=0, step=1, limit=4
    $region2: #{tpu_custom_call.1} parent=1 // loop_pre_header
      _
    $region3: #{tpu_custom_call.1} parent=1 // loop_header
      %s15 = sphi 0, %s19
      %p16 = scmp.ge.s32.totalorder %s15, 4
      %s22 = sphi 0, %s34
      %s23 = sphi 0, %s30
      %s24 = sphi 0, %s22
      %s25 = sphi 0, %s23
      %s26 = sphi 0, %s24
      %s27 = sphi 0, %s25
      %s35 = sphi 0, %s35
      %s37 = sphi 0, %s35
      %s38 = sphi 0, %s37
      %s52 = sphi 0, %s38
      %s56 = sphi 0, %s56
      %s58 = sphi 0, %s56
      %s59 = sphi 0, %s58
      %s73 = sphi 0, %s59
      %s77 = sphi 0, %s77
      %s79 = sphi 0, %s77
      %s80 = sphi 0, %s79
      %s94 = sphi 0, %s80
      %s102 = sphi 0, %s104
      %s105 = sphi 0, %s102
      %s106 = sphi 0, %s105
      %s122 = sphi 0, %s106
      %s130 = sphi 0, %s132
      %s133 = sphi 0, %s130
      %s134 = sphi 0, %s133
      %s150 = sphi 0, %s134
      %s158 = sphi 0, %s160
      %s161 = sphi 0, %s158
      %s162 = sphi 0, %s161
      %s178 = sphi 0, %s162
    $region4: #{tpu_custom_call.1} parent=1 // loop_header_branch
      %18 = sbr.rel (%p16) target = $region8
    $region5: #{tpu_custom_call.1} parent=1 // loop_body
      %s20 = ssub.s32 %s15, 1
      %s21 = ssub.s32 %s15, 2
      %s28 = sadd.s32 1, %s23
      %p29 = scmp.ge.s32.totalorder %s28, 1
      %s30 = scalar_select %p29, 0, %s28
      %s31 = sadd.s32 1, %s22
      %s32 = scalar_select %p29, %s31, %s22
      %p33 = scmp.ge.s32.totalorder %s32, 2
      %s34 = scalar_select %p33, 0, %s32
      %s36 = sadd.s32 %s35, 1
      %p39 = scmp.eq.s32.totalorder %s15, 1
      %p40 = scmp.ne.s32.totalorder %s35, %s37
      %p41 = scmp.eq.s32.totalorder %s15, 0
      %p42 = por %p40, %p41
      %p43 = scmp.ne.s32.totalorder %s35, %s37
      %p44 = scmp.eq.s32.totalorder %s20, 1
      %p45 = por %p43, %p44
      %p46 = scmp.ne.s32.totalorder %s37, %s38
      %p47 = scmp.eq.s32.totalorder %s20, 0
      %p48 = por %p46, %p47
      %p49 = scmp.ne.s32.totalorder %s37, %s38
      %p50 = scmp.eq.s32.totalorder %s21, 1
      %p51 = por %p49, %p50
      %p53 = scmp.ne.s32.totalorder %s38, %s52
      %p54 = scmp.eq.s32.totalorder %s21, 0
      %p55 = por %p53, %p54
      %s57 = sadd.s32 %s56, 1
      %p60 = scmp.eq.s32.totalorder %s15, 1
      %p61 = scmp.ne.s32.totalorder %s56, %s58
      %p62 = scmp.eq.s32.totalorder %s15, 0
      %p63 = por %p61, %p62
      %p64 = scmp.ne.s32.totalorder %s56, %s58
      %p65 = scmp.eq.s32.totalorder %s20, 1
      %p66 = por %p64, %p65
      %p67 = scmp.ne.s32.totalorder %s58, %s59
      %p68 = scmp.eq.s32.totalorder %s20, 0
      %p69 = por %p67, %p68
      %p70 = scmp.ne.s32.totalorder %s58, %s59
      %p71 = scmp.eq.s32.totalorder %s21, 1
      %p72 = por %p70, %p71
      %p74 = scmp.ne.s32.totalorder %s59, %s73
      %p75 = scmp.eq.s32.totalorder %s21, 0
      %p76 = por %p74, %p75
      %s78 = sadd.s32 %s77, 1
      %p81 = scmp.eq.s32.totalorder %s15, 1
      %p82 = scmp.ne.s32.totalorder %s77, %s79
      %p83 = scmp.eq.s32.totalorder %s15, 0
      %p84 = por %p82, %p83
      %p85 = scmp.ne.s32.totalorder %s77, %s79
      %p86 = scmp.eq.s32.totalorder %s20, 1
      %p87 = por %p85, %p86
      %p88 = scmp.ne.s32.totalorder %s79, %s80
      %p89 = scmp.eq.s32.totalorder %s20, 0
      %p90 = por %p88, %p89
      %p91 = scmp.ne.s32.totalorder %s79, %s80
      %p92 = scmp.eq.s32.totalorder %s21, 1
      %p93 = por %p91, %p92
      %p95 = scmp.ne.s32.totalorder %s80, %s94
      %p96 = scmp.eq.s32.totalorder %s21, 0
      %p97 = por %p95, %p96
      %s98 = ssub.s32 %s22, %s34
      %s99 = ssub.s32 %s23, %s30
      %s100 = sor.u32 %s98, %s99
      %p101 = scmp.eq.s32.totalorder %s100, 0
      %s103 = sadd.s32 %s102, 1
      %s104 = scalar_select %p101, %s102, %s103
      %p107 = pneg %p101
      %p108 = scmp.eq.s32.totalorder %s15, 1
      %p109 = por %p107, %p108
      %p110 = scmp.ne.s32.totalorder %s102, %s105
      %p111 = scmp.eq.s32.totalorder %s15, 0
      %p112 = por %p110, %p111
      %p113 = scmp.ne.s32.totalorder %s102, %s105
      %p114 = scmp.eq.s32.totalorder %s20, 1
      %p115 = por %p113, %p114
      %p116 = scmp.ne.s32.totalorder %s105, %s106
      %p117 = scmp.eq.s32.totalorder %s20, 0
      %p118 = por %p116, %p117
      %p119 = scmp.ne.s32.totalorder %s105, %s106
      %p120 = scmp.eq.s32.totalorder %s21, 1
      %p121 = por %p119, %p120
      %p123 = scmp.ne.s32.totalorder %s106, %s122
      %p124 = scmp.eq.s32.totalorder %s21, 0
      %p125 = por %p123, %p124
      %s126 = ssub.s32 %s22, %s34
      %s127 = ssub.s32 %s23, %s30
      %s128 = sor.u32 %s126, %s127
      %p129 = scmp.eq.s32.totalorder %s128, 0
      %s131 = sadd.s32 %s130, 1
      %s132 = scalar_select %p129, %s130, %s131
      %p135 = pneg %p129
      %p136 = scmp.eq.s32.totalorder %s15, 1
      %p137 = por %p135, %p136
      %p138 = scmp.ne.s32.totalorder %s130, %s133
      %p139 = scmp.eq.s32.totalorder %s15, 0
      %p140 = por %p138, %p139
      %p141 = scmp.ne.s32.totalorder %s130, %s133
      %p142 = scmp.eq.s32.totalorder %s20, 1
      %p143 = por %p141, %p142
      %p144 = scmp.ne.s32.totalorder %s133, %s134
      %p145 = scmp.eq.s32.totalorder %s20, 0
      %p146 = por %p144, %p145
      %p147 = scmp.ne.s32.totalorder %s133, %s134
      %p148 = scmp.eq.s32.totalorder %s21, 1
      %p149 = por %p147, %p148
      %p151 = scmp.ne.s32.totalorder %s134, %s150
      %p152 = scmp.eq.s32.totalorder %s21, 0
      %p153 = por %p151, %p152
      %s154 = ssub.s32 %s22, %s34
      %s155 = ssub.s32 %s23, %s30
      %s156 = sor.u32 %s154, %s155
      %p157 = scmp.eq.s32.totalorder %s156, 0
      %s159 = sadd.s32 %s158, 1
      %s160 = scalar_select %p157, %s158, %s159
      %p163 = pneg %p157
      %p164 = scmp.eq.s32.totalorder %s15, 1
      %p165 = por %p163, %p164
      %p166 = scmp.ne.s32.totalorder %s158, %s161
      %p167 = scmp.eq.s32.totalorder %s15, 0
      %p168 = por %p166, %p167
      %p169 = scmp.ne.s32.totalorder %s158, %s161
      %p170 = scmp.eq.s32.totalorder %s20, 1
      %p171 = por %p169, %p170
      %p172 = scmp.ne.s32.totalorder %s161, %s162
      %p173 = scmp.eq.s32.totalorder %s20, 0
      %p174 = por %p172, %p173
      %p175 = scmp.ne.s32.totalorder %s161, %s162
      %p176 = scmp.eq.s32.totalorder %s21, 1
      %p177 = por %p175, %p176
      %p179 = scmp.ne.s32.totalorder %s162, %s178
      %p180 = scmp.eq.s32.totalorder %s21, 0
      %p181 = por %p179, %p180
      %p182 = scmp.le.s32.totalorder 1, %s15
      %p183 = scmp.lt.s32.totalorder %s15, 3
      %p184 = pnand %p182, %p183
      %p185 = pneg %p184
      // Predicated region
      $region9: #{tpu_custom_call.1} parent=5 // pred_check
        _
      $region10: #{tpu_custom_call.1} parent=5 // pred_check_branch
        %187 = sbr.rel (%p184) target = $region12
      $region11: #{tpu_custom_call.1} parent=5 // pred_region
        %s188 = ssub.s32 %s15, 1
        // Predicated region
        $region13: #{tpu_custom_call.1} parent=11 // pred_check
          %p189 = pneg %p48
        $region14: #{tpu_custom_call.1} parent=11 // pred_check_branch
          %191 = sbr.rel (%p189) target = $region16
        $region15: #{tpu_custom_call.1} parent=11 // pred_region
          %193 = vsyncadd [#allocation4], 0
          %s195 = sshll.u32 %s0, 4
          %s196 = int_to_ptr.vmem [resolvable:$true] %s195
          %198 = dma.vmem_to_smem %s196, 16, [#allocation2], [#allocation4]
        $region16: #{tpu_custom_call.1} parent=11 // pred_fallthru
          _
        // Predicated region
        $region17: #{tpu_custom_call.1} parent=11 // pred_check
          %p199 = pneg %p69
        $region18: #{tpu_custom_call.1} parent=11 // pred_check_branch
          %201 = sbr.rel (%p199) target = $region20
        $region19: #{tpu_custom_call.1} parent=11 // pred_region
          _
        $region20: #{tpu_custom_call.1} parent=11 // pred_fallthru
          _
        // Predicated region
        $region21: #{tpu_custom_call.1} parent=11 // pred_check
          %p202 = pneg %p90
        $region22: #{tpu_custom_call.1} parent=11 // pred_check_branch
          %204 = sbr.rel (%p202) target = $region24
        $region23: #{tpu_custom_call.1} parent=11 // pred_region
          _
        $region24: #{tpu_custom_call.1} parent=11 // pred_fallthru
          _
      $region12: #{tpu_custom_call.1} parent=5 // pred_fallthru
        _
      %p205 = scmp.lt.s32.totalorder %s15, 2
      // Predicated region
      $region25: #{tpu_custom_call.1} parent=5 // pred_check
        %p206 = pneg %p205
      $region26: #{tpu_custom_call.1} parent=5 // pred_check_branch
        %208 = sbr.rel (%p206) target = $region28
      $region27: #{tpu_custom_call.1} parent=5 // pred_region
        // Predicated region
        $region29: #{tpu_custom_call.1} parent=27 // pred_check
          %p209 = pneg %p112
        $region30: #{tpu_custom_call.1} parent=27 // pred_check_branch
          %211 = sbr.rel (%p209) target = $region32
        $region31: #{tpu_custom_call.1} parent=27 // pred_region
          %s212 = smul.u32 4, %s23
          %p213 = scmp.lt.s32.totalorder %s22, 1
          %s214 = scalar_select %p213, %s22, 1
          %p215 = scmp.lt.s32.totalorder %s212, 3
          %s216 = scalar_select %p215, %s212, 3
          %s217 = smul.addr %s216, 2
          %s218 = smul.addr %s214, 8
          %s219 = sadd.s32 %s217, %s218
          %s220 = smul.addr %s219, 8
          %s221 = scalar_lea.vmem %s3, %s220
          %s222 = smul.u32 4, %s23
        $region32: #{tpu_custom_call.1} parent=27 // pred_fallthru
          _
        // Predicated region
        $region33: #{tpu_custom_call.1} parent=27 // pred_check
          %p223 = pneg %p140
        $region34: #{tpu_custom_call.1} parent=27 // pred_check_branch
          %225 = sbr.rel (%p223) target = $region36
        $region35: #{tpu_custom_call.1} parent=27 // pred_region
          %s226 = sand.u32 %s130, 1
          %s227 = scalar_lea.sflag [#allocation3], %s226
          %s228 = sand.u32 %s130, 1
          %s229 = smul.addr %s228, 64
          %s230 = scalar_lea.vmem [#allocation5], %s229
          %s231 = smul.u32 4, %s23
          %233 = vsyncadd %s227, 0
          %s234 = smul.addr %s231, 2
          %s235 = smul.addr %s22, 8
          %s236 = sadd.s32 %s234, %s235
          %s237 = smul.addr %s236, 8
          %s238 = scalar_lea.hbm %s4, %s237
          %s239 = sshll.u32 %s238, 4
          %s240 = int_to_ptr.hbm [resolvable:$true] %s239
          %s241 = sshll.u32 %s230, 4
          %s242 = int_to_ptr.vmem [resolvable:$true] %s241
          %247 = dma.hbm_to_vmem [thread:$0]  %s240, 1024, %s242, %s227, 128, 128, 8
        $region36: #{tpu_custom_call.1} parent=27 // pred_fallthru
          _
      $region28: #{tpu_custom_call.1} parent=5 // pred_fallthru
        _
      %p248 = scmp.le.s32.totalorder 1, %s15
      %p249 = scmp.lt.s32.totalorder %s15, 3
      %p250 = pnand %p248, %p249
      %p251 = pneg %p250
      // Predicated region
      $region37: #{tpu_custom_call.1} parent=5 // pred_check
        _
      $region38: #{tpu_custom_call.1} parent=5 // pred_check_branch
        %253 = sbr.rel (%p250) target = $region40
      $region39: #{tpu_custom_call.1} parent=5 // pred_region
        %s254 = ssub.s32 %s15, 1
        // Predicated region
        $region41: #{tpu_custom_call.1} parent=39 // pred_check
          %p255 = pneg %p48
        $region42: #{tpu_custom_call.1} parent=39 // pred_check_branch
          %257 = sbr.rel (%p255) target = $region44
        $region43: #{tpu_custom_call.1} parent=39 // pred_region
          %259 = dma.done [#allocation4], 16
        $region44: #{tpu_custom_call.1} parent=39 // pred_fallthru
          _
        %s260 = sand.u32 %s133, 1
        %s261 = scalar_lea.sflag [#allocation3], %s260
        %s262 = sand.u32 %s133, 1
        %s263 = smul.addr %s262, 64
        %s264 = scalar_lea.vmem [#allocation5], %s263
        // Predicated region
        $region45: #{tpu_custom_call.1} parent=39 // pred_check
          %p265 = pneg %p146
        $region46: #{tpu_custom_call.1} parent=39 // pred_check_branch
          %267 = sbr.rel (%p265) target = $region48
        $region47: #{tpu_custom_call.1} parent=39 // pred_region
          %269 = dma.done %s261, 1024
        $region48: #{tpu_custom_call.1} parent=39 // pred_fallthru
          _
        %270 = sfence
        %p271 = pneg %p48
        %p272 = pneg %p45
        %p273 = pneg %p69
        %p274 = pneg %p66
        %p275 = pneg %p90
        %p276 = pneg %p87
        %s277 = smul.u32 4, %s25
        %p278 = scmp.lt.s32.totalorder %s24, 1
        %s279 = scalar_select %p278, %s24, 1
        %p280 = scmp.lt.s32.totalorder %s277, 3
        %s281 = scalar_select %p280, %s277, 3
        %s282 = smul.addr %s281, 2
        %s283 = smul.addr %s279, 8
        %s284 = sadd.s32 %s282, %s283
        %s285 = smul.addr %s284, 8
        %s286 = scalar_lea.vmem %s3, %s285
        %p287 = pneg %p118
        %p288 = pneg %p115
        %s289 = sand.u32 %s133, 1
        %s290 = scalar_lea.sflag [#allocation3], %s289
        %s291 = sand.u32 %s133, 1
        %s292 = smul.addr %s291, 64
        %s293 = scalar_lea.vmem [#allocation5], %s292
        %p294 = pneg %p146
        %p295 = pneg %p143
        %p296 = pneg %p174
        %p297 = pneg %p171
        %p298 = scmp.lt.s32.totalorder %s24, 1
        %s299 = scalar_select %p298, %s24, 1
        %p300 = scmp.lt.s32.totalorder %s25, 0
        %s301 = scalar_select %p300, %s25, 0
        %s302 = sadd.s32 %s301, %s299
        %s303 = scalar_lea.vmem %s5, %s302
        %s304 = smul.u32 4, %s25
        %p305 = scmp.lt.s32.totalorder %s24, 1
        %s306 = scalar_select %p305, %s24, 1
        %p307 = scmp.lt.s32.totalorder %s304, 3
        %s308 = scalar_select %p307, %s304, 3
        %s309 = smul.addr %s308, 2
        %s310 = smul.addr %s306, 8
        %s311 = sadd.s32 %s309, %s310
        %s312 = smul.addr %s311, 8
        %s313 = scalar_lea.vmem %s3, %s312
        %s314 = smul.u32 4, %s25
        %s315 = smul.u32 4, %s25
        %p316 = scmp.lt.s32.totalorder %s24, 1
        %s317 = scalar_select %p316, %s24, 1
        %p318 = scmp.lt.s32.totalorder %s25, 0
        %s319 = scalar_select %p318, %s25, 0
        %s320 = sadd.s32 %s319, %s317
        %s321 = scalar_lea.vmem %s5, %s320
        %v322 = vld [vmem:[%s313] sm:$0xff]
        %v323 = vld [vmem:[%s313 + $0x8] sm:$0xff]
        %v324 = vld [vmem:[%s313 + $0x10] sm:$0xff]
        %v325 = vld [vmem:[%s313 + $0x18] sm:$0xff]
        %v326 = vld [vmem:[%s313 + $0x20] sm:$0xff]
        %v327 = vld [vmem:[%s313 + $0x28] sm:$0xff]
        %v328 = vld [vmem:[%s313 + $0x30] sm:$0xff]
        %v329 = vld [vmem:[%s313 + $0x38] sm:$0xff]
        %v330 = vld [vmem:[%s264] sm:$0xff]
        %v331 = vld [vmem:[%s264 + $0x8] sm:$0xff]
        %v332 = vld [vmem:[%s264 + $0x10] sm:$0xff]
        %v333 = vld [vmem:[%s264 + $0x18] sm:$0xff]
        %v334 = vld [vmem:[%s264 + $0x20] sm:$0xff]
        %v335 = vld [vmem:[%s264 + $0x28] sm:$0xff]
        %v336 = vld [vmem:[%s264 + $0x30] sm:$0xff]
        %v337 = vld [vmem:[%s264 + $0x38] sm:$0xff]
        %v338 = vld [vmem:[%s1] sm:$0x3f]
        %v339 = vld [vmem:[%s1 + $0x8] sm:$0x3f]
        %v340 = vld [vmem:[%s1 + $0x10] sm:$0x3f]
        %v341 = vld [vmem:[%s1 + $0x18] sm:$0x3f]
        %v342 = vld [vmem:[%s2] sm:$0xff]
        %v343 = vld [vmem:[%s2 + $0x8] sm:$0xff]
        %v344 = vld [vmem:[%s2 + $0x10] sm:$0xff]
        %v345 = vld [vmem:[%s2 + $0x18] sm:$0xff]
        %v346 = vld [vmem:[%s2 + $0x20] sm:$0xff]
        %v347 = vld [vmem:[%s2 + $0x28] sm:$0xff]
        %v348 = vld [vmem:[%s2 + $0x30] sm:$0xff]
        %v349 = vld [vmem:[%s2 + $0x38] sm:$0xff]
        %vm350 = vcmask 130048
        %v352 = vsel %vm350, %v338, 0
        %354 = vmatpush.msra.mxu0 0.0
        %355 = vmatpush.msra.mxu0 0.0
        %356 = vmatpush.msra.mxu0 0.0
        %357 = vmatpush.msra.mxu0 0.0
        %358 = vmatpush.msra.mxu0 0.0
        %359 = vmatpush.msra.mxu0 0.0
        %360 = vmatpush.msra.mxu0 0.0
        %361 = vmatpush.msra.mxu0 0.0
        %362 = vmatpush.msra.mxu0 0.0
        %363 = vmatpush.msra.mxu0 0.0
        %364 = vmatpush.msra.mxu0 0.0
        %365 = vmatpush.msra.mxu0 0.0
        %366 = vmatpush.msra.mxu0 0.0
        %367 = vmatpush.msra.mxu0 0.0
        %v368 = vand.u32 %v323, 4294901760
        %369 = vmatpush.msra.mxu0 %v368
        %v370 = vand.u32 %v322, 4294901760
        %371 = vmatpush.msra.mxu0 %v370
        %v372 = vand.u32 %v352, 4294901760
        %v373 = vsub.f32 %v352, %v372
        %v374 = vand.u32 %v373, 4294901760
        %v375 = vsub.f32 %v373, %v374
        %v376 = vand.u32 %v375, 4294901760
        %377 = vmatmul.f32.gmra.mxu0 %v376
        %v378 = vpop.f32.mrf.mxu0
        %v379 = vadd.f32 0.0, %v378
        %380 = vdwg.mxu0
        %381 = vmatpush.msra.mxu0 0.0
        %382 = vmatpush.msra.mxu0 0.0
        %383 = vmatpush.msra.mxu0 0.0
        %384 = vmatpush.msra.mxu0 0.0
        %385 = vmatpush.msra.mxu0 0.0
        %386 = vmatpush.msra.mxu0 0.0
        %387 = vmatpush.msra.mxu0 0.0
        %388 = vmatpush.msra.mxu0 0.0
        %389 = vmatpush.msra.mxu0 0.0
        %390 = vmatpush.msra.mxu0 0.0
        %391 = vmatpush.msra.mxu0 0.0
        %392 = vmatpush.msra.mxu0 0.0
        %393 = vmatpush.msra.mxu0 0.0
        %394 = vmatpush.msra.mxu0 0.0
        %v395 = vand.u32 %v323, 4294901760
        %v396 = vsub.f32 %v323, %v395
        %v397 = vand.u32 %v396, 4294901760
        %v398 = vsub.f32 %v396, %v397
        %v399 = vand.u32 %v398, 4294901760
        %400 = vmatpush.msra.mxu0 %v399
        %v401 = vand.u32 %v322, 4294901760
        %v402 = vsub.f32 %v322, %v401
        %v403 = vand.u32 %v402, 4294901760
        %v404 = vsub.f32 %v402, %v403
        %v405 = vand.u32 %v404, 4294901760
        %406 = vmatpush.msra.mxu0 %v405
        %v407 = vand.u32 %v352, 4294901760
        %408 = vmatmul.f32.gmra.mxu0 %v407
        %v409 = vpop.f32.mrf.mxu0
        %v410 = vadd.f32 %v379, %v409
        %411 = vdwg.mxu0
        %412 = vmatpush.msra.mxu0 0.0
        %413 = vmatpush.msra.mxu0 0.0
        %414 = vmatpush.msra.mxu0 0.0
        %415 = vmatpush.msra.mxu0 0.0
        %416 = vmatpush.msra.mxu0 0.0
        %417 = vmatpush.msra.mxu0 0.0
        %418 = vmatpush.msra.mxu0 0.0
        %419 = vmatpush.msra.mxu0 0.0
        %420 = vmatpush.msra.mxu0 0.0
        %421 = vmatpush.msra.mxu0 0.0
        %422 = vmatpush.msra.mxu0 0.0
        %423 = vmatpush.msra.mxu0 0.0
        %424 = vmatpush.msra.mxu0 0.0
        %425 = vmatpush.msra.mxu0 0.0
        %v426 = vand.u32 %v323, 4294901760
        %v427 = vsub.f32 %v323, %v426
        %428 = vmatpush.msra.mxu0 %v427
        %v429 = vand.u32 %v322, 4294901760
        %v430 = vsub.f32 %v322, %v429
        %431 = vmatpush.msra.mxu0 %v430
        %v432 = vand.u32 %v352, 4294901760
        %v433 = vsub.f32 %v352, %v432
        %434 = vmatmul.f32.gmra.mxu0 %v433
        %v435 = vpop.f32.mrf.mxu0
        %v436 = vadd.f32 %v410, %v435
        %437 = vdwg.mxu0
        %438 = vmatpush.msra.mxu0 0.0
        %439 = vmatpush.msra.mxu0 0.0
        %440 = vmatpush.msra.mxu0 0.0
        %441 = vmatpush.msra.mxu0 0.0
        %442 = vmatpush.msra.mxu0 0.0
        %443 = vmatpush.msra.mxu0 0.0
        %444 = vmatpush.msra.mxu0 0.0
        %445 = vmatpush.msra.mxu0 0.0
        %446 = vmatpush.msra.mxu0 0.0
        %447 = vmatpush.msra.mxu0 0.0
        %448 = vmatpush.msra.mxu0 0.0
        %449 = vmatpush.msra.mxu0 0.0
        %450 = vmatpush.msra.mxu0 0.0
        %451 = vmatpush.msra.mxu0 0.0
        %v452 = vand.u32 %v323, 4294901760
        %453 = vmatpush.msra.mxu0 %v452
        %v454 = vand.u32 %v322, 4294901760
        %455 = vmatpush.msra.mxu0 %v454
        %v456 = vand.u32 %v352, 4294901760
        %v457 = vsub.f32 %v352, %v456
        %v458 = vand.u32 %v457, 4294901760
        %459 = vmatmul.f32.gmra.mxu0 %v458
        %v460 = vpop.f32.mrf.mxu0
        %v461 = vadd.f32 %v436, %v460
        %462 = vdwg.mxu0
        %463 = vmatpush.msra.mxu0 0.0
        %464 = vmatpush.msra.mxu0 0.0
        %465 = vmatpush.msra.mxu0 0.0
        %466 = vmatpush.msra.mxu0 0.0
        %467 = vmatpush.msra.mxu0 0.0
        %468 = vmatpush.msra.mxu0 0.0
        %469 = vmatpush.msra.mxu0 0.0
        %470 = vmatpush.msra.mxu0 0.0
        %471 = vmatpush.msra.mxu0 0.0
        %472 = vmatpush.msra.mxu0 0.0
        %473 = vmatpush.msra.mxu0 0.0
        %474 = vmatpush.msra.mxu0 0.0
        %475 = vmatpush.msra.mxu0 0.0
        %476 = vmatpush.msra.mxu0 0.0
        %v477 = vand.u32 %v323, 4294901760
        %v478 = vsub.f32 %v323, %v477
        %v479 = vand.u32 %v478, 4294901760
        %480 = vmatpush.msra.mxu0 %v479
        %v481 = vand.u32 %v322, 4294901760
        %v482 = vsub.f32 %v322, %v481
        %v483 = vand.u32 %v482, 4294901760
        %484 = vmatpush.msra.mxu0 %v483
        %v485 = vand.u32 %v352, 4294901760
        %486 = vmatmul.f32.gmra.mxu0 %v485
        %v487 = vpop.f32.mrf.mxu0
        %v488 = vadd.f32 %v461, %v487
        %489 = vdwg.mxu0
        %490 = vmatpush.msra.mxu0 0.0
        %491 = vmatpush.msra.mxu0 0.0
        %492 = vmatpush.msra.mxu0 0.0
        %493 = vmatpush.msra.mxu0 0.0
        %494 = vmatpush.msra.mxu0 0.0
        %495 = vmatpush.msra.mxu0 0.0
        %496 = vmatpush.msra.mxu0 0.0
        %497 = vmatpush.msra.mxu0 0.0
        %498 = vmatpush.msra.mxu0 0.0
        %499 = vmatpush.msra.mxu0 0.0
        %500 = vmatpush.msra.mxu0 0.0
        %501 = vmatpush.msra.mxu0 0.0
        %502 = vmatpush.msra.mxu0 0.0
        %503 = vmatpush.msra.mxu0 0.0
        %v504 = vand.u32 %v323, 4294901760
        %505 = vmatpush.msra.mxu0 %v504
        %v506 = vand.u32 %v322, 4294901760
        %507 = vmatpush.msra.mxu0 %v506
        %v508 = vand.u32 %v352, 4294901760
        %509 = vmatmul.f32.gmra.mxu0 %v508
        %v510 = vpop.f32.mrf.mxu0
        %v511 = vadd.f32 %v488, %v510
        %512 = vdwg.mxu0
        %v514 = vsel %vm350, %v339, 0
        %516 = vmatpush.msra.mxu0 0.0
        %517 = vmatpush.msra.mxu0 0.0
        %518 = vmatpush.msra.mxu0 0.0
        %519 = vmatpush.msra.mxu0 0.0
        %520 = vmatpush.msra.mxu0 0.0
        %521 = vmatpush.msra.mxu0 0.0
        %522 = vmatpush.msra.mxu0 0.0
        %523 = vmatpush.msra.mxu0 0.0
        %524 = vmatpush.msra.mxu0 0.0
        %525 = vmatpush.msra.mxu0 0.0
        %526 = vmatpush.msra.mxu0 0.0
        %527 = vmatpush.msra.mxu0 0.0
        %528 = vmatpush.msra.mxu0 0.0
        %529 = vmatpush.msra.mxu0 0.0
        %v530 = vand.u32 %v325, 4294901760
        %531 = vmatpush.msra.mxu0 %v530
        %v532 = vand.u32 %v324, 4294901760
        %533 = vmatpush.msra.mxu0 %v532
        %v534 = vand.u32 %v514, 4294901760
        %v535 = vsub.f32 %v514, %v534
        %v536 = vand.u32 %v535, 4294901760
        %v537 = vsub.f32 %v535, %v536
        %v538 = vand.u32 %v537, 4294901760
        %539 = vmatmul.f32.gmra.mxu0 %v538
        %v540 = vpop.f32.mrf.mxu0
        %v541 = vadd.f32 0.0, %v540
        %542 = vdwg.mxu0
        %543 = vmatpush.msra.mxu0 0.0
        %544 = vmatpush.msra.mxu0 0.0
        %545 = vmatpush.msra.mxu0 0.0
        %546 = vmatpush.msra.mxu0 0.0
        %547 = vmatpush.msra.mxu0 0.0
        %548 = vmatpush.msra.mxu0 0.0
        %549 = vmatpush.msra.mxu0 0.0
        %550 = vmatpush.msra.mxu0 0.0
        %551 = vmatpush.msra.mxu0 0.0
        %552 = vmatpush.msra.mxu0 0.0
        %553 = vmatpush.msra.mxu0 0.0
        %554 = vmatpush.msra.mxu0 0.0
        %555 = vmatpush.msra.mxu0 0.0
        %556 = vmatpush.msra.mxu0 0.0
        %v557 = vand.u32 %v325, 4294901760
        %v558 = vsub.f32 %v325, %v557
        %v559 = vand.u32 %v558, 4294901760
        %v560 = vsub.f32 %v558, %v559
        %v561 = vand.u32 %v560, 4294901760
        %562 = vmatpush.msra.mxu0 %v561
        %v563 = vand.u32 %v324, 4294901760
        %v564 = vsub.f32 %v324, %v563
        %v565 = vand.u32 %v564, 4294901760
        %v566 = vsub.f32 %v564, %v565
        %v567 = vand.u32 %v566, 4294901760
        %568 = vmatpush.msra.mxu0 %v567
        %v569 = vand.u32 %v514, 4294901760
        %570 = vmatmul.f32.gmra.mxu0 %v569
        %v571 = vpop.f32.mrf.mxu0
        %v572 = vadd.f32 %v541, %v571
        %573 = vdwg.mxu0
        %574 = vmatpush.msra.mxu0 0.0
        %575 = vmatpush.msra.mxu0 0.0
        %576 = vmatpush.msra.mxu0 0.0
        %577 = vmatpush.msra.mxu0 0.0
        %578 = vmatpush.msra.mxu0 0.0
        %579 = vmatpush.msra.mxu0 0.0
        %580 = vmatpush.msra.mxu0 0.0
        %581 = vmatpush.msra.mxu0 0.0
        %582 = vmatpush.msra.mxu0 0.0
        %583 = vmatpush.msra.mxu0 0.0
        %584 = vmatpush.msra.mxu0 0.0
        %585 = vmatpush.msra.mxu0 0.0
        %586 = vmatpush.msra.mxu0 0.0
        %587 = vmatpush.msra.mxu0 0.0
        %v588 = vand.u32 %v325, 4294901760
        %v589 = vsub.f32 %v325, %v588
        %590 = vmatpush.msra.mxu0 %v589
        %v591 = vand.u32 %v324, 4294901760
        %v592 = vsub.f32 %v324, %v591
        %593 = vmatpush.msra.mxu0 %v592
        %v594 = vand.u32 %v514, 4294901760
        %v595 = vsub.f32 %v514, %v594
        %596 = vmatmul.f32.gmra.mxu0 %v595
        %v597 = vpop.f32.mrf.mxu0
        %v598 = vadd.f32 %v572, %v597
        %599 = vdwg.mxu0
        %600 = vmatpush.msra.mxu0 0.0
        %601 = vmatpush.msra.mxu0 0.0
        %602 = vmatpush.msra.mxu0 0.0
        %603 = vmatpush.msra.mxu0 0.0
        %604 = vmatpush.msra.mxu0 0.0
        %605 = vmatpush.msra.mxu0 0.0
        %606 = vmatpush.msra.mxu0 0.0
        %607 = vmatpush.msra.mxu0 0.0
        %608 = vmatpush.msra.mxu0 0.0
        %609 = vmatpush.msra.mxu0 0.0
        %610 = vmatpush.msra.mxu0 0.0
        %611 = vmatpush.msra.mxu0 0.0
        %612 = vmatpush.msra.mxu0 0.0
        %613 = vmatpush.msra.mxu0 0.0
        %v614 = vand.u32 %v325, 4294901760
        %615 = vmatpush.msra.mxu0 %v614
        %v616 = vand.u32 %v324, 4294901760
        %617 = vmatpush.msra.mxu0 %v616
        %v618 = vand.u32 %v514, 4294901760
        %v619 = vsub.f32 %v514, %v618
        %v620 = vand.u32 %v619, 4294901760
        %621 = vmatmul.f32.gmra.mxu0 %v620
        %v622 = vpop.f32.mrf.mxu0
        %v623 = vadd.f32 %v598, %v622
        %624 = vdwg.mxu0
        %625 = vmatpush.msra.mxu0 0.0
        %626 = vmatpush.msra.mxu0 0.0
        %627 = vmatpush.msra.mxu0 0.0
        %628 = vmatpush.msra.mxu0 0.0
        %629 = vmatpush.msra.mxu0 0.0
        %630 = vmatpush.msra.mxu0 0.0
        %631 = vmatpush.msra.mxu0 0.0
        %632 = vmatpush.msra.mxu0 0.0
        %633 = vmatpush.msra.mxu0 0.0
        %634 = vmatpush.msra.mxu0 0.0
        %635 = vmatpush.msra.mxu0 0.0
        %636 = vmatpush.msra.mxu0 0.0
        %637 = vmatpush.msra.mxu0 0.0
        %638 = vmatpush.msra.mxu0 0.0
        %v639 = vand.u32 %v325, 4294901760
        %v640 = vsub.f32 %v325, %v639
        %v641 = vand.u32 %v640, 4294901760
        %642 = vmatpush.msra.mxu0 %v641
        %v643 = vand.u32 %v324, 4294901760
        %v644 = vsub.f32 %v324, %v643
        %v645 = vand.u32 %v644, 4294901760
        %646 = vmatpush.msra.mxu0 %v645
        %v647 = vand.u32 %v514, 4294901760
        %648 = vmatmul.f32.gmra.mxu0 %v647
        %v649 = vpop.f32.mrf.mxu0
        %v650 = vadd.f32 %v623, %v649
        %651 = vdwg.mxu0
        %652 = vmatpush.msra.mxu0 0.0
        %653 = vmatpush.msra.mxu0 0.0
        %654 = vmatpush.msra.mxu0 0.0
        %655 = vmatpush.msra.mxu0 0.0
        %656 = vmatpush.msra.mxu0 0.0
        %657 = vmatpush.msra.mxu0 0.0
        %658 = vmatpush.msra.mxu0 0.0
        %659 = vmatpush.msra.mxu0 0.0
        %660 = vmatpush.msra.mxu0 0.0
        %661 = vmatpush.msra.mxu0 0.0
        %662 = vmatpush.msra.mxu0 0.0
        %663 = vmatpush.msra.mxu0 0.0
        %664 = vmatpush.msra.mxu0 0.0
        %665 = vmatpush.msra.mxu0 0.0
        %v666 = vand.u32 %v325, 4294901760
        %667 = vmatpush.msra.mxu0 %v666
        %v668 = vand.u32 %v324, 4294901760
        %669 = vmatpush.msra.mxu0 %v668
        %v670 = vand.u32 %v514, 4294901760
        %671 = vmatmul.f32.gmra.mxu0 %v670
        %v672 = vpop.f32.mrf.mxu0
        %v673 = vadd.f32 %v650, %v672
        %674 = vdwg.mxu0
        %v676 = vsel %vm350, %v340, 0
        %678 = vmatpush.msra.mxu0 0.0
        %679 = vmatpush.msra.mxu0 0.0
        %680 = vmatpush.msra.mxu0 0.0
        %681 = vmatpush.msra.mxu0 0.0
        %682 = vmatpush.msra.mxu0 0.0
        %683 = vmatpush.msra.mxu0 0.0
        %684 = vmatpush.msra.mxu0 0.0
        %685 = vmatpush.msra.mxu0 0.0
        %686 = vmatpush.msra.mxu0 0.0
        %687 = vmatpush.msra.mxu0 0.0
        %688 = vmatpush.msra.mxu0 0.0
        %689 = vmatpush.msra.mxu0 0.0
        %690 = vmatpush.msra.mxu0 0.0
        %691 = vmatpush.msra.mxu0 0.0
        %v692 = vand.u32 %v327, 4294901760
        %693 = vmatpush.msra.mxu0 %v692
        %v694 = vand.u32 %v326, 4294901760
        %695 = vmatpush.msra.mxu0 %v694
        %v696 = vand.u32 %v676, 4294901760
        %v697 = vsub.f32 %v676, %v696
        %v698 = vand.u32 %v697, 4294901760
        %v699 = vsub.f32 %v697, %v698
        %v700 = vand.u32 %v699, 4294901760
        %701 = vmatmul.f32.gmra.mxu0 %v700
        %v702 = vpop.f32.mrf.mxu0
        %v703 = vadd.f32 0.0, %v702
        %704 = vdwg.mxu0
        %705 = vmatpush.msra.mxu0 0.0
        %706 = vmatpush.msra.mxu0 0.0
        %707 = vmatpush.msra.mxu0 0.0
        %708 = vmatpush.msra.mxu0 0.0
        %709 = vmatpush.msra.mxu0 0.0
        %710 = vmatpush.msra.mxu0 0.0
        %711 = vmatpush.msra.mxu0 0.0
        %712 = vmatpush.msra.mxu0 0.0
        %713 = vmatpush.msra.mxu0 0.0
        %714 = vmatpush.msra.mxu0 0.0
        %715 = vmatpush.msra.mxu0 0.0
        %716 = vmatpush.msra.mxu0 0.0
        %717 = vmatpush.msra.mxu0 0.0
        %718 = vmatpush.msra.mxu0 0.0
        %v719 = vand.u32 %v327, 4294901760
        %v720 = vsub.f32 %v327, %v719
        %v721 = vand.u32 %v720, 4294901760
        %v722 = vsub.f32 %v720, %v721
        %v723 = vand.u32 %v722, 4294901760
        %724 = vmatpush.msra.mxu0 %v723
        %v725 = vand.u32 %v326, 4294901760
        %v726 = vsub.f32 %v326, %v725
        %v727 = vand.u32 %v726, 4294901760
        %v728 = vsub.f32 %v726, %v727
        %v729 = vand.u32 %v728, 4294901760
        %730 = vmatpush.msra.mxu0 %v729
        %v731 = vand.u32 %v676, 4294901760
        %732 = vmatmul.f32.gmra.mxu0 %v731
        %v733 = vpop.f32.mrf.mxu0
        %v734 = vadd.f32 %v703, %v733
        %735 = vdwg.mxu0
        %736 = vmatpush.msra.mxu0 0.0
        %737 = vmatpush.msra.mxu0 0.0
        %738 = vmatpush.msra.mxu0 0.0
        %739 = vmatpush.msra.mxu0 0.0
        %740 = vmatpush.msra.mxu0 0.0
        %741 = vmatpush.msra.mxu0 0.0
        %742 = vmatpush.msra.mxu0 0.0
        %743 = vmatpush.msra.mxu0 0.0
        %744 = vmatpush.msra.mxu0 0.0
        %745 = vmatpush.msra.mxu0 0.0
        %746 = vmatpush.msra.mxu0 0.0
        %747 = vmatpush.msra.mxu0 0.0
        %748 = vmatpush.msra.mxu0 0.0
        %749 = vmatpush.msra.mxu0 0.0
        %v750 = vand.u32 %v327, 4294901760
        %v751 = vsub.f32 %v327, %v750
        %752 = vmatpush.msra.mxu0 %v751
        %v753 = vand.u32 %v326, 4294901760
        %v754 = vsub.f32 %v326, %v753
        %755 = vmatpush.msra.mxu0 %v754
        %v756 = vand.u32 %v676, 4294901760
        %v757 = vsub.f32 %v676, %v756
        %758 = vmatmul.f32.gmra.mxu0 %v757
        %v759 = vpop.f32.mrf.mxu0
        %v760 = vadd.f32 %v734, %v759
        %761 = vdwg.mxu0
        %762 = vmatpush.msra.mxu0 0.0
        %763 = vmatpush.msra.mxu0 0.0
        %764 = vmatpush.msra.mxu0 0.0
        %765 = vmatpush.msra.mxu0 0.0
        %766 = vmatpush.msra.mxu0 0.0
        %767 = vmatpush.msra.mxu0 0.0
        %768 = vmatpush.msra.mxu0 0.0
        %769 = vmatpush.msra.mxu0 0.0
        %770 = vmatpush.msra.mxu0 0.0
        %771 = vmatpush.msra.mxu0 0.0
        %772 = vmatpush.msra.mxu0 0.0
        %773 = vmatpush.msra.mxu0 0.0
        %774 = vmatpush.msra.mxu0 0.0
        %775 = vmatpush.msra.mxu0 0.0
        %v776 = vand.u32 %v327, 4294901760
        %777 = vmatpush.msra.mxu0 %v776
        %v778 = vand.u32 %v326, 4294901760
        %779 = vmatpush.msra.mxu0 %v778
        %v780 = vand.u32 %v676, 4294901760
        %v781 = vsub.f32 %v676, %v780
        %v782 = vand.u32 %v781, 4294901760
        %783 = vmatmul.f32.gmra.mxu0 %v782
        %v784 = vpop.f32.mrf.mxu0
        %v785 = vadd.f32 %v760, %v784
        %786 = vdwg.mxu0
        %787 = vmatpush.msra.mxu0 0.0
        %788 = vmatpush.msra.mxu0 0.0
        %789 = vmatpush.msra.mxu0 0.0
        %790 = vmatpush.msra.mxu0 0.0
        %791 = vmatpush.msra.mxu0 0.0
        %792 = vmatpush.msra.mxu0 0.0
        %793 = vmatpush.msra.mxu0 0.0
        %794 = vmatpush.msra.mxu0 0.0
        %795 = vmatpush.msra.mxu0 0.0
        %796 = vmatpush.msra.mxu0 0.0
        %797 = vmatpush.msra.mxu0 0.0
        %798 = vmatpush.msra.mxu0 0.0
        %799 = vmatpush.msra.mxu0 0.0
        %800 = vmatpush.msra.mxu0 0.0
        %v801 = vand.u32 %v327, 4294901760
        %v802 = vsub.f32 %v327, %v801
        %v803 = vand.u32 %v802, 4294901760
        %804 = vmatpush.msra.mxu0 %v803
        %v805 = vand.u32 %v326, 4294901760
        %v806 = vsub.f32 %v326, %v805
        %v807 = vand.u32 %v806, 4294901760
        %808 = vmatpush.msra.mxu0 %v807
        %v809 = vand.u32 %v676, 4294901760
        %810 = vmatmul.f32.gmra.mxu0 %v809
        %v811 = vpop.f32.mrf.mxu0
        %v812 = vadd.f32 %v785, %v811
        %813 = vdwg.mxu0
        %814 = vmatpush.msra.mxu0 0.0
        %815 = vmatpush.msra.mxu0 0.0
        %816 = vmatpush.msra.mxu0 0.0
        %817 = vmatpush.msra.mxu0 0.0
        %818 = vmatpush.msra.mxu0 0.0
        %819 = vmatpush.msra.mxu0 0.0
        %820 = vmatpush.msra.mxu0 0.0
        %821 = vmatpush.msra.mxu0 0.0
        %822 = vmatpush.msra.mxu0 0.0
        %823 = vmatpush.msra.mxu0 0.0
        %824 = vmatpush.msra.mxu0 0.0
        %825 = vmatpush.msra.mxu0 0.0
        %826 = vmatpush.msra.mxu0 0.0
        %827 = vmatpush.msra.mxu0 0.0
        %v828 = vand.u32 %v327, 4294901760
        %829 = vmatpush.msra.mxu0 %v828
        %v830 = vand.u32 %v326, 4294901760
        %831 = vmatpush.msra.mxu0 %v830
        %v832 = vand.u32 %v676, 4294901760
        %833 = vmatmul.f32.gmra.mxu0 %v832
        %v834 = vpop.f32.mrf.mxu0
        %v835 = vadd.f32 %v812, %v834
        %836 = vdwg.mxu0
        %v838 = vsel %vm350, %v341, 0
        %840 = vmatpush.msra.mxu0 0.0
        %841 = vmatpush.msra.mxu0 0.0
        %842 = vmatpush.msra.mxu0 0.0
        %843 = vmatpush.msra.mxu0 0.0
        %844 = vmatpush.msra.mxu0 0.0
        %845 = vmatpush.msra.mxu0 0.0
        %846 = vmatpush.msra.mxu0 0.0
        %847 = vmatpush.msra.mxu0 0.0
        %848 = vmatpush.msra.mxu0 0.0
        %849 = vmatpush.msra.mxu0 0.0
        %850 = vmatpush.msra.mxu0 0.0
        %851 = vmatpush.msra.mxu0 0.0
        %852 = vmatpush.msra.mxu0 0.0
        %853 = vmatpush.msra.mxu0 0.0
        %v854 = vand.u32 %v329, 4294901760
        %855 = vmatpush.msra.mxu0 %v854
        %v856 = vand.u32 %v328, 4294901760
        %857 = vmatpush.msra.mxu0 %v856
        %v858 = vand.u32 %v838, 4294901760
        %v859 = vsub.f32 %v838, %v858
        %v860 = vand.u32 %v859, 4294901760
        %v861 = vsub.f32 %v859, %v860
        %v862 = vand.u32 %v861, 4294901760
        %863 = vmatmul.f32.gmra.mxu0 %v862
        %v864 = vpop.f32.mrf.mxu0
        %v865 = vadd.f32 0.0, %v864
        %866 = vdwg.mxu0
        %867 = vmatpush.msra.mxu0 0.0
        %868 = vmatpush.msra.mxu0 0.0
        %869 = vmatpush.msra.mxu0 0.0
        %870 = vmatpush.msra.mxu0 0.0
        %871 = vmatpush.msra.mxu0 0.0
        %872 = vmatpush.msra.mxu0 0.0
        %873 = vmatpush.msra.mxu0 0.0
        %874 = vmatpush.msra.mxu0 0.0
        %875 = vmatpush.msra.mxu0 0.0
        %876 = vmatpush.msra.mxu0 0.0
        %877 = vmatpush.msra.mxu0 0.0
        %878 = vmatpush.msra.mxu0 0.0
        %879 = vmatpush.msra.mxu0 0.0
        %880 = vmatpush.msra.mxu0 0.0
        %v881 = vand.u32 %v329, 4294901760
        %v882 = vsub.f32 %v329, %v881
        %v883 = vand.u32 %v882, 4294901760
        %v884 = vsub.f32 %v882, %v883
        %v885 = vand.u32 %v884, 4294901760
        %886 = vmatpush.msra.mxu0 %v885
        %v887 = vand.u32 %v328, 4294901760
        %v888 = vsub.f32 %v328, %v887
        %v889 = vand.u32 %v888, 4294901760
        %v890 = vsub.f32 %v888, %v889
        %v891 = vand.u32 %v890, 4294901760
        %892 = vmatpush.msra.mxu0 %v891
        %v893 = vand.u32 %v838, 4294901760
        %894 = vmatmul.f32.gmra.mxu0 %v893
        %v895 = vpop.f32.mrf.mxu0
        %v896 = vadd.f32 %v865, %v895
        %897 = vdwg.mxu0
        %898 = vmatpush.msra.mxu0 0.0
        %899 = vmatpush.msra.mxu0 0.0
        %900 = vmatpush.msra.mxu0 0.0
        %901 = vmatpush.msra.mxu0 0.0
        %902 = vmatpush.msra.mxu0 0.0
        %903 = vmatpush.msra.mxu0 0.0
        %904 = vmatpush.msra.mxu0 0.0
        %905 = vmatpush.msra.mxu0 0.0
        %906 = vmatpush.msra.mxu0 0.0
        %907 = vmatpush.msra.mxu0 0.0
        %908 = vmatpush.msra.mxu0 0.0
        %909 = vmatpush.msra.mxu0 0.0
        %910 = vmatpush.msra.mxu0 0.0
        %911 = vmatpush.msra.mxu0 0.0
        %v912 = vand.u32 %v329, 4294901760
        %v913 = vsub.f32 %v329, %v912
        %914 = vmatpush.msra.mxu0 %v913
        %v915 = vand.u32 %v328, 4294901760
        %v916 = vsub.f32 %v328, %v915
        %917 = vmatpush.msra.mxu0 %v916
        %v918 = vand.u32 %v838, 4294901760
        %v919 = vsub.f32 %v838, %v918
        %920 = vmatmul.f32.gmra.mxu0 %v919
        %v921 = vpop.f32.mrf.mxu0
        %v922 = vadd.f32 %v896, %v921
        %923 = vdwg.mxu0
        %924 = vmatpush.msra.mxu0 0.0
        %925 = vmatpush.msra.mxu0 0.0
        %926 = vmatpush.msra.mxu0 0.0
        %927 = vmatpush.msra.mxu0 0.0
        %928 = vmatpush.msra.mxu0 0.0
        %929 = vmatpush.msra.mxu0 0.0
        %930 = vmatpush.msra.mxu0 0.0
        %931 = vmatpush.msra.mxu0 0.0
        %932 = vmatpush.msra.mxu0 0.0
        %933 = vmatpush.msra.mxu0 0.0
        %934 = vmatpush.msra.mxu0 0.0
        %935 = vmatpush.msra.mxu0 0.0
        %936 = vmatpush.msra.mxu0 0.0
        %937 = vmatpush.msra.mxu0 0.0
        %v938 = vand.u32 %v329, 4294901760
        %939 = vmatpush.msra.mxu0 %v938
        %v940 = vand.u32 %v328, 4294901760
        %941 = vmatpush.msra.mxu0 %v940
        %v942 = vand.u32 %v838, 4294901760
        %v943 = vsub.f32 %v838, %v942
        %v944 = vand.u32 %v943, 4294901760
        %945 = vmatmul.f32.gmra.mxu0 %v944
        %v946 = vpop.f32.mrf.mxu0
        %v947 = vadd.f32 %v922, %v946
        %948 = vdwg.mxu0
        %949 = vmatpush.msra.mxu0 0.0
        %950 = vmatpush.msra.mxu0 0.0
        %951 = vmatpush.msra.mxu0 0.0
        %952 = vmatpush.msra.mxu0 0.0
        %953 = vmatpush.msra.mxu0 0.0
        %954 = vmatpush.msra.mxu0 0.0
        %955 = vmatpush.msra.mxu0 0.0
        %956 = vmatpush.msra.mxu0 0.0
        %957 = vmatpush.msra.mxu0 0.0
        %958 = vmatpush.msra.mxu0 0.0
        %959 = vmatpush.msra.mxu0 0.0
        %960 = vmatpush.msra.mxu0 0.0
        %961 = vmatpush.msra.mxu0 0.0
        %962 = vmatpush.msra.mxu0 0.0
        %v963 = vand.u32 %v329, 4294901760
        %v964 = vsub.f32 %v329, %v963
        %v965 = vand.u32 %v964, 4294901760
        %966 = vmatpush.msra.mxu0 %v965
        %v967 = vand.u32 %v328, 4294901760
        %v968 = vsub.f32 %v328, %v967
        %v969 = vand.u32 %v968, 4294901760
        %970 = vmatpush.msra.mxu0 %v969
        %v971 = vand.u32 %v838, 4294901760
        %972 = vmatmul.f32.gmra.mxu0 %v971
        %v973 = vpop.f32.mrf.mxu0
        %v974 = vadd.f32 %v947, %v973
        %975 = vdwg.mxu0
        %976 = vmatpush.msra.mxu0 0.0
        %977 = vmatpush.msra.mxu0 0.0
        %978 = vmatpush.msra.mxu0 0.0
        %979 = vmatpush.msra.mxu0 0.0
        %980 = vmatpush.msra.mxu0 0.0
        %981 = vmatpush.msra.mxu0 0.0
        %982 = vmatpush.msra.mxu0 0.0
        %983 = vmatpush.msra.mxu0 0.0
        %984 = vmatpush.msra.mxu0 0.0
        %985 = vmatpush.msra.mxu0 0.0
        %986 = vmatpush.msra.mxu0 0.0
        %987 = vmatpush.msra.mxu0 0.0
        %988 = vmatpush.msra.mxu0 0.0
        %989 = vmatpush.msra.mxu0 0.0
        %v990 = vand.u32 %v329, 4294901760
        %991 = vmatpush.msra.mxu0 %v990
        %v992 = vand.u32 %v328, 4294901760
        %993 = vmatpush.msra.mxu0 %v992
        %v994 = vand.u32 %v838, 4294901760
        %995 = vmatmul.f32.gmra.mxu0 %v994
        %v996 = vpop.f32.mrf.mxu0
        %v997 = vadd.f32 %v974, %v996
        %998 = vdwg.mxu0
        %v1000 = vsel %vm350, %v511, 0
        %1002 = vmatpush.msra.mxu0 0.0
        %1003 = vmatpush.msra.mxu0 0.0
        %1004 = vmatpush.msra.mxu0 0.0
        %1005 = vmatpush.msra.mxu0 0.0
        %1006 = vmatpush.msra.mxu0 0.0
        %1007 = vmatpush.msra.mxu0 0.0
        %1008 = vmatpush.msra.mxu0 0.0
        %1009 = vmatpush.msra.mxu0 0.0
        %1010 = vmatpush.msra.mxu0 0.0
        %1011 = vmatpush.msra.mxu0 0.0
        %1012 = vmatpush.msra.mxu0 0.0
        %1013 = vmatpush.msra.mxu0 0.0
        %1014 = vmatpush.msra.mxu0 0.0
        %1015 = vmatpush.msra.mxu0 0.0
        %v1016 = vand.u32 %v343, 4294901760
        %1017 = vmatpush.msra.mxu0 %v1016
        %v1018 = vand.u32 %v342, 4294901760
        %1019 = vmatpush.msra.mxu0 %v1018
        %v1020 = vand.u32 %v1000, 4294901760
        %v1021 = vsub.f32 %v1000, %v1020
        %v1022 = vand.u32 %v1021, 4294901760
        %v1023 = vsub.f32 %v1021, %v1022
        %v1024 = vand.u32 %v1023, 4294901760
        %1025 = vmatmul.f32.gmra.mxu0 %v1024
        %v1026 = vpop.f32.mrf.mxu0
        %v1027 = vadd.f32 0.0, %v1026
        %1028 = vdwg.mxu0
        %1029 = vmatpush.msra.mxu0 0.0
        %1030 = vmatpush.msra.mxu0 0.0
        %1031 = vmatpush.msra.mxu0 0.0
        %1032 = vmatpush.msra.mxu0 0.0
        %1033 = vmatpush.msra.mxu0 0.0
        %1034 = vmatpush.msra.mxu0 0.0
        %1035 = vmatpush.msra.mxu0 0.0
        %1036 = vmatpush.msra.mxu0 0.0
        %1037 = vmatpush.msra.mxu0 0.0
        %1038 = vmatpush.msra.mxu0 0.0
        %1039 = vmatpush.msra.mxu0 0.0
        %1040 = vmatpush.msra.mxu0 0.0
        %1041 = vmatpush.msra.mxu0 0.0
        %1042 = vmatpush.msra.mxu0 0.0
        %v1043 = vand.u32 %v343, 4294901760
        %v1044 = vsub.f32 %v343, %v1043
        %v1045 = vand.u32 %v1044, 4294901760
        %v1046 = vsub.f32 %v1044, %v1045
        %v1047 = vand.u32 %v1046, 4294901760
        %1048 = vmatpush.msra.mxu0 %v1047
        %v1049 = vand.u32 %v342, 4294901760
        %v1050 = vsub.f32 %v342, %v1049
        %v1051 = vand.u32 %v1050, 4294901760
        %v1052 = vsub.f32 %v1050, %v1051
        %v1053 = vand.u32 %v1052, 4294901760
        %1054 = vmatpush.msra.mxu0 %v1053
        %v1055 = vand.u32 %v1000, 4294901760
        %1056 = vmatmul.f32.gmra.mxu0 %v1055
        %v1057 = vpop.f32.mrf.mxu0
        %v1058 = vadd.f32 %v1027, %v1057
        %1059 = vdwg.mxu0
        %1060 = vmatpush.msra.mxu0 0.0
        %1061 = vmatpush.msra.mxu0 0.0
        %1062 = vmatpush.msra.mxu0 0.0
        %1063 = vmatpush.msra.mxu0 0.0
        %1064 = vmatpush.msra.mxu0 0.0
        %1065 = vmatpush.msra.mxu0 0.0
        %1066 = vmatpush.msra.mxu0 0.0
        %1067 = vmatpush.msra.mxu0 0.0
        %1068 = vmatpush.msra.mxu0 0.0
        %1069 = vmatpush.msra.mxu0 0.0
        %1070 = vmatpush.msra.mxu0 0.0
        %1071 = vmatpush.msra.mxu0 0.0
        %1072 = vmatpush.msra.mxu0 0.0
        %1073 = vmatpush.msra.mxu0 0.0
        %v1074 = vand.u32 %v343, 4294901760
        %v1075 = vsub.f32 %v343, %v1074
        %1076 = vmatpush.msra.mxu0 %v1075
        %v1077 = vand.u32 %v342, 4294901760
        %v1078 = vsub.f32 %v342, %v1077
        %1079 = vmatpush.msra.mxu0 %v1078
        %v1080 = vand.u32 %v1000, 4294901760
        %v1081 = vsub.f32 %v1000, %v1080
        %1082 = vmatmul.f32.gmra.mxu0 %v1081
        %v1083 = vpop.f32.mrf.mxu0
        %v1084 = vadd.f32 %v1058, %v1083
        %1085 = vdwg.mxu0
        %1086 = vmatpush.msra.mxu0 0.0
        %1087 = vmatpush.msra.mxu0 0.0
        %1088 = vmatpush.msra.mxu0 0.0
        %1089 = vmatpush.msra.mxu0 0.0
        %1090 = vmatpush.msra.mxu0 0.0
        %1091 = vmatpush.msra.mxu0 0.0
        %1092 = vmatpush.msra.mxu0 0.0
        %1093 = vmatpush.msra.mxu0 0.0
        %1094 = vmatpush.msra.mxu0 0.0
        %1095 = vmatpush.msra.mxu0 0.0
        %1096 = vmatpush.msra.mxu0 0.0
        %1097 = vmatpush.msra.mxu0 0.0
        %1098 = vmatpush.msra.mxu0 0.0
        %1099 = vmatpush.msra.mxu0 0.0
        %v1100 = vand.u32 %v343, 4294901760
        %1101 = vmatpush.msra.mxu0 %v1100
        %v1102 = vand.u32 %v342, 4294901760
        %1103 = vmatpush.msra.mxu0 %v1102
        %v1104 = vand.u32 %v1000, 4294901760
        %v1105 = vsub.f32 %v1000, %v1104
        %v1106 = vand.u32 %v1105, 4294901760
        %1107 = vmatmul.f32.gmra.mxu0 %v1106
        %v1108 = vpop.f32.mrf.mxu0
        %v1109 = vadd.f32 %v1084, %v1108
        %1110 = vdwg.mxu0
        %1111 = vmatpush.msra.mxu0 0.0
        %1112 = vmatpush.msra.mxu0 0.0
        %1113 = vmatpush.msra.mxu0 0.0
        %1114 = vmatpush.msra.mxu0 0.0
        %1115 = vmatpush.msra.mxu0 0.0
        %1116 = vmatpush.msra.mxu0 0.0
        %1117 = vmatpush.msra.mxu0 0.0
        %1118 = vmatpush.msra.mxu0 0.0
        %1119 = vmatpush.msra.mxu0 0.0
        %1120 = vmatpush.msra.mxu0 0.0
        %1121 = vmatpush.msra.mxu0 0.0
        %1122 = vmatpush.msra.mxu0 0.0
        %1123 = vmatpush.msra.mxu0 0.0
        %1124 = vmatpush.msra.mxu0 0.0
        %v1125 = vand.u32 %v343, 4294901760
        %v1126 = vsub.f32 %v343, %v1125
        %v1127 = vand.u32 %v1126, 4294901760
        %1128 = vmatpush.msra.mxu0 %v1127
        %v1129 = vand.u32 %v342, 4294901760
        %v1130 = vsub.f32 %v342, %v1129
        %v1131 = vand.u32 %v1130, 4294901760
        %1132 = vmatpush.msra.mxu0 %v1131
        %v1133 = vand.u32 %v1000, 4294901760
        %1134 = vmatmul.f32.gmra.mxu0 %v1133
        %v1135 = vpop.f32.mrf.mxu0
        %v1136 = vadd.f32 %v1109, %v1135
        %1137 = vdwg.mxu0
        %1138 = vmatpush.msra.mxu0 0.0
        %1139 = vmatpush.msra.mxu0 0.0
        %1140 = vmatpush.msra.mxu0 0.0
        %1141 = vmatpush.msra.mxu0 0.0
        %1142 = vmatpush.msra.mxu0 0.0
        %1143 = vmatpush.msra.mxu0 0.0
        %1144 = vmatpush.msra.mxu0 0.0
        %1145 = vmatpush.msra.mxu0 0.0
        %1146 = vmatpush.msra.mxu0 0.0
        %1147 = vmatpush.msra.mxu0 0.0
        %1148 = vmatpush.msra.mxu0 0.0
        %1149 = vmatpush.msra.mxu0 0.0
        %1150 = vmatpush.msra.mxu0 0.0
        %1151 = vmatpush.msra.mxu0 0.0
        %v1152 = vand.u32 %v343, 4294901760
        %1153 = vmatpush.msra.mxu0 %v1152
        %v1154 = vand.u32 %v342, 4294901760
        %1155 = vmatpush.msra.mxu0 %v1154
        %v1156 = vand.u32 %v1000, 4294901760
        %1157 = vmatmul.f32.gmra.mxu0 %v1156
        %v1158 = vpop.f32.mrf.mxu0
        %v1159 = vadd.f32 %v1136, %v1158
        %1160 = vdwg.mxu0
        %v1162 = vsel %vm350, %v673, 0
        %1164 = vmatpush.msra.mxu0 0.0
        %1165 = vmatpush.msra.mxu0 0.0
        %1166 = vmatpush.msra.mxu0 0.0
        %1167 = vmatpush.msra.mxu0 0.0
        %1168 = vmatpush.msra.mxu0 0.0
        %1169 = vmatpush.msra.mxu0 0.0
        %1170 = vmatpush.msra.mxu0 0.0
        %1171 = vmatpush.msra.mxu0 0.0
        %1172 = vmatpush.msra.mxu0 0.0
        %1173 = vmatpush.msra.mxu0 0.0
        %1174 = vmatpush.msra.mxu0 0.0
        %1175 = vmatpush.msra.mxu0 0.0
        %1176 = vmatpush.msra.mxu0 0.0
        %1177 = vmatpush.msra.mxu0 0.0
        %v1178 = vand.u32 %v345, 4294901760
        %1179 = vmatpush.msra.mxu0 %v1178
        %v1180 = vand.u32 %v344, 4294901760
        %1181 = vmatpush.msra.mxu0 %v1180
        %v1182 = vand.u32 %v1162, 4294901760
        %v1183 = vsub.f32 %v1162, %v1182
        %v1184 = vand.u32 %v1183, 4294901760
        %v1185 = vsub.f32 %v1183, %v1184
        %v1186 = vand.u32 %v1185, 4294901760
        %1187 = vmatmul.f32.gmra.mxu0 %v1186
        %v1188 = vpop.f32.mrf.mxu0
        %v1189 = vadd.f32 0.0, %v1188
        %1190 = vdwg.mxu0
        %1191 = vmatpush.msra.mxu0 0.0
        %1192 = vmatpush.msra.mxu0 0.0
        %1193 = vmatpush.msra.mxu0 0.0
        %1194 = vmatpush.msra.mxu0 0.0
        %1195 = vmatpush.msra.mxu0 0.0
        %1196 = vmatpush.msra.mxu0 0.0
        %1197 = vmatpush.msra.mxu0 0.0
        %1198 = vmatpush.msra.mxu0 0.0
        %1199 = vmatpush.msra.mxu0 0.0
        %1200 = vmatpush.msra.mxu0 0.0
        %1201 = vmatpush.msra.mxu0 0.0
        %1202 = vmatpush.msra.mxu0 0.0
        %1203 = vmatpush.msra.mxu0 0.0
        %1204 = vmatpush.msra.mxu0 0.0
        %v1205 = vand.u32 %v345, 4294901760
        %v1206 = vsub.f32 %v345, %v1205
        %v1207 = vand.u32 %v1206, 4294901760
        %v1208 = vsub.f32 %v1206, %v1207
        %v1209 = vand.u32 %v1208, 4294901760
        %1210 = vmatpush.msra.mxu0 %v1209
        %v1211 = vand.u32 %v344, 4294901760
        %v1212 = vsub.f32 %v344, %v1211
        %v1213 = vand.u32 %v1212, 4294901760
        %v1214 = vsub.f32 %v1212, %v1213
        %v1215 = vand.u32 %v1214, 4294901760
        %1216 = vmatpush.msra.mxu0 %v1215
        %v1217 = vand.u32 %v1162, 4294901760
        %1218 = vmatmul.f32.gmra.mxu0 %v1217
        %v1219 = vpop.f32.mrf.mxu0
        %v1220 = vadd.f32 %v1189, %v1219
        %1221 = vdwg.mxu0
        %1222 = vmatpush.msra.mxu0 0.0
        %1223 = vmatpush.msra.mxu0 0.0
        %1224 = vmatpush.msra.mxu0 0.0
        %1225 = vmatpush.msra.mxu0 0.0
        %1226 = vmatpush.msra.mxu0 0.0
        %1227 = vmatpush.msra.mxu0 0.0
        %1228 = vmatpush.msra.mxu0 0.0
        %1229 = vmatpush.msra.mxu0 0.0
        %1230 = vmatpush.msra.mxu0 0.0
        %1231 = vmatpush.msra.mxu0 0.0
        %1232 = vmatpush.msra.mxu0 0.0
        %1233 = vmatpush.msra.mxu0 0.0
        %1234 = vmatpush.msra.mxu0 0.0
        %1235 = vmatpush.msra.mxu0 0.0
        %v1236 = vand.u32 %v345, 4294901760
        %v1237 = vsub.f32 %v345, %v1236
        %1238 = vmatpush.msra.mxu0 %v1237
        %v1239 = vand.u32 %v344, 4294901760
        %v1240 = vsub.f32 %v344, %v1239
        %1241 = vmatpush.msra.mxu0 %v1240
        %v1242 = vand.u32 %v1162, 4294901760
        %v1243 = vsub.f32 %v1162, %v1242
        %1244 = vmatmul.f32.gmra.mxu0 %v1243
        %v1245 = vpop.f32.mrf.mxu0
        %v1246 = vadd.f32 %v1220, %v1245
        %1247 = vdwg.mxu0
        %1248 = vmatpush.msra.mxu0 0.0
        %1249 = vmatpush.msra.mxu0 0.0
        %1250 = vmatpush.msra.mxu0 0.0
        %1251 = vmatpush.msra.mxu0 0.0
        %1252 = vmatpush.msra.mxu0 0.0
        %1253 = vmatpush.msra.mxu0 0.0
        %1254 = vmatpush.msra.mxu0 0.0
        %1255 = vmatpush.msra.mxu0 0.0
        %1256 = vmatpush.msra.mxu0 0.0
        %1257 = vmatpush.msra.mxu0 0.0
        %1258 = vmatpush.msra.mxu0 0.0
        %1259 = vmatpush.msra.mxu0 0.0
        %1260 = vmatpush.msra.mxu0 0.0
        %1261 = vmatpush.msra.mxu0 0.0
        %v1262 = vand.u32 %v345, 4294901760
        %1263 = vmatpush.msra.mxu0 %v1262
        %v1264 = vand.u32 %v344, 4294901760
        %1265 = vmatpush.msra.mxu0 %v1264
        %v1266 = vand.u32 %v1162, 4294901760
        %v1267 = vsub.f32 %v1162, %v1266
        %v1268 = vand.u32 %v1267, 4294901760
        %1269 = vmatmul.f32.gmra.mxu0 %v1268
        %v1270 = vpop.f32.mrf.mxu0
        %v1271 = vadd.f32 %v1246, %v1270
        %1272 = vdwg.mxu0
        %1273 = vmatpush.msra.mxu0 0.0
        %1274 = vmatpush.msra.mxu0 0.0
        %1275 = vmatpush.msra.mxu0 0.0
        %1276 = vmatpush.msra.mxu0 0.0
        %1277 = vmatpush.msra.mxu0 0.0
        %1278 = vmatpush.msra.mxu0 0.0
        %1279 = vmatpush.msra.mxu0 0.0
        %1280 = vmatpush.msra.mxu0 0.0
        %1281 = vmatpush.msra.mxu0 0.0
        %1282 = vmatpush.msra.mxu0 0.0
        %1283 = vmatpush.msra.mxu0 0.0
        %1284 = vmatpush.msra.mxu0 0.0
        %1285 = vmatpush.msra.mxu0 0.0
        %1286 = vmatpush.msra.mxu0 0.0
        %v1287 = vand.u32 %v345, 4294901760
        %v1288 = vsub.f32 %v345, %v1287
        %v1289 = vand.u32 %v1288, 4294901760
        %1290 = vmatpush.msra.mxu0 %v1289
        %v1291 = vand.u32 %v344, 4294901760
        %v1292 = vsub.f32 %v344, %v1291
        %v1293 = vand.u32 %v1292, 4294901760
        %1294 = vmatpush.msra.mxu0 %v1293
        %v1295 = vand.u32 %v1162, 4294901760
        %1296 = vmatmul.f32.gmra.mxu0 %v1295
        %v1297 = vpop.f32.mrf.mxu0
        %v1298 = vadd.f32 %v1271, %v1297
        %1299 = vdwg.mxu0
        %1300 = vmatpush.msra.mxu0 0.0
        %1301 = vmatpush.msra.mxu0 0.0
        %1302 = vmatpush.msra.mxu0 0.0
        %1303 = vmatpush.msra.mxu0 0.0
        %1304 = vmatpush.msra.mxu0 0.0
        %1305 = vmatpush.msra.mxu0 0.0
        %1306 = vmatpush.msra.mxu0 0.0
        %1307 = vmatpush.msra.mxu0 0.0
        %1308 = vmatpush.msra.mxu0 0.0
        %1309 = vmatpush.msra.mxu0 0.0
        %1310 = vmatpush.msra.mxu0 0.0
        %1311 = vmatpush.msra.mxu0 0.0
        %1312 = vmatpush.msra.mxu0 0.0
        %1313 = vmatpush.msra.mxu0 0.0
        %v1314 = vand.u32 %v345, 4294901760
        %1315 = vmatpush.msra.mxu0 %v1314
        %v1316 = vand.u32 %v344, 4294901760
        %1317 = vmatpush.msra.mxu0 %v1316
        %v1318 = vand.u32 %v1162, 4294901760
        %1319 = vmatmul.f32.gmra.mxu0 %v1318
        %v1320 = vpop.f32.mrf.mxu0
        %v1321 = vadd.f32 %v1298, %v1320
        %1322 = vdwg.mxu0
        %v1324 = vsel %vm350, %v835, 0
        %1326 = vmatpush.msra.mxu0 0.0
        %1327 = vmatpush.msra.mxu0 0.0
        %1328 = vmatpush.msra.mxu0 0.0
        %1329 = vmatpush.msra.mxu0 0.0
        %1330 = vmatpush.msra.mxu0 0.0
        %1331 = vmatpush.msra.mxu0 0.0
        %1332 = vmatpush.msra.mxu0 0.0
        %1333 = vmatpush.msra.mxu0 0.0
        %1334 = vmatpush.msra.mxu0 0.0
        %1335 = vmatpush.msra.mxu0 0.0
        %1336 = vmatpush.msra.mxu0 0.0
        %1337 = vmatpush.msra.mxu0 0.0
        %1338 = vmatpush.msra.mxu0 0.0
        %1339 = vmatpush.msra.mxu0 0.0
        %v1340 = vand.u32 %v347, 4294901760
        %1341 = vmatpush.msra.mxu0 %v1340
        %v1342 = vand.u32 %v346, 4294901760
        %1343 = vmatpush.msra.mxu0 %v1342
        %v1344 = vand.u32 %v1324, 4294901760
        %v1345 = vsub.f32 %v1324, %v1344
        %v1346 = vand.u32 %v1345, 4294901760
        %v1347 = vsub.f32 %v1345, %v1346
        %v1348 = vand.u32 %v1347, 4294901760
        %1349 = vmatmul.f32.gmra.mxu0 %v1348
        %v1350 = vpop.f32.mrf.mxu0
        %v1351 = vadd.f32 0.0, %v1350
        %1352 = vdwg.mxu0
        %1353 = vmatpush.msra.mxu0 0.0
        %1354 = vmatpush.msra.mxu0 0.0
        %1355 = vmatpush.msra.mxu0 0.0
        %1356 = vmatpush.msra.mxu0 0.0
        %1357 = vmatpush.msra.mxu0 0.0
        %1358 = vmatpush.msra.mxu0 0.0
        %1359 = vmatpush.msra.mxu0 0.0
        %1360 = vmatpush.msra.mxu0 0.0
        %1361 = vmatpush.msra.mxu0 0.0
        %1362 = vmatpush.msra.mxu0 0.0
        %1363 = vmatpush.msra.mxu0 0.0
        %1364 = vmatpush.msra.mxu0 0.0
        %1365 = vmatpush.msra.mxu0 0.0
        %1366 = vmatpush.msra.mxu0 0.0
        %v1367 = vand.u32 %v347, 4294901760
        %v1368 = vsub.f32 %v347, %v1367
        %v1369 = vand.u32 %v1368, 4294901760
        %v1370 = vsub.f32 %v1368, %v1369
        %v1371 = vand.u32 %v1370, 4294901760
        %1372 = vmatpush.msra.mxu0 %v1371
        %v1373 = vand.u32 %v346, 4294901760
        %v1374 = vsub.f32 %v346, %v1373
        %v1375 = vand.u32 %v1374, 4294901760
        %v1376 = vsub.f32 %v1374, %v1375
        %v1377 = vand.u32 %v1376, 4294901760
        %1378 = vmatpush.msra.mxu0 %v1377
        %v1379 = vand.u32 %v1324, 4294901760
        %1380 = vmatmul.f32.gmra.mxu0 %v1379
        %v1381 = vpop.f32.mrf.mxu0
        %v1382 = vadd.f32 %v1351, %v1381
        %1383 = vdwg.mxu0
        %1384 = vmatpush.msra.mxu0 0.0
        %1385 = vmatpush.msra.mxu0 0.0
        %1386 = vmatpush.msra.mxu0 0.0
        %1387 = vmatpush.msra.mxu0 0.0
        %1388 = vmatpush.msra.mxu0 0.0
        %1389 = vmatpush.msra.mxu0 0.0
        %1390 = vmatpush.msra.mxu0 0.0
        %1391 = vmatpush.msra.mxu0 0.0
        %1392 = vmatpush.msra.mxu0 0.0
        %1393 = vmatpush.msra.mxu0 0.0
        %1394 = vmatpush.msra.mxu0 0.0
        %1395 = vmatpush.msra.mxu0 0.0
        %1396 = vmatpush.msra.mxu0 0.0
        %1397 = vmatpush.msra.mxu0 0.0
        %v1398 = vand.u32 %v347, 4294901760
        %v1399 = vsub.f32 %v347, %v1398
        %1400 = vmatpush.msra.mxu0 %v1399
        %v1401 = vand.u32 %v346, 4294901760
        %v1402 = vsub.f32 %v346, %v1401
        %1403 = vmatpush.msra.mxu0 %v1402
        %v1404 = vand.u32 %v1324, 4294901760
        %v1405 = vsub.f32 %v1324, %v1404
        %1406 = vmatmul.f32.gmra.mxu0 %v1405
        %v1407 = vpop.f32.mrf.mxu0
        %v1408 = vadd.f32 %v1382, %v1407
        %1409 = vdwg.mxu0
        %1410 = vmatpush.msra.mxu0 0.0
        %1411 = vmatpush.msra.mxu0 0.0
        %1412 = vmatpush.msra.mxu0 0.0
        %1413 = vmatpush.msra.mxu0 0.0
        %1414 = vmatpush.msra.mxu0 0.0
        %1415 = vmatpush.msra.mxu0 0.0
        %1416 = vmatpush.msra.mxu0 0.0
        %1417 = vmatpush.msra.mxu0 0.0
        %1418 = vmatpush.msra.mxu0 0.0
        %1419 = vmatpush.msra.mxu0 0.0
        %1420 = vmatpush.msra.mxu0 0.0
        %1421 = vmatpush.msra.mxu0 0.0
        %1422 = vmatpush.msra.mxu0 0.0
        %1423 = vmatpush.msra.mxu0 0.0
        %v1424 = vand.u32 %v347, 4294901760
        %1425 = vmatpush.msra.mxu0 %v1424
        %v1426 = vand.u32 %v346, 4294901760
        %1427 = vmatpush.msra.mxu0 %v1426
        %v1428 = vand.u32 %v1324, 4294901760
        %v1429 = vsub.f32 %v1324, %v1428
        %v1430 = vand.u32 %v1429, 4294901760
        %1431 = vmatmul.f32.gmra.mxu0 %v1430
        %v1432 = vpop.f32.mrf.mxu0
        %v1433 = vadd.f32 %v1408, %v1432
        %1434 = vdwg.mxu0
        %1435 = vmatpush.msra.mxu0 0.0
        %1436 = vmatpush.msra.mxu0 0.0
        %1437 = vmatpush.msra.mxu0 0.0
        %1438 = vmatpush.msra.mxu0 0.0
        %1439 = vmatpush.msra.mxu0 0.0
        %1440 = vmatpush.msra.mxu0 0.0
        %1441 = vmatpush.msra.mxu0 0.0
        %1442 = vmatpush.msra.mxu0 0.0
        %1443 = vmatpush.msra.mxu0 0.0
        %1444 = vmatpush.msra.mxu0 0.0
        %1445 = vmatpush.msra.mxu0 0.0
        %1446 = vmatpush.msra.mxu0 0.0
        %1447 = vmatpush.msra.mxu0 0.0
        %1448 = vmatpush.msra.mxu0 0.0
        %v1449 = vand.u32 %v347, 4294901760
        %v1450 = vsub.f32 %v347, %v1449
        %v1451 = vand.u32 %v1450, 4294901760
        %1452 = vmatpush.msra.mxu0 %v1451
        %v1453 = vand.u32 %v346, 4294901760
        %v1454 = vsub.f32 %v346, %v1453
        %v1455 = vand.u32 %v1454, 4294901760
        %1456 = vmatpush.msra.mxu0 %v1455
        %v1457 = vand.u32 %v1324, 4294901760
        %1458 = vmatmul.f32.gmra.mxu0 %v1457
        %v1459 = vpop.f32.mrf.mxu0
        %v1460 = vadd.f32 %v1433, %v1459
        %1461 = vdwg.mxu0
        %1462 = vmatpush.msra.mxu0 0.0
        %1463 = vmatpush.msra.mxu0 0.0
        %1464 = vmatpush.msra.mxu0 0.0
        %1465 = vmatpush.msra.mxu0 0.0
        %1466 = vmatpush.msra.mxu0 0.0
        %1467 = vmatpush.msra.mxu0 0.0
        %1468 = vmatpush.msra.mxu0 0.0
        %1469 = vmatpush.msra.mxu0 0.0
        %1470 = vmatpush.msra.mxu0 0.0
        %1471 = vmatpush.msra.mxu0 0.0
        %1472 = vmatpush.msra.mxu0 0.0
        %1473 = vmatpush.msra.mxu0 0.0
        %1474 = vmatpush.msra.mxu0 0.0
        %1475 = vmatpush.msra.mxu0 0.0
        %v1476 = vand.u32 %v347, 4294901760
        %1477 = vmatpush.msra.mxu0 %v1476
        %v1478 = vand.u32 %v346, 4294901760
        %1479 = vmatpush.msra.mxu0 %v1478
        %v1480 = vand.u32 %v1324, 4294901760
        %1481 = vmatmul.f32.gmra.mxu0 %v1480
        %v1482 = vpop.f32.mrf.mxu0
        %v1483 = vadd.f32 %v1460, %v1482
        %1484 = vdwg.mxu0
        %v1486 = vsel %vm350, %v997, 0
        %1488 = vmatpush.msra.mxu0 0.0
        %1489 = vmatpush.msra.mxu0 0.0
        %1490 = vmatpush.msra.mxu0 0.0
        %1491 = vmatpush.msra.mxu0 0.0
        %1492 = vmatpush.msra.mxu0 0.0
        %1493 = vmatpush.msra.mxu0 0.0
        %1494 = vmatpush.msra.mxu0 0.0
        %1495 = vmatpush.msra.mxu0 0.0
        %1496 = vmatpush.msra.mxu0 0.0
        %1497 = vmatpush.msra.mxu0 0.0
        %1498 = vmatpush.msra.mxu0 0.0
        %1499 = vmatpush.msra.mxu0 0.0
        %1500 = vmatpush.msra.mxu0 0.0
        %1501 = vmatpush.msra.mxu0 0.0
        %v1502 = vand.u32 %v349, 4294901760
        %1503 = vmatpush.msra.mxu0 %v1502
        %v1504 = vand.u32 %v348, 4294901760
        %1505 = vmatpush.msra.mxu0 %v1504
        %v1506 = vand.u32 %v1486, 4294901760
        %v1507 = vsub.f32 %v1486, %v1506
        %v1508 = vand.u32 %v1507, 4294901760
        %v1509 = vsub.f32 %v1507, %v1508
        %v1510 = vand.u32 %v1509, 4294901760
        %1511 = vmatmul.f32.gmra.mxu0 %v1510
        %v1512 = vpop.f32.mrf.mxu0
        %v1513 = vadd.f32 0.0, %v1512
        %1514 = vdwg.mxu0
        %1515 = vmatpush.msra.mxu0 0.0
        %1516 = vmatpush.msra.mxu0 0.0
        %1517 = vmatpush.msra.mxu0 0.0
        %1518 = vmatpush.msra.mxu0 0.0
        %1519 = vmatpush.msra.mxu0 0.0
        %1520 = vmatpush.msra.mxu0 0.0
        %1521 = vmatpush.msra.mxu0 0.0
        %1522 = vmatpush.msra.mxu0 0.0
        %1523 = vmatpush.msra.mxu0 0.0
        %1524 = vmatpush.msra.mxu0 0.0
        %1525 = vmatpush.msra.mxu0 0.0
        %1526 = vmatpush.msra.mxu0 0.0
        %1527 = vmatpush.msra.mxu0 0.0
        %1528 = vmatpush.msra.mxu0 0.0
        %v1529 = vand.u32 %v349, 4294901760
        %v1530 = vsub.f32 %v349, %v1529
        %v1531 = vand.u32 %v1530, 4294901760
        %v1532 = vsub.f32 %v1530, %v1531
        %v1533 = vand.u32 %v1532, 4294901760
        %1534 = vmatpush.msra.mxu0 %v1533
        %v1535 = vand.u32 %v348, 4294901760
        %v1536 = vsub.f32 %v348, %v1535
        %v1537 = vand.u32 %v1536, 4294901760
        %v1538 = vsub.f32 %v1536, %v1537
        %v1539 = vand.u32 %v1538, 4294901760
        %1540 = vmatpush.msra.mxu0 %v1539
        %v1541 = vand.u32 %v1486, 4294901760
        %1542 = vmatmul.f32.gmra.mxu0 %v1541
        %v1543 = vpop.f32.mrf.mxu0
        %v1544 = vadd.f32 %v1513, %v1543
        %1545 = vdwg.mxu0
        %1546 = vmatpush.msra.mxu0 0.0
        %1547 = vmatpush.msra.mxu0 0.0
        %1548 = vmatpush.msra.mxu0 0.0
        %1549 = vmatpush.msra.mxu0 0.0
        %1550 = vmatpush.msra.mxu0 0.0
        %1551 = vmatpush.msra.mxu0 0.0
        %1552 = vmatpush.msra.mxu0 0.0
        %1553 = vmatpush.msra.mxu0 0.0
        %1554 = vmatpush.msra.mxu0 0.0
        %1555 = vmatpush.msra.mxu0 0.0
        %1556 = vmatpush.msra.mxu0 0.0
        %1557 = vmatpush.msra.mxu0 0.0
        %1558 = vmatpush.msra.mxu0 0.0
        %1559 = vmatpush.msra.mxu0 0.0
        %v1560 = vand.u32 %v349, 4294901760
        %v1561 = vsub.f32 %v349, %v1560
        %1562 = vmatpush.msra.mxu0 %v1561
        %v1563 = vand.u32 %v348, 4294901760
        %v1564 = vsub.f32 %v348, %v1563
        %1565 = vmatpush.msra.mxu0 %v1564
        %v1566 = vand.u32 %v1486, 4294901760
        %v1567 = vsub.f32 %v1486, %v1566
        %1568 = vmatmul.f32.gmra.mxu0 %v1567
        %v1569 = vpop.f32.mrf.mxu0
        %v1570 = vadd.f32 %v1544, %v1569
        %1571 = vdwg.mxu0
        %1572 = vmatpush.msra.mxu0 0.0
        %1573 = vmatpush.msra.mxu0 0.0
        %1574 = vmatpush.msra.mxu0 0.0
        %1575 = vmatpush.msra.mxu0 0.0
        %1576 = vmatpush.msra.mxu0 0.0
        %1577 = vmatpush.msra.mxu0 0.0
        %1578 = vmatpush.msra.mxu0 0.0
        %1579 = vmatpush.msra.mxu0 0.0
        %1580 = vmatpush.msra.mxu0 0.0
        %1581 = vmatpush.msra.mxu0 0.0
        %1582 = vmatpush.msra.mxu0 0.0
        %1583 = vmatpush.msra.mxu0 0.0
        %1584 = vmatpush.msra.mxu0 0.0
        %1585 = vmatpush.msra.mxu0 0.0
        %v1586 = vand.u32 %v349, 4294901760
        %1587 = vmatpush.msra.mxu0 %v1586
        %v1588 = vand.u32 %v348, 4294901760
        %1589 = vmatpush.msra.mxu0 %v1588
        %v1590 = vand.u32 %v1486, 4294901760
        %v1591 = vsub.f32 %v1486, %v1590
        %v1592 = vand.u32 %v1591, 4294901760
        %1593 = vmatmul.f32.gmra.mxu0 %v1592
        %v1594 = vpop.f32.mrf.mxu0
        %v1595 = vadd.f32 %v1570, %v1594
        %1596 = vdwg.mxu0
        %1597 = vmatpush.msra.mxu0 0.0
        %1598 = vmatpush.msra.mxu0 0.0
        %1599 = vmatpush.msra.mxu0 0.0
        %1600 = vmatpush.msra.mxu0 0.0
        %1601 = vmatpush.msra.mxu0 0.0
        %1602 = vmatpush.msra.mxu0 0.0
        %1603 = vmatpush.msra.mxu0 0.0
        %1604 = vmatpush.msra.mxu0 0.0
        %1605 = vmatpush.msra.mxu0 0.0
        %1606 = vmatpush.msra.mxu0 0.0
        %1607 = vmatpush.msra.mxu0 0.0
        %1608 = vmatpush.msra.mxu0 0.0
        %1609 = vmatpush.msra.mxu0 0.0
        %1610 = vmatpush.msra.mxu0 0.0
        %v1611 = vand.u32 %v349, 4294901760
        %v1612 = vsub.f32 %v349, %v1611
        %v1613 = vand.u32 %v1612, 4294901760
        %1614 = vmatpush.msra.mxu0 %v1613
        %v1615 = vand.u32 %v348, 4294901760
        %v1616 = vsub.f32 %v348, %v1615
        %v1617 = vand.u32 %v1616, 4294901760
        %1618 = vmatpush.msra.mxu0 %v1617
        %v1619 = vand.u32 %v1486, 4294901760
        %1620 = vmatmul.f32.gmra.mxu0 %v1619
        %v1621 = vpop.f32.mrf.mxu0
        %v1622 = vadd.f32 %v1595, %v1621
        %1623 = vdwg.mxu0
        %1624 = vmatpush.msra.mxu0 0.0
        %1625 = vmatpush.msra.mxu0 0.0
        %1626 = vmatpush.msra.mxu0 0.0
        %1627 = vmatpush.msra.mxu0 0.0
        %1628 = vmatpush.msra.mxu0 0.0
        %1629 = vmatpush.msra.mxu0 0.0
        %1630 = vmatpush.msra.mxu0 0.0
        %1631 = vmatpush.msra.mxu0 0.0
        %1632 = vmatpush.msra.mxu0 0.0
        %1633 = vmatpush.msra.mxu0 0.0
        %1634 = vmatpush.msra.mxu0 0.0
        %1635 = vmatpush.msra.mxu0 0.0
        %1636 = vmatpush.msra.mxu0 0.0
        %1637 = vmatpush.msra.mxu0 0.0
        %v1638 = vand.u32 %v349, 4294901760
        %1639 = vmatpush.msra.mxu0 %v1638
        %v1640 = vand.u32 %v348, 4294901760
        %1641 = vmatpush.msra.mxu0 %v1640
        %v1642 = vand.u32 %v1486, 4294901760
        %1643 = vmatmul.f32.gmra.mxu0 %v1642
        %v1644 = vpop.f32.mrf.mxu0
        %v1645 = vadd.f32 %v1622, %v1644
        %1646 = vdwg.mxu0
        %1647 = vmatpush.msra.mxu0 0.0
        %1648 = vmatpush.msra.mxu0 0.0
        %1649 = vmatpush.msra.mxu0 0.0
        %1650 = vmatpush.msra.mxu0 0.0
        %1651 = vmatpush.msra.mxu0 0.0
        %1652 = vmatpush.msra.mxu0 0.0
        %1653 = vmatpush.msra.mxu0 0.0
        %1654 = vmatpush.msra.mxu0 0.0
        %1655 = vmatpush.msra.mxu0 0.0
        %1656 = vmatpush.msra.mxu0 0.0
        %1657 = vmatpush.msra.mxu0 0.0
        %1658 = vmatpush.msra.mxu0 0.0
        %1659 = vmatpush.msra.mxu0 0.0
        %1660 = vmatpush.msra.mxu0 0.0
        %v1661 = vand.u32 %v331, 4294901760
        %1662 = vmatpush.msra.mxu0 %v1661
        %v1663 = vand.u32 %v330, 4294901760
        %1664 = vmatpush.msra.mxu0 %v1663
        %v1665 = vand.u32 %v352, 4294901760
        %v1666 = vsub.f32 %v352, %v1665
        %v1667 = vand.u32 %v1666, 4294901760
        %v1668 = vsub.f32 %v1666, %v1667
        %v1669 = vand.u32 %v1668, 4294901760
        %1670 = vmatmul.f32.gmra.mxu0 %v1669
        %v1671 = vpop.f32.mrf.mxu0
        %v1672 = vadd.f32 0.0, %v1671
        %1673 = vdwg.mxu0
        %1674 = vmatpush.msra.mxu0 0.0
        %1675 = vmatpush.msra.mxu0 0.0
        %1676 = vmatpush.msra.mxu0 0.0
        %1677 = vmatpush.msra.mxu0 0.0
        %1678 = vmatpush.msra.mxu0 0.0
        %1679 = vmatpush.msra.mxu0 0.0
        %1680 = vmatpush.msra.mxu0 0.0
        %1681 = vmatpush.msra.mxu0 0.0
        %1682 = vmatpush.msra.mxu0 0.0
        %1683 = vmatpush.msra.mxu0 0.0
        %1684 = vmatpush.msra.mxu0 0.0
        %1685 = vmatpush.msra.mxu0 0.0
        %1686 = vmatpush.msra.mxu0 0.0
        %1687 = vmatpush.msra.mxu0 0.0
        %v1688 = vand.u32 %v331, 4294901760
        %v1689 = vsub.f32 %v331, %v1688
        %v1690 = vand.u32 %v1689, 4294901760
        %v1691 = vsub.f32 %v1689, %v1690
        %v1692 = vand.u32 %v1691, 4294901760
        %1693 = vmatpush.msra.mxu0 %v1692
        %v1694 = vand.u32 %v330, 4294901760
        %v1695 = vsub.f32 %v330, %v1694
        %v1696 = vand.u32 %v1695, 4294901760
        %v1697 = vsub.f32 %v1695, %v1696
        %v1698 = vand.u32 %v1697, 4294901760
        %1699 = vmatpush.msra.mxu0 %v1698
        %v1700 = vand.u32 %v352, 4294901760
        %1701 = vmatmul.f32.gmra.mxu0 %v1700
        %v1702 = vpop.f32.mrf.mxu0
        %v1703 = vadd.f32 %v1672, %v1702
        %1704 = vdwg.mxu0
        %1705 = vmatpush.msra.mxu0 0.0
        %1706 = vmatpush.msra.mxu0 0.0
        %1707 = vmatpush.msra.mxu0 0.0
        %1708 = vmatpush.msra.mxu0 0.0
        %1709 = vmatpush.msra.mxu0 0.0
        %1710 = vmatpush.msra.mxu0 0.0
        %1711 = vmatpush.msra.mxu0 0.0
        %1712 = vmatpush.msra.mxu0 0.0
        %1713 = vmatpush.msra.mxu0 0.0
        %1714 = vmatpush.msra.mxu0 0.0
        %1715 = vmatpush.msra.mxu0 0.0
        %1716 = vmatpush.msra.mxu0 0.0
        %1717 = vmatpush.msra.mxu0 0.0
        %1718 = vmatpush.msra.mxu0 0.0
        %v1719 = vand.u32 %v331, 4294901760
        %v1720 = vsub.f32 %v331, %v1719
        %1721 = vmatpush.msra.mxu0 %v1720
        %v1722 = vand.u32 %v330, 4294901760
        %v1723 = vsub.f32 %v330, %v1722
        %1724 = vmatpush.msra.mxu0 %v1723
        %v1725 = vand.u32 %v352, 4294901760
        %v1726 = vsub.f32 %v352, %v1725
        %1727 = vmatmul.f32.gmra.mxu0 %v1726
        %v1728 = vpop.f32.mrf.mxu0
        %v1729 = vadd.f32 %v1703, %v1728
        %1730 = vdwg.mxu0
        %1731 = vmatpush.msra.mxu0 0.0
        %1732 = vmatpush.msra.mxu0 0.0
        %1733 = vmatpush.msra.mxu0 0.0
        %1734 = vmatpush.msra.mxu0 0.0
        %1735 = vmatpush.msra.mxu0 0.0
        %1736 = vmatpush.msra.mxu0 0.0
        %1737 = vmatpush.msra.mxu0 0.0
        %1738 = vmatpush.msra.mxu0 0.0
        %1739 = vmatpush.msra.mxu0 0.0
        %1740 = vmatpush.msra.mxu0 0.0
        %1741 = vmatpush.msra.mxu0 0.0
        %1742 = vmatpush.msra.mxu0 0.0
        %1743 = vmatpush.msra.mxu0 0.0
        %1744 = vmatpush.msra.mxu0 0.0
        %v1745 = vand.u32 %v331, 4294901760
        %1746 = vmatpush.msra.mxu0 %v1745
        %v1747 = vand.u32 %v330, 4294901760
        %1748 = vmatpush.msra.mxu0 %v1747
        %v1749 = vand.u32 %v352, 4294901760
        %v1750 = vsub.f32 %v352, %v1749
        %v1751 = vand.u32 %v1750, 4294901760
        %1752 = vmatmul.f32.gmra.mxu0 %v1751
        %v1753 = vpop.f32.mrf.mxu0
        %v1754 = vadd.f32 %v1729, %v1753
        %1755 = vdwg.mxu0
        %1756 = vmatpush.msra.mxu0 0.0
        %1757 = vmatpush.msra.mxu0 0.0
        %1758 = vmatpush.msra.mxu0 0.0
        %1759 = vmatpush.msra.mxu0 0.0
        %1760 = vmatpush.msra.mxu0 0.0
        %1761 = vmatpush.msra.mxu0 0.0
        %1762 = vmatpush.msra.mxu0 0.0
        %1763 = vmatpush.msra.mxu0 0.0
        %1764 = vmatpush.msra.mxu0 0.0
        %1765 = vmatpush.msra.mxu0 0.0
        %1766 = vmatpush.msra.mxu0 0.0
        %1767 = vmatpush.msra.mxu0 0.0
        %1768 = vmatpush.msra.mxu0 0.0
        %1769 = vmatpush.msra.mxu0 0.0
        %v1770 = vand.u32 %v331, 4294901760
        %v1771 = vsub.f32 %v331, %v1770
        %v1772 = vand.u32 %v1771, 4294901760
        %1773 = vmatpush.msra.mxu0 %v1772
        %v1774 = vand.u32 %v330, 4294901760
        %v1775 = vsub.f32 %v330, %v1774
        %v1776 = vand.u32 %v1775, 4294901760
        %1777 = vmatpush.msra.mxu0 %v1776
        %v1778 = vand.u32 %v352, 4294901760
        %1779 = vmatmul.f32.gmra.mxu0 %v1778
        %v1780 = vpop.f32.mrf.mxu0
        %v1781 = vadd.f32 %v1754, %v1780
        %1782 = vdwg.mxu0
        %1783 = vmatpush.msra.mxu0 0.0
        %1784 = vmatpush.msra.mxu0 0.0
        %1785 = vmatpush.msra.mxu0 0.0
        %1786 = vmatpush.msra.mxu0 0.0
        %1787 = vmatpush.msra.mxu0 0.0
        %1788 = vmatpush.msra.mxu0 0.0
        %1789 = vmatpush.msra.mxu0 0.0
        %1790 = vmatpush.msra.mxu0 0.0
        %1791 = vmatpush.msra.mxu0 0.0
        %1792 = vmatpush.msra.mxu0 0.0
        %1793 = vmatpush.msra.mxu0 0.0
        %1794 = vmatpush.msra.mxu0 0.0
        %1795 = vmatpush.msra.mxu0 0.0
        %1796 = vmatpush.msra.mxu0 0.0
        %v1797 = vand.u32 %v331, 4294901760
        %1798 = vmatpush.msra.mxu0 %v1797
        %v1799 = vand.u32 %v330, 4294901760
        %1800 = vmatpush.msra.mxu0 %v1799
        %v1801 = vand.u32 %v352, 4294901760
        %1802 = vmatmul.f32.gmra.mxu0 %v1801
        %v1803 = vpop.f32.mrf.mxu0
        %v1804 = vadd.f32 %v1781, %v1803
        %1805 = vdwg.mxu0
        %1806 = vmatpush.msra.mxu0 0.0
        %1807 = vmatpush.msra.mxu0 0.0
        %1808 = vmatpush.msra.mxu0 0.0
        %1809 = vmatpush.msra.mxu0 0.0
        %1810 = vmatpush.msra.mxu0 0.0
        %1811 = vmatpush.msra.mxu0 0.0
        %1812 = vmatpush.msra.mxu0 0.0
        %1813 = vmatpush.msra.mxu0 0.0
        %1814 = vmatpush.msra.mxu0 0.0
        %1815 = vmatpush.msra.mxu0 0.0
        %1816 = vmatpush.msra.mxu0 0.0
        %1817 = vmatpush.msra.mxu0 0.0
        %1818 = vmatpush.msra.mxu0 0.0
        %1819 = vmatpush.msra.mxu0 0.0
        %v1820 = vand.u32 %v333, 4294901760
        %1821 = vmatpush.msra.mxu0 %v1820
        %v1822 = vand.u32 %v332, 4294901760
        %1823 = vmatpush.msra.mxu0 %v1822
        %v1824 = vand.u32 %v514, 4294901760
        %v1825 = vsub.f32 %v514, %v1824
        %v1826 = vand.u32 %v1825, 4294901760
        %v1827 = vsub.f32 %v1825, %v1826
        %v1828 = vand.u32 %v1827, 4294901760
        %1829 = vmatmul.f32.gmra.mxu0 %v1828
        %v1830 = vpop.f32.mrf.mxu0
        %v1831 = vadd.f32 0.0, %v1830
        %1832 = vdwg.mxu0
        %1833 = vmatpush.msra.mxu0 0.0
        %1834 = vmatpush.msra.mxu0 0.0
        %1835 = vmatpush.msra.mxu0 0.0
        %1836 = vmatpush.msra.mxu0 0.0
        %1837 = vmatpush.msra.mxu0 0.0
        %1838 = vmatpush.msra.mxu0 0.0
        %1839 = vmatpush.msra.mxu0 0.0
        %1840 = vmatpush.msra.mxu0 0.0
        %1841 = vmatpush.msra.mxu0 0.0
        %1842 = vmatpush.msra.mxu0 0.0
        %1843 = vmatpush.msra.mxu0 0.0
        %1844 = vmatpush.msra.mxu0 0.0
        %1845 = vmatpush.msra.mxu0 0.0
        %1846 = vmatpush.msra.mxu0 0.0
        %v1847 = vand.u32 %v333, 4294901760
        %v1848 = vsub.f32 %v333, %v1847
        %v1849 = vand.u32 %v1848, 4294901760
        %v1850 = vsub.f32 %v1848, %v1849
        %v1851 = vand.u32 %v1850, 4294901760
        %1852 = vmatpush.msra.mxu0 %v1851
        %v1853 = vand.u32 %v332, 4294901760
        %v1854 = vsub.f32 %v332, %v1853
        %v1855 = vand.u32 %v1854, 4294901760
        %v1856 = vsub.f32 %v1854, %v1855
        %v1857 = vand.u32 %v1856, 4294901760
        %1858 = vmatpush.msra.mxu0 %v1857
        %v1859 = vand.u32 %v514, 4294901760
        %1860 = vmatmul.f32.gmra.mxu0 %v1859
        %v1861 = vpop.f32.mrf.mxu0
        %v1862 = vadd.f32 %v1831, %v1861
        %1863 = vdwg.mxu0
        %1864 = vmatpush.msra.mxu0 0.0
        %1865 = vmatpush.msra.mxu0 0.0
        %1866 = vmatpush.msra.mxu0 0.0
        %1867 = vmatpush.msra.mxu0 0.0
        %1868 = vmatpush.msra.mxu0 0.0
        %1869 = vmatpush.msra.mxu0 0.0
        %1870 = vmatpush.msra.mxu0 0.0
        %1871 = vmatpush.msra.mxu0 0.0
        %1872 = vmatpush.msra.mxu0 0.0
        %1873 = vmatpush.msra.mxu0 0.0
        %1874 = vmatpush.msra.mxu0 0.0
        %1875 = vmatpush.msra.mxu0 0.0
        %1876 = vmatpush.msra.mxu0 0.0
        %1877 = vmatpush.msra.mxu0 0.0
        %v1878 = vand.u32 %v333, 4294901760
        %v1879 = vsub.f32 %v333, %v1878
        %1880 = vmatpush.msra.mxu0 %v1879
        %v1881 = vand.u32 %v332, 4294901760
        %v1882 = vsub.f32 %v332, %v1881
        %1883 = vmatpush.msra.mxu0 %v1882
        %v1884 = vand.u32 %v514, 4294901760
        %v1885 = vsub.f32 %v514, %v1884
        %1886 = vmatmul.f32.gmra.mxu0 %v1885
        %v1887 = vpop.f32.mrf.mxu0
        %v1888 = vadd.f32 %v1862, %v1887
        %1889 = vdwg.mxu0
        %1890 = vmatpush.msra.mxu0 0.0
        %1891 = vmatpush.msra.mxu0 0.0
        %1892 = vmatpush.msra.mxu0 0.0
        %1893 = vmatpush.msra.mxu0 0.0
        %1894 = vmatpush.msra.mxu0 0.0
        %1895 = vmatpush.msra.mxu0 0.0
        %1896 = vmatpush.msra.mxu0 0.0
        %1897 = vmatpush.msra.mxu0 0.0
        %1898 = vmatpush.msra.mxu0 0.0
        %1899 = vmatpush.msra.mxu0 0.0
        %1900 = vmatpush.msra.mxu0 0.0
        %1901 = vmatpush.msra.mxu0 0.0
        %1902 = vmatpush.msra.mxu0 0.0
        %1903 = vmatpush.msra.mxu0 0.0
        %v1904 = vand.u32 %v333, 4294901760
        %1905 = vmatpush.msra.mxu0 %v1904
        %v1906 = vand.u32 %v332, 4294901760
        %1907 = vmatpush.msra.mxu0 %v1906
        %v1908 = vand.u32 %v514, 4294901760
        %v1909 = vsub.f32 %v514, %v1908
        %v1910 = vand.u32 %v1909, 4294901760
        %1911 = vmatmul.f32.gmra.mxu0 %v1910
        %v1912 = vpop.f32.mrf.mxu0
        %v1913 = vadd.f32 %v1888, %v1912
        %1914 = vdwg.mxu0
        %1915 = vmatpush.msra.mxu0 0.0
        %1916 = vmatpush.msra.mxu0 0.0
        %1917 = vmatpush.msra.mxu0 0.0
        %1918 = vmatpush.msra.mxu0 0.0
        %1919 = vmatpush.msra.mxu0 0.0
        %1920 = vmatpush.msra.mxu0 0.0
        %1921 = vmatpush.msra.mxu0 0.0
        %1922 = vmatpush.msra.mxu0 0.0
        %1923 = vmatpush.msra.mxu0 0.0
        %1924 = vmatpush.msra.mxu0 0.0
        %1925 = vmatpush.msra.mxu0 0.0
        %1926 = vmatpush.msra.mxu0 0.0
        %1927 = vmatpush.msra.mxu0 0.0
        %1928 = vmatpush.msra.mxu0 0.0
        %v1929 = vand.u32 %v333, 4294901760
        %v1930 = vsub.f32 %v333, %v1929
        %v1931 = vand.u32 %v1930, 4294901760
        %1932 = vmatpush.msra.mxu0 %v1931
        %v1933 = vand.u32 %v332, 4294901760
        %v1934 = vsub.f32 %v332, %v1933
        %v1935 = vand.u32 %v1934, 4294901760
        %1936 = vmatpush.msra.mxu0 %v1935
        %v1937 = vand.u32 %v514, 4294901760
        %1938 = vmatmul.f32.gmra.mxu0 %v1937
        %v1939 = vpop.f32.mrf.mxu0
        %v1940 = vadd.f32 %v1913, %v1939
        %1941 = vdwg.mxu0
        %1942 = vmatpush.msra.mxu0 0.0
        %1943 = vmatpush.msra.mxu0 0.0
        %1944 = vmatpush.msra.mxu0 0.0
        %1945 = vmatpush.msra.mxu0 0.0
        %1946 = vmatpush.msra.mxu0 0.0
        %1947 = vmatpush.msra.mxu0 0.0
        %1948 = vmatpush.msra.mxu0 0.0
        %1949 = vmatpush.msra.mxu0 0.0
        %1950 = vmatpush.msra.mxu0 0.0
        %1951 = vmatpush.msra.mxu0 0.0
        %1952 = vmatpush.msra.mxu0 0.0
        %1953 = vmatpush.msra.mxu0 0.0
        %1954 = vmatpush.msra.mxu0 0.0
        %1955 = vmatpush.msra.mxu0 0.0
        %v1956 = vand.u32 %v333, 4294901760
        %1957 = vmatpush.msra.mxu0 %v1956
        %v1958 = vand.u32 %v332, 4294901760
        %1959 = vmatpush.msra.mxu0 %v1958
        %v1960 = vand.u32 %v514, 4294901760
        %1961 = vmatmul.f32.gmra.mxu0 %v1960
        %v1962 = vpop.f32.mrf.mxu0
        %v1963 = vadd.f32 %v1940, %v1962
        %1964 = vdwg.mxu0
        %1965 = vmatpush.msra.mxu0 0.0
        %1966 = vmatpush.msra.mxu0 0.0
        %1967 = vmatpush.msra.mxu0 0.0
        %1968 = vmatpush.msra.mxu0 0.0
        %1969 = vmatpush.msra.mxu0 0.0
        %1970 = vmatpush.msra.mxu0 0.0
        %1971 = vmatpush.msra.mxu0 0.0
        %1972 = vmatpush.msra.mxu0 0.0
        %1973 = vmatpush.msra.mxu0 0.0
        %1974 = vmatpush.msra.mxu0 0.0
        %1975 = vmatpush.msra.mxu0 0.0
        %1976 = vmatpush.msra.mxu0 0.0
        %1977 = vmatpush.msra.mxu0 0.0
        %1978 = vmatpush.msra.mxu0 0.0
        %v1979 = vand.u32 %v335, 4294901760
        %1980 = vmatpush.msra.mxu0 %v1979
        %v1981 = vand.u32 %v334, 4294901760
        %1982 = vmatpush.msra.mxu0 %v1981
        %v1983 = vand.u32 %v676, 4294901760
        %v1984 = vsub.f32 %v676, %v1983
        %v1985 = vand.u32 %v1984, 4294901760
        %v1986 = vsub.f32 %v1984, %v1985
        %v1987 = vand.u32 %v1986, 4294901760
        %1988 = vmatmul.f32.gmra.mxu0 %v1987
        %v1989 = vpop.f32.mrf.mxu0
        %v1990 = vadd.f32 0.0, %v1989
        %1991 = vdwg.mxu0
        %1992 = vmatpush.msra.mxu0 0.0
        %1993 = vmatpush.msra.mxu0 0.0
        %1994 = vmatpush.msra.mxu0 0.0
        %1995 = vmatpush.msra.mxu0 0.0
        %1996 = vmatpush.msra.mxu0 0.0
        %1997 = vmatpush.msra.mxu0 0.0
        %1998 = vmatpush.msra.mxu0 0.0
        %1999 = vmatpush.msra.mxu0 0.0
        %2000 = vmatpush.msra.mxu0 0.0
        %2001 = vmatpush.msra.mxu0 0.0
        %2002 = vmatpush.msra.mxu0 0.0
        %2003 = vmatpush.msra.mxu0 0.0
        %2004 = vmatpush.msra.mxu0 0.0
        %2005 = vmatpush.msra.mxu0 0.0
        %v2006 = vand.u32 %v335, 4294901760
        %v2007 = vsub.f32 %v335, %v2006
        %v2008 = vand.u32 %v2007, 4294901760
        %v2009 = vsub.f32 %v2007, %v2008
        %v2010 = vand.u32 %v2009, 4294901760
        %2011 = vmatpush.msra.mxu0 %v2010
        %v2012 = vand.u32 %v334, 4294901760
        %v2013 = vsub.f32 %v334, %v2012
        %v2014 = vand.u32 %v2013, 4294901760
        %v2015 = vsub.f32 %v2013, %v2014
        %v2016 = vand.u32 %v2015, 4294901760
        %2017 = vmatpush.msra.mxu0 %v2016
        %v2018 = vand.u32 %v676, 4294901760
        %2019 = vmatmul.f32.gmra.mxu0 %v2018
        %v2020 = vpop.f32.mrf.mxu0
        %v2021 = vadd.f32 %v1990, %v2020
        %2022 = vdwg.mxu0
        %2023 = vmatpush.msra.mxu0 0.0
        %2024 = vmatpush.msra.mxu0 0.0
        %2025 = vmatpush.msra.mxu0 0.0
        %2026 = vmatpush.msra.mxu0 0.0
        %2027 = vmatpush.msra.mxu0 0.0
        %2028 = vmatpush.msra.mxu0 0.0
        %2029 = vmatpush.msra.mxu0 0.0
        %2030 = vmatpush.msra.mxu0 0.0
        %2031 = vmatpush.msra.mxu0 0.0
        %2032 = vmatpush.msra.mxu0 0.0
        %2033 = vmatpush.msra.mxu0 0.0
        %2034 = vmatpush.msra.mxu0 0.0
        %2035 = vmatpush.msra.mxu0 0.0
        %2036 = vmatpush.msra.mxu0 0.0
        %v2037 = vand.u32 %v335, 4294901760
        %v2038 = vsub.f32 %v335, %v2037
        %2039 = vmatpush.msra.mxu0 %v2038
        %v2040 = vand.u32 %v334, 4294901760
        %v2041 = vsub.f32 %v334, %v2040
        %2042 = vmatpush.msra.mxu0 %v2041
        %v2043 = vand.u32 %v676, 4294901760
        %v2044 = vsub.f32 %v676, %v2043
        %2045 = vmatmul.f32.gmra.mxu0 %v2044
        %v2046 = vpop.f32.mrf.mxu0
        %v2047 = vadd.f32 %v2021, %v2046
        %2048 = vdwg.mxu0
        %2049 = vmatpush.msra.mxu0 0.0
        %2050 = vmatpush.msra.mxu0 0.0
        %2051 = vmatpush.msra.mxu0 0.0
        %2052 = vmatpush.msra.mxu0 0.0
        %2053 = vmatpush.msra.mxu0 0.0
        %2054 = vmatpush.msra.mxu0 0.0
        %2055 = vmatpush.msra.mxu0 0.0
        %2056 = vmatpush.msra.mxu0 0.0
        %2057 = vmatpush.msra.mxu0 0.0
        %2058 = vmatpush.msra.mxu0 0.0
        %2059 = vmatpush.msra.mxu0 0.0
        %2060 = vmatpush.msra.mxu0 0.0
        %2061 = vmatpush.msra.mxu0 0.0
        %2062 = vmatpush.msra.mxu0 0.0
        %v2063 = vand.u32 %v335, 4294901760
        %2064 = vmatpush.msra.mxu0 %v2063
        %v2065 = vand.u32 %v334, 4294901760
        %2066 = vmatpush.msra.mxu0 %v2065
        %v2067 = vand.u32 %v676, 4294901760
        %v2068 = vsub.f32 %v676, %v2067
        %v2069 = vand.u32 %v2068, 4294901760
        %2070 = vmatmul.f32.gmra.mxu0 %v2069
        %v2071 = vpop.f32.mrf.mxu0
        %v2072 = vadd.f32 %v2047, %v2071
        %2073 = vdwg.mxu0
        %2074 = vmatpush.msra.mxu0 0.0
        %2075 = vmatpush.msra.mxu0 0.0
        %2076 = vmatpush.msra.mxu0 0.0
        %2077 = vmatpush.msra.mxu0 0.0
        %2078 = vmatpush.msra.mxu0 0.0
        %2079 = vmatpush.msra.mxu0 0.0
        %2080 = vmatpush.msra.mxu0 0.0
        %2081 = vmatpush.msra.mxu0 0.0
        %2082 = vmatpush.msra.mxu0 0.0
        %2083 = vmatpush.msra.mxu0 0.0
        %2084 = vmatpush.msra.mxu0 0.0
        %2085 = vmatpush.msra.mxu0 0.0
        %2086 = vmatpush.msra.mxu0 0.0
        %2087 = vmatpush.msra.mxu0 0.0
        %v2088 = vand.u32 %v335, 4294901760
        %v2089 = vsub.f32 %v335, %v2088
        %v2090 = vand.u32 %v2089, 4294901760
        %2091 = vmatpush.msra.mxu0 %v2090
        %v2092 = vand.u32 %v334, 4294901760
        %v2093 = vsub.f32 %v334, %v2092
        %v2094 = vand.u32 %v2093, 4294901760
        %2095 = vmatpush.msra.mxu0 %v2094
        %v2096 = vand.u32 %v676, 4294901760
        %2097 = vmatmul.f32.gmra.mxu0 %v2096
        %v2098 = vpop.f32.mrf.mxu0
        %v2099 = vadd.f32 %v2072, %v2098
        %2100 = vdwg.mxu0
        %2101 = vmatpush.msra.mxu0 0.0
        %2102 = vmatpush.msra.mxu0 0.0
        %2103 = vmatpush.msra.mxu0 0.0
        %2104 = vmatpush.msra.mxu0 0.0
        %2105 = vmatpush.msra.mxu0 0.0
        %2106 = vmatpush.msra.mxu0 0.0
        %2107 = vmatpush.msra.mxu0 0.0
        %2108 = vmatpush.msra.mxu0 0.0
        %2109 = vmatpush.msra.mxu0 0.0
        %2110 = vmatpush.msra.mxu0 0.0
        %2111 = vmatpush.msra.mxu0 0.0
        %2112 = vmatpush.msra.mxu0 0.0
        %2113 = vmatpush.msra.mxu0 0.0
        %2114 = vmatpush.msra.mxu0 0.0
        %v2115 = vand.u32 %v335, 4294901760
        %2116 = vmatpush.msra.mxu0 %v2115
        %v2117 = vand.u32 %v334, 4294901760
        %2118 = vmatpush.msra.mxu0 %v2117
        %v2119 = vand.u32 %v676, 4294901760
        %2120 = vmatmul.f32.gmra.mxu0 %v2119
        %v2121 = vpop.f32.mrf.mxu0
        %v2122 = vadd.f32 %v2099, %v2121
        %2123 = vdwg.mxu0
        %2124 = vmatpush.msra.mxu0 0.0
        %2125 = vmatpush.msra.mxu0 0.0
        %2126 = vmatpush.msra.mxu0 0.0
        %2127 = vmatpush.msra.mxu0 0.0
        %2128 = vmatpush.msra.mxu0 0.0
        %2129 = vmatpush.msra.mxu0 0.0
        %2130 = vmatpush.msra.mxu0 0.0
        %2131 = vmatpush.msra.mxu0 0.0
        %2132 = vmatpush.msra.mxu0 0.0
        %2133 = vmatpush.msra.mxu0 0.0
        %2134 = vmatpush.msra.mxu0 0.0
        %2135 = vmatpush.msra.mxu0 0.0
        %2136 = vmatpush.msra.mxu0 0.0
        %2137 = vmatpush.msra.mxu0 0.0
        %v2138 = vand.u32 %v337, 4294901760
        %2139 = vmatpush.msra.mxu0 %v2138
        %v2140 = vand.u32 %v336, 4294901760
        %2141 = vmatpush.msra.mxu0 %v2140
        %v2142 = vand.u32 %v838, 4294901760
        %v2143 = vsub.f32 %v838, %v2142
        %v2144 = vand.u32 %v2143, 4294901760
        %v2145 = vsub.f32 %v2143, %v2144
        %v2146 = vand.u32 %v2145, 4294901760
        %2147 = vmatmul.f32.gmra.mxu0 %v2146
        %v2148 = vpop.f32.mrf.mxu0
        %v2149 = vadd.f32 0.0, %v2148
        %2150 = vdwg.mxu0
        %2151 = vmatpush.msra.mxu0 0.0
        %2152 = vmatpush.msra.mxu0 0.0
        %2153 = vmatpush.msra.mxu0 0.0
        %2154 = vmatpush.msra.mxu0 0.0
        %2155 = vmatpush.msra.mxu0 0.0
        %2156 = vmatpush.msra.mxu0 0.0
        %2157 = vmatpush.msra.mxu0 0.0
        %2158 = vmatpush.msra.mxu0 0.0
        %2159 = vmatpush.msra.mxu0 0.0
        %2160 = vmatpush.msra.mxu0 0.0
        %2161 = vmatpush.msra.mxu0 0.0
        %2162 = vmatpush.msra.mxu0 0.0
        %2163 = vmatpush.msra.mxu0 0.0
        %2164 = vmatpush.msra.mxu0 0.0
        %v2165 = vand.u32 %v337, 4294901760
        %v2166 = vsub.f32 %v337, %v2165
        %v2167 = vand.u32 %v2166, 4294901760
        %v2168 = vsub.f32 %v2166, %v2167
        %v2169 = vand.u32 %v2168, 4294901760
        %2170 = vmatpush.msra.mxu0 %v2169
        %v2171 = vand.u32 %v336, 4294901760
        %v2172 = vsub.f32 %v336, %v2171
        %v2173 = vand.u32 %v2172, 4294901760
        %v2174 = vsub.f32 %v2172, %v2173
        %v2175 = vand.u32 %v2174, 4294901760
        %2176 = vmatpush.msra.mxu0 %v2175
        %v2177 = vand.u32 %v838, 4294901760
        %2178 = vmatmul.f32.gmra.mxu0 %v2177
        %v2179 = vpop.f32.mrf.mxu0
        %v2180 = vadd.f32 %v2149, %v2179
        %2181 = vdwg.mxu0
        %2182 = vmatpush.msra.mxu0 0.0
        %2183 = vmatpush.msra.mxu0 0.0
        %2184 = vmatpush.msra.mxu0 0.0
        %2185 = vmatpush.msra.mxu0 0.0
        %2186 = vmatpush.msra.mxu0 0.0
        %2187 = vmatpush.msra.mxu0 0.0
        %2188 = vmatpush.msra.mxu0 0.0
        %2189 = vmatpush.msra.mxu0 0.0
        %2190 = vmatpush.msra.mxu0 0.0
        %2191 = vmatpush.msra.mxu0 0.0
        %2192 = vmatpush.msra.mxu0 0.0
        %2193 = vmatpush.msra.mxu0 0.0
        %2194 = vmatpush.msra.mxu0 0.0
        %2195 = vmatpush.msra.mxu0 0.0
        %v2196 = vand.u32 %v337, 4294901760
        %v2197 = vsub.f32 %v337, %v2196
        %2198 = vmatpush.msra.mxu0 %v2197
        %v2199 = vand.u32 %v336, 4294901760
        %v2200 = vsub.f32 %v336, %v2199
        %2201 = vmatpush.msra.mxu0 %v2200
        %v2202 = vand.u32 %v838, 4294901760
        %v2203 = vsub.f32 %v838, %v2202
        %2204 = vmatmul.f32.gmra.mxu0 %v2203
        %v2205 = vpop.f32.mrf.mxu0
        %v2206 = vadd.f32 %v2180, %v2205
        %2207 = vdwg.mxu0
        %2208 = vmatpush.msra.mxu0 0.0
        %2209 = vmatpush.msra.mxu0 0.0
        %2210 = vmatpush.msra.mxu0 0.0
        %2211 = vmatpush.msra.mxu0 0.0
        %2212 = vmatpush.msra.mxu0 0.0
        %2213 = vmatpush.msra.mxu0 0.0
        %2214 = vmatpush.msra.mxu0 0.0
        %2215 = vmatpush.msra.mxu0 0.0
        %2216 = vmatpush.msra.mxu0 0.0
        %2217 = vmatpush.msra.mxu0 0.0
        %2218 = vmatpush.msra.mxu0 0.0
        %2219 = vmatpush.msra.mxu0 0.0
        %2220 = vmatpush.msra.mxu0 0.0
        %2221 = vmatpush.msra.mxu0 0.0
        %v2222 = vand.u32 %v337, 4294901760
        %2223 = vmatpush.msra.mxu0 %v2222
        %v2224 = vand.u32 %v336, 4294901760
        %2225 = vmatpush.msra.mxu0 %v2224
        %v2226 = vand.u32 %v838, 4294901760
        %v2227 = vsub.f32 %v838, %v2226
        %v2228 = vand.u32 %v2227, 4294901760
        %2229 = vmatmul.f32.gmra.mxu0 %v2228
        %v2230 = vpop.f32.mrf.mxu0
        %v2231 = vadd.f32 %v2206, %v2230
        %2232 = vdwg.mxu0
        %2233 = vmatpush.msra.mxu0 0.0
        %2234 = vmatpush.msra.mxu0 0.0
        %2235 = vmatpush.msra.mxu0 0.0
        %2236 = vmatpush.msra.mxu0 0.0
        %2237 = vmatpush.msra.mxu0 0.0
        %2238 = vmatpush.msra.mxu0 0.0
        %2239 = vmatpush.msra.mxu0 0.0
        %2240 = vmatpush.msra.mxu0 0.0
        %2241 = vmatpush.msra.mxu0 0.0
        %2242 = vmatpush.msra.mxu0 0.0
        %2243 = vmatpush.msra.mxu0 0.0
        %2244 = vmatpush.msra.mxu0 0.0
        %2245 = vmatpush.msra.mxu0 0.0
        %2246 = vmatpush.msra.mxu0 0.0
        %v2247 = vand.u32 %v337, 4294901760
        %v2248 = vsub.f32 %v337, %v2247
        %v2249 = vand.u32 %v2248, 4294901760
        %2250 = vmatpush.msra.mxu0 %v2249
        %v2251 = vand.u32 %v336, 4294901760
        %v2252 = vsub.f32 %v336, %v2251
        %v2253 = vand.u32 %v2252, 4294901760
        %2254 = vmatpush.msra.mxu0 %v2253
        %v2255 = vand.u32 %v838, 4294901760
        %2256 = vmatmul.f32.gmra.mxu0 %v2255
        %v2257 = vpop.f32.mrf.mxu0
        %v2258 = vadd.f32 %v2231, %v2257
        %2259 = vdwg.mxu0
        %2260 = vmatpush.msra.mxu0 0.0
        %2261 = vmatpush.msra.mxu0 0.0
        %2262 = vmatpush.msra.mxu0 0.0
        %2263 = vmatpush.msra.mxu0 0.0
        %2264 = vmatpush.msra.mxu0 0.0
        %2265 = vmatpush.msra.mxu0 0.0
        %2266 = vmatpush.msra.mxu0 0.0
        %2267 = vmatpush.msra.mxu0 0.0
        %2268 = vmatpush.msra.mxu0 0.0
        %2269 = vmatpush.msra.mxu0 0.0
        %2270 = vmatpush.msra.mxu0 0.0
        %2271 = vmatpush.msra.mxu0 0.0
        %2272 = vmatpush.msra.mxu0 0.0
        %2273 = vmatpush.msra.mxu0 0.0
        %v2274 = vand.u32 %v337, 4294901760
        %2275 = vmatpush.msra.mxu0 %v2274
        %v2276 = vand.u32 %v336, 4294901760
        %2277 = vmatpush.msra.mxu0 %v2276
        %v2278 = vand.u32 %v838, 4294901760
        %2279 = vmatmul.f32.gmra.mxu0 %v2278
        %v2280 = vpop.f32.mrf.mxu0
        %v2281 = vadd.f32 %v2258, %v2280
        %2282 = vdwg.mxu0
        %v2284 = vsel %vm350, %v1804, 0
        %2286 = vmatpush.msra.mxu0 0.0
        %2287 = vmatpush.msra.mxu0 0.0
        %2288 = vmatpush.msra.mxu0 0.0
        %2289 = vmatpush.msra.mxu0 0.0
        %2290 = vmatpush.msra.mxu0 0.0
        %2291 = vmatpush.msra.mxu0 0.0
        %2292 = vmatpush.msra.mxu0 0.0
        %2293 = vmatpush.msra.mxu0 0.0
        %2294 = vmatpush.msra.mxu0 0.0
        %2295 = vmatpush.msra.mxu0 0.0
        %2296 = vmatpush.msra.mxu0 0.0
        %2297 = vmatpush.msra.mxu0 0.0
        %2298 = vmatpush.msra.mxu0 0.0
        %2299 = vmatpush.msra.mxu0 0.0
        %v2300 = vand.u32 %v343, 4294901760
        %2301 = vmatpush.msra.mxu0 %v2300
        %v2302 = vand.u32 %v342, 4294901760
        %2303 = vmatpush.msra.mxu0 %v2302
        %v2304 = vand.u32 %v2284, 4294901760
        %v2305 = vsub.f32 %v2284, %v2304
        %v2306 = vand.u32 %v2305, 4294901760
        %v2307 = vsub.f32 %v2305, %v2306
        %v2308 = vand.u32 %v2307, 4294901760
        %2309 = vmatmul.f32.gmra.mxu0 %v2308
        %v2310 = vpop.f32.mrf.mxu0
        %v2311 = vadd.f32 0.0, %v2310
        %2312 = vdwg.mxu0
        %2313 = vmatpush.msra.mxu0 0.0
        %2314 = vmatpush.msra.mxu0 0.0
        %2315 = vmatpush.msra.mxu0 0.0
        %2316 = vmatpush.msra.mxu0 0.0
        %2317 = vmatpush.msra.mxu0 0.0
        %2318 = vmatpush.msra.mxu0 0.0
        %2319 = vmatpush.msra.mxu0 0.0
        %2320 = vmatpush.msra.mxu0 0.0
        %2321 = vmatpush.msra.mxu0 0.0
        %2322 = vmatpush.msra.mxu0 0.0
        %2323 = vmatpush.msra.mxu0 0.0
        %2324 = vmatpush.msra.mxu0 0.0
        %2325 = vmatpush.msra.mxu0 0.0
        %2326 = vmatpush.msra.mxu0 0.0
        %v2327 = vand.u32 %v343, 4294901760
        %v2328 = vsub.f32 %v343, %v2327
        %v2329 = vand.u32 %v2328, 4294901760
        %v2330 = vsub.f32 %v2328, %v2329
        %v2331 = vand.u32 %v2330, 4294901760
        %2332 = vmatpush.msra.mxu0 %v2331
        %v2333 = vand.u32 %v342, 4294901760
        %v2334 = vsub.f32 %v342, %v2333
        %v2335 = vand.u32 %v2334, 4294901760
        %v2336 = vsub.f32 %v2334, %v2335
        %v2337 = vand.u32 %v2336, 4294901760
        %2338 = vmatpush.msra.mxu0 %v2337
        %v2339 = vand.u32 %v2284, 4294901760
        %2340 = vmatmul.f32.gmra.mxu0 %v2339
        %v2341 = vpop.f32.mrf.mxu0
        %v2342 = vadd.f32 %v2311, %v2341
        %2343 = vdwg.mxu0
        %2344 = vmatpush.msra.mxu0 0.0
        %2345 = vmatpush.msra.mxu0 0.0
        %2346 = vmatpush.msra.mxu0 0.0
        %2347 = vmatpush.msra.mxu0 0.0
        %2348 = vmatpush.msra.mxu0 0.0
        %2349 = vmatpush.msra.mxu0 0.0
        %2350 = vmatpush.msra.mxu0 0.0
        %2351 = vmatpush.msra.mxu0 0.0
        %2352 = vmatpush.msra.mxu0 0.0
        %2353 = vmatpush.msra.mxu0 0.0
        %2354 = vmatpush.msra.mxu0 0.0
        %2355 = vmatpush.msra.mxu0 0.0
        %2356 = vmatpush.msra.mxu0 0.0
        %2357 = vmatpush.msra.mxu0 0.0
        %v2358 = vand.u32 %v343, 4294901760
        %v2359 = vsub.f32 %v343, %v2358
        %2360 = vmatpush.msra.mxu0 %v2359
        %v2361 = vand.u32 %v342, 4294901760
        %v2362 = vsub.f32 %v342, %v2361
        %2363 = vmatpush.msra.mxu0 %v2362
        %v2364 = vand.u32 %v2284, 4294901760
        %v2365 = vsub.f32 %v2284, %v2364
        %2366 = vmatmul.f32.gmra.mxu0 %v2365
        %v2367 = vpop.f32.mrf.mxu0
        %v2368 = vadd.f32 %v2342, %v2367
        %2369 = vdwg.mxu0
        %2370 = vmatpush.msra.mxu0 0.0
        %2371 = vmatpush.msra.mxu0 0.0
        %2372 = vmatpush.msra.mxu0 0.0
        %2373 = vmatpush.msra.mxu0 0.0
        %2374 = vmatpush.msra.mxu0 0.0
        %2375 = vmatpush.msra.mxu0 0.0
        %2376 = vmatpush.msra.mxu0 0.0
        %2377 = vmatpush.msra.mxu0 0.0
        %2378 = vmatpush.msra.mxu0 0.0
        %2379 = vmatpush.msra.mxu0 0.0
        %2380 = vmatpush.msra.mxu0 0.0
        %2381 = vmatpush.msra.mxu0 0.0
        %2382 = vmatpush.msra.mxu0 0.0
        %2383 = vmatpush.msra.mxu0 0.0
        %v2384 = vand.u32 %v343, 4294901760
        %2385 = vmatpush.msra.mxu0 %v2384
        %v2386 = vand.u32 %v342, 4294901760
        %2387 = vmatpush.msra.mxu0 %v2386
        %v2388 = vand.u32 %v2284, 4294901760
        %v2389 = vsub.f32 %v2284, %v2388
        %v2390 = vand.u32 %v2389, 4294901760
        %2391 = vmatmul.f32.gmra.mxu0 %v2390
        %v2392 = vpop.f32.mrf.mxu0
        %v2393 = vadd.f32 %v2368, %v2392
        %2394 = vdwg.mxu0
        %2395 = vmatpush.msra.mxu0 0.0
        %2396 = vmatpush.msra.mxu0 0.0
        %2397 = vmatpush.msra.mxu0 0.0
        %2398 = vmatpush.msra.mxu0 0.0
        %2399 = vmatpush.msra.mxu0 0.0
        %2400 = vmatpush.msra.mxu0 0.0
        %2401 = vmatpush.msra.mxu0 0.0
        %2402 = vmatpush.msra.mxu0 0.0
        %2403 = vmatpush.msra.mxu0 0.0
        %2404 = vmatpush.msra.mxu0 0.0
        %2405 = vmatpush.msra.mxu0 0.0
        %2406 = vmatpush.msra.mxu0 0.0
        %2407 = vmatpush.msra.mxu0 0.0
        %2408 = vmatpush.msra.mxu0 0.0
        %v2409 = vand.u32 %v343, 4294901760
        %v2410 = vsub.f32 %v343, %v2409
        %v2411 = vand.u32 %v2410, 4294901760
        %2412 = vmatpush.msra.mxu0 %v2411
        %v2413 = vand.u32 %v342, 4294901760
        %v2414 = vsub.f32 %v342, %v2413
        %v2415 = vand.u32 %v2414, 4294901760
        %2416 = vmatpush.msra.mxu0 %v2415
        %v2417 = vand.u32 %v2284, 4294901760
        %2418 = vmatmul.f32.gmra.mxu0 %v2417
        %v2419 = vpop.f32.mrf.mxu0
        %v2420 = vadd.f32 %v2393, %v2419
        %2421 = vdwg.mxu0
        %2422 = vmatpush.msra.mxu0 0.0
        %2423 = vmatpush.msra.mxu0 0.0
        %2424 = vmatpush.msra.mxu0 0.0
        %2425 = vmatpush.msra.mxu0 0.0
        %2426 = vmatpush.msra.mxu0 0.0
        %2427 = vmatpush.msra.mxu0 0.0
        %2428 = vmatpush.msra.mxu0 0.0
        %2429 = vmatpush.msra.mxu0 0.0
        %2430 = vmatpush.msra.mxu0 0.0
        %2431 = vmatpush.msra.mxu0 0.0
        %2432 = vmatpush.msra.mxu0 0.0
        %2433 = vmatpush.msra.mxu0 0.0
        %2434 = vmatpush.msra.mxu0 0.0
        %2435 = vmatpush.msra.mxu0 0.0
        %v2436 = vand.u32 %v343, 4294901760
        %2437 = vmatpush.msra.mxu0 %v2436
        %v2438 = vand.u32 %v342, 4294901760
        %2439 = vmatpush.msra.mxu0 %v2438
        %v2440 = vand.u32 %v2284, 4294901760
        %2441 = vmatmul.f32.gmra.mxu0 %v2440
        %v2442 = vpop.f32.mrf.mxu0
        %v2443 = vadd.f32 %v2420, %v2442
        %2444 = vdwg.mxu0
        %v2446 = vsel %vm350, %v1963, 0
        %2448 = vmatpush.msra.mxu0 0.0
        %2449 = vmatpush.msra.mxu0 0.0
        %2450 = vmatpush.msra.mxu0 0.0
        %2451 = vmatpush.msra.mxu0 0.0
        %2452 = vmatpush.msra.mxu0 0.0
        %2453 = vmatpush.msra.mxu0 0.0
        %2454 = vmatpush.msra.mxu0 0.0
        %2455 = vmatpush.msra.mxu0 0.0
        %2456 = vmatpush.msra.mxu0 0.0
        %2457 = vmatpush.msra.mxu0 0.0
        %2458 = vmatpush.msra.mxu0 0.0
        %2459 = vmatpush.msra.mxu0 0.0
        %2460 = vmatpush.msra.mxu0 0.0
        %2461 = vmatpush.msra.mxu0 0.0
        %v2462 = vand.u32 %v345, 4294901760
        %2463 = vmatpush.msra.mxu0 %v2462
        %v2464 = vand.u32 %v344, 4294901760
        %2465 = vmatpush.msra.mxu0 %v2464
        %v2466 = vand.u32 %v2446, 4294901760
        %v2467 = vsub.f32 %v2446, %v2466
        %v2468 = vand.u32 %v2467, 4294901760
        %v2469 = vsub.f32 %v2467, %v2468
        %v2470 = vand.u32 %v2469, 4294901760
        %2471 = vmatmul.f32.gmra.mxu0 %v2470
        %v2472 = vpop.f32.mrf.mxu0
        %v2473 = vadd.f32 0.0, %v2472
        %2474 = vdwg.mxu0
        %2475 = vmatpush.msra.mxu0 0.0
        %2476 = vmatpush.msra.mxu0 0.0
        %2477 = vmatpush.msra.mxu0 0.0
        %2478 = vmatpush.msra.mxu0 0.0
        %2479 = vmatpush.msra.mxu0 0.0
        %2480 = vmatpush.msra.mxu0 0.0
        %2481 = vmatpush.msra.mxu0 0.0
        %2482 = vmatpush.msra.mxu0 0.0
        %2483 = vmatpush.msra.mxu0 0.0
        %2484 = vmatpush.msra.mxu0 0.0
        %2485 = vmatpush.msra.mxu0 0.0
        %2486 = vmatpush.msra.mxu0 0.0
        %2487 = vmatpush.msra.mxu0 0.0
        %2488 = vmatpush.msra.mxu0 0.0
        %v2489 = vand.u32 %v345, 4294901760
        %v2490 = vsub.f32 %v345, %v2489
        %v2491 = vand.u32 %v2490, 4294901760
        %v2492 = vsub.f32 %v2490, %v2491
        %v2493 = vand.u32 %v2492, 4294901760
        %2494 = vmatpush.msra.mxu0 %v2493
        %v2495 = vand.u32 %v344, 4294901760
        %v2496 = vsub.f32 %v344, %v2495
        %v2497 = vand.u32 %v2496, 4294901760
        %v2498 = vsub.f32 %v2496, %v2497
        %v2499 = vand.u32 %v2498, 4294901760
        %2500 = vmatpush.msra.mxu0 %v2499
        %v2501 = vand.u32 %v2446, 4294901760
        %2502 = vmatmul.f32.gmra.mxu0 %v2501
        %v2503 = vpop.f32.mrf.mxu0
        %v2504 = vadd.f32 %v2473, %v2503
        %2505 = vdwg.mxu0
        %2506 = vmatpush.msra.mxu0 0.0
        %2507 = vmatpush.msra.mxu0 0.0
        %2508 = vmatpush.msra.mxu0 0.0
        %2509 = vmatpush.msra.mxu0 0.0
        %2510 = vmatpush.msra.mxu0 0.0
        %2511 = vmatpush.msra.mxu0 0.0
        %2512 = vmatpush.msra.mxu0 0.0
        %2513 = vmatpush.msra.mxu0 0.0
        %2514 = vmatpush.msra.mxu0 0.0
        %2515 = vmatpush.msra.mxu0 0.0
        %2516 = vmatpush.msra.mxu0 0.0
        %2517 = vmatpush.msra.mxu0 0.0
        %2518 = vmatpush.msra.mxu0 0.0
        %2519 = vmatpush.msra.mxu0 0.0
        %v2520 = vand.u32 %v345, 4294901760
        %v2521 = vsub.f32 %v345, %v2520
        %2522 = vmatpush.msra.mxu0 %v2521
        %v2523 = vand.u32 %v344, 4294901760
        %v2524 = vsub.f32 %v344, %v2523
        %2525 = vmatpush.msra.mxu0 %v2524
        %v2526 = vand.u32 %v2446, 4294901760
        %v2527 = vsub.f32 %v2446, %v2526
        %2528 = vmatmul.f32.gmra.mxu0 %v2527
        %v2529 = vpop.f32.mrf.mxu0
        %v2530 = vadd.f32 %v2504, %v2529
        %2531 = vdwg.mxu0
        %2532 = vmatpush.msra.mxu0 0.0
        %2533 = vmatpush.msra.mxu0 0.0
        %2534 = vmatpush.msra.mxu0 0.0
        %2535 = vmatpush.msra.mxu0 0.0
        %2536 = vmatpush.msra.mxu0 0.0
        %2537 = vmatpush.msra.mxu0 0.0
        %2538 = vmatpush.msra.mxu0 0.0
        %2539 = vmatpush.msra.mxu0 0.0
        %2540 = vmatpush.msra.mxu0 0.0
        %2541 = vmatpush.msra.mxu0 0.0
        %2542 = vmatpush.msra.mxu0 0.0
        %2543 = vmatpush.msra.mxu0 0.0
        %2544 = vmatpush.msra.mxu0 0.0
        %2545 = vmatpush.msra.mxu0 0.0
        %v2546 = vand.u32 %v345, 4294901760
        %2547 = vmatpush.msra.mxu0 %v2546
        %v2548 = vand.u32 %v344, 4294901760
        %2549 = vmatpush.msra.mxu0 %v2548
        %v2550 = vand.u32 %v2446, 4294901760
        %v2551 = vsub.f32 %v2446, %v2550
        %v2552 = vand.u32 %v2551, 4294901760
        %2553 = vmatmul.f32.gmra.mxu0 %v2552
        %v2554 = vpop.f32.mrf.mxu0
        %v2555 = vadd.f32 %v2530, %v2554
        %2556 = vdwg.mxu0
        %2557 = vmatpush.msra.mxu0 0.0
        %2558 = vmatpush.msra.mxu0 0.0
        %2559 = vmatpush.msra.mxu0 0.0
        %2560 = vmatpush.msra.mxu0 0.0
        %2561 = vmatpush.msra.mxu0 0.0
        %2562 = vmatpush.msra.mxu0 0.0
        %2563 = vmatpush.msra.mxu0 0.0
        %2564 = vmatpush.msra.mxu0 0.0
        %2565 = vmatpush.msra.mxu0 0.0
        %2566 = vmatpush.msra.mxu0 0.0
        %2567 = vmatpush.msra.mxu0 0.0
        %2568 = vmatpush.msra.mxu0 0.0
        %2569 = vmatpush.msra.mxu0 0.0
        %2570 = vmatpush.msra.mxu0 0.0
        %v2571 = vand.u32 %v345, 4294901760
        %v2572 = vsub.f32 %v345, %v2571
        %v2573 = vand.u32 %v2572, 4294901760
        %2574 = vmatpush.msra.mxu0 %v2573
        %v2575 = vand.u32 %v344, 4294901760
        %v2576 = vsub.f32 %v344, %v2575
        %v2577 = vand.u32 %v2576, 4294901760
        %2578 = vmatpush.msra.mxu0 %v2577
        %v2579 = vand.u32 %v2446, 4294901760
        %2580 = vmatmul.f32.gmra.mxu0 %v2579
        %v2581 = vpop.f32.mrf.mxu0
        %v2582 = vadd.f32 %v2555, %v2581
        %2583 = vdwg.mxu0
        %2584 = vmatpush.msra.mxu0 0.0
        %2585 = vmatpush.msra.mxu0 0.0
        %2586 = vmatpush.msra.mxu0 0.0
        %2587 = vmatpush.msra.mxu0 0.0
        %2588 = vmatpush.msra.mxu0 0.0
        %2589 = vmatpush.msra.mxu0 0.0
        %2590 = vmatpush.msra.mxu0 0.0
        %2591 = vmatpush.msra.mxu0 0.0
        %2592 = vmatpush.msra.mxu0 0.0
        %2593 = vmatpush.msra.mxu0 0.0
        %2594 = vmatpush.msra.mxu0 0.0
        %2595 = vmatpush.msra.mxu0 0.0
        %2596 = vmatpush.msra.mxu0 0.0
        %2597 = vmatpush.msra.mxu0 0.0
        %v2598 = vand.u32 %v345, 4294901760
        %2599 = vmatpush.msra.mxu0 %v2598
        %v2600 = vand.u32 %v344, 4294901760
        %2601 = vmatpush.msra.mxu0 %v2600
        %v2602 = vand.u32 %v2446, 4294901760
        %2603 = vmatmul.f32.gmra.mxu0 %v2602
        %v2604 = vpop.f32.mrf.mxu0
        %v2605 = vadd.f32 %v2582, %v2604
        %2606 = vdwg.mxu0
        %v2608 = vsel %vm350, %v2122, 0
        %2610 = vmatpush.msra.mxu0 0.0
        %2611 = vmatpush.msra.mxu0 0.0
        %2612 = vmatpush.msra.mxu0 0.0
        %2613 = vmatpush.msra.mxu0 0.0
        %2614 = vmatpush.msra.mxu0 0.0
        %2615 = vmatpush.msra.mxu0 0.0
        %2616 = vmatpush.msra.mxu0 0.0
        %2617 = vmatpush.msra.mxu0 0.0
        %2618 = vmatpush.msra.mxu0 0.0
        %2619 = vmatpush.msra.mxu0 0.0
        %2620 = vmatpush.msra.mxu0 0.0
        %2621 = vmatpush.msra.mxu0 0.0
        %2622 = vmatpush.msra.mxu0 0.0
        %2623 = vmatpush.msra.mxu0 0.0
        %v2624 = vand.u32 %v347, 4294901760
        %2625 = vmatpush.msra.mxu0 %v2624
        %v2626 = vand.u32 %v346, 4294901760
        %2627 = vmatpush.msra.mxu0 %v2626
        %v2628 = vand.u32 %v2608, 4294901760
        %v2629 = vsub.f32 %v2608, %v2628
        %v2630 = vand.u32 %v2629, 4294901760
        %v2631 = vsub.f32 %v2629, %v2630
        %v2632 = vand.u32 %v2631, 4294901760
        %2633 = vmatmul.f32.gmra.mxu0 %v2632
        %v2634 = vpop.f32.mrf.mxu0
        %v2635 = vadd.f32 0.0, %v2634
        %2636 = vdwg.mxu0
        %2637 = vmatpush.msra.mxu0 0.0
        %2638 = vmatpush.msra.mxu0 0.0
        %2639 = vmatpush.msra.mxu0 0.0
        %2640 = vmatpush.msra.mxu0 0.0
        %2641 = vmatpush.msra.mxu0 0.0
        %2642 = vmatpush.msra.mxu0 0.0
        %2643 = vmatpush.msra.mxu0 0.0
        %2644 = vmatpush.msra.mxu0 0.0
        %2645 = vmatpush.msra.mxu0 0.0
        %2646 = vmatpush.msra.mxu0 0.0
        %2647 = vmatpush.msra.mxu0 0.0
        %2648 = vmatpush.msra.mxu0 0.0
        %2649 = vmatpush.msra.mxu0 0.0
        %2650 = vmatpush.msra.mxu0 0.0
        %v2651 = vand.u32 %v347, 4294901760
        %v2652 = vsub.f32 %v347, %v2651
        %v2653 = vand.u32 %v2652, 4294901760
        %v2654 = vsub.f32 %v2652, %v2653
        %v2655 = vand.u32 %v2654, 4294901760
        %2656 = vmatpush.msra.mxu0 %v2655
        %v2657 = vand.u32 %v346, 4294901760
        %v2658 = vsub.f32 %v346, %v2657
        %v2659 = vand.u32 %v2658, 4294901760
        %v2660 = vsub.f32 %v2658, %v2659
        %v2661 = vand.u32 %v2660, 4294901760
        %2662 = vmatpush.msra.mxu0 %v2661
        %v2663 = vand.u32 %v2608, 4294901760
        %2664 = vmatmul.f32.gmra.mxu0 %v2663
        %v2665 = vpop.f32.mrf.mxu0
        %v2666 = vadd.f32 %v2635, %v2665
        %2667 = vdwg.mxu0
        %2668 = vmatpush.msra.mxu0 0.0
        %2669 = vmatpush.msra.mxu0 0.0
        %2670 = vmatpush.msra.mxu0 0.0
        %2671 = vmatpush.msra.mxu0 0.0
        %2672 = vmatpush.msra.mxu0 0.0
        %2673 = vmatpush.msra.mxu0 0.0
        %2674 = vmatpush.msra.mxu0 0.0
        %2675 = vmatpush.msra.mxu0 0.0
        %2676 = vmatpush.msra.mxu0 0.0
        %2677 = vmatpush.msra.mxu0 0.0
        %2678 = vmatpush.msra.mxu0 0.0
        %2679 = vmatpush.msra.mxu0 0.0
        %2680 = vmatpush.msra.mxu0 0.0
        %2681 = vmatpush.msra.mxu0 0.0
        %v2682 = vand.u32 %v347, 4294901760
        %v2683 = vsub.f32 %v347, %v2682
        %2684 = vmatpush.msra.mxu0 %v2683
        %v2685 = vand.u32 %v346, 4294901760
        %v2686 = vsub.f32 %v346, %v2685
        %2687 = vmatpush.msra.mxu0 %v2686
        %v2688 = vand.u32 %v2608, 4294901760
        %v2689 = vsub.f32 %v2608, %v2688
        %2690 = vmatmul.f32.gmra.mxu0 %v2689
        %v2691 = vpop.f32.mrf.mxu0
        %v2692 = vadd.f32 %v2666, %v2691
        %2693 = vdwg.mxu0
        %2694 = vmatpush.msra.mxu0 0.0
        %2695 = vmatpush.msra.mxu0 0.0
        %2696 = vmatpush.msra.mxu0 0.0
        %2697 = vmatpush.msra.mxu0 0.0
        %2698 = vmatpush.msra.mxu0 0.0
        %2699 = vmatpush.msra.mxu0 0.0
        %2700 = vmatpush.msra.mxu0 0.0
        %2701 = vmatpush.msra.mxu0 0.0
        %2702 = vmatpush.msra.mxu0 0.0
        %2703 = vmatpush.msra.mxu0 0.0
        %2704 = vmatpush.msra.mxu0 0.0
        %2705 = vmatpush.msra.mxu0 0.0
        %2706 = vmatpush.msra.mxu0 0.0
        %2707 = vmatpush.msra.mxu0 0.0
        %v2708 = vand.u32 %v347, 4294901760
        %2709 = vmatpush.msra.mxu0 %v2708
        %v2710 = vand.u32 %v346, 4294901760
        %2711 = vmatpush.msra.mxu0 %v2710
        %v2712 = vand.u32 %v2608, 4294901760
        %v2713 = vsub.f32 %v2608, %v2712
        %v2714 = vand.u32 %v2713, 4294901760
        %2715 = vmatmul.f32.gmra.mxu0 %v2714
        %v2716 = vpop.f32.mrf.mxu0
        %v2717 = vadd.f32 %v2692, %v2716
        %2718 = vdwg.mxu0
        %2719 = vmatpush.msra.mxu0 0.0
        %2720 = vmatpush.msra.mxu0 0.0
        %2721 = vmatpush.msra.mxu0 0.0
        %2722 = vmatpush.msra.mxu0 0.0
        %2723 = vmatpush.msra.mxu0 0.0
        %2724 = vmatpush.msra.mxu0 0.0
        %2725 = vmatpush.msra.mxu0 0.0
        %2726 = vmatpush.msra.mxu0 0.0
        %2727 = vmatpush.msra.mxu0 0.0
        %2728 = vmatpush.msra.mxu0 0.0
        %2729 = vmatpush.msra.mxu0 0.0
        %2730 = vmatpush.msra.mxu0 0.0
        %2731 = vmatpush.msra.mxu0 0.0
        %2732 = vmatpush.msra.mxu0 0.0
        %v2733 = vand.u32 %v347, 4294901760
        %v2734 = vsub.f32 %v347, %v2733
        %v2735 = vand.u32 %v2734, 4294901760
        %2736 = vmatpush.msra.mxu0 %v2735
        %v2737 = vand.u32 %v346, 4294901760
        %v2738 = vsub.f32 %v346, %v2737
        %v2739 = vand.u32 %v2738, 4294901760
        %2740 = vmatpush.msra.mxu0 %v2739
        %v2741 = vand.u32 %v2608, 4294901760
        %2742 = vmatmul.f32.gmra.mxu0 %v2741
        %v2743 = vpop.f32.mrf.mxu0
        %v2744 = vadd.f32 %v2717, %v2743
        %2745 = vdwg.mxu0
        %2746 = vmatpush.msra.mxu0 0.0
        %2747 = vmatpush.msra.mxu0 0.0
        %2748 = vmatpush.msra.mxu0 0.0
        %2749 = vmatpush.msra.mxu0 0.0
        %2750 = vmatpush.msra.mxu0 0.0
        %2751 = vmatpush.msra.mxu0 0.0
        %2752 = vmatpush.msra.mxu0 0.0
        %2753 = vmatpush.msra.mxu0 0.0
        %2754 = vmatpush.msra.mxu0 0.0
        %2755 = vmatpush.msra.mxu0 0.0
        %2756 = vmatpush.msra.mxu0 0.0
        %2757 = vmatpush.msra.mxu0 0.0
        %2758 = vmatpush.msra.mxu0 0.0
        %2759 = vmatpush.msra.mxu0 0.0
        %v2760 = vand.u32 %v347, 4294901760
        %2761 = vmatpush.msra.mxu0 %v2760
        %v2762 = vand.u32 %v346, 4294901760
        %2763 = vmatpush.msra.mxu0 %v2762
        %v2764 = vand.u32 %v2608, 4294901760
        %2765 = vmatmul.f32.gmra.mxu0 %v2764
        %v2766 = vpop.f32.mrf.mxu0
        %v2767 = vadd.f32 %v2744, %v2766
        %2768 = vdwg.mxu0
        %v2770 = vsel %vm350, %v2281, 0
        %2772 = vmatpush.msra.mxu0 0.0
        %2773 = vmatpush.msra.mxu0 0.0
        %2774 = vmatpush.msra.mxu0 0.0
        %2775 = vmatpush.msra.mxu0 0.0
        %2776 = vmatpush.msra.mxu0 0.0
        %2777 = vmatpush.msra.mxu0 0.0
        %2778 = vmatpush.msra.mxu0 0.0
        %2779 = vmatpush.msra.mxu0 0.0
        %2780 = vmatpush.msra.mxu0 0.0
        %2781 = vmatpush.msra.mxu0 0.0
        %2782 = vmatpush.msra.mxu0 0.0
        %2783 = vmatpush.msra.mxu0 0.0
        %2784 = vmatpush.msra.mxu0 0.0
        %2785 = vmatpush.msra.mxu0 0.0
        %v2786 = vand.u32 %v349, 4294901760
        %2787 = vmatpush.msra.mxu0 %v2786
        %v2788 = vand.u32 %v348, 4294901760
        %2789 = vmatpush.msra.mxu0 %v2788
        %v2790 = vand.u32 %v2770, 4294901760
        %v2791 = vsub.f32 %v2770, %v2790
        %v2792 = vand.u32 %v2791, 4294901760
        %v2793 = vsub.f32 %v2791, %v2792
        %v2794 = vand.u32 %v2793, 4294901760
        %2795 = vmatmul.f32.gmra.mxu0 %v2794
        %v2796 = vpop.f32.mrf.mxu0
        %v2797 = vadd.f32 0.0, %v2796
        %2798 = vdwg.mxu0
        %2799 = vmatpush.msra.mxu0 0.0
        %2800 = vmatpush.msra.mxu0 0.0
        %2801 = vmatpush.msra.mxu0 0.0
        %2802 = vmatpush.msra.mxu0 0.0
        %2803 = vmatpush.msra.mxu0 0.0
        %2804 = vmatpush.msra.mxu0 0.0
        %2805 = vmatpush.msra.mxu0 0.0
        %2806 = vmatpush.msra.mxu0 0.0
        %2807 = vmatpush.msra.mxu0 0.0
        %2808 = vmatpush.msra.mxu0 0.0
        %2809 = vmatpush.msra.mxu0 0.0
        %2810 = vmatpush.msra.mxu0 0.0
        %2811 = vmatpush.msra.mxu0 0.0
        %2812 = vmatpush.msra.mxu0 0.0
        %v2813 = vand.u32 %v349, 4294901760
        %v2814 = vsub.f32 %v349, %v2813
        %v2815 = vand.u32 %v2814, 4294901760
        %v2816 = vsub.f32 %v2814, %v2815
        %v2817 = vand.u32 %v2816, 4294901760
        %2818 = vmatpush.msra.mxu0 %v2817
        %v2819 = vand.u32 %v348, 4294901760
        %v2820 = vsub.f32 %v348, %v2819
        %v2821 = vand.u32 %v2820, 4294901760
        %v2822 = vsub.f32 %v2820, %v2821
        %v2823 = vand.u32 %v2822, 4294901760
        %2824 = vmatpush.msra.mxu0 %v2823
        %v2825 = vand.u32 %v2770, 4294901760
        %2826 = vmatmul.f32.gmra.mxu0 %v2825
        %v2827 = vpop.f32.mrf.mxu0
        %v2828 = vadd.f32 %v2797, %v2827
        %2829 = vdwg.mxu0
        %2830 = vmatpush.msra.mxu0 0.0
        %2831 = vmatpush.msra.mxu0 0.0
        %2832 = vmatpush.msra.mxu0 0.0
        %2833 = vmatpush.msra.mxu0 0.0
        %2834 = vmatpush.msra.mxu0 0.0
        %2835 = vmatpush.msra.mxu0 0.0
        %2836 = vmatpush.msra.mxu0 0.0
        %2837 = vmatpush.msra.mxu0 0.0
        %2838 = vmatpush.msra.mxu0 0.0
        %2839 = vmatpush.msra.mxu0 0.0
        %2840 = vmatpush.msra.mxu0 0.0
        %2841 = vmatpush.msra.mxu0 0.0
        %2842 = vmatpush.msra.mxu0 0.0
        %2843 = vmatpush.msra.mxu0 0.0
        %v2844 = vand.u32 %v349, 4294901760
        %v2845 = vsub.f32 %v349, %v2844
        %2846 = vmatpush.msra.mxu0 %v2845
        %v2847 = vand.u32 %v348, 4294901760
        %v2848 = vsub.f32 %v348, %v2847
        %2849 = vmatpush.msra.mxu0 %v2848
        %v2850 = vand.u32 %v2770, 4294901760
        %v2851 = vsub.f32 %v2770, %v2850
        %2852 = vmatmul.f32.gmra.mxu0 %v2851
        %v2853 = vpop.f32.mrf.mxu0
        %v2854 = vadd.f32 %v2828, %v2853
        %2855 = vdwg.mxu0
        %2856 = vmatpush.msra.mxu0 0.0
        %2857 = vmatpush.msra.mxu0 0.0
        %2858 = vmatpush.msra.mxu0 0.0
        %2859 = vmatpush.msra.mxu0 0.0
        %2860 = vmatpush.msra.mxu0 0.0
        %2861 = vmatpush.msra.mxu0 0.0
        %2862 = vmatpush.msra.mxu0 0.0
        %2863 = vmatpush.msra.mxu0 0.0
        %2864 = vmatpush.msra.mxu0 0.0
        %2865 = vmatpush.msra.mxu0 0.0
        %2866 = vmatpush.msra.mxu0 0.0
        %2867 = vmatpush.msra.mxu0 0.0
        %2868 = vmatpush.msra.mxu0 0.0
        %2869 = vmatpush.msra.mxu0 0.0
        %v2870 = vand.u32 %v349, 4294901760
        %2871 = vmatpush.msra.mxu0 %v2870
        %v2872 = vand.u32 %v348, 4294901760
        %2873 = vmatpush.msra.mxu0 %v2872
        %v2874 = vand.u32 %v2770, 4294901760
        %v2875 = vsub.f32 %v2770, %v2874
        %v2876 = vand.u32 %v2875, 4294901760
        %2877 = vmatmul.f32.gmra.mxu0 %v2876
        %v2878 = vpop.f32.mrf.mxu0
        %v2879 = vadd.f32 %v2854, %v2878
        %2880 = vdwg.mxu0
        %2881 = vmatpush.msra.mxu0 0.0
        %2882 = vmatpush.msra.mxu0 0.0
        %2883 = vmatpush.msra.mxu0 0.0
        %2884 = vmatpush.msra.mxu0 0.0
        %2885 = vmatpush.msra.mxu0 0.0
        %2886 = vmatpush.msra.mxu0 0.0
        %2887 = vmatpush.msra.mxu0 0.0
        %2888 = vmatpush.msra.mxu0 0.0
        %2889 = vmatpush.msra.mxu0 0.0
        %2890 = vmatpush.msra.mxu0 0.0
        %2891 = vmatpush.msra.mxu0 0.0
        %2892 = vmatpush.msra.mxu0 0.0
        %2893 = vmatpush.msra.mxu0 0.0
        %2894 = vmatpush.msra.mxu0 0.0
        %v2895 = vand.u32 %v349, 4294901760
        %v2896 = vsub.f32 %v349, %v2895
        %v2897 = vand.u32 %v2896, 4294901760
        %2898 = vmatpush.msra.mxu0 %v2897
        %v2899 = vand.u32 %v348, 4294901760
        %v2900 = vsub.f32 %v348, %v2899
        %v2901 = vand.u32 %v2900, 4294901760
        %2902 = vmatpush.msra.mxu0 %v2901
        %v2903 = vand.u32 %v2770, 4294901760
        %2904 = vmatmul.f32.gmra.mxu0 %v2903
        %v2905 = vpop.f32.mrf.mxu0
        %v2906 = vadd.f32 %v2879, %v2905
        %2907 = vdwg.mxu0
        %2908 = vmatpush.msra.mxu0 0.0
        %2909 = vmatpush.msra.mxu0 0.0
        %2910 = vmatpush.msra.mxu0 0.0
        %2911 = vmatpush.msra.mxu0 0.0
        %2912 = vmatpush.msra.mxu0 0.0
        %2913 = vmatpush.msra.mxu0 0.0
        %2914 = vmatpush.msra.mxu0 0.0
        %2915 = vmatpush.msra.mxu0 0.0
        %2916 = vmatpush.msra.mxu0 0.0
        %2917 = vmatpush.msra.mxu0 0.0
        %2918 = vmatpush.msra.mxu0 0.0
        %2919 = vmatpush.msra.mxu0 0.0
        %2920 = vmatpush.msra.mxu0 0.0
        %2921 = vmatpush.msra.mxu0 0.0
        %v2922 = vand.u32 %v349, 4294901760
        %2923 = vmatpush.msra.mxu0 %v2922
        %v2924 = vand.u32 %v348, 4294901760
        %2925 = vmatpush.msra.mxu0 %v2924
        %v2926 = vand.u32 %v2770, 4294901760
        %2927 = vmatmul.f32.gmra.mxu0 %v2926
        %v2928 = vpop.f32.mrf.mxu0
        %v2929 = vadd.f32 %v2906, %v2928
        %2930 = vdwg.mxu0
        %v2931 = vmul.f32 %v322, %v322
        %v2932 = vmul.f32 %v323, %v323
        %v2933 = vmul.f32 %v324, %v324
        %v2934 = vmul.f32 %v325, %v325
        %v2935 = vmul.f32 %v326, %v326
        %v2936 = vmul.f32 %v327, %v327
        %v2937 = vmul.f32 %v328, %v328
        %v2938 = vmul.f32 %v329, %v329
        %2939 = vmatpush.msra.mxu0 0.0
        %2940 = vmatpush.msra.mxu0 0.0
        %2941 = vmatpush.msra.mxu0 0.0
        %2942 = vmatpush.msra.mxu0 0.0
        %2943 = vmatpush.msra.mxu0 0.0
        %2944 = vmatpush.msra.mxu0 0.0
        %2945 = vmatpush.msra.mxu0 0.0
        %2946 = vmatpush.msra.mxu0 0.0
        %2947 = vmatpush.msra.mxu0 0.0
        %2948 = vmatpush.msra.mxu0 0.0
        %2949 = vmatpush.msra.mxu0 0.0
        %2950 = vmatpush.msra.mxu0 0.0
        %2951 = vmatpush.msra.mxu0 0.0
        %2952 = vmatpush.msra.mxu0 0.0
        %v2953 = vand.u32 %v2932, 4294901760
        %2954 = vmatpush.msra.mxu0 %v2953
        %v2955 = vand.u32 %v2931, 4294901760
        %2956 = vmatpush.msra.mxu0 %v2955
        %v2957 = vand.u32 %v352, 4294901760
        %v2958 = vsub.f32 %v352, %v2957
        %v2959 = vand.u32 %v2958, 4294901760
        %v2960 = vsub.f32 %v2958, %v2959
        %v2961 = vand.u32 %v2960, 4294901760
        %2962 = vmatmul.f32.gmra.mxu0 %v2961
        %v2963 = vpop.f32.mrf.mxu0
        %v2964 = vadd.f32 0.0, %v2963
        %2965 = vdwg.mxu0
        %2966 = vmatpush.msra.mxu0 0.0
        %2967 = vmatpush.msra.mxu0 0.0
        %2968 = vmatpush.msra.mxu0 0.0
        %2969 = vmatpush.msra.mxu0 0.0
        %2970 = vmatpush.msra.mxu0 0.0
        %2971 = vmatpush.msra.mxu0 0.0
        %2972 = vmatpush.msra.mxu0 0.0
        %2973 = vmatpush.msra.mxu0 0.0
        %2974 = vmatpush.msra.mxu0 0.0
        %2975 = vmatpush.msra.mxu0 0.0
        %2976 = vmatpush.msra.mxu0 0.0
        %2977 = vmatpush.msra.mxu0 0.0
        %2978 = vmatpush.msra.mxu0 0.0
        %2979 = vmatpush.msra.mxu0 0.0
        %v2980 = vand.u32 %v2932, 4294901760
        %v2981 = vsub.f32 %v2932, %v2980
        %v2982 = vand.u32 %v2981, 4294901760
        %v2983 = vsub.f32 %v2981, %v2982
        %v2984 = vand.u32 %v2983, 4294901760
        %2985 = vmatpush.msra.mxu0 %v2984
        %v2986 = vand.u32 %v2931, 4294901760
        %v2987 = vsub.f32 %v2931, %v2986
        %v2988 = vand.u32 %v2987, 4294901760
        %v2989 = vsub.f32 %v2987, %v2988
        %v2990 = vand.u32 %v2989, 4294901760
        %2991 = vmatpush.msra.mxu0 %v2990
        %v2992 = vand.u32 %v352, 4294901760
        %2993 = vmatmul.f32.gmra.mxu0 %v2992
        %v2994 = vpop.f32.mrf.mxu0
        %v2995 = vadd.f32 %v2964, %v2994
        %2996 = vdwg.mxu0
        %2997 = vmatpush.msra.mxu0 0.0
        %2998 = vmatpush.msra.mxu0 0.0
        %2999 = vmatpush.msra.mxu0 0.0
        %3000 = vmatpush.msra.mxu0 0.0
        %3001 = vmatpush.msra.mxu0 0.0
        %3002 = vmatpush.msra.mxu0 0.0
        %3003 = vmatpush.msra.mxu0 0.0
        %3004 = vmatpush.msra.mxu0 0.0
        %3005 = vmatpush.msra.mxu0 0.0
        %3006 = vmatpush.msra.mxu0 0.0
        %3007 = vmatpush.msra.mxu0 0.0
        %3008 = vmatpush.msra.mxu0 0.0
        %3009 = vmatpush.msra.mxu0 0.0
        %3010 = vmatpush.msra.mxu0 0.0
        %v3011 = vand.u32 %v2932, 4294901760
        %v3012 = vsub.f32 %v2932, %v3011
        %3013 = vmatpush.msra.mxu0 %v3012
        %v3014 = vand.u32 %v2931, 4294901760
        %v3015 = vsub.f32 %v2931, %v3014
        %3016 = vmatpush.msra.mxu0 %v3015
        %v3017 = vand.u32 %v352, 4294901760
        %v3018 = vsub.f32 %v352, %v3017
        %3019 = vmatmul.f32.gmra.mxu0 %v3018
        %v3020 = vpop.f32.mrf.mxu0
        %v3021 = vadd.f32 %v2995, %v3020
        %3022 = vdwg.mxu0
        %3023 = vmatpush.msra.mxu0 0.0
        %3024 = vmatpush.msra.mxu0 0.0
        %3025 = vmatpush.msra.mxu0 0.0
        %3026 = vmatpush.msra.mxu0 0.0
        %3027 = vmatpush.msra.mxu0 0.0
        %3028 = vmatpush.msra.mxu0 0.0
        %3029 = vmatpush.msra.mxu0 0.0
        %3030 = vmatpush.msra.mxu0 0.0
        %3031 = vmatpush.msra.mxu0 0.0
        %3032 = vmatpush.msra.mxu0 0.0
        %3033 = vmatpush.msra.mxu0 0.0
        %3034 = vmatpush.msra.mxu0 0.0
        %3035 = vmatpush.msra.mxu0 0.0
        %3036 = vmatpush.msra.mxu0 0.0
        %v3037 = vand.u32 %v2932, 4294901760
        %3038 = vmatpush.msra.mxu0 %v3037
        %v3039 = vand.u32 %v2931, 4294901760
        %3040 = vmatpush.msra.mxu0 %v3039
        %v3041 = vand.u32 %v352, 4294901760
        %v3042 = vsub.f32 %v352, %v3041
        %v3043 = vand.u32 %v3042, 4294901760
        %3044 = vmatmul.f32.gmra.mxu0 %v3043
        %v3045 = vpop.f32.mrf.mxu0
        %v3046 = vadd.f32 %v3021, %v3045
        %3047 = vdwg.mxu0
        %3048 = vmatpush.msra.mxu0 0.0
        %3049 = vmatpush.msra.mxu0 0.0
        %3050 = vmatpush.msra.mxu0 0.0
        %3051 = vmatpush.msra.mxu0 0.0
        %3052 = vmatpush.msra.mxu0 0.0
        %3053 = vmatpush.msra.mxu0 0.0
        %3054 = vmatpush.msra.mxu0 0.0
        %3055 = vmatpush.msra.mxu0 0.0
        %3056 = vmatpush.msra.mxu0 0.0
        %3057 = vmatpush.msra.mxu0 0.0
        %3058 = vmatpush.msra.mxu0 0.0
        %3059 = vmatpush.msra.mxu0 0.0
        %3060 = vmatpush.msra.mxu0 0.0
        %3061 = vmatpush.msra.mxu0 0.0
        %v3062 = vand.u32 %v2932, 4294901760
        %v3063 = vsub.f32 %v2932, %v3062
        %v3064 = vand.u32 %v3063, 4294901760
        %3065 = vmatpush.msra.mxu0 %v3064
        %v3066 = vand.u32 %v2931, 4294901760
        %v3067 = vsub.f32 %v2931, %v3066
        %v3068 = vand.u32 %v3067, 4294901760
        %3069 = vmatpush.msra.mxu0 %v3068
        %v3070 = vand.u32 %v352, 4294901760
        %3071 = vmatmul.f32.gmra.mxu0 %v3070
        %v3072 = vpop.f32.mrf.mxu0
        %v3073 = vadd.f32 %v3046, %v3072
        %3074 = vdwg.mxu0
        %3075 = vmatpush.msra.mxu0 0.0
        %3076 = vmatpush.msra.mxu0 0.0
        %3077 = vmatpush.msra.mxu0 0.0
        %3078 = vmatpush.msra.mxu0 0.0
        %3079 = vmatpush.msra.mxu0 0.0
        %3080 = vmatpush.msra.mxu0 0.0
        %3081 = vmatpush.msra.mxu0 0.0
        %3082 = vmatpush.msra.mxu0 0.0
        %3083 = vmatpush.msra.mxu0 0.0
        %3084 = vmatpush.msra.mxu0 0.0
        %3085 = vmatpush.msra.mxu0 0.0
        %3086 = vmatpush.msra.mxu0 0.0
        %3087 = vmatpush.msra.mxu0 0.0
        %3088 = vmatpush.msra.mxu0 0.0
        %v3089 = vand.u32 %v2932, 4294901760
        %3090 = vmatpush.msra.mxu0 %v3089
        %v3091 = vand.u32 %v2931, 4294901760
        %3092 = vmatpush.msra.mxu0 %v3091
        %v3093 = vand.u32 %v352, 4294901760
        %3094 = vmatmul.f32.gmra.mxu0 %v3093
        %v3095 = vpop.f32.mrf.mxu0
        %v3096 = vadd.f32 %v3073, %v3095
        %3097 = vdwg.mxu0
        %3098 = vmatpush.msra.mxu0 0.0
        %3099 = vmatpush.msra.mxu0 0.0
        %3100 = vmatpush.msra.mxu0 0.0
        %3101 = vmatpush.msra.mxu0 0.0
        %3102 = vmatpush.msra.mxu0 0.0
        %3103 = vmatpush.msra.mxu0 0.0
        %3104 = vmatpush.msra.mxu0 0.0
        %3105 = vmatpush.msra.mxu0 0.0
        %3106 = vmatpush.msra.mxu0 0.0
        %3107 = vmatpush.msra.mxu0 0.0
        %3108 = vmatpush.msra.mxu0 0.0
        %3109 = vmatpush.msra.mxu0 0.0
        %3110 = vmatpush.msra.mxu0 0.0
        %3111 = vmatpush.msra.mxu0 0.0
        %v3112 = vand.u32 %v2934, 4294901760
        %3113 = vmatpush.msra.mxu0 %v3112
        %v3114 = vand.u32 %v2933, 4294901760
        %3115 = vmatpush.msra.mxu0 %v3114
        %v3116 = vand.u32 %v514, 4294901760
        %v3117 = vsub.f32 %v514, %v3116
        %v3118 = vand.u32 %v3117, 4294901760
        %v3119 = vsub.f32 %v3117, %v3118
        %v3120 = vand.u32 %v3119, 4294901760
        %3121 = vmatmul.f32.gmra.mxu0 %v3120
        %v3122 = vpop.f32.mrf.mxu0
        %v3123 = vadd.f32 0.0, %v3122
        %3124 = vdwg.mxu0
        %3125 = vmatpush.msra.mxu0 0.0
        %3126 = vmatpush.msra.mxu0 0.0
        %3127 = vmatpush.msra.mxu0 0.0
        %3128 = vmatpush.msra.mxu0 0.0
        %3129 = vmatpush.msra.mxu0 0.0
        %3130 = vmatpush.msra.mxu0 0.0
        %3131 = vmatpush.msra.mxu0 0.0
        %3132 = vmatpush.msra.mxu0 0.0
        %3133 = vmatpush.msra.mxu0 0.0
        %3134 = vmatpush.msra.mxu0 0.0
        %3135 = vmatpush.msra.mxu0 0.0
        %3136 = vmatpush.msra.mxu0 0.0
        %3137 = vmatpush.msra.mxu0 0.0
        %3138 = vmatpush.msra.mxu0 0.0
        %v3139 = vand.u32 %v2934, 4294901760
        %v3140 = vsub.f32 %v2934, %v3139
        %v3141 = vand.u32 %v3140, 4294901760
        %v3142 = vsub.f32 %v3140, %v3141
        %v3143 = vand.u32 %v3142, 4294901760
        %3144 = vmatpush.msra.mxu0 %v3143
        %v3145 = vand.u32 %v2933, 4294901760
        %v3146 = vsub.f32 %v2933, %v3145
        %v3147 = vand.u32 %v3146, 4294901760
        %v3148 = vsub.f32 %v3146, %v3147
        %v3149 = vand.u32 %v3148, 4294901760
        %3150 = vmatpush.msra.mxu0 %v3149
        %v3151 = vand.u32 %v514, 4294901760
        %3152 = vmatmul.f32.gmra.mxu0 %v3151
        %v3153 = vpop.f32.mrf.mxu0
        %v3154 = vadd.f32 %v3123, %v3153
        %3155 = vdwg.mxu0
        %3156 = vmatpush.msra.mxu0 0.0
        %3157 = vmatpush.msra.mxu0 0.0
        %3158 = vmatpush.msra.mxu0 0.0
        %3159 = vmatpush.msra.mxu0 0.0
        %3160 = vmatpush.msra.mxu0 0.0
        %3161 = vmatpush.msra.mxu0 0.0
        %3162 = vmatpush.msra.mxu0 0.0
        %3163 = vmatpush.msra.mxu0 0.0
        %3164 = vmatpush.msra.mxu0 0.0
        %3165 = vmatpush.msra.mxu0 0.0
        %3166 = vmatpush.msra.mxu0 0.0
        %3167 = vmatpush.msra.mxu0 0.0
        %3168 = vmatpush.msra.mxu0 0.0
        %3169 = vmatpush.msra.mxu0 0.0
        %v3170 = vand.u32 %v2934, 4294901760
        %v3171 = vsub.f32 %v2934, %v3170
        %3172 = vmatpush.msra.mxu0 %v3171
        %v3173 = vand.u32 %v2933, 4294901760
        %v3174 = vsub.f32 %v2933, %v3173
        %3175 = vmatpush.msra.mxu0 %v3174
        %v3176 = vand.u32 %v514, 4294901760
        %v3177 = vsub.f32 %v514, %v3176
        %3178 = vmatmul.f32.gmra.mxu0 %v3177
        %v3179 = vpop.f32.mrf.mxu0
        %v3180 = vadd.f32 %v3154, %v3179
        %3181 = vdwg.mxu0
        %3182 = vmatpush.msra.mxu0 0.0
        %3183 = vmatpush.msra.mxu0 0.0
        %3184 = vmatpush.msra.mxu0 0.0
        %3185 = vmatpush.msra.mxu0 0.0
        %3186 = vmatpush.msra.mxu0 0.0
        %3187 = vmatpush.msra.mxu0 0.0
        %3188 = vmatpush.msra.mxu0 0.0
        %3189 = vmatpush.msra.mxu0 0.0
        %3190 = vmatpush.msra.mxu0 0.0
        %3191 = vmatpush.msra.mxu0 0.0
        %3192 = vmatpush.msra.mxu0 0.0
        %3193 = vmatpush.msra.mxu0 0.0
        %3194 = vmatpush.msra.mxu0 0.0
        %3195 = vmatpush.msra.mxu0 0.0
        %v3196 = vand.u32 %v2934, 4294901760
        %3197 = vmatpush.msra.mxu0 %v3196
        %v3198 = vand.u32 %v2933, 4294901760
        %3199 = vmatpush.msra.mxu0 %v3198
        %v3200 = vand.u32 %v514, 4294901760
        %v3201 = vsub.f32 %v514, %v3200
        %v3202 = vand.u32 %v3201, 4294901760
        %3203 = vmatmul.f32.gmra.mxu0 %v3202
        %v3204 = vpop.f32.mrf.mxu0
        %v3205 = vadd.f32 %v3180, %v3204
        %3206 = vdwg.mxu0
        %3207 = vmatpush.msra.mxu0 0.0
        %3208 = vmatpush.msra.mxu0 0.0
        %3209 = vmatpush.msra.mxu0 0.0
        %3210 = vmatpush.msra.mxu0 0.0
        %3211 = vmatpush.msra.mxu0 0.0
        %3212 = vmatpush.msra.mxu0 0.0
        %3213 = vmatpush.msra.mxu0 0.0
        %3214 = vmatpush.msra.mxu0 0.0
        %3215 = vmatpush.msra.mxu0 0.0
        %3216 = vmatpush.msra.mxu0 0.0
        %3217 = vmatpush.msra.mxu0 0.0
        %3218 = vmatpush.msra.mxu0 0.0
        %3219 = vmatpush.msra.mxu0 0.0
        %3220 = vmatpush.msra.mxu0 0.0
        %v3221 = vand.u32 %v2934, 4294901760
        %v3222 = vsub.f32 %v2934, %v3221
        %v3223 = vand.u32 %v3222, 4294901760
        %3224 = vmatpush.msra.mxu0 %v3223
        %v3225 = vand.u32 %v2933, 4294901760
        %v3226 = vsub.f32 %v2933, %v3225
        %v3227 = vand.u32 %v3226, 4294901760
        %3228 = vmatpush.msra.mxu0 %v3227
        %v3229 = vand.u32 %v514, 4294901760
        %3230 = vmatmul.f32.gmra.mxu0 %v3229
        %v3231 = vpop.f32.mrf.mxu0
        %v3232 = vadd.f32 %v3205, %v3231
        %3233 = vdwg.mxu0
        %3234 = vmatpush.msra.mxu0 0.0
        %3235 = vmatpush.msra.mxu0 0.0
        %3236 = vmatpush.msra.mxu0 0.0
        %3237 = vmatpush.msra.mxu0 0.0
        %3238 = vmatpush.msra.mxu0 0.0
        %3239 = vmatpush.msra.mxu0 0.0
        %3240 = vmatpush.msra.mxu0 0.0
        %3241 = vmatpush.msra.mxu0 0.0
        %3242 = vmatpush.msra.mxu0 0.0
        %3243 = vmatpush.msra.mxu0 0.0
        %3244 = vmatpush.msra.mxu0 0.0
        %3245 = vmatpush.msra.mxu0 0.0
        %3246 = vmatpush.msra.mxu0 0.0
        %3247 = vmatpush.msra.mxu0 0.0
        %v3248 = vand.u32 %v2934, 4294901760
        %3249 = vmatpush.msra.mxu0 %v3248
        %v3250 = vand.u32 %v2933, 4294901760
        %3251 = vmatpush.msra.mxu0 %v3250
        %v3252 = vand.u32 %v514, 4294901760
        %3253 = vmatmul.f32.gmra.mxu0 %v3252
        %v3254 = vpop.f32.mrf.mxu0
        %v3255 = vadd.f32 %v3232, %v3254
        %3256 = vdwg.mxu0
        %3257 = vmatpush.msra.mxu0 0.0
        %3258 = vmatpush.msra.mxu0 0.0
        %3259 = vmatpush.msra.mxu0 0.0
        %3260 = vmatpush.msra.mxu0 0.0
        %3261 = vmatpush.msra.mxu0 0.0
        %3262 = vmatpush.msra.mxu0 0.0
        %3263 = vmatpush.msra.mxu0 0.0
        %3264 = vmatpush.msra.mxu0 0.0
        %3265 = vmatpush.msra.mxu0 0.0
        %3266 = vmatpush.msra.mxu0 0.0
        %3267 = vmatpush.msra.mxu0 0.0
        %3268 = vmatpush.msra.mxu0 0.0
        %3269 = vmatpush.msra.mxu0 0.0
        %3270 = vmatpush.msra.mxu0 0.0
        %v3271 = vand.u32 %v2936, 4294901760
        %3272 = vmatpush.msra.mxu0 %v3271
        %v3273 = vand.u32 %v2935, 4294901760
        %3274 = vmatpush.msra.mxu0 %v3273
        %v3275 = vand.u32 %v676, 4294901760
        %v3276 = vsub.f32 %v676, %v3275
        %v3277 = vand.u32 %v3276, 4294901760
        %v3278 = vsub.f32 %v3276, %v3277
        %v3279 = vand.u32 %v3278, 4294901760
        %3280 = vmatmul.f32.gmra.mxu0 %v3279
        %v3281 = vpop.f32.mrf.mxu0
        %v3282 = vadd.f32 0.0, %v3281
        %3283 = vdwg.mxu0
        %3284 = vmatpush.msra.mxu0 0.0
        %3285 = vmatpush.msra.mxu0 0.0
        %3286 = vmatpush.msra.mxu0 0.0
        %3287 = vmatpush.msra.mxu0 0.0
        %3288 = vmatpush.msra.mxu0 0.0
        %3289 = vmatpush.msra.mxu0 0.0
        %3290 = vmatpush.msra.mxu0 0.0
        %3291 = vmatpush.msra.mxu0 0.0
        %3292 = vmatpush.msra.mxu0 0.0
        %3293 = vmatpush.msra.mxu0 0.0
        %3294 = vmatpush.msra.mxu0 0.0
        %3295 = vmatpush.msra.mxu0 0.0
        %3296 = vmatpush.msra.mxu0 0.0
        %3297 = vmatpush.msra.mxu0 0.0
        %v3298 = vand.u32 %v2936, 4294901760
        %v3299 = vsub.f32 %v2936, %v3298
        %v3300 = vand.u32 %v3299, 4294901760
        %v3301 = vsub.f32 %v3299, %v3300
        %v3302 = vand.u32 %v3301, 4294901760
        %3303 = vmatpush.msra.mxu0 %v3302
        %v3304 = vand.u32 %v2935, 4294901760
        %v3305 = vsub.f32 %v2935, %v3304
        %v3306 = vand.u32 %v3305, 4294901760
        %v3307 = vsub.f32 %v3305, %v3306
        %v3308 = vand.u32 %v3307, 4294901760
        %3309 = vmatpush.msra.mxu0 %v3308
        %v3310 = vand.u32 %v676, 4294901760
        %3311 = vmatmul.f32.gmra.mxu0 %v3310
        %v3312 = vpop.f32.mrf.mxu0
        %v3313 = vadd.f32 %v3282, %v3312
        %3314 = vdwg.mxu0
        %3315 = vmatpush.msra.mxu0 0.0
        %3316 = vmatpush.msra.mxu0 0.0
        %3317 = vmatpush.msra.mxu0 0.0
        %3318 = vmatpush.msra.mxu0 0.0
        %3319 = vmatpush.msra.mxu0 0.0
        %3320 = vmatpush.msra.mxu0 0.0
        %3321 = vmatpush.msra.mxu0 0.0
        %3322 = vmatpush.msra.mxu0 0.0
        %3323 = vmatpush.msra.mxu0 0.0
        %3324 = vmatpush.msra.mxu0 0.0
        %3325 = vmatpush.msra.mxu0 0.0
        %3326 = vmatpush.msra.mxu0 0.0
        %3327 = vmatpush.msra.mxu0 0.0
        %3328 = vmatpush.msra.mxu0 0.0
        %v3329 = vand.u32 %v2936, 4294901760
        %v3330 = vsub.f32 %v2936, %v3329
        %3331 = vmatpush.msra.mxu0 %v3330
        %v3332 = vand.u32 %v2935, 4294901760
        %v3333 = vsub.f32 %v2935, %v3332
        %3334 = vmatpush.msra.mxu0 %v3333
        %v3335 = vand.u32 %v676, 4294901760
        %v3336 = vsub.f32 %v676, %v3335
        %3337 = vmatmul.f32.gmra.mxu0 %v3336
        %v3338 = vpop.f32.mrf.mxu0
        %v3339 = vadd.f32 %v3313, %v3338
        %3340 = vdwg.mxu0
        %3341 = vmatpush.msra.mxu0 0.0
        %3342 = vmatpush.msra.mxu0 0.0
        %3343 = vmatpush.msra.mxu0 0.0
        %3344 = vmatpush.msra.mxu0 0.0
        %3345 = vmatpush.msra.mxu0 0.0
        %3346 = vmatpush.msra.mxu0 0.0
        %3347 = vmatpush.msra.mxu0 0.0
        %3348 = vmatpush.msra.mxu0 0.0
        %3349 = vmatpush.msra.mxu0 0.0
        %3350 = vmatpush.msra.mxu0 0.0
        %3351 = vmatpush.msra.mxu0 0.0
        %3352 = vmatpush.msra.mxu0 0.0
        %3353 = vmatpush.msra.mxu0 0.0
        %3354 = vmatpush.msra.mxu0 0.0
        %v3355 = vand.u32 %v2936, 4294901760
        %3356 = vmatpush.msra.mxu0 %v3355
        %v3357 = vand.u32 %v2935, 4294901760
        %3358 = vmatpush.msra.mxu0 %v3357
        %v3359 = vand.u32 %v676, 4294901760
        %v3360 = vsub.f32 %v676, %v3359
        %v3361 = vand.u32 %v3360, 4294901760
        %3362 = vmatmul.f32.gmra.mxu0 %v3361
        %v3363 = vpop.f32.mrf.mxu0
        %v3364 = vadd.f32 %v3339, %v3363
        %3365 = vdwg.mxu0
        %3366 = vmatpush.msra.mxu0 0.0
        %3367 = vmatpush.msra.mxu0 0.0
        %3368 = vmatpush.msra.mxu0 0.0
        %3369 = vmatpush.msra.mxu0 0.0
        %3370 = vmatpush.msra.mxu0 0.0
        %3371 = vmatpush.msra.mxu0 0.0
        %3372 = vmatpush.msra.mxu0 0.0
        %3373 = vmatpush.msra.mxu0 0.0
        %3374 = vmatpush.msra.mxu0 0.0
        %3375 = vmatpush.msra.mxu0 0.0
        %3376 = vmatpush.msra.mxu0 0.0
        %3377 = vmatpush.msra.mxu0 0.0
        %3378 = vmatpush.msra.mxu0 0.0
        %3379 = vmatpush.msra.mxu0 0.0
        %v3380 = vand.u32 %v2936, 4294901760
        %v3381 = vsub.f32 %v2936, %v3380
        %v3382 = vand.u32 %v3381, 4294901760
        %3383 = vmatpush.msra.mxu0 %v3382
        %v3384 = vand.u32 %v2935, 4294901760
        %v3385 = vsub.f32 %v2935, %v3384
        %v3386 = vand.u32 %v3385, 4294901760
        %3387 = vmatpush.msra.mxu0 %v3386
        %v3388 = vand.u32 %v676, 4294901760
        %3389 = vmatmul.f32.gmra.mxu0 %v3388
        %v3390 = vpop.f32.mrf.mxu0
        %v3391 = vadd.f32 %v3364, %v3390
        %3392 = vdwg.mxu0
        %3393 = vmatpush.msra.mxu0 0.0
        %3394 = vmatpush.msra.mxu0 0.0
        %3395 = vmatpush.msra.mxu0 0.0
        %3396 = vmatpush.msra.mxu0 0.0
        %3397 = vmatpush.msra.mxu0 0.0
        %3398 = vmatpush.msra.mxu0 0.0
        %3399 = vmatpush.msra.mxu0 0.0
        %3400 = vmatpush.msra.mxu0 0.0
        %3401 = vmatpush.msra.mxu0 0.0
        %3402 = vmatpush.msra.mxu0 0.0
        %3403 = vmatpush.msra.mxu0 0.0
        %3404 = vmatpush.msra.mxu0 0.0
        %3405 = vmatpush.msra.mxu0 0.0
        %3406 = vmatpush.msra.mxu0 0.0
        %v3407 = vand.u32 %v2936, 4294901760
        %3408 = vmatpush.msra.mxu0 %v3407
        %v3409 = vand.u32 %v2935, 4294901760
        %3410 = vmatpush.msra.mxu0 %v3409
        %v3411 = vand.u32 %v676, 4294901760
        %3412 = vmatmul.f32.gmra.mxu0 %v3411
        %v3413 = vpop.f32.mrf.mxu0
        %v3414 = vadd.f32 %v3391, %v3413
        %3415 = vdwg.mxu0
        %3416 = vmatpush.msra.mxu0 0.0
        %3417 = vmatpush.msra.mxu0 0.0
        %3418 = vmatpush.msra.mxu0 0.0
        %3419 = vmatpush.msra.mxu0 0.0
        %3420 = vmatpush.msra.mxu0 0.0
        %3421 = vmatpush.msra.mxu0 0.0
        %3422 = vmatpush.msra.mxu0 0.0
        %3423 = vmatpush.msra.mxu0 0.0
        %3424 = vmatpush.msra.mxu0 0.0
        %3425 = vmatpush.msra.mxu0 0.0
        %3426 = vmatpush.msra.mxu0 0.0
        %3427 = vmatpush.msra.mxu0 0.0
        %3428 = vmatpush.msra.mxu0 0.0
        %3429 = vmatpush.msra.mxu0 0.0
        %v3430 = vand.u32 %v2938, 4294901760
        %3431 = vmatpush.msra.mxu0 %v3430
        %v3432 = vand.u32 %v2937, 4294901760
        %3433 = vmatpush.msra.mxu0 %v3432
        %v3434 = vand.u32 %v838, 4294901760
        %v3435 = vsub.f32 %v838, %v3434
        %v3436 = vand.u32 %v3435, 4294901760
        %v3437 = vsub.f32 %v3435, %v3436
        %v3438 = vand.u32 %v3437, 4294901760
        %3439 = vmatmul.f32.gmra.mxu0 %v3438
        %v3440 = vpop.f32.mrf.mxu0
        %v3441 = vadd.f32 0.0, %v3440
        %3442 = vdwg.mxu0
        %3443 = vmatpush.msra.mxu0 0.0
        %3444 = vmatpush.msra.mxu0 0.0
        %3445 = vmatpush.msra.mxu0 0.0
        %3446 = vmatpush.msra.mxu0 0.0
        %3447 = vmatpush.msra.mxu0 0.0
        %3448 = vmatpush.msra.mxu0 0.0
        %3449 = vmatpush.msra.mxu0 0.0
        %3450 = vmatpush.msra.mxu0 0.0
        %3451 = vmatpush.msra.mxu0 0.0
        %3452 = vmatpush.msra.mxu0 0.0
        %3453 = vmatpush.msra.mxu0 0.0
        %3454 = vmatpush.msra.mxu0 0.0
        %3455 = vmatpush.msra.mxu0 0.0
        %3456 = vmatpush.msra.mxu0 0.0
        %v3457 = vand.u32 %v2938, 4294901760
        %v3458 = vsub.f32 %v2938, %v3457
        %v3459 = vand.u32 %v3458, 4294901760
        %v3460 = vsub.f32 %v3458, %v3459
        %v3461 = vand.u32 %v3460, 4294901760
        %3462 = vmatpush.msra.mxu0 %v3461
        %v3463 = vand.u32 %v2937, 4294901760
        %v3464 = vsub.f32 %v2937, %v3463
        %v3465 = vand.u32 %v3464, 4294901760
        %v3466 = vsub.f32 %v3464, %v3465
        %v3467 = vand.u32 %v3466, 4294901760
        %3468 = vmatpush.msra.mxu0 %v3467
        %v3469 = vand.u32 %v838, 4294901760
        %3470 = vmatmul.f32.gmra.mxu0 %v3469
        %v3471 = vpop.f32.mrf.mxu0
        %v3472 = vadd.f32 %v3441, %v3471
        %3473 = vdwg.mxu0
        %3474 = vmatpush.msra.mxu0 0.0
        %3475 = vmatpush.msra.mxu0 0.0
        %3476 = vmatpush.msra.mxu0 0.0
        %3477 = vmatpush.msra.mxu0 0.0
        %3478 = vmatpush.msra.mxu0 0.0
        %3479 = vmatpush.msra.mxu0 0.0
        %3480 = vmatpush.msra.mxu0 0.0
        %3481 = vmatpush.msra.mxu0 0.0
        %3482 = vmatpush.msra.mxu0 0.0
        %3483 = vmatpush.msra.mxu0 0.0
        %3484 = vmatpush.msra.mxu0 0.0
        %3485 = vmatpush.msra.mxu0 0.0
        %3486 = vmatpush.msra.mxu0 0.0
        %3487 = vmatpush.msra.mxu0 0.0
        %v3488 = vand.u32 %v2938, 4294901760
        %v3489 = vsub.f32 %v2938, %v3488
        %3490 = vmatpush.msra.mxu0 %v3489
        %v3491 = vand.u32 %v2937, 4294901760
        %v3492 = vsub.f32 %v2937, %v3491
        %3493 = vmatpush.msra.mxu0 %v3492
        %v3494 = vand.u32 %v838, 4294901760
        %v3495 = vsub.f32 %v838, %v3494
        %3496 = vmatmul.f32.gmra.mxu0 %v3495
        %v3497 = vpop.f32.mrf.mxu0
        %v3498 = vadd.f32 %v3472, %v3497
        %3499 = vdwg.mxu0
        %3500 = vmatpush.msra.mxu0 0.0
        %3501 = vmatpush.msra.mxu0 0.0
        %3502 = vmatpush.msra.mxu0 0.0
        %3503 = vmatpush.msra.mxu0 0.0
        %3504 = vmatpush.msra.mxu0 0.0
        %3505 = vmatpush.msra.mxu0 0.0
        %3506 = vmatpush.msra.mxu0 0.0
        %3507 = vmatpush.msra.mxu0 0.0
        %3508 = vmatpush.msra.mxu0 0.0
        %3509 = vmatpush.msra.mxu0 0.0
        %3510 = vmatpush.msra.mxu0 0.0
        %3511 = vmatpush.msra.mxu0 0.0
        %3512 = vmatpush.msra.mxu0 0.0
        %3513 = vmatpush.msra.mxu0 0.0
        %v3514 = vand.u32 %v2938, 4294901760
        %3515 = vmatpush.msra.mxu0 %v3514
        %v3516 = vand.u32 %v2937, 4294901760
        %3517 = vmatpush.msra.mxu0 %v3516
        %v3518 = vand.u32 %v838, 4294901760
        %v3519 = vsub.f32 %v838, %v3518
        %v3520 = vand.u32 %v3519, 4294901760
        %3521 = vmatmul.f32.gmra.mxu0 %v3520
        %v3522 = vpop.f32.mrf.mxu0
        %v3523 = vadd.f32 %v3498, %v3522
        %3524 = vdwg.mxu0
        %3525 = vmatpush.msra.mxu0 0.0
        %3526 = vmatpush.msra.mxu0 0.0
        %3527 = vmatpush.msra.mxu0 0.0
        %3528 = vmatpush.msra.mxu0 0.0
        %3529 = vmatpush.msra.mxu0 0.0
        %3530 = vmatpush.msra.mxu0 0.0
        %3531 = vmatpush.msra.mxu0 0.0
        %3532 = vmatpush.msra.mxu0 0.0
        %3533 = vmatpush.msra.mxu0 0.0
        %3534 = vmatpush.msra.mxu0 0.0
        %3535 = vmatpush.msra.mxu0 0.0
        %3536 = vmatpush.msra.mxu0 0.0
        %3537 = vmatpush.msra.mxu0 0.0
        %3538 = vmatpush.msra.mxu0 0.0
        %v3539 = vand.u32 %v2938, 4294901760
        %v3540 = vsub.f32 %v2938, %v3539
        %v3541 = vand.u32 %v3540, 4294901760
        %3542 = vmatpush.msra.mxu0 %v3541
        %v3543 = vand.u32 %v2937, 4294901760
        %v3544 = vsub.f32 %v2937, %v3543
        %v3545 = vand.u32 %v3544, 4294901760
        %3546 = vmatpush.msra.mxu0 %v3545
        %v3547 = vand.u32 %v838, 4294901760
        %3548 = vmatmul.f32.gmra.mxu0 %v3547
        %v3549 = vpop.f32.mrf.mxu0
        %v3550 = vadd.f32 %v3523, %v3549
        %3551 = vdwg.mxu0
        %3552 = vmatpush.msra.mxu0 0.0
        %3553 = vmatpush.msra.mxu0 0.0
        %3554 = vmatpush.msra.mxu0 0.0
        %3555 = vmatpush.msra.mxu0 0.0
        %3556 = vmatpush.msra.mxu0 0.0
        %3557 = vmatpush.msra.mxu0 0.0
        %3558 = vmatpush.msra.mxu0 0.0
        %3559 = vmatpush.msra.mxu0 0.0
        %3560 = vmatpush.msra.mxu0 0.0
        %3561 = vmatpush.msra.mxu0 0.0
        %3562 = vmatpush.msra.mxu0 0.0
        %3563 = vmatpush.msra.mxu0 0.0
        %3564 = vmatpush.msra.mxu0 0.0
        %3565 = vmatpush.msra.mxu0 0.0
        %v3566 = vand.u32 %v2938, 4294901760
        %3567 = vmatpush.msra.mxu0 %v3566
        %v3568 = vand.u32 %v2937, 4294901760
        %3569 = vmatpush.msra.mxu0 %v3568
        %v3570 = vand.u32 %v838, 4294901760
        %3571 = vmatmul.f32.gmra.mxu0 %v3570
        %v3572 = vpop.f32.mrf.mxu0
        %v3573 = vadd.f32 %v3550, %v3572
        %3574 = vdwg.mxu0
        %v3576 = vsel %vm350, %v3096, 0
        %3578 = vmatpush.msra.mxu0 0.0
        %3579 = vmatpush.msra.mxu0 0.0
        %3580 = vmatpush.msra.mxu0 0.0
        %3581 = vmatpush.msra.mxu0 0.0
        %3582 = vmatpush.msra.mxu0 0.0
        %3583 = vmatpush.msra.mxu0 0.0
        %3584 = vmatpush.msra.mxu0 0.0
        %3585 = vmatpush.msra.mxu0 0.0
        %3586 = vmatpush.msra.mxu0 0.0
        %3587 = vmatpush.msra.mxu0 0.0
        %3588 = vmatpush.msra.mxu0 0.0
        %3589 = vmatpush.msra.mxu0 0.0
        %3590 = vmatpush.msra.mxu0 0.0
        %3591 = vmatpush.msra.mxu0 0.0
        %v3592 = vand.u32 %v343, 4294901760
        %3593 = vmatpush.msra.mxu0 %v3592
        %v3594 = vand.u32 %v342, 4294901760
        %3595 = vmatpush.msra.mxu0 %v3594
        %v3596 = vand.u32 %v3576, 4294901760
        %v3597 = vsub.f32 %v3576, %v3596
        %v3598 = vand.u32 %v3597, 4294901760
        %v3599 = vsub.f32 %v3597, %v3598
        %v3600 = vand.u32 %v3599, 4294901760
        %3601 = vmatmul.f32.gmra.mxu0 %v3600
        %v3602 = vpop.f32.mrf.mxu0
        %v3603 = vadd.f32 0.0, %v3602
        %3604 = vdwg.mxu0
        %3605 = vmatpush.msra.mxu0 0.0
        %3606 = vmatpush.msra.mxu0 0.0
        %3607 = vmatpush.msra.mxu0 0.0
        %3608 = vmatpush.msra.mxu0 0.0
        %3609 = vmatpush.msra.mxu0 0.0
        %3610 = vmatpush.msra.mxu0 0.0
        %3611 = vmatpush.msra.mxu0 0.0
        %3612 = vmatpush.msra.mxu0 0.0
        %3613 = vmatpush.msra.mxu0 0.0
        %3614 = vmatpush.msra.mxu0 0.0
        %3615 = vmatpush.msra.mxu0 0.0
        %3616 = vmatpush.msra.mxu0 0.0
        %3617 = vmatpush.msra.mxu0 0.0
        %3618 = vmatpush.msra.mxu0 0.0
        %v3619 = vand.u32 %v343, 4294901760
        %v3620 = vsub.f32 %v343, %v3619
        %v3621 = vand.u32 %v3620, 4294901760
        %v3622 = vsub.f32 %v3620, %v3621
        %v3623 = vand.u32 %v3622, 4294901760
        %3624 = vmatpush.msra.mxu0 %v3623
        %v3625 = vand.u32 %v342, 4294901760
        %v3626 = vsub.f32 %v342, %v3625
        %v3627 = vand.u32 %v3626, 4294901760
        %v3628 = vsub.f32 %v3626, %v3627
        %v3629 = vand.u32 %v3628, 4294901760
        %3630 = vmatpush.msra.mxu0 %v3629
        %v3631 = vand.u32 %v3576, 4294901760
        %3632 = vmatmul.f32.gmra.mxu0 %v3631
        %v3633 = vpop.f32.mrf.mxu0
        %v3634 = vadd.f32 %v3603, %v3633
        %3635 = vdwg.mxu0
        %3636 = vmatpush.msra.mxu0 0.0
        %3637 = vmatpush.msra.mxu0 0.0
        %3638 = vmatpush.msra.mxu0 0.0
        %3639 = vmatpush.msra.mxu0 0.0
        %3640 = vmatpush.msra.mxu0 0.0
        %3641 = vmatpush.msra.mxu0 0.0
        %3642 = vmatpush.msra.mxu0 0.0
        %3643 = vmatpush.msra.mxu0 0.0
        %3644 = vmatpush.msra.mxu0 0.0
        %3645 = vmatpush.msra.mxu0 0.0
        %3646 = vmatpush.msra.mxu0 0.0
        %3647 = vmatpush.msra.mxu0 0.0
        %3648 = vmatpush.msra.mxu0 0.0
        %3649 = vmatpush.msra.mxu0 0.0
        %v3650 = vand.u32 %v343, 4294901760
        %v3651 = vsub.f32 %v343, %v3650
        %3652 = vmatpush.msra.mxu0 %v3651
        %v3653 = vand.u32 %v342, 4294901760
        %v3654 = vsub.f32 %v342, %v3653
        %3655 = vmatpush.msra.mxu0 %v3654
        %v3656 = vand.u32 %v3576, 4294901760
        %v3657 = vsub.f32 %v3576, %v3656
        %3658 = vmatmul.f32.gmra.mxu0 %v3657
        %v3659 = vpop.f32.mrf.mxu0
        %v3660 = vadd.f32 %v3634, %v3659
        %3661 = vdwg.mxu0
        %3662 = vmatpush.msra.mxu0 0.0
        %3663 = vmatpush.msra.mxu0 0.0
        %3664 = vmatpush.msra.mxu0 0.0
        %3665 = vmatpush.msra.mxu0 0.0
        %3666 = vmatpush.msra.mxu0 0.0
        %3667 = vmatpush.msra.mxu0 0.0
        %3668 = vmatpush.msra.mxu0 0.0
        %3669 = vmatpush.msra.mxu0 0.0
        %3670 = vmatpush.msra.mxu0 0.0
        %3671 = vmatpush.msra.mxu0 0.0
        %3672 = vmatpush.msra.mxu0 0.0
        %3673 = vmatpush.msra.mxu0 0.0
        %3674 = vmatpush.msra.mxu0 0.0
        %3675 = vmatpush.msra.mxu0 0.0
        %v3676 = vand.u32 %v343, 4294901760
        %3677 = vmatpush.msra.mxu0 %v3676
        %v3678 = vand.u32 %v342, 4294901760
        %3679 = vmatpush.msra.mxu0 %v3678
        %v3680 = vand.u32 %v3576, 4294901760
        %v3681 = vsub.f32 %v3576, %v3680
        %v3682 = vand.u32 %v3681, 4294901760
        %3683 = vmatmul.f32.gmra.mxu0 %v3682
        %v3684 = vpop.f32.mrf.mxu0
        %v3685 = vadd.f32 %v3660, %v3684
        %3686 = vdwg.mxu0
        %3687 = vmatpush.msra.mxu0 0.0
        %3688 = vmatpush.msra.mxu0 0.0
        %3689 = vmatpush.msra.mxu0 0.0
        %3690 = vmatpush.msra.mxu0 0.0
        %3691 = vmatpush.msra.mxu0 0.0
        %3692 = vmatpush.msra.mxu0 0.0
        %3693 = vmatpush.msra.mxu0 0.0
        %3694 = vmatpush.msra.mxu0 0.0
        %3695 = vmatpush.msra.mxu0 0.0
        %3696 = vmatpush.msra.mxu0 0.0
        %3697 = vmatpush.msra.mxu0 0.0
        %3698 = vmatpush.msra.mxu0 0.0
        %3699 = vmatpush.msra.mxu0 0.0
        %3700 = vmatpush.msra.mxu0 0.0
        %v3701 = vand.u32 %v343, 4294901760
        %v3702 = vsub.f32 %v343, %v3701
        %v3703 = vand.u32 %v3702, 4294901760
        %3704 = vmatpush.msra.mxu0 %v3703
        %v3705 = vand.u32 %v342, 4294901760
        %v3706 = vsub.f32 %v342, %v3705
        %v3707 = vand.u32 %v3706, 4294901760
        %3708 = vmatpush.msra.mxu0 %v3707
        %v3709 = vand.u32 %v3576, 4294901760
        %3710 = vmatmul.f32.gmra.mxu0 %v3709
        %v3711 = vpop.f32.mrf.mxu0
        %v3712 = vadd.f32 %v3685, %v3711
        %3713 = vdwg.mxu0
        %3714 = vmatpush.msra.mxu0 0.0
        %3715 = vmatpush.msra.mxu0 0.0
        %3716 = vmatpush.msra.mxu0 0.0
        %3717 = vmatpush.msra.mxu0 0.0
        %3718 = vmatpush.msra.mxu0 0.0
        %3719 = vmatpush.msra.mxu0 0.0
        %3720 = vmatpush.msra.mxu0 0.0
        %3721 = vmatpush.msra.mxu0 0.0
        %3722 = vmatpush.msra.mxu0 0.0
        %3723 = vmatpush.msra.mxu0 0.0
        %3724 = vmatpush.msra.mxu0 0.0
        %3725 = vmatpush.msra.mxu0 0.0
        %3726 = vmatpush.msra.mxu0 0.0
        %3727 = vmatpush.msra.mxu0 0.0
        %v3728 = vand.u32 %v343, 4294901760
        %3729 = vmatpush.msra.mxu0 %v3728
        %v3730 = vand.u32 %v342, 4294901760
        %3731 = vmatpush.msra.mxu0 %v3730
        %v3732 = vand.u32 %v3576, 4294901760
        %3733 = vmatmul.f32.gmra.mxu0 %v3732
        %v3734 = vpop.f32.mrf.mxu0
        %v3735 = vadd.f32 %v3712, %v3734
        %3736 = vdwg.mxu0
        %v3738 = vsel %vm350, %v3255, 0
        %3740 = vmatpush.msra.mxu0 0.0
        %3741 = vmatpush.msra.mxu0 0.0
        %3742 = vmatpush.msra.mxu0 0.0
        %3743 = vmatpush.msra.mxu0 0.0
        %3744 = vmatpush.msra.mxu0 0.0
        %3745 = vmatpush.msra.mxu0 0.0
        %3746 = vmatpush.msra.mxu0 0.0
        %3747 = vmatpush.msra.mxu0 0.0
        %3748 = vmatpush.msra.mxu0 0.0
        %3749 = vmatpush.msra.mxu0 0.0
        %3750 = vmatpush.msra.mxu0 0.0
        %3751 = vmatpush.msra.mxu0 0.0
        %3752 = vmatpush.msra.mxu0 0.0
        %3753 = vmatpush.msra.mxu0 0.0
        %v3754 = vand.u32 %v345, 4294901760
        %3755 = vmatpush.msra.mxu0 %v3754
        %v3756 = vand.u32 %v344, 4294901760
        %3757 = vmatpush.msra.mxu0 %v3756
        %v3758 = vand.u32 %v3738, 4294901760
        %v3759 = vsub.f32 %v3738, %v3758
        %v3760 = vand.u32 %v3759, 4294901760
        %v3761 = vsub.f32 %v3759, %v3760
        %v3762 = vand.u32 %v3761, 4294901760
        %3763 = vmatmul.f32.gmra.mxu0 %v3762
        %v3764 = vpop.f32.mrf.mxu0
        %v3765 = vadd.f32 0.0, %v3764
        %3766 = vdwg.mxu0
        %3767 = vmatpush.msra.mxu0 0.0
        %3768 = vmatpush.msra.mxu0 0.0
        %3769 = vmatpush.msra.mxu0 0.0
        %3770 = vmatpush.msra.mxu0 0.0
        %3771 = vmatpush.msra.mxu0 0.0
        %3772 = vmatpush.msra.mxu0 0.0
        %3773 = vmatpush.msra.mxu0 0.0
        %3774 = vmatpush.msra.mxu0 0.0
        %3775 = vmatpush.msra.mxu0 0.0
        %3776 = vmatpush.msra.mxu0 0.0
        %3777 = vmatpush.msra.mxu0 0.0
        %3778 = vmatpush.msra.mxu0 0.0
        %3779 = vmatpush.msra.mxu0 0.0
        %3780 = vmatpush.msra.mxu0 0.0
        %v3781 = vand.u32 %v345, 4294901760
        %v3782 = vsub.f32 %v345, %v3781
        %v3783 = vand.u32 %v3782, 4294901760
        %v3784 = vsub.f32 %v3782, %v3783
        %v3785 = vand.u32 %v3784, 4294901760
        %3786 = vmatpush.msra.mxu0 %v3785
        %v3787 = vand.u32 %v344, 4294901760
        %v3788 = vsub.f32 %v344, %v3787
        %v3789 = vand.u32 %v3788, 4294901760
        %v3790 = vsub.f32 %v3788, %v3789
        %v3791 = vand.u32 %v3790, 4294901760
        %3792 = vmatpush.msra.mxu0 %v3791
        %v3793 = vand.u32 %v3738, 4294901760
        %3794 = vmatmul.f32.gmra.mxu0 %v3793
        %v3795 = vpop.f32.mrf.mxu0
        %v3796 = vadd.f32 %v3765, %v3795
        %3797 = vdwg.mxu0
        %3798 = vmatpush.msra.mxu0 0.0
        %3799 = vmatpush.msra.mxu0 0.0
        %3800 = vmatpush.msra.mxu0 0.0
        %3801 = vmatpush.msra.mxu0 0.0
        %3802 = vmatpush.msra.mxu0 0.0
        %3803 = vmatpush.msra.mxu0 0.0
        %3804 = vmatpush.msra.mxu0 0.0
        %3805 = vmatpush.msra.mxu0 0.0
        %3806 = vmatpush.msra.mxu0 0.0
        %3807 = vmatpush.msra.mxu0 0.0
        %3808 = vmatpush.msra.mxu0 0.0
        %3809 = vmatpush.msra.mxu0 0.0
        %3810 = vmatpush.msra.mxu0 0.0
        %3811 = vmatpush.msra.mxu0 0.0
        %v3812 = vand.u32 %v345, 4294901760
        %v3813 = vsub.f32 %v345, %v3812
        %3814 = vmatpush.msra.mxu0 %v3813
        %v3815 = vand.u32 %v344, 4294901760
        %v3816 = vsub.f32 %v344, %v3815
        %3817 = vmatpush.msra.mxu0 %v3816
        %v3818 = vand.u32 %v3738, 4294901760
        %v3819 = vsub.f32 %v3738, %v3818
        %3820 = vmatmul.f32.gmra.mxu0 %v3819
        %v3821 = vpop.f32.mrf.mxu0
        %v3822 = vadd.f32 %v3796, %v3821
        %3823 = vdwg.mxu0
        %3824 = vmatpush.msra.mxu0 0.0
        %3825 = vmatpush.msra.mxu0 0.0
        %3826 = vmatpush.msra.mxu0 0.0
        %3827 = vmatpush.msra.mxu0 0.0
        %3828 = vmatpush.msra.mxu0 0.0
        %3829 = vmatpush.msra.mxu0 0.0
        %3830 = vmatpush.msra.mxu0 0.0
        %3831 = vmatpush.msra.mxu0 0.0
        %3832 = vmatpush.msra.mxu0 0.0
        %3833 = vmatpush.msra.mxu0 0.0
        %3834 = vmatpush.msra.mxu0 0.0
        %3835 = vmatpush.msra.mxu0 0.0
        %3836 = vmatpush.msra.mxu0 0.0
        %3837 = vmatpush.msra.mxu0 0.0
        %v3838 = vand.u32 %v345, 4294901760
        %3839 = vmatpush.msra.mxu0 %v3838
        %v3840 = vand.u32 %v344, 4294901760
        %3841 = vmatpush.msra.mxu0 %v3840
        %v3842 = vand.u32 %v3738, 4294901760
        %v3843 = vsub.f32 %v3738, %v3842
        %v3844 = vand.u32 %v3843, 4294901760
        %3845 = vmatmul.f32.gmra.mxu0 %v3844
        %v3846 = vpop.f32.mrf.mxu0
        %v3847 = vadd.f32 %v3822, %v3846
        %3848 = vdwg.mxu0
        %3849 = vmatpush.msra.mxu0 0.0
        %3850 = vmatpush.msra.mxu0 0.0
        %3851 = vmatpush.msra.mxu0 0.0
        %3852 = vmatpush.msra.mxu0 0.0
        %3853 = vmatpush.msra.mxu0 0.0
        %3854 = vmatpush.msra.mxu0 0.0
        %3855 = vmatpush.msra.mxu0 0.0
        %3856 = vmatpush.msra.mxu0 0.0
        %3857 = vmatpush.msra.mxu0 0.0
        %3858 = vmatpush.msra.mxu0 0.0
        %3859 = vmatpush.msra.mxu0 0.0
        %3860 = vmatpush.msra.mxu0 0.0
        %3861 = vmatpush.msra.mxu0 0.0
        %3862 = vmatpush.msra.mxu0 0.0
        %v3863 = vand.u32 %v345, 4294901760
        %v3864 = vsub.f32 %v345, %v3863
        %v3865 = vand.u32 %v3864, 4294901760
        %3866 = vmatpush.msra.mxu0 %v3865
        %v3867 = vand.u32 %v344, 4294901760
        %v3868 = vsub.f32 %v344, %v3867
        %v3869 = vand.u32 %v3868, 4294901760
        %3870 = vmatpush.msra.mxu0 %v3869
        %v3871 = vand.u32 %v3738, 4294901760
        %3872 = vmatmul.f32.gmra.mxu0 %v3871
        %v3873 = vpop.f32.mrf.mxu0
        %v3874 = vadd.f32 %v3847, %v3873
        %3875 = vdwg.mxu0
        %3876 = vmatpush.msra.mxu0 0.0
        %3877 = vmatpush.msra.mxu0 0.0
        %3878 = vmatpush.msra.mxu0 0.0
        %3879 = vmatpush.msra.mxu0 0.0
        %3880 = vmatpush.msra.mxu0 0.0
        %3881 = vmatpush.msra.mxu0 0.0
        %3882 = vmatpush.msra.mxu0 0.0
        %3883 = vmatpush.msra.mxu0 0.0
        %3884 = vmatpush.msra.mxu0 0.0
        %3885 = vmatpush.msra.mxu0 0.0
        %3886 = vmatpush.msra.mxu0 0.0
        %3887 = vmatpush.msra.mxu0 0.0
        %3888 = vmatpush.msra.mxu0 0.0
        %3889 = vmatpush.msra.mxu0 0.0
        %v3890 = vand.u32 %v345, 4294901760
        %3891 = vmatpush.msra.mxu0 %v3890
        %v3892 = vand.u32 %v344, 4294901760
        %3893 = vmatpush.msra.mxu0 %v3892
        %v3894 = vand.u32 %v3738, 4294901760
        %3895 = vmatmul.f32.gmra.mxu0 %v3894
        %v3896 = vpop.f32.mrf.mxu0
        %v3897 = vadd.f32 %v3874, %v3896
        %3898 = vdwg.mxu0
        %v3900 = vsel %vm350, %v3414, 0
        %3902 = vmatpush.msra.mxu0 0.0
        %3903 = vmatpush.msra.mxu0 0.0
        %3904 = vmatpush.msra.mxu0 0.0
        %3905 = vmatpush.msra.mxu0 0.0
        %3906 = vmatpush.msra.mxu0 0.0
        %3907 = vmatpush.msra.mxu0 0.0
        %3908 = vmatpush.msra.mxu0 0.0
        %3909 = vmatpush.msra.mxu0 0.0
        %3910 = vmatpush.msra.mxu0 0.0
        %3911 = vmatpush.msra.mxu0 0.0
        %3912 = vmatpush.msra.mxu0 0.0
        %3913 = vmatpush.msra.mxu0 0.0
        %3914 = vmatpush.msra.mxu0 0.0
        %3915 = vmatpush.msra.mxu0 0.0
        %v3916 = vand.u32 %v347, 4294901760
        %3917 = vmatpush.msra.mxu0 %v3916
        %v3918 = vand.u32 %v346, 4294901760
        %3919 = vmatpush.msra.mxu0 %v3918
        %v3920 = vand.u32 %v3900, 4294901760
        %v3921 = vsub.f32 %v3900, %v3920
        %v3922 = vand.u32 %v3921, 4294901760
        %v3923 = vsub.f32 %v3921, %v3922
        %v3924 = vand.u32 %v3923, 4294901760
        %3925 = vmatmul.f32.gmra.mxu0 %v3924
        %v3926 = vpop.f32.mrf.mxu0
        %v3927 = vadd.f32 0.0, %v3926
        %3928 = vdwg.mxu0
        %3929 = vmatpush.msra.mxu0 0.0
        %3930 = vmatpush.msra.mxu0 0.0
        %3931 = vmatpush.msra.mxu0 0.0
        %3932 = vmatpush.msra.mxu0 0.0
        %3933 = vmatpush.msra.mxu0 0.0
        %3934 = vmatpush.msra.mxu0 0.0
        %3935 = vmatpush.msra.mxu0 0.0
        %3936 = vmatpush.msra.mxu0 0.0
        %3937 = vmatpush.msra.mxu0 0.0
        %3938 = vmatpush.msra.mxu0 0.0
        %3939 = vmatpush.msra.mxu0 0.0
        %3940 = vmatpush.msra.mxu0 0.0
        %3941 = vmatpush.msra.mxu0 0.0
        %3942 = vmatpush.msra.mxu0 0.0
        %v3943 = vand.u32 %v347, 4294901760
        %v3944 = vsub.f32 %v347, %v3943
        %v3945 = vand.u32 %v3944, 4294901760
        %v3946 = vsub.f32 %v3944, %v3945
        %v3947 = vand.u32 %v3946, 4294901760
        %3948 = vmatpush.msra.mxu0 %v3947
        %v3949 = vand.u32 %v346, 4294901760
        %v3950 = vsub.f32 %v346, %v3949
        %v3951 = vand.u32 %v3950, 4294901760
        %v3952 = vsub.f32 %v3950, %v3951
        %v3953 = vand.u32 %v3952, 4294901760
        %3954 = vmatpush.msra.mxu0 %v3953
        %v3955 = vand.u32 %v3900, 4294901760
        %3956 = vmatmul.f32.gmra.mxu0 %v3955
        %v3957 = vpop.f32.mrf.mxu0
        %v3958 = vadd.f32 %v3927, %v3957
        %3959 = vdwg.mxu0
        %3960 = vmatpush.msra.mxu0 0.0
        %3961 = vmatpush.msra.mxu0 0.0
        %3962 = vmatpush.msra.mxu0 0.0
        %3963 = vmatpush.msra.mxu0 0.0
        %3964 = vmatpush.msra.mxu0 0.0
        %3965 = vmatpush.msra.mxu0 0.0
        %3966 = vmatpush.msra.mxu0 0.0
        %3967 = vmatpush.msra.mxu0 0.0
        %3968 = vmatpush.msra.mxu0 0.0
        %3969 = vmatpush.msra.mxu0 0.0
        %3970 = vmatpush.msra.mxu0 0.0
        %3971 = vmatpush.msra.mxu0 0.0
        %3972 = vmatpush.msra.mxu0 0.0
        %3973 = vmatpush.msra.mxu0 0.0
        %v3974 = vand.u32 %v347, 4294901760
        %v3975 = vsub.f32 %v347, %v3974
        %3976 = vmatpush.msra.mxu0 %v3975
        %v3977 = vand.u32 %v346, 4294901760
        %v3978 = vsub.f32 %v346, %v3977
        %3979 = vmatpush.msra.mxu0 %v3978
        %v3980 = vand.u32 %v3900, 4294901760
        %v3981 = vsub.f32 %v3900, %v3980
        %3982 = vmatmul.f32.gmra.mxu0 %v3981
        %v3983 = vpop.f32.mrf.mxu0
        %v3984 = vadd.f32 %v3958, %v3983
        %3985 = vdwg.mxu0
        %3986 = vmatpush.msra.mxu0 0.0
        %3987 = vmatpush.msra.mxu0 0.0
        %3988 = vmatpush.msra.mxu0 0.0
        %3989 = vmatpush.msra.mxu0 0.0
        %3990 = vmatpush.msra.mxu0 0.0
        %3991 = vmatpush.msra.mxu0 0.0
        %3992 = vmatpush.msra.mxu0 0.0
        %3993 = vmatpush.msra.mxu0 0.0
        %3994 = vmatpush.msra.mxu0 0.0
        %3995 = vmatpush.msra.mxu0 0.0
        %3996 = vmatpush.msra.mxu0 0.0
        %3997 = vmatpush.msra.mxu0 0.0
        %3998 = vmatpush.msra.mxu0 0.0
        %3999 = vmatpush.msra.mxu0 0.0
        %v4000 = vand.u32 %v347, 4294901760
        %4001 = vmatpush.msra.mxu0 %v4000
        %v4002 = vand.u32 %v346, 4294901760
        %4003 = vmatpush.msra.mxu0 %v4002
        %v4004 = vand.u32 %v3900, 4294901760
        %v4005 = vsub.f32 %v3900, %v4004
        %v4006 = vand.u32 %v4005, 4294901760
        %4007 = vmatmul.f32.gmra.mxu0 %v4006
        %v4008 = vpop.f32.mrf.mxu0
        %v4009 = vadd.f32 %v3984, %v4008
        %4010 = vdwg.mxu0
        %4011 = vmatpush.msra.mxu0 0.0
        %4012 = vmatpush.msra.mxu0 0.0
        %4013 = vmatpush.msra.mxu0 0.0
        %4014 = vmatpush.msra.mxu0 0.0
        %4015 = vmatpush.msra.mxu0 0.0
        %4016 = vmatpush.msra.mxu0 0.0
        %4017 = vmatpush.msra.mxu0 0.0
        %4018 = vmatpush.msra.mxu0 0.0
        %4019 = vmatpush.msra.mxu0 0.0
        %4020 = vmatpush.msra.mxu0 0.0
        %4021 = vmatpush.msra.mxu0 0.0
        %4022 = vmatpush.msra.mxu0 0.0
        %4023 = vmatpush.msra.mxu0 0.0
        %4024 = vmatpush.msra.mxu0 0.0
        %v4025 = vand.u32 %v347, 4294901760
        %v4026 = vsub.f32 %v347, %v4025
        %v4027 = vand.u32 %v4026, 4294901760
        %4028 = vmatpush.msra.mxu0 %v4027
        %v4029 = vand.u32 %v346, 4294901760
        %v4030 = vsub.f32 %v346, %v4029
        %v4031 = vand.u32 %v4030, 4294901760
        %4032 = vmatpush.msra.mxu0 %v4031
        %v4033 = vand.u32 %v3900, 4294901760
        %4034 = vmatmul.f32.gmra.mxu0 %v4033
        %v4035 = vpop.f32.mrf.mxu0
        %v4036 = vadd.f32 %v4009, %v4035
        %4037 = vdwg.mxu0
        %4038 = vmatpush.msra.mxu0 0.0
        %4039 = vmatpush.msra.mxu0 0.0
        %4040 = vmatpush.msra.mxu0 0.0
        %4041 = vmatpush.msra.mxu0 0.0
        %4042 = vmatpush.msra.mxu0 0.0
        %4043 = vmatpush.msra.mxu0 0.0
        %4044 = vmatpush.msra.mxu0 0.0
        %4045 = vmatpush.msra.mxu0 0.0
        %4046 = vmatpush.msra.mxu0 0.0
        %4047 = vmatpush.msra.mxu0 0.0
        %4048 = vmatpush.msra.mxu0 0.0
        %4049 = vmatpush.msra.mxu0 0.0
        %4050 = vmatpush.msra.mxu0 0.0
        %4051 = vmatpush.msra.mxu0 0.0
        %v4052 = vand.u32 %v347, 4294901760
        %4053 = vmatpush.msra.mxu0 %v4052
        %v4054 = vand.u32 %v346, 4294901760
        %4055 = vmatpush.msra.mxu0 %v4054
        %v4056 = vand.u32 %v3900, 4294901760
        %4057 = vmatmul.f32.gmra.mxu0 %v4056
        %v4058 = vpop.f32.mrf.mxu0
        %v4059 = vadd.f32 %v4036, %v4058
        %4060 = vdwg.mxu0
        %v4062 = vsel %vm350, %v3573, 0
        %4064 = vmatpush.msra.mxu0 0.0
        %4065 = vmatpush.msra.mxu0 0.0
        %4066 = vmatpush.msra.mxu0 0.0
        %4067 = vmatpush.msra.mxu0 0.0
        %4068 = vmatpush.msra.mxu0 0.0
        %4069 = vmatpush.msra.mxu0 0.0
        %4070 = vmatpush.msra.mxu0 0.0
        %4071 = vmatpush.msra.mxu0 0.0
        %4072 = vmatpush.msra.mxu0 0.0
        %4073 = vmatpush.msra.mxu0 0.0
        %4074 = vmatpush.msra.mxu0 0.0
        %4075 = vmatpush.msra.mxu0 0.0
        %4076 = vmatpush.msra.mxu0 0.0
        %4077 = vmatpush.msra.mxu0 0.0
        %v4078 = vand.u32 %v349, 4294901760
        %4079 = vmatpush.msra.mxu0 %v4078
        %v4080 = vand.u32 %v348, 4294901760
        %4081 = vmatpush.msra.mxu0 %v4080
        %v4082 = vand.u32 %v4062, 4294901760
        %v4083 = vsub.f32 %v4062, %v4082
        %v4084 = vand.u32 %v4083, 4294901760
        %v4085 = vsub.f32 %v4083, %v4084
        %v4086 = vand.u32 %v4085, 4294901760
        %4087 = vmatmul.f32.gmra.mxu0 %v4086
        %v4088 = vpop.f32.mrf.mxu0
        %v4089 = vadd.f32 0.0, %v4088
        %4090 = vdwg.mxu0
        %4091 = vmatpush.msra.mxu0 0.0
        %4092 = vmatpush.msra.mxu0 0.0
        %4093 = vmatpush.msra.mxu0 0.0
        %4094 = vmatpush.msra.mxu0 0.0
        %4095 = vmatpush.msra.mxu0 0.0
        %4096 = vmatpush.msra.mxu0 0.0
        %4097 = vmatpush.msra.mxu0 0.0
        %4098 = vmatpush.msra.mxu0 0.0
        %4099 = vmatpush.msra.mxu0 0.0
        %4100 = vmatpush.msra.mxu0 0.0
        %4101 = vmatpush.msra.mxu0 0.0
        %4102 = vmatpush.msra.mxu0 0.0
        %4103 = vmatpush.msra.mxu0 0.0
        %4104 = vmatpush.msra.mxu0 0.0
        %v4105 = vand.u32 %v349, 4294901760
        %v4106 = vsub.f32 %v349, %v4105
        %v4107 = vand.u32 %v4106, 4294901760
        %v4108 = vsub.f32 %v4106, %v4107
        %v4109 = vand.u32 %v4108, 4294901760
        %4110 = vmatpush.msra.mxu0 %v4109
        %v4111 = vand.u32 %v348, 4294901760
        %v4112 = vsub.f32 %v348, %v4111
        %v4113 = vand.u32 %v4112, 4294901760
        %v4114 = vsub.f32 %v4112, %v4113
        %v4115 = vand.u32 %v4114, 4294901760
        %4116 = vmatpush.msra.mxu0 %v4115
        %v4117 = vand.u32 %v4062, 4294901760
        %4118 = vmatmul.f32.gmra.mxu0 %v4117
        %v4119 = vpop.f32.mrf.mxu0
        %v4120 = vadd.f32 %v4089, %v4119
        %4121 = vdwg.mxu0
        %4122 = vmatpush.msra.mxu0 0.0
        %4123 = vmatpush.msra.mxu0 0.0
        %4124 = vmatpush.msra.mxu0 0.0
        %4125 = vmatpush.msra.mxu0 0.0
        %4126 = vmatpush.msra.mxu0 0.0
        %4127 = vmatpush.msra.mxu0 0.0
        %4128 = vmatpush.msra.mxu0 0.0
        %4129 = vmatpush.msra.mxu0 0.0
        %4130 = vmatpush.msra.mxu0 0.0
        %4131 = vmatpush.msra.mxu0 0.0
        %4132 = vmatpush.msra.mxu0 0.0
        %4133 = vmatpush.msra.mxu0 0.0
        %4134 = vmatpush.msra.mxu0 0.0
        %4135 = vmatpush.msra.mxu0 0.0
        %v4136 = vand.u32 %v349, 4294901760
        %v4137 = vsub.f32 %v349, %v4136
        %4138 = vmatpush.msra.mxu0 %v4137
        %v4139 = vand.u32 %v348, 4294901760
        %v4140 = vsub.f32 %v348, %v4139
        %4141 = vmatpush.msra.mxu0 %v4140
        %v4142 = vand.u32 %v4062, 4294901760
        %v4143 = vsub.f32 %v4062, %v4142
        %4144 = vmatmul.f32.gmra.mxu0 %v4143
        %v4145 = vpop.f32.mrf.mxu0
        %v4146 = vadd.f32 %v4120, %v4145
        %4147 = vdwg.mxu0
        %4148 = vmatpush.msra.mxu0 0.0
        %4149 = vmatpush.msra.mxu0 0.0
        %4150 = vmatpush.msra.mxu0 0.0
        %4151 = vmatpush.msra.mxu0 0.0
        %4152 = vmatpush.msra.mxu0 0.0
        %4153 = vmatpush.msra.mxu0 0.0
        %4154 = vmatpush.msra.mxu0 0.0
        %4155 = vmatpush.msra.mxu0 0.0
        %4156 = vmatpush.msra.mxu0 0.0
        %4157 = vmatpush.msra.mxu0 0.0
        %4158 = vmatpush.msra.mxu0 0.0
        %4159 = vmatpush.msra.mxu0 0.0
        %4160 = vmatpush.msra.mxu0 0.0
        %4161 = vmatpush.msra.mxu0 0.0
        %v4162 = vand.u32 %v349, 4294901760
        %4163 = vmatpush.msra.mxu0 %v4162
        %v4164 = vand.u32 %v348, 4294901760
        %4165 = vmatpush.msra.mxu0 %v4164
        %v4166 = vand.u32 %v4062, 4294901760
        %v4167 = vsub.f32 %v4062, %v4166
        %v4168 = vand.u32 %v4167, 4294901760
        %4169 = vmatmul.f32.gmra.mxu0 %v4168
        %v4170 = vpop.f32.mrf.mxu0
        %v4171 = vadd.f32 %v4146, %v4170
        %4172 = vdwg.mxu0
        %4173 = vmatpush.msra.mxu0 0.0
        %4174 = vmatpush.msra.mxu0 0.0
        %4175 = vmatpush.msra.mxu0 0.0
        %4176 = vmatpush.msra.mxu0 0.0
        %4177 = vmatpush.msra.mxu0 0.0
        %4178 = vmatpush.msra.mxu0 0.0
        %4179 = vmatpush.msra.mxu0 0.0
        %4180 = vmatpush.msra.mxu0 0.0
        %4181 = vmatpush.msra.mxu0 0.0
        %4182 = vmatpush.msra.mxu0 0.0
        %4183 = vmatpush.msra.mxu0 0.0
        %4184 = vmatpush.msra.mxu0 0.0
        %4185 = vmatpush.msra.mxu0 0.0
        %4186 = vmatpush.msra.mxu0 0.0
        %v4187 = vand.u32 %v349, 4294901760
        %v4188 = vsub.f32 %v349, %v4187
        %v4189 = vand.u32 %v4188, 4294901760
        %4190 = vmatpush.msra.mxu0 %v4189
        %v4191 = vand.u32 %v348, 4294901760
        %v4192 = vsub.f32 %v348, %v4191
        %v4193 = vand.u32 %v4192, 4294901760
        %4194 = vmatpush.msra.mxu0 %v4193
        %v4195 = vand.u32 %v4062, 4294901760
        %4196 = vmatmul.f32.gmra.mxu0 %v4195
        %v4197 = vpop.f32.mrf.mxu0
        %v4198 = vadd.f32 %v4171, %v4197
        %4199 = vdwg.mxu0
        %4200 = vmatpush.msra.mxu0 0.0
        %4201 = vmatpush.msra.mxu0 0.0
        %4202 = vmatpush.msra.mxu0 0.0
        %4203 = vmatpush.msra.mxu0 0.0
        %4204 = vmatpush.msra.mxu0 0.0
        %4205 = vmatpush.msra.mxu0 0.0
        %4206 = vmatpush.msra.mxu0 0.0
        %4207 = vmatpush.msra.mxu0 0.0
        %4208 = vmatpush.msra.mxu0 0.0
        %4209 = vmatpush.msra.mxu0 0.0
        %4210 = vmatpush.msra.mxu0 0.0
        %4211 = vmatpush.msra.mxu0 0.0
        %4212 = vmatpush.msra.mxu0 0.0
        %4213 = vmatpush.msra.mxu0 0.0
        %v4214 = vand.u32 %v349, 4294901760
        %4215 = vmatpush.msra.mxu0 %v4214
        %v4216 = vand.u32 %v348, 4294901760
        %4217 = vmatpush.msra.mxu0 %v4216
        %v4218 = vand.u32 %v4062, 4294901760
        %4219 = vmatmul.f32.gmra.mxu0 %v4218
        %v4220 = vpop.f32.mrf.mxu0
        %v4221 = vadd.f32 %v4198, %v4220
        %4222 = vdwg.mxu0
        %v4223 = vmul.f32 %v330, %v330
        %v4224 = vmul.f32 %v331, %v331
        %v4225 = vmul.f32 %v332, %v332
        %v4226 = vmul.f32 %v333, %v333
        %v4227 = vmul.f32 %v334, %v334
        %v4228 = vmul.f32 %v335, %v335
        %v4229 = vmul.f32 %v336, %v336
        %v4230 = vmul.f32 %v337, %v337
        %4231 = vmatpush.msra.mxu0 0.0
        %4232 = vmatpush.msra.mxu0 0.0
        %4233 = vmatpush.msra.mxu0 0.0
        %4234 = vmatpush.msra.mxu0 0.0
        %4235 = vmatpush.msra.mxu0 0.0
        %4236 = vmatpush.msra.mxu0 0.0
        %4237 = vmatpush.msra.mxu0 0.0
        %4238 = vmatpush.msra.mxu0 0.0
        %4239 = vmatpush.msra.mxu0 0.0
        %4240 = vmatpush.msra.mxu0 0.0
        %4241 = vmatpush.msra.mxu0 0.0
        %4242 = vmatpush.msra.mxu0 0.0
        %4243 = vmatpush.msra.mxu0 0.0
        %4244 = vmatpush.msra.mxu0 0.0
        %v4245 = vand.u32 %v4224, 4294901760
        %4246 = vmatpush.msra.mxu0 %v4245
        %v4247 = vand.u32 %v4223, 4294901760
        %4248 = vmatpush.msra.mxu0 %v4247
        %v4249 = vand.u32 %v352, 4294901760
        %v4250 = vsub.f32 %v352, %v4249
        %v4251 = vand.u32 %v4250, 4294901760
        %v4252 = vsub.f32 %v4250, %v4251
        %v4253 = vand.u32 %v4252, 4294901760
        %4254 = vmatmul.f32.gmra.mxu0 %v4253
        %v4255 = vpop.f32.mrf.mxu0
        %v4256 = vadd.f32 0.0, %v4255
        %4257 = vdwg.mxu0
        %4258 = vmatpush.msra.mxu0 0.0
        %4259 = vmatpush.msra.mxu0 0.0
        %4260 = vmatpush.msra.mxu0 0.0
        %4261 = vmatpush.msra.mxu0 0.0
        %4262 = vmatpush.msra.mxu0 0.0
        %4263 = vmatpush.msra.mxu0 0.0
        %4264 = vmatpush.msra.mxu0 0.0
        %4265 = vmatpush.msra.mxu0 0.0
        %4266 = vmatpush.msra.mxu0 0.0
        %4267 = vmatpush.msra.mxu0 0.0
        %4268 = vmatpush.msra.mxu0 0.0
        %4269 = vmatpush.msra.mxu0 0.0
        %4270 = vmatpush.msra.mxu0 0.0
        %4271 = vmatpush.msra.mxu0 0.0
        %v4272 = vand.u32 %v4224, 4294901760
        %v4273 = vsub.f32 %v4224, %v4272
        %v4274 = vand.u32 %v4273, 4294901760
        %v4275 = vsub.f32 %v4273, %v4274
        %v4276 = vand.u32 %v4275, 4294901760
        %4277 = vmatpush.msra.mxu0 %v4276
        %v4278 = vand.u32 %v4223, 4294901760
        %v4279 = vsub.f32 %v4223, %v4278
        %v4280 = vand.u32 %v4279, 4294901760
        %v4281 = vsub.f32 %v4279, %v4280
        %v4282 = vand.u32 %v4281, 4294901760
        %4283 = vmatpush.msra.mxu0 %v4282
        %v4284 = vand.u32 %v352, 4294901760
        %4285 = vmatmul.f32.gmra.mxu0 %v4284
        %v4286 = vpop.f32.mrf.mxu0
        %v4287 = vadd.f32 %v4256, %v4286
        %4288 = vdwg.mxu0
        %4289 = vmatpush.msra.mxu0 0.0
        %4290 = vmatpush.msra.mxu0 0.0
        %4291 = vmatpush.msra.mxu0 0.0
        %4292 = vmatpush.msra.mxu0 0.0
        %4293 = vmatpush.msra.mxu0 0.0
        %4294 = vmatpush.msra.mxu0 0.0
        %4295 = vmatpush.msra.mxu0 0.0
        %4296 = vmatpush.msra.mxu0 0.0
        %4297 = vmatpush.msra.mxu0 0.0
        %4298 = vmatpush.msra.mxu0 0.0
        %4299 = vmatpush.msra.mxu0 0.0
        %4300 = vmatpush.msra.mxu0 0.0
        %4301 = vmatpush.msra.mxu0 0.0
        %4302 = vmatpush.msra.mxu0 0.0
        %v4303 = vand.u32 %v4224, 4294901760
        %v4304 = vsub.f32 %v4224, %v4303
        %4305 = vmatpush.msra.mxu0 %v4304
        %v4306 = vand.u32 %v4223, 4294901760
        %v4307 = vsub.f32 %v4223, %v4306
        %4308 = vmatpush.msra.mxu0 %v4307
        %v4309 = vand.u32 %v352, 4294901760
        %v4310 = vsub.f32 %v352, %v4309
        %4311 = vmatmul.f32.gmra.mxu0 %v4310
        %v4312 = vpop.f32.mrf.mxu0
        %v4313 = vadd.f32 %v4287, %v4312
        %4314 = vdwg.mxu0
        %4315 = vmatpush.msra.mxu0 0.0
        %4316 = vmatpush.msra.mxu0 0.0
        %4317 = vmatpush.msra.mxu0 0.0
        %4318 = vmatpush.msra.mxu0 0.0
        %4319 = vmatpush.msra.mxu0 0.0
        %4320 = vmatpush.msra.mxu0 0.0
        %4321 = vmatpush.msra.mxu0 0.0
        %4322 = vmatpush.msra.mxu0 0.0
        %4323 = vmatpush.msra.mxu0 0.0
        %4324 = vmatpush.msra.mxu0 0.0
        %4325 = vmatpush.msra.mxu0 0.0
        %4326 = vmatpush.msra.mxu0 0.0
        %4327 = vmatpush.msra.mxu0 0.0
        %4328 = vmatpush.msra.mxu0 0.0
        %v4329 = vand.u32 %v4224, 4294901760
        %4330 = vmatpush.msra.mxu0 %v4329
        %v4331 = vand.u32 %v4223, 4294901760
        %4332 = vmatpush.msra.mxu0 %v4331
        %v4333 = vand.u32 %v352, 4294901760
        %v4334 = vsub.f32 %v352, %v4333
        %v4335 = vand.u32 %v4334, 4294901760
        %4336 = vmatmul.f32.gmra.mxu0 %v4335
        %v4337 = vpop.f32.mrf.mxu0
        %v4338 = vadd.f32 %v4313, %v4337
        %4339 = vdwg.mxu0
        %4340 = vmatpush.msra.mxu0 0.0
        %4341 = vmatpush.msra.mxu0 0.0
        %4342 = vmatpush.msra.mxu0 0.0
        %4343 = vmatpush.msra.mxu0 0.0
        %4344 = vmatpush.msra.mxu0 0.0
        %4345 = vmatpush.msra.mxu0 0.0
        %4346 = vmatpush.msra.mxu0 0.0
        %4347 = vmatpush.msra.mxu0 0.0
        %4348 = vmatpush.msra.mxu0 0.0
        %4349 = vmatpush.msra.mxu0 0.0
        %4350 = vmatpush.msra.mxu0 0.0
        %4351 = vmatpush.msra.mxu0 0.0
        %4352 = vmatpush.msra.mxu0 0.0
        %4353 = vmatpush.msra.mxu0 0.0
        %v4354 = vand.u32 %v4224, 4294901760
        %v4355 = vsub.f32 %v4224, %v4354
        %v4356 = vand.u32 %v4355, 4294901760
        %4357 = vmatpush.msra.mxu0 %v4356
        %v4358 = vand.u32 %v4223, 4294901760
        %v4359 = vsub.f32 %v4223, %v4358
        %v4360 = vand.u32 %v4359, 4294901760
        %4361 = vmatpush.msra.mxu0 %v4360
        %v4362 = vand.u32 %v352, 4294901760
        %4363 = vmatmul.f32.gmra.mxu0 %v4362
        %v4364 = vpop.f32.mrf.mxu0
        %v4365 = vadd.f32 %v4338, %v4364
        %4366 = vdwg.mxu0
        %4367 = vmatpush.msra.mxu0 0.0
        %4368 = vmatpush.msra.mxu0 0.0
        %4369 = vmatpush.msra.mxu0 0.0
        %4370 = vmatpush.msra.mxu0 0.0
        %4371 = vmatpush.msra.mxu0 0.0
        %4372 = vmatpush.msra.mxu0 0.0
        %4373 = vmatpush.msra.mxu0 0.0
        %4374 = vmatpush.msra.mxu0 0.0
        %4375 = vmatpush.msra.mxu0 0.0
        %4376 = vmatpush.msra.mxu0 0.0
        %4377 = vmatpush.msra.mxu0 0.0
        %4378 = vmatpush.msra.mxu0 0.0
        %4379 = vmatpush.msra.mxu0 0.0
        %4380 = vmatpush.msra.mxu0 0.0
        %v4381 = vand.u32 %v4224, 4294901760
        %4382 = vmatpush.msra.mxu0 %v4381
        %v4383 = vand.u32 %v4223, 4294901760
        %4384 = vmatpush.msra.mxu0 %v4383
        %v4385 = vand.u32 %v352, 4294901760
        %4386 = vmatmul.f32.gmra.mxu0 %v4385
        %v4387 = vpop.f32.mrf.mxu0
        %v4388 = vadd.f32 %v4365, %v4387
        %4389 = vdwg.mxu0
        %4390 = vmatpush.msra.mxu0 0.0
        %4391 = vmatpush.msra.mxu0 0.0
        %4392 = vmatpush.msra.mxu0 0.0
        %4393 = vmatpush.msra.mxu0 0.0
        %4394 = vmatpush.msra.mxu0 0.0
        %4395 = vmatpush.msra.mxu0 0.0
        %4396 = vmatpush.msra.mxu0 0.0
        %4397 = vmatpush.msra.mxu0 0.0
        %4398 = vmatpush.msra.mxu0 0.0
        %4399 = vmatpush.msra.mxu0 0.0
        %4400 = vmatpush.msra.mxu0 0.0
        %4401 = vmatpush.msra.mxu0 0.0
        %4402 = vmatpush.msra.mxu0 0.0
        %4403 = vmatpush.msra.mxu0 0.0
        %v4404 = vand.u32 %v4226, 4294901760
        %4405 = vmatpush.msra.mxu0 %v4404
        %v4406 = vand.u32 %v4225, 4294901760
        %4407 = vmatpush.msra.mxu0 %v4406
        %v4408 = vand.u32 %v514, 4294901760
        %v4409 = vsub.f32 %v514, %v4408
        %v4410 = vand.u32 %v4409, 4294901760
        %v4411 = vsub.f32 %v4409, %v4410
        %v4412 = vand.u32 %v4411, 4294901760
        %4413 = vmatmul.f32.gmra.mxu0 %v4412
        %v4414 = vpop.f32.mrf.mxu0
        %v4415 = vadd.f32 0.0, %v4414
        %4416 = vdwg.mxu0
        %4417 = vmatpush.msra.mxu0 0.0
        %4418 = vmatpush.msra.mxu0 0.0
        %4419 = vmatpush.msra.mxu0 0.0
        %4420 = vmatpush.msra.mxu0 0.0
        %4421 = vmatpush.msra.mxu0 0.0
        %4422 = vmatpush.msra.mxu0 0.0
        %4423 = vmatpush.msra.mxu0 0.0
        %4424 = vmatpush.msra.mxu0 0.0
        %4425 = vmatpush.msra.mxu0 0.0
        %4426 = vmatpush.msra.mxu0 0.0
        %4427 = vmatpush.msra.mxu0 0.0
        %4428 = vmatpush.msra.mxu0 0.0
        %4429 = vmatpush.msra.mxu0 0.0
        %4430 = vmatpush.msra.mxu0 0.0
        %v4431 = vand.u32 %v4226, 4294901760
        %v4432 = vsub.f32 %v4226, %v4431
        %v4433 = vand.u32 %v4432, 4294901760
        %v4434 = vsub.f32 %v4432, %v4433
        %v4435 = vand.u32 %v4434, 4294901760
        %4436 = vmatpush.msra.mxu0 %v4435
        %v4437 = vand.u32 %v4225, 4294901760
        %v4438 = vsub.f32 %v4225, %v4437
        %v4439 = vand.u32 %v4438, 4294901760
        %v4440 = vsub.f32 %v4438, %v4439
        %v4441 = vand.u32 %v4440, 4294901760
        %4442 = vmatpush.msra.mxu0 %v4441
        %v4443 = vand.u32 %v514, 4294901760
        %4444 = vmatmul.f32.gmra.mxu0 %v4443
        %v4445 = vpop.f32.mrf.mxu0
        %v4446 = vadd.f32 %v4415, %v4445
        %4447 = vdwg.mxu0
        %4448 = vmatpush.msra.mxu0 0.0
        %4449 = vmatpush.msra.mxu0 0.0
        %4450 = vmatpush.msra.mxu0 0.0
        %4451 = vmatpush.msra.mxu0 0.0
        %4452 = vmatpush.msra.mxu0 0.0
        %4453 = vmatpush.msra.mxu0 0.0
        %4454 = vmatpush.msra.mxu0 0.0
        %4455 = vmatpush.msra.mxu0 0.0
        %4456 = vmatpush.msra.mxu0 0.0
        %4457 = vmatpush.msra.mxu0 0.0
        %4458 = vmatpush.msra.mxu0 0.0
        %4459 = vmatpush.msra.mxu0 0.0
        %4460 = vmatpush.msra.mxu0 0.0
        %4461 = vmatpush.msra.mxu0 0.0
        %v4462 = vand.u32 %v4226, 4294901760
        %v4463 = vsub.f32 %v4226, %v4462
        %4464 = vmatpush.msra.mxu0 %v4463
        %v4465 = vand.u32 %v4225, 4294901760
        %v4466 = vsub.f32 %v4225, %v4465
        %4467 = vmatpush.msra.mxu0 %v4466
        %v4468 = vand.u32 %v514, 4294901760
        %v4469 = vsub.f32 %v514, %v4468
        %4470 = vmatmul.f32.gmra.mxu0 %v4469
        %v4471 = vpop.f32.mrf.mxu0
        %v4472 = vadd.f32 %v4446, %v4471
        %4473 = vdwg.mxu0
        %4474 = vmatpush.msra.mxu0 0.0
        %4475 = vmatpush.msra.mxu0 0.0
        %4476 = vmatpush.msra.mxu0 0.0
        %4477 = vmatpush.msra.mxu0 0.0
        %4478 = vmatpush.msra.mxu0 0.0
        %4479 = vmatpush.msra.mxu0 0.0
        %4480 = vmatpush.msra.mxu0 0.0
        %4481 = vmatpush.msra.mxu0 0.0
        %4482 = vmatpush.msra.mxu0 0.0
        %4483 = vmatpush.msra.mxu0 0.0
        %4484 = vmatpush.msra.mxu0 0.0
        %4485 = vmatpush.msra.mxu0 0.0
        %4486 = vmatpush.msra.mxu0 0.0
        %4487 = vmatpush.msra.mxu0 0.0
        %v4488 = vand.u32 %v4226, 4294901760
        %4489 = vmatpush.msra.mxu0 %v4488
        %v4490 = vand.u32 %v4225, 4294901760
        %4491 = vmatpush.msra.mxu0 %v4490
        %v4492 = vand.u32 %v514, 4294901760
        %v4493 = vsub.f32 %v514, %v4492
        %v4494 = vand.u32 %v4493, 4294901760
        %4495 = vmatmul.f32.gmra.mxu0 %v4494
        %v4496 = vpop.f32.mrf.mxu0
        %v4497 = vadd.f32 %v4472, %v4496
        %4498 = vdwg.mxu0
        %4499 = vmatpush.msra.mxu0 0.0
        %4500 = vmatpush.msra.mxu0 0.0
        %4501 = vmatpush.msra.mxu0 0.0
        %4502 = vmatpush.msra.mxu0 0.0
        %4503 = vmatpush.msra.mxu0 0.0
        %4504 = vmatpush.msra.mxu0 0.0
        %4505 = vmatpush.msra.mxu0 0.0
        %4506 = vmatpush.msra.mxu0 0.0
        %4507 = vmatpush.msra.mxu0 0.0
        %4508 = vmatpush.msra.mxu0 0.0
        %4509 = vmatpush.msra.mxu0 0.0
        %4510 = vmatpush.msra.mxu0 0.0
        %4511 = vmatpush.msra.mxu0 0.0
        %4512 = vmatpush.msra.mxu0 0.0
        %v4513 = vand.u32 %v4226, 4294901760
        %v4514 = vsub.f32 %v4226, %v4513
        %v4515 = vand.u32 %v4514, 4294901760
        %4516 = vmatpush.msra.mxu0 %v4515
        %v4517 = vand.u32 %v4225, 4294901760
        %v4518 = vsub.f32 %v4225, %v4517
        %v4519 = vand.u32 %v4518, 4294901760
        %4520 = vmatpush.msra.mxu0 %v4519
        %v4521 = vand.u32 %v514, 4294901760
        %4522 = vmatmul.f32.gmra.mxu0 %v4521
        %v4523 = vpop.f32.mrf.mxu0
        %v4524 = vadd.f32 %v4497, %v4523
        %4525 = vdwg.mxu0
        %4526 = vmatpush.msra.mxu0 0.0
        %4527 = vmatpush.msra.mxu0 0.0
        %4528 = vmatpush.msra.mxu0 0.0
        %4529 = vmatpush.msra.mxu0 0.0
        %4530 = vmatpush.msra.mxu0 0.0
        %4531 = vmatpush.msra.mxu0 0.0
        %4532 = vmatpush.msra.mxu0 0.0
        %4533 = vmatpush.msra.mxu0 0.0
        %4534 = vmatpush.msra.mxu0 0.0
        %4535 = vmatpush.msra.mxu0 0.0
        %4536 = vmatpush.msra.mxu0 0.0
        %4537 = vmatpush.msra.mxu0 0.0
        %4538 = vmatpush.msra.mxu0 0.0
        %4539 = vmatpush.msra.mxu0 0.0
        %v4540 = vand.u32 %v4226, 4294901760
        %4541 = vmatpush.msra.mxu0 %v4540
        %v4542 = vand.u32 %v4225, 4294901760
        %4543 = vmatpush.msra.mxu0 %v4542
        %v4544 = vand.u32 %v514, 4294901760
        %4545 = vmatmul.f32.gmra.mxu0 %v4544
        %v4546 = vpop.f32.mrf.mxu0
        %v4547 = vadd.f32 %v4524, %v4546
        %4548 = vdwg.mxu0
        %4549 = vmatpush.msra.mxu0 0.0
        %4550 = vmatpush.msra.mxu0 0.0
        %4551 = vmatpush.msra.mxu0 0.0
        %4552 = vmatpush.msra.mxu0 0.0
        %4553 = vmatpush.msra.mxu0 0.0
        %4554 = vmatpush.msra.mxu0 0.0
        %4555 = vmatpush.msra.mxu0 0.0
        %4556 = vmatpush.msra.mxu0 0.0
        %4557 = vmatpush.msra.mxu0 0.0
        %4558 = vmatpush.msra.mxu0 0.0
        %4559 = vmatpush.msra.mxu0 0.0
        %4560 = vmatpush.msra.mxu0 0.0
        %4561 = vmatpush.msra.mxu0 0.0
        %4562 = vmatpush.msra.mxu0 0.0
        %v4563 = vand.u32 %v4228, 4294901760
        %4564 = vmatpush.msra.mxu0 %v4563
        %v4565 = vand.u32 %v4227, 4294901760
        %4566 = vmatpush.msra.mxu0 %v4565
        %v4567 = vand.u32 %v676, 4294901760
        %v4568 = vsub.f32 %v676, %v4567
        %v4569 = vand.u32 %v4568, 4294901760
        %v4570 = vsub.f32 %v4568, %v4569
        %v4571 = vand.u32 %v4570, 4294901760
        %4572 = vmatmul.f32.gmra.mxu0 %v4571
        %v4573 = vpop.f32.mrf.mxu0
        %v4574 = vadd.f32 0.0, %v4573
        %4575 = vdwg.mxu0
        %4576 = vmatpush.msra.mxu0 0.0
        %4577 = vmatpush.msra.mxu0 0.0
        %4578 = vmatpush.msra.mxu0 0.0
        %4579 = vmatpush.msra.mxu0 0.0
        %4580 = vmatpush.msra.mxu0 0.0
        %4581 = vmatpush.msra.mxu0 0.0
        %4582 = vmatpush.msra.mxu0 0.0
        %4583 = vmatpush.msra.mxu0 0.0
        %4584 = vmatpush.msra.mxu0 0.0
        %4585 = vmatpush.msra.mxu0 0.0
        %4586 = vmatpush.msra.mxu0 0.0
        %4587 = vmatpush.msra.mxu0 0.0
        %4588 = vmatpush.msra.mxu0 0.0
        %4589 = vmatpush.msra.mxu0 0.0
        %v4590 = vand.u32 %v4228, 4294901760
        %v4591 = vsub.f32 %v4228, %v4590
        %v4592 = vand.u32 %v4591, 4294901760
        %v4593 = vsub.f32 %v4591, %v4592
        %v4594 = vand.u32 %v4593, 4294901760
        %4595 = vmatpush.msra.mxu0 %v4594
        %v4596 = vand.u32 %v4227, 4294901760
        %v4597 = vsub.f32 %v4227, %v4596
        %v4598 = vand.u32 %v4597, 4294901760
        %v4599 = vsub.f32 %v4597, %v4598
        %v4600 = vand.u32 %v4599, 4294901760
        %4601 = vmatpush.msra.mxu0 %v4600
        %v4602 = vand.u32 %v676, 4294901760
        %4603 = vmatmul.f32.gmra.mxu0 %v4602
        %v4604 = vpop.f32.mrf.mxu0
        %v4605 = vadd.f32 %v4574, %v4604
        %4606 = vdwg.mxu0
        %4607 = vmatpush.msra.mxu0 0.0
        %4608 = vmatpush.msra.mxu0 0.0
        %4609 = vmatpush.msra.mxu0 0.0
        %4610 = vmatpush.msra.mxu0 0.0
        %4611 = vmatpush.msra.mxu0 0.0
        %4612 = vmatpush.msra.mxu0 0.0
        %4613 = vmatpush.msra.mxu0 0.0
        %4614 = vmatpush.msra.mxu0 0.0
        %4615 = vmatpush.msra.mxu0 0.0
        %4616 = vmatpush.msra.mxu0 0.0
        %4617 = vmatpush.msra.mxu0 0.0
        %4618 = vmatpush.msra.mxu0 0.0
        %4619 = vmatpush.msra.mxu0 0.0
        %4620 = vmatpush.msra.mxu0 0.0
        %v4621 = vand.u32 %v4228, 4294901760
        %v4622 = vsub.f32 %v4228, %v4621
        %4623 = vmatpush.msra.mxu0 %v4622
        %v4624 = vand.u32 %v4227, 4294901760
        %v4625 = vsub.f32 %v4227, %v4624
        %4626 = vmatpush.msra.mxu0 %v4625
        %v4627 = vand.u32 %v676, 4294901760
        %v4628 = vsub.f32 %v676, %v4627
        %4629 = vmatmul.f32.gmra.mxu0 %v4628
        %v4630 = vpop.f32.mrf.mxu0
        %v4631 = vadd.f32 %v4605, %v4630
        %4632 = vdwg.mxu0
        %4633 = vmatpush.msra.mxu0 0.0
        %4634 = vmatpush.msra.mxu0 0.0
        %4635 = vmatpush.msra.mxu0 0.0
        %4636 = vmatpush.msra.mxu0 0.0
        %4637 = vmatpush.msra.mxu0 0.0
        %4638 = vmatpush.msra.mxu0 0.0
        %4639 = vmatpush.msra.mxu0 0.0
        %4640 = vmatpush.msra.mxu0 0.0
        %4641 = vmatpush.msra.mxu0 0.0
        %4642 = vmatpush.msra.mxu0 0.0
        %4643 = vmatpush.msra.mxu0 0.0
        %4644 = vmatpush.msra.mxu0 0.0
        %4645 = vmatpush.msra.mxu0 0.0
        %4646 = vmatpush.msra.mxu0 0.0
        %v4647 = vand.u32 %v4228, 4294901760
        %4648 = vmatpush.msra.mxu0 %v4647
        %v4649 = vand.u32 %v4227, 4294901760
        %4650 = vmatpush.msra.mxu0 %v4649
        %v4651 = vand.u32 %v676, 4294901760
        %v4652 = vsub.f32 %v676, %v4651
        %v4653 = vand.u32 %v4652, 4294901760
        %4654 = vmatmul.f32.gmra.mxu0 %v4653
        %v4655 = vpop.f32.mrf.mxu0
        %v4656 = vadd.f32 %v4631, %v4655
        %4657 = vdwg.mxu0
        %4658 = vmatpush.msra.mxu0 0.0
        %4659 = vmatpush.msra.mxu0 0.0
        %4660 = vmatpush.msra.mxu0 0.0
        %4661 = vmatpush.msra.mxu0 0.0
        %4662 = vmatpush.msra.mxu0 0.0
        %4663 = vmatpush.msra.mxu0 0.0
        %4664 = vmatpush.msra.mxu0 0.0
        %4665 = vmatpush.msra.mxu0 0.0
        %4666 = vmatpush.msra.mxu0 0.0
        %4667 = vmatpush.msra.mxu0 0.0
        %4668 = vmatpush.msra.mxu0 0.0
        %4669 = vmatpush.msra.mxu0 0.0
        %4670 = vmatpush.msra.mxu0 0.0
        %4671 = vmatpush.msra.mxu0 0.0
        %v4672 = vand.u32 %v4228, 4294901760
        %v4673 = vsub.f32 %v4228, %v4672
        %v4674 = vand.u32 %v4673, 4294901760
        %4675 = vmatpush.msra.mxu0 %v4674
        %v4676 = vand.u32 %v4227, 4294901760
        %v4677 = vsub.f32 %v4227, %v4676
        %v4678 = vand.u32 %v4677, 4294901760
        %4679 = vmatpush.msra.mxu0 %v4678
        %v4680 = vand.u32 %v676, 4294901760
        %4681 = vmatmul.f32.gmra.mxu0 %v4680
        %v4682 = vpop.f32.mrf.mxu0
        %v4683 = vadd.f32 %v4656, %v4682
        %4684 = vdwg.mxu0
        %4685 = vmatpush.msra.mxu0 0.0
        %4686 = vmatpush.msra.mxu0 0.0
        %4687 = vmatpush.msra.mxu0 0.0
        %4688 = vmatpush.msra.mxu0 0.0
        %4689 = vmatpush.msra.mxu0 0.0
        %4690 = vmatpush.msra.mxu0 0.0
        %4691 = vmatpush.msra.mxu0 0.0
        %4692 = vmatpush.msra.mxu0 0.0
        %4693 = vmatpush.msra.mxu0 0.0
        %4694 = vmatpush.msra.mxu0 0.0
        %4695 = vmatpush.msra.mxu0 0.0
        %4696 = vmatpush.msra.mxu0 0.0
        %4697 = vmatpush.msra.mxu0 0.0
        %4698 = vmatpush.msra.mxu0 0.0
        %v4699 = vand.u32 %v4228, 4294901760
        %4700 = vmatpush.msra.mxu0 %v4699
        %v4701 = vand.u32 %v4227, 4294901760
        %4702 = vmatpush.msra.mxu0 %v4701
        %v4703 = vand.u32 %v676, 4294901760
        %4704 = vmatmul.f32.gmra.mxu0 %v4703
        %v4705 = vpop.f32.mrf.mxu0
        %v4706 = vadd.f32 %v4683, %v4705
        %4707 = vdwg.mxu0
        %4708 = vmatpush.msra.mxu0 0.0
        %4709 = vmatpush.msra.mxu0 0.0
        %4710 = vmatpush.msra.mxu0 0.0
        %4711 = vmatpush.msra.mxu0 0.0
        %4712 = vmatpush.msra.mxu0 0.0
        %4713 = vmatpush.msra.mxu0 0.0
        %4714 = vmatpush.msra.mxu0 0.0
        %4715 = vmatpush.msra.mxu0 0.0
        %4716 = vmatpush.msra.mxu0 0.0
        %4717 = vmatpush.msra.mxu0 0.0
        %4718 = vmatpush.msra.mxu0 0.0
        %4719 = vmatpush.msra.mxu0 0.0
        %4720 = vmatpush.msra.mxu0 0.0
        %4721 = vmatpush.msra.mxu0 0.0
        %v4722 = vand.u32 %v4230, 4294901760
        %4723 = vmatpush.msra.mxu0 %v4722
        %v4724 = vand.u32 %v4229, 4294901760
        %4725 = vmatpush.msra.mxu0 %v4724
        %v4726 = vand.u32 %v838, 4294901760
        %v4727 = vsub.f32 %v838, %v4726
        %v4728 = vand.u32 %v4727, 4294901760
        %v4729 = vsub.f32 %v4727, %v4728
        %v4730 = vand.u32 %v4729, 4294901760
        %4731 = vmatmul.f32.gmra.mxu0 %v4730
        %v4732 = vpop.f32.mrf.mxu0
        %v4733 = vadd.f32 0.0, %v4732
        %4734 = vdwg.mxu0
        %4735 = vmatpush.msra.mxu0 0.0
        %4736 = vmatpush.msra.mxu0 0.0
        %4737 = vmatpush.msra.mxu0 0.0
        %4738 = vmatpush.msra.mxu0 0.0
        %4739 = vmatpush.msra.mxu0 0.0
        %4740 = vmatpush.msra.mxu0 0.0
        %4741 = vmatpush.msra.mxu0 0.0
        %4742 = vmatpush.msra.mxu0 0.0
        %4743 = vmatpush.msra.mxu0 0.0
        %4744 = vmatpush.msra.mxu0 0.0
        %4745 = vmatpush.msra.mxu0 0.0
        %4746 = vmatpush.msra.mxu0 0.0
        %4747 = vmatpush.msra.mxu0 0.0
        %4748 = vmatpush.msra.mxu0 0.0
        %v4749 = vand.u32 %v4230, 4294901760
        %v4750 = vsub.f32 %v4230, %v4749
        %v4751 = vand.u32 %v4750, 4294901760
        %v4752 = vsub.f32 %v4750, %v4751
        %v4753 = vand.u32 %v4752, 4294901760
        %4754 = vmatpush.msra.mxu0 %v4753
        %v4755 = vand.u32 %v4229, 4294901760
        %v4756 = vsub.f32 %v4229, %v4755
        %v4757 = vand.u32 %v4756, 4294901760
        %v4758 = vsub.f32 %v4756, %v4757
        %v4759 = vand.u32 %v4758, 4294901760
        %4760 = vmatpush.msra.mxu0 %v4759
        %v4761 = vand.u32 %v838, 4294901760
        %4762 = vmatmul.f32.gmra.mxu0 %v4761
        %v4763 = vpop.f32.mrf.mxu0
        %v4764 = vadd.f32 %v4733, %v4763
        %4765 = vdwg.mxu0
        %4766 = vmatpush.msra.mxu0 0.0
        %4767 = vmatpush.msra.mxu0 0.0
        %4768 = vmatpush.msra.mxu0 0.0
        %4769 = vmatpush.msra.mxu0 0.0
        %4770 = vmatpush.msra.mxu0 0.0
        %4771 = vmatpush.msra.mxu0 0.0
        %4772 = vmatpush.msra.mxu0 0.0
        %4773 = vmatpush.msra.mxu0 0.0
        %4774 = vmatpush.msra.mxu0 0.0
        %4775 = vmatpush.msra.mxu0 0.0
        %4776 = vmatpush.msra.mxu0 0.0
        %4777 = vmatpush.msra.mxu0 0.0
        %4778 = vmatpush.msra.mxu0 0.0
        %4779 = vmatpush.msra.mxu0 0.0
        %v4780 = vand.u32 %v4230, 4294901760
        %v4781 = vsub.f32 %v4230, %v4780
        %4782 = vmatpush.msra.mxu0 %v4781
        %v4783 = vand.u32 %v4229, 4294901760
        %v4784 = vsub.f32 %v4229, %v4783
        %4785 = vmatpush.msra.mxu0 %v4784
        %v4786 = vand.u32 %v838, 4294901760
        %v4787 = vsub.f32 %v838, %v4786
        %4788 = vmatmul.f32.gmra.mxu0 %v4787
        %v4789 = vpop.f32.mrf.mxu0
        %v4790 = vadd.f32 %v4764, %v4789
        %4791 = vdwg.mxu0
        %4792 = vmatpush.msra.mxu0 0.0
        %4793 = vmatpush.msra.mxu0 0.0
        %4794 = vmatpush.msra.mxu0 0.0
        %4795 = vmatpush.msra.mxu0 0.0
        %4796 = vmatpush.msra.mxu0 0.0
        %4797 = vmatpush.msra.mxu0 0.0
        %4798 = vmatpush.msra.mxu0 0.0
        %4799 = vmatpush.msra.mxu0 0.0
        %4800 = vmatpush.msra.mxu0 0.0
        %4801 = vmatpush.msra.mxu0 0.0
        %4802 = vmatpush.msra.mxu0 0.0
        %4803 = vmatpush.msra.mxu0 0.0
        %4804 = vmatpush.msra.mxu0 0.0
        %4805 = vmatpush.msra.mxu0 0.0
        %v4806 = vand.u32 %v4230, 4294901760
        %4807 = vmatpush.msra.mxu0 %v4806
        %v4808 = vand.u32 %v4229, 4294901760
        %4809 = vmatpush.msra.mxu0 %v4808
        %v4810 = vand.u32 %v838, 4294901760
        %v4811 = vsub.f32 %v838, %v4810
        %v4812 = vand.u32 %v4811, 4294901760
        %4813 = vmatmul.f32.gmra.mxu0 %v4812
        %v4814 = vpop.f32.mrf.mxu0
        %v4815 = vadd.f32 %v4790, %v4814
        %4816 = vdwg.mxu0
        %4817 = vmatpush.msra.mxu0 0.0
        %4818 = vmatpush.msra.mxu0 0.0
        %4819 = vmatpush.msra.mxu0 0.0
        %4820 = vmatpush.msra.mxu0 0.0
        %4821 = vmatpush.msra.mxu0 0.0
        %4822 = vmatpush.msra.mxu0 0.0
        %4823 = vmatpush.msra.mxu0 0.0
        %4824 = vmatpush.msra.mxu0 0.0
        %4825 = vmatpush.msra.mxu0 0.0
        %4826 = vmatpush.msra.mxu0 0.0
        %4827 = vmatpush.msra.mxu0 0.0
        %4828 = vmatpush.msra.mxu0 0.0
        %4829 = vmatpush.msra.mxu0 0.0
        %4830 = vmatpush.msra.mxu0 0.0
        %v4831 = vand.u32 %v4230, 4294901760
        %v4832 = vsub.f32 %v4230, %v4831
        %v4833 = vand.u32 %v4832, 4294901760
        %4834 = vmatpush.msra.mxu0 %v4833
        %v4835 = vand.u32 %v4229, 4294901760
        %v4836 = vsub.f32 %v4229, %v4835
        %v4837 = vand.u32 %v4836, 4294901760
        %4838 = vmatpush.msra.mxu0 %v4837
        %v4839 = vand.u32 %v838, 4294901760
        %4840 = vmatmul.f32.gmra.mxu0 %v4839
        %v4841 = vpop.f32.mrf.mxu0
        %v4842 = vadd.f32 %v4815, %v4841
        %4843 = vdwg.mxu0
        %4844 = vmatpush.msra.mxu0 0.0
        %4845 = vmatpush.msra.mxu0 0.0
        %4846 = vmatpush.msra.mxu0 0.0
        %4847 = vmatpush.msra.mxu0 0.0
        %4848 = vmatpush.msra.mxu0 0.0
        %4849 = vmatpush.msra.mxu0 0.0
        %4850 = vmatpush.msra.mxu0 0.0
        %4851 = vmatpush.msra.mxu0 0.0
        %4852 = vmatpush.msra.mxu0 0.0
        %4853 = vmatpush.msra.mxu0 0.0
        %4854 = vmatpush.msra.mxu0 0.0
        %4855 = vmatpush.msra.mxu0 0.0
        %4856 = vmatpush.msra.mxu0 0.0
        %4857 = vmatpush.msra.mxu0 0.0
        %v4858 = vand.u32 %v4230, 4294901760
        %4859 = vmatpush.msra.mxu0 %v4858
        %v4860 = vand.u32 %v4229, 4294901760
        %4861 = vmatpush.msra.mxu0 %v4860
        %v4862 = vand.u32 %v838, 4294901760
        %4863 = vmatmul.f32.gmra.mxu0 %v4862
        %v4864 = vpop.f32.mrf.mxu0
        %v4865 = vadd.f32 %v4842, %v4864
        %4866 = vdwg.mxu0
        %v4868 = vsel %vm350, %v4388, 0
        %4870 = vmatpush.msra.mxu0 0.0
        %4871 = vmatpush.msra.mxu0 0.0
        %4872 = vmatpush.msra.mxu0 0.0
        %4873 = vmatpush.msra.mxu0 0.0
        %4874 = vmatpush.msra.mxu0 0.0
        %4875 = vmatpush.msra.mxu0 0.0
        %4876 = vmatpush.msra.mxu0 0.0
        %4877 = vmatpush.msra.mxu0 0.0
        %4878 = vmatpush.msra.mxu0 0.0
        %4879 = vmatpush.msra.mxu0 0.0
        %4880 = vmatpush.msra.mxu0 0.0
        %4881 = vmatpush.msra.mxu0 0.0
        %4882 = vmatpush.msra.mxu0 0.0
        %4883 = vmatpush.msra.mxu0 0.0
        %v4884 = vand.u32 %v343, 4294901760
        %4885 = vmatpush.msra.mxu0 %v4884
        %v4886 = vand.u32 %v342, 4294901760
        %4887 = vmatpush.msra.mxu0 %v4886
        %v4888 = vand.u32 %v4868, 4294901760
        %v4889 = vsub.f32 %v4868, %v4888
        %v4890 = vand.u32 %v4889, 4294901760
        %v4891 = vsub.f32 %v4889, %v4890
        %v4892 = vand.u32 %v4891, 4294901760
        %4893 = vmatmul.f32.gmra.mxu0 %v4892
        %v4894 = vpop.f32.mrf.mxu0
        %v4895 = vadd.f32 0.0, %v4894
        %4896 = vdwg.mxu0
        %4897 = vmatpush.msra.mxu0 0.0
        %4898 = vmatpush.msra.mxu0 0.0
        %4899 = vmatpush.msra.mxu0 0.0
        %4900 = vmatpush.msra.mxu0 0.0
        %4901 = vmatpush.msra.mxu0 0.0
        %4902 = vmatpush.msra.mxu0 0.0
        %4903 = vmatpush.msra.mxu0 0.0
        %4904 = vmatpush.msra.mxu0 0.0
        %4905 = vmatpush.msra.mxu0 0.0
        %4906 = vmatpush.msra.mxu0 0.0
        %4907 = vmatpush.msra.mxu0 0.0
        %4908 = vmatpush.msra.mxu0 0.0
        %4909 = vmatpush.msra.mxu0 0.0
        %4910 = vmatpush.msra.mxu0 0.0
        %v4911 = vand.u32 %v343, 4294901760
        %v4912 = vsub.f32 %v343, %v4911
        %v4913 = vand.u32 %v4912, 4294901760
        %v4914 = vsub.f32 %v4912, %v4913
        %v4915 = vand.u32 %v4914, 4294901760
        %4916 = vmatpush.msra.mxu0 %v4915
        %v4917 = vand.u32 %v342, 4294901760
        %v4918 = vsub.f32 %v342, %v4917
        %v4919 = vand.u32 %v4918, 4294901760
        %v4920 = vsub.f32 %v4918, %v4919
        %v4921 = vand.u32 %v4920, 4294901760
        %4922 = vmatpush.msra.mxu0 %v4921
        %v4923 = vand.u32 %v4868, 4294901760
        %4924 = vmatmul.f32.gmra.mxu0 %v4923
        %v4925 = vpop.f32.mrf.mxu0
        %v4926 = vadd.f32 %v4895, %v4925
        %4927 = vdwg.mxu0
        %4928 = vmatpush.msra.mxu0 0.0
        %4929 = vmatpush.msra.mxu0 0.0
        %4930 = vmatpush.msra.mxu0 0.0
        %4931 = vmatpush.msra.mxu0 0.0
        %4932 = vmatpush.msra.mxu0 0.0
        %4933 = vmatpush.msra.mxu0 0.0
        %4934 = vmatpush.msra.mxu0 0.0
        %4935 = vmatpush.msra.mxu0 0.0
        %4936 = vmatpush.msra.mxu0 0.0
        %4937 = vmatpush.msra.mxu0 0.0
        %4938 = vmatpush.msra.mxu0 0.0
        %4939 = vmatpush.msra.mxu0 0.0
        %4940 = vmatpush.msra.mxu0 0.0
        %4941 = vmatpush.msra.mxu0 0.0
        %v4942 = vand.u32 %v343, 4294901760
        %v4943 = vsub.f32 %v343, %v4942
        %4944 = vmatpush.msra.mxu0 %v4943
        %v4945 = vand.u32 %v342, 4294901760
        %v4946 = vsub.f32 %v342, %v4945
        %4947 = vmatpush.msra.mxu0 %v4946
        %v4948 = vand.u32 %v4868, 4294901760
        %v4949 = vsub.f32 %v4868, %v4948
        %4950 = vmatmul.f32.gmra.mxu0 %v4949
        %v4951 = vpop.f32.mrf.mxu0
        %v4952 = vadd.f32 %v4926, %v4951
        %4953 = vdwg.mxu0
        %4954 = vmatpush.msra.mxu0 0.0
        %4955 = vmatpush.msra.mxu0 0.0
        %4956 = vmatpush.msra.mxu0 0.0
        %4957 = vmatpush.msra.mxu0 0.0
        %4958 = vmatpush.msra.mxu0 0.0
        %4959 = vmatpush.msra.mxu0 0.0
        %4960 = vmatpush.msra.mxu0 0.0
        %4961 = vmatpush.msra.mxu0 0.0
        %4962 = vmatpush.msra.mxu0 0.0
        %4963 = vmatpush.msra.mxu0 0.0
        %4964 = vmatpush.msra.mxu0 0.0
        %4965 = vmatpush.msra.mxu0 0.0
        %4966 = vmatpush.msra.mxu0 0.0
        %4967 = vmatpush.msra.mxu0 0.0
        %v4968 = vand.u32 %v343, 4294901760
        %4969 = vmatpush.msra.mxu0 %v4968
        %v4970 = vand.u32 %v342, 4294901760
        %4971 = vmatpush.msra.mxu0 %v4970
        %v4972 = vand.u32 %v4868, 4294901760
        %v4973 = vsub.f32 %v4868, %v4972
        %v4974 = vand.u32 %v4973, 4294901760
        %4975 = vmatmul.f32.gmra.mxu0 %v4974
        %v4976 = vpop.f32.mrf.mxu0
        %v4977 = vadd.f32 %v4952, %v4976
        %4978 = vdwg.mxu0
        %4979 = vmatpush.msra.mxu0 0.0
        %4980 = vmatpush.msra.mxu0 0.0
        %4981 = vmatpush.msra.mxu0 0.0
        %4982 = vmatpush.msra.mxu0 0.0
        %4983 = vmatpush.msra.mxu0 0.0
        %4984 = vmatpush.msra.mxu0 0.0
        %4985 = vmatpush.msra.mxu0 0.0
        %4986 = vmatpush.msra.mxu0 0.0
        %4987 = vmatpush.msra.mxu0 0.0
        %4988 = vmatpush.msra.mxu0 0.0
        %4989 = vmatpush.msra.mxu0 0.0
        %4990 = vmatpush.msra.mxu0 0.0
        %4991 = vmatpush.msra.mxu0 0.0
        %4992 = vmatpush.msra.mxu0 0.0
        %v4993 = vand.u32 %v343, 4294901760
        %v4994 = vsub.f32 %v343, %v4993
        %v4995 = vand.u32 %v4994, 4294901760
        %4996 = vmatpush.msra.mxu0 %v4995
        %v4997 = vand.u32 %v342, 4294901760
        %v4998 = vsub.f32 %v342, %v4997
        %v4999 = vand.u32 %v4998, 4294901760
        %5000 = vmatpush.msra.mxu0 %v4999
        %v5001 = vand.u32 %v4868, 4294901760
        %5002 = vmatmul.f32.gmra.mxu0 %v5001
        %v5003 = vpop.f32.mrf.mxu0
        %v5004 = vadd.f32 %v4977, %v5003
        %5005 = vdwg.mxu0
        %5006 = vmatpush.msra.mxu0 0.0
        %5007 = vmatpush.msra.mxu0 0.0
        %5008 = vmatpush.msra.mxu0 0.0
        %5009 = vmatpush.msra.mxu0 0.0
        %5010 = vmatpush.msra.mxu0 0.0
        %5011 = vmatpush.msra.mxu0 0.0
        %5012 = vmatpush.msra.mxu0 0.0
        %5013 = vmatpush.msra.mxu0 0.0
        %5014 = vmatpush.msra.mxu0 0.0
        %5015 = vmatpush.msra.mxu0 0.0
        %5016 = vmatpush.msra.mxu0 0.0
        %5017 = vmatpush.msra.mxu0 0.0
        %5018 = vmatpush.msra.mxu0 0.0
        %5019 = vmatpush.msra.mxu0 0.0
        %v5020 = vand.u32 %v343, 4294901760
        %5021 = vmatpush.msra.mxu0 %v5020
        %v5022 = vand.u32 %v342, 4294901760
        %5023 = vmatpush.msra.mxu0 %v5022
        %v5024 = vand.u32 %v4868, 4294901760
        %5025 = vmatmul.f32.gmra.mxu0 %v5024
        %v5026 = vpop.f32.mrf.mxu0
        %v5027 = vadd.f32 %v5004, %v5026
        %5028 = vdwg.mxu0
        %v5030 = vsel %vm350, %v4547, 0
        %5032 = vmatpush.msra.mxu0 0.0
        %5033 = vmatpush.msra.mxu0 0.0
        %5034 = vmatpush.msra.mxu0 0.0
        %5035 = vmatpush.msra.mxu0 0.0
        %5036 = vmatpush.msra.mxu0 0.0
        %5037 = vmatpush.msra.mxu0 0.0
        %5038 = vmatpush.msra.mxu0 0.0
        %5039 = vmatpush.msra.mxu0 0.0
        %5040 = vmatpush.msra.mxu0 0.0
        %5041 = vmatpush.msra.mxu0 0.0
        %5042 = vmatpush.msra.mxu0 0.0
        %5043 = vmatpush.msra.mxu0 0.0
        %5044 = vmatpush.msra.mxu0 0.0
        %5045 = vmatpush.msra.mxu0 0.0
        %v5046 = vand.u32 %v345, 4294901760
        %5047 = vmatpush.msra.mxu0 %v5046
        %v5048 = vand.u32 %v344, 4294901760
        %5049 = vmatpush.msra.mxu0 %v5048
        %v5050 = vand.u32 %v5030, 4294901760
        %v5051 = vsub.f32 %v5030, %v5050
        %v5052 = vand.u32 %v5051, 4294901760
        %v5053 = vsub.f32 %v5051, %v5052
        %v5054 = vand.u32 %v5053, 4294901760
        %5055 = vmatmul.f32.gmra.mxu0 %v5054
        %v5056 = vpop.f32.mrf.mxu0
        %v5057 = vadd.f32 0.0, %v5056
        %5058 = vdwg.mxu0
        %5059 = vmatpush.msra.mxu0 0.0
        %5060 = vmatpush.msra.mxu0 0.0
        %5061 = vmatpush.msra.mxu0 0.0
        %5062 = vmatpush.msra.mxu0 0.0
        %5063 = vmatpush.msra.mxu0 0.0
        %5064 = vmatpush.msra.mxu0 0.0
        %5065 = vmatpush.msra.mxu0 0.0
        %5066 = vmatpush.msra.mxu0 0.0
        %5067 = vmatpush.msra.mxu0 0.0
        %5068 = vmatpush.msra.mxu0 0.0
        %5069 = vmatpush.msra.mxu0 0.0
        %5070 = vmatpush.msra.mxu0 0.0
        %5071 = vmatpush.msra.mxu0 0.0
        %5072 = vmatpush.msra.mxu0 0.0
        %v5073 = vand.u32 %v345, 4294901760
        %v5074 = vsub.f32 %v345, %v5073
        %v5075 = vand.u32 %v5074, 4294901760
        %v5076 = vsub.f32 %v5074, %v5075
        %v5077 = vand.u32 %v5076, 4294901760
        %5078 = vmatpush.msra.mxu0 %v5077
        %v5079 = vand.u32 %v344, 4294901760
        %v5080 = vsub.f32 %v344, %v5079
        %v5081 = vand.u32 %v5080, 4294901760
        %v5082 = vsub.f32 %v5080, %v5081
        %v5083 = vand.u32 %v5082, 4294901760
        %5084 = vmatpush.msra.mxu0 %v5083
        %v5085 = vand.u32 %v5030, 4294901760
        %5086 = vmatmul.f32.gmra.mxu0 %v5085
        %v5087 = vpop.f32.mrf.mxu0
        %v5088 = vadd.f32 %v5057, %v5087
        %5089 = vdwg.mxu0
        %5090 = vmatpush.msra.mxu0 0.0
        %5091 = vmatpush.msra.mxu0 0.0
        %5092 = vmatpush.msra.mxu0 0.0
        %5093 = vmatpush.msra.mxu0 0.0
        %5094 = vmatpush.msra.mxu0 0.0
        %5095 = vmatpush.msra.mxu0 0.0
        %5096 = vmatpush.msra.mxu0 0.0
        %5097 = vmatpush.msra.mxu0 0.0
        %5098 = vmatpush.msra.mxu0 0.0
        %5099 = vmatpush.msra.mxu0 0.0
        %5100 = vmatpush.msra.mxu0 0.0
        %5101 = vmatpush.msra.mxu0 0.0
        %5102 = vmatpush.msra.mxu0 0.0
        %5103 = vmatpush.msra.mxu0 0.0
        %v5104 = vand.u32 %v345, 4294901760
        %v5105 = vsub.f32 %v345, %v5104
        %5106 = vmatpush.msra.mxu0 %v5105
        %v5107 = vand.u32 %v344, 4294901760
        %v5108 = vsub.f32 %v344, %v5107
        %5109 = vmatpush.msra.mxu0 %v5108
        %v5110 = vand.u32 %v5030, 4294901760
        %v5111 = vsub.f32 %v5030, %v5110
        %5112 = vmatmul.f32.gmra.mxu0 %v5111
        %v5113 = vpop.f32.mrf.mxu0
        %v5114 = vadd.f32 %v5088, %v5113
        %5115 = vdwg.mxu0
        %5116 = vmatpush.msra.mxu0 0.0
        %5117 = vmatpush.msra.mxu0 0.0
        %5118 = vmatpush.msra.mxu0 0.0
        %5119 = vmatpush.msra.mxu0 0.0
        %5120 = vmatpush.msra.mxu0 0.0
        %5121 = vmatpush.msra.mxu0 0.0
        %5122 = vmatpush.msra.mxu0 0.0
        %5123 = vmatpush.msra.mxu0 0.0
        %5124 = vmatpush.msra.mxu0 0.0
        %5125 = vmatpush.msra.mxu0 0.0
        %5126 = vmatpush.msra.mxu0 0.0
        %5127 = vmatpush.msra.mxu0 0.0
        %5128 = vmatpush.msra.mxu0 0.0
        %5129 = vmatpush.msra.mxu0 0.0
        %v5130 = vand.u32 %v345, 4294901760
        %5131 = vmatpush.msra.mxu0 %v5130
        %v5132 = vand.u32 %v344, 4294901760
        %5133 = vmatpush.msra.mxu0 %v5132
        %v5134 = vand.u32 %v5030, 4294901760
        %v5135 = vsub.f32 %v5030, %v5134
        %v5136 = vand.u32 %v5135, 4294901760
        %5137 = vmatmul.f32.gmra.mxu0 %v5136
        %v5138 = vpop.f32.mrf.mxu0
        %v5139 = vadd.f32 %v5114, %v5138
        %5140 = vdwg.mxu0
        %5141 = vmatpush.msra.mxu0 0.0
        %5142 = vmatpush.msra.mxu0 0.0
        %5143 = vmatpush.msra.mxu0 0.0
        %5144 = vmatpush.msra.mxu0 0.0
        %5145 = vmatpush.msra.mxu0 0.0
        %5146 = vmatpush.msra.mxu0 0.0
        %5147 = vmatpush.msra.mxu0 0.0
        %5148 = vmatpush.msra.mxu0 0.0
        %5149 = vmatpush.msra.mxu0 0.0
        %5150 = vmatpush.msra.mxu0 0.0
        %5151 = vmatpush.msra.mxu0 0.0
        %5152 = vmatpush.msra.mxu0 0.0
        %5153 = vmatpush.msra.mxu0 0.0
        %5154 = vmatpush.msra.mxu0 0.0
        %v5155 = vand.u32 %v345, 4294901760
        %v5156 = vsub.f32 %v345, %v5155
        %v5157 = vand.u32 %v5156, 4294901760
        %5158 = vmatpush.msra.mxu0 %v5157
        %v5159 = vand.u32 %v344, 4294901760
        %v5160 = vsub.f32 %v344, %v5159
        %v5161 = vand.u32 %v5160, 4294901760
        %5162 = vmatpush.msra.mxu0 %v5161
        %v5163 = vand.u32 %v5030, 4294901760
        %5164 = vmatmul.f32.gmra.mxu0 %v5163
        %v5165 = vpop.f32.mrf.mxu0
        %v5166 = vadd.f32 %v5139, %v5165
        %5167 = vdwg.mxu0
        %5168 = vmatpush.msra.mxu0 0.0
        %5169 = vmatpush.msra.mxu0 0.0
        %5170 = vmatpush.msra.mxu0 0.0
        %5171 = vmatpush.msra.mxu0 0.0
        %5172 = vmatpush.msra.mxu0 0.0
        %5173 = vmatpush.msra.mxu0 0.0
        %5174 = vmatpush.msra.mxu0 0.0
        %5175 = vmatpush.msra.mxu0 0.0
        %5176 = vmatpush.msra.mxu0 0.0
        %5177 = vmatpush.msra.mxu0 0.0
        %5178 = vmatpush.msra.mxu0 0.0
        %5179 = vmatpush.msra.mxu0 0.0
        %5180 = vmatpush.msra.mxu0 0.0
        %5181 = vmatpush.msra.mxu0 0.0
        %v5182 = vand.u32 %v345, 4294901760
        %5183 = vmatpush.msra.mxu0 %v5182
        %v5184 = vand.u32 %v344, 4294901760
        %5185 = vmatpush.msra.mxu0 %v5184
        %v5186 = vand.u32 %v5030, 4294901760
        %5187 = vmatmul.f32.gmra.mxu0 %v5186
        %v5188 = vpop.f32.mrf.mxu0
        %v5189 = vadd.f32 %v5166, %v5188
        %5190 = vdwg.mxu0
        %v5192 = vsel %vm350, %v4706, 0
        %5194 = vmatpush.msra.mxu0 0.0
        %5195 = vmatpush.msra.mxu0 0.0
        %5196 = vmatpush.msra.mxu0 0.0
        %5197 = vmatpush.msra.mxu0 0.0
        %5198 = vmatpush.msra.mxu0 0.0
        %5199 = vmatpush.msra.mxu0 0.0
        %5200 = vmatpush.msra.mxu0 0.0
        %5201 = vmatpush.msra.mxu0 0.0
        %5202 = vmatpush.msra.mxu0 0.0
        %5203 = vmatpush.msra.mxu0 0.0
        %5204 = vmatpush.msra.mxu0 0.0
        %5205 = vmatpush.msra.mxu0 0.0
        %5206 = vmatpush.msra.mxu0 0.0
        %5207 = vmatpush.msra.mxu0 0.0
        %v5208 = vand.u32 %v347, 4294901760
        %5209 = vmatpush.msra.mxu0 %v5208
        %v5210 = vand.u32 %v346, 4294901760
        %5211 = vmatpush.msra.mxu0 %v5210
        %v5212 = vand.u32 %v5192, 4294901760
        %v5213 = vsub.f32 %v5192, %v5212
        %v5214 = vand.u32 %v5213, 4294901760
        %v5215 = vsub.f32 %v5213, %v5214
        %v5216 = vand.u32 %v5215, 4294901760
        %5217 = vmatmul.f32.gmra.mxu0 %v5216
        %v5218 = vpop.f32.mrf.mxu0
        %v5219 = vadd.f32 0.0, %v5218
        %5220 = vdwg.mxu0
        %5221 = vmatpush.msra.mxu0 0.0
        %5222 = vmatpush.msra.mxu0 0.0
        %5223 = vmatpush.msra.mxu0 0.0
        %5224 = vmatpush.msra.mxu0 0.0
        %5225 = vmatpush.msra.mxu0 0.0
        %5226 = vmatpush.msra.mxu0 0.0
        %5227 = vmatpush.msra.mxu0 0.0
        %5228 = vmatpush.msra.mxu0 0.0
        %5229 = vmatpush.msra.mxu0 0.0
        %5230 = vmatpush.msra.mxu0 0.0
        %5231 = vmatpush.msra.mxu0 0.0
        %5232 = vmatpush.msra.mxu0 0.0
        %5233 = vmatpush.msra.mxu0 0.0
        %5234 = vmatpush.msra.mxu0 0.0
        %v5235 = vand.u32 %v347, 4294901760
        %v5236 = vsub.f32 %v347, %v5235
        %v5237 = vand.u32 %v5236, 4294901760
        %v5238 = vsub.f32 %v5236, %v5237
        %v5239 = vand.u32 %v5238, 4294901760
        %5240 = vmatpush.msra.mxu0 %v5239
        %v5241 = vand.u32 %v346, 4294901760
        %v5242 = vsub.f32 %v346, %v5241
        %v5243 = vand.u32 %v5242, 4294901760
        %v5244 = vsub.f32 %v5242, %v5243
        %v5245 = vand.u32 %v5244, 4294901760
        %5246 = vmatpush.msra.mxu0 %v5245
        %v5247 = vand.u32 %v5192, 4294901760
        %5248 = vmatmul.f32.gmra.mxu0 %v5247
        %v5249 = vpop.f32.mrf.mxu0
        %v5250 = vadd.f32 %v5219, %v5249
        %5251 = vdwg.mxu0
        %5252 = vmatpush.msra.mxu0 0.0
        %5253 = vmatpush.msra.mxu0 0.0
        %5254 = vmatpush.msra.mxu0 0.0
        %5255 = vmatpush.msra.mxu0 0.0
        %5256 = vmatpush.msra.mxu0 0.0
        %5257 = vmatpush.msra.mxu0 0.0
        %5258 = vmatpush.msra.mxu0 0.0
        %5259 = vmatpush.msra.mxu0 0.0
        %5260 = vmatpush.msra.mxu0 0.0
        %5261 = vmatpush.msra.mxu0 0.0
        %5262 = vmatpush.msra.mxu0 0.0
        %5263 = vmatpush.msra.mxu0 0.0
        %5264 = vmatpush.msra.mxu0 0.0
        %5265 = vmatpush.msra.mxu0 0.0
        %v5266 = vand.u32 %v347, 4294901760
        %v5267 = vsub.f32 %v347, %v5266
        %5268 = vmatpush.msra.mxu0 %v5267
        %v5269 = vand.u32 %v346, 4294901760
        %v5270 = vsub.f32 %v346, %v5269
        %5271 = vmatpush.msra.mxu0 %v5270
        %v5272 = vand.u32 %v5192, 4294901760
        %v5273 = vsub.f32 %v5192, %v5272
        %5274 = vmatmul.f32.gmra.mxu0 %v5273
        %v5275 = vpop.f32.mrf.mxu0
        %v5276 = vadd.f32 %v5250, %v5275
        %5277 = vdwg.mxu0
        %5278 = vmatpush.msra.mxu0 0.0
        %5279 = vmatpush.msra.mxu0 0.0
        %5280 = vmatpush.msra.mxu0 0.0
        %5281 = vmatpush.msra.mxu0 0.0
        %5282 = vmatpush.msra.mxu0 0.0
        %5283 = vmatpush.msra.mxu0 0.0
        %5284 = vmatpush.msra.mxu0 0.0
        %5285 = vmatpush.msra.mxu0 0.0
        %5286 = vmatpush.msra.mxu0 0.0
        %5287 = vmatpush.msra.mxu0 0.0
        %5288 = vmatpush.msra.mxu0 0.0
        %5289 = vmatpush.msra.mxu0 0.0
        %5290 = vmatpush.msra.mxu0 0.0
        %5291 = vmatpush.msra.mxu0 0.0
        %v5292 = vand.u32 %v347, 4294901760
        %5293 = vmatpush.msra.mxu0 %v5292
        %v5294 = vand.u32 %v346, 4294901760
        %5295 = vmatpush.msra.mxu0 %v5294
        %v5296 = vand.u32 %v5192, 4294901760
        %v5297 = vsub.f32 %v5192, %v5296
        %v5298 = vand.u32 %v5297, 4294901760
        %5299 = vmatmul.f32.gmra.mxu0 %v5298
        %v5300 = vpop.f32.mrf.mxu0
        %v5301 = vadd.f32 %v5276, %v5300
        %5302 = vdwg.mxu0
        %5303 = vmatpush.msra.mxu0 0.0
        %5304 = vmatpush.msra.mxu0 0.0
        %5305 = vmatpush.msra.mxu0 0.0
        %5306 = vmatpush.msra.mxu0 0.0
        %5307 = vmatpush.msra.mxu0 0.0
        %5308 = vmatpush.msra.mxu0 0.0
        %5309 = vmatpush.msra.mxu0 0.0
        %5310 = vmatpush.msra.mxu0 0.0
        %5311 = vmatpush.msra.mxu0 0.0
        %5312 = vmatpush.msra.mxu0 0.0
        %5313 = vmatpush.msra.mxu0 0.0
        %5314 = vmatpush.msra.mxu0 0.0
        %5315 = vmatpush.msra.mxu0 0.0
        %5316 = vmatpush.msra.mxu0 0.0
        %v5317 = vand.u32 %v347, 4294901760
        %v5318 = vsub.f32 %v347, %v5317
        %v5319 = vand.u32 %v5318, 4294901760
        %5320 = vmatpush.msra.mxu0 %v5319
        %v5321 = vand.u32 %v346, 4294901760
        %v5322 = vsub.f32 %v346, %v5321
        %v5323 = vand.u32 %v5322, 4294901760
        %5324 = vmatpush.msra.mxu0 %v5323
        %v5325 = vand.u32 %v5192, 4294901760
        %5326 = vmatmul.f32.gmra.mxu0 %v5325
        %v5327 = vpop.f32.mrf.mxu0
        %v5328 = vadd.f32 %v5301, %v5327
        %5329 = vdwg.mxu0
        %5330 = vmatpush.msra.mxu0 0.0
        %5331 = vmatpush.msra.mxu0 0.0
        %5332 = vmatpush.msra.mxu0 0.0
        %5333 = vmatpush.msra.mxu0 0.0
        %5334 = vmatpush.msra.mxu0 0.0
        %5335 = vmatpush.msra.mxu0 0.0
        %5336 = vmatpush.msra.mxu0 0.0
        %5337 = vmatpush.msra.mxu0 0.0
        %5338 = vmatpush.msra.mxu0 0.0
        %5339 = vmatpush.msra.mxu0 0.0
        %5340 = vmatpush.msra.mxu0 0.0
        %5341 = vmatpush.msra.mxu0 0.0
        %5342 = vmatpush.msra.mxu0 0.0
        %5343 = vmatpush.msra.mxu0 0.0
        %v5344 = vand.u32 %v347, 4294901760
        %5345 = vmatpush.msra.mxu0 %v5344
        %v5346 = vand.u32 %v346, 4294901760
        %5347 = vmatpush.msra.mxu0 %v5346
        %v5348 = vand.u32 %v5192, 4294901760
        %5349 = vmatmul.f32.gmra.mxu0 %v5348
        %v5350 = vpop.f32.mrf.mxu0
        %v5351 = vadd.f32 %v5328, %v5350
        %5352 = vdwg.mxu0
        %v5354 = vsel %vm350, %v4865, 0
        %5356 = vmatpush.msra.mxu0 0.0
        %5357 = vmatpush.msra.mxu0 0.0
        %5358 = vmatpush.msra.mxu0 0.0
        %5359 = vmatpush.msra.mxu0 0.0
        %5360 = vmatpush.msra.mxu0 0.0
        %5361 = vmatpush.msra.mxu0 0.0
        %5362 = vmatpush.msra.mxu0 0.0
        %5363 = vmatpush.msra.mxu0 0.0
        %5364 = vmatpush.msra.mxu0 0.0
        %5365 = vmatpush.msra.mxu0 0.0
        %5366 = vmatpush.msra.mxu0 0.0
        %5367 = vmatpush.msra.mxu0 0.0
        %5368 = vmatpush.msra.mxu0 0.0
        %5369 = vmatpush.msra.mxu0 0.0
        %v5370 = vand.u32 %v349, 4294901760
        %5371 = vmatpush.msra.mxu0 %v5370
        %v5372 = vand.u32 %v348, 4294901760
        %5373 = vmatpush.msra.mxu0 %v5372
        %v5374 = vand.u32 %v5354, 4294901760
        %v5375 = vsub.f32 %v5354, %v5374
        %v5376 = vand.u32 %v5375, 4294901760
        %v5377 = vsub.f32 %v5375, %v5376
        %v5378 = vand.u32 %v5377, 4294901760
        %5379 = vmatmul.f32.gmra.mxu0 %v5378
        %v5380 = vpop.f32.mrf.mxu0
        %v5381 = vadd.f32 0.0, %v5380
        %5382 = vdwg.mxu0
        %5383 = vmatpush.msra.mxu0 0.0
        %5384 = vmatpush.msra.mxu0 0.0
        %5385 = vmatpush.msra.mxu0 0.0
        %5386 = vmatpush.msra.mxu0 0.0
        %5387 = vmatpush.msra.mxu0 0.0
        %5388 = vmatpush.msra.mxu0 0.0
        %5389 = vmatpush.msra.mxu0 0.0
        %5390 = vmatpush.msra.mxu0 0.0
        %5391 = vmatpush.msra.mxu0 0.0
        %5392 = vmatpush.msra.mxu0 0.0
        %5393 = vmatpush.msra.mxu0 0.0
        %5394 = vmatpush.msra.mxu0 0.0
        %5395 = vmatpush.msra.mxu0 0.0
        %5396 = vmatpush.msra.mxu0 0.0
        %v5397 = vand.u32 %v349, 4294901760
        %v5398 = vsub.f32 %v349, %v5397
        %v5399 = vand.u32 %v5398, 4294901760
        %v5400 = vsub.f32 %v5398, %v5399
        %v5401 = vand.u32 %v5400, 4294901760
        %5402 = vmatpush.msra.mxu0 %v5401
        %v5403 = vand.u32 %v348, 4294901760
        %v5404 = vsub.f32 %v348, %v5403
        %v5405 = vand.u32 %v5404, 4294901760
        %v5406 = vsub.f32 %v5404, %v5405
        %v5407 = vand.u32 %v5406, 4294901760
        %5408 = vmatpush.msra.mxu0 %v5407
        %v5409 = vand.u32 %v5354, 4294901760
        %5410 = vmatmul.f32.gmra.mxu0 %v5409
        %v5411 = vpop.f32.mrf.mxu0
        %v5412 = vadd.f32 %v5381, %v5411
        %5413 = vdwg.mxu0
        %5414 = vmatpush.msra.mxu0 0.0
        %5415 = vmatpush.msra.mxu0 0.0
        %5416 = vmatpush.msra.mxu0 0.0
        %5417 = vmatpush.msra.mxu0 0.0
        %5418 = vmatpush.msra.mxu0 0.0
        %5419 = vmatpush.msra.mxu0 0.0
        %5420 = vmatpush.msra.mxu0 0.0
        %5421 = vmatpush.msra.mxu0 0.0
        %5422 = vmatpush.msra.mxu0 0.0
        %5423 = vmatpush.msra.mxu0 0.0
        %5424 = vmatpush.msra.mxu0 0.0
        %5425 = vmatpush.msra.mxu0 0.0
        %5426 = vmatpush.msra.mxu0 0.0
        %5427 = vmatpush.msra.mxu0 0.0
        %v5428 = vand.u32 %v349, 4294901760
        %v5429 = vsub.f32 %v349, %v5428
        %5430 = vmatpush.msra.mxu0 %v5429
        %v5431 = vand.u32 %v348, 4294901760
        %v5432 = vsub.f32 %v348, %v5431
        %5433 = vmatpush.msra.mxu0 %v5432
        %v5434 = vand.u32 %v5354, 4294901760
        %v5435 = vsub.f32 %v5354, %v5434
        %5436 = vmatmul.f32.gmra.mxu0 %v5435
        %v5437 = vpop.f32.mrf.mxu0
        %v5438 = vadd.f32 %v5412, %v5437
        %5439 = vdwg.mxu0
        %5440 = vmatpush.msra.mxu0 0.0
        %5441 = vmatpush.msra.mxu0 0.0
        %5442 = vmatpush.msra.mxu0 0.0
        %5443 = vmatpush.msra.mxu0 0.0
        %5444 = vmatpush.msra.mxu0 0.0
        %5445 = vmatpush.msra.mxu0 0.0
        %5446 = vmatpush.msra.mxu0 0.0
        %5447 = vmatpush.msra.mxu0 0.0
        %5448 = vmatpush.msra.mxu0 0.0
        %5449 = vmatpush.msra.mxu0 0.0
        %5450 = vmatpush.msra.mxu0 0.0
        %5451 = vmatpush.msra.mxu0 0.0
        %5452 = vmatpush.msra.mxu0 0.0
        %5453 = vmatpush.msra.mxu0 0.0
        %v5454 = vand.u32 %v349, 4294901760
        %5455 = vmatpush.msra.mxu0 %v5454
        %v5456 = vand.u32 %v348, 4294901760
        %5457 = vmatpush.msra.mxu0 %v5456
        %v5458 = vand.u32 %v5354, 4294901760
        %v5459 = vsub.f32 %v5354, %v5458
        %v5460 = vand.u32 %v5459, 4294901760
        %5461 = vmatmul.f32.gmra.mxu0 %v5460
        %v5462 = vpop.f32.mrf.mxu0
        %v5463 = vadd.f32 %v5438, %v5462
        %5464 = vdwg.mxu0
        %5465 = vmatpush.msra.mxu0 0.0
        %5466 = vmatpush.msra.mxu0 0.0
        %5467 = vmatpush.msra.mxu0 0.0
        %5468 = vmatpush.msra.mxu0 0.0
        %5469 = vmatpush.msra.mxu0 0.0
        %5470 = vmatpush.msra.mxu0 0.0
        %5471 = vmatpush.msra.mxu0 0.0
        %5472 = vmatpush.msra.mxu0 0.0
        %5473 = vmatpush.msra.mxu0 0.0
        %5474 = vmatpush.msra.mxu0 0.0
        %5475 = vmatpush.msra.mxu0 0.0
        %5476 = vmatpush.msra.mxu0 0.0
        %5477 = vmatpush.msra.mxu0 0.0
        %5478 = vmatpush.msra.mxu0 0.0
        %v5479 = vand.u32 %v349, 4294901760
        %v5480 = vsub.f32 %v349, %v5479
        %v5481 = vand.u32 %v5480, 4294901760
        %5482 = vmatpush.msra.mxu0 %v5481
        %v5483 = vand.u32 %v348, 4294901760
        %v5484 = vsub.f32 %v348, %v5483
        %v5485 = vand.u32 %v5484, 4294901760
        %5486 = vmatpush.msra.mxu0 %v5485
        %v5487 = vand.u32 %v5354, 4294901760
        %5488 = vmatmul.f32.gmra.mxu0 %v5487
        %v5489 = vpop.f32.mrf.mxu0
        %v5490 = vadd.f32 %v5463, %v5489
        %5491 = vdwg.mxu0
        %5492 = vmatpush.msra.mxu0 0.0
        %5493 = vmatpush.msra.mxu0 0.0
        %5494 = vmatpush.msra.mxu0 0.0
        %5495 = vmatpush.msra.mxu0 0.0
        %5496 = vmatpush.msra.mxu0 0.0
        %5497 = vmatpush.msra.mxu0 0.0
        %5498 = vmatpush.msra.mxu0 0.0
        %5499 = vmatpush.msra.mxu0 0.0
        %5500 = vmatpush.msra.mxu0 0.0
        %5501 = vmatpush.msra.mxu0 0.0
        %5502 = vmatpush.msra.mxu0 0.0
        %5503 = vmatpush.msra.mxu0 0.0
        %5504 = vmatpush.msra.mxu0 0.0
        %5505 = vmatpush.msra.mxu0 0.0
        %v5506 = vand.u32 %v349, 4294901760
        %5507 = vmatpush.msra.mxu0 %v5506
        %v5508 = vand.u32 %v348, 4294901760
        %5509 = vmatpush.msra.mxu0 %v5508
        %v5510 = vand.u32 %v5354, 4294901760
        %5511 = vmatmul.f32.gmra.mxu0 %v5510
        %v5512 = vpop.f32.mrf.mxu0
        %v5513 = vadd.f32 %v5490, %v5512
        %5514 = vdwg.mxu0
        %v5515 = vmul.f32 %v322, %v330
        %v5516 = vmul.f32 %v323, %v331
        %v5517 = vmul.f32 %v324, %v332
        %v5518 = vmul.f32 %v325, %v333
        %v5519 = vmul.f32 %v326, %v334
        %v5520 = vmul.f32 %v327, %v335
        %v5521 = vmul.f32 %v328, %v336
        %v5522 = vmul.f32 %v329, %v337
        %5523 = vmatpush.msra.mxu0 0.0
        %5524 = vmatpush.msra.mxu0 0.0
        %5525 = vmatpush.msra.mxu0 0.0
        %5526 = vmatpush.msra.mxu0 0.0
        %5527 = vmatpush.msra.mxu0 0.0
        %5528 = vmatpush.msra.mxu0 0.0
        %5529 = vmatpush.msra.mxu0 0.0
        %5530 = vmatpush.msra.mxu0 0.0
        %5531 = vmatpush.msra.mxu0 0.0
        %5532 = vmatpush.msra.mxu0 0.0
        %5533 = vmatpush.msra.mxu0 0.0
        %5534 = vmatpush.msra.mxu0 0.0
        %5535 = vmatpush.msra.mxu0 0.0
        %5536 = vmatpush.msra.mxu0 0.0
        %v5537 = vand.u32 %v5516, 4294901760
        %5538 = vmatpush.msra.mxu0 %v5537
        %v5539 = vand.u32 %v5515, 4294901760
        %5540 = vmatpush.msra.mxu0 %v5539
        %v5541 = vand.u32 %v352, 4294901760
        %v5542 = vsub.f32 %v352, %v5541
        %v5543 = vand.u32 %v5542, 4294901760
        %v5544 = vsub.f32 %v5542, %v5543
        %v5545 = vand.u32 %v5544, 4294901760
        %5546 = vmatmul.f32.gmra.mxu0 %v5545
        %v5547 = vpop.f32.mrf.mxu0
        %v5548 = vadd.f32 0.0, %v5547
        %5549 = vdwg.mxu0
        %5550 = vmatpush.msra.mxu0 0.0
        %5551 = vmatpush.msra.mxu0 0.0
        %5552 = vmatpush.msra.mxu0 0.0
        %5553 = vmatpush.msra.mxu0 0.0
        %5554 = vmatpush.msra.mxu0 0.0
        %5555 = vmatpush.msra.mxu0 0.0
        %5556 = vmatpush.msra.mxu0 0.0
        %5557 = vmatpush.msra.mxu0 0.0
        %5558 = vmatpush.msra.mxu0 0.0
        %5559 = vmatpush.msra.mxu0 0.0
        %5560 = vmatpush.msra.mxu0 0.0
        %5561 = vmatpush.msra.mxu0 0.0
        %5562 = vmatpush.msra.mxu0 0.0
        %5563 = vmatpush.msra.mxu0 0.0
        %v5564 = vand.u32 %v5516, 4294901760
        %v5565 = vsub.f32 %v5516, %v5564
        %v5566 = vand.u32 %v5565, 4294901760
        %v5567 = vsub.f32 %v5565, %v5566
        %v5568 = vand.u32 %v5567, 4294901760
        %5569 = vmatpush.msra.mxu0 %v5568
        %v5570 = vand.u32 %v5515, 4294901760
        %v5571 = vsub.f32 %v5515, %v5570
        %v5572 = vand.u32 %v5571, 4294901760
        %v5573 = vsub.f32 %v5571, %v5572
        %v5574 = vand.u32 %v5573, 4294901760
        %5575 = vmatpush.msra.mxu0 %v5574
        %v5576 = vand.u32 %v352, 4294901760
        %5577 = vmatmul.f32.gmra.mxu0 %v5576
        %v5578 = vpop.f32.mrf.mxu0
        %v5579 = vadd.f32 %v5548, %v5578
        %5580 = vdwg.mxu0
        %5581 = vmatpush.msra.mxu0 0.0
        %5582 = vmatpush.msra.mxu0 0.0
        %5583 = vmatpush.msra.mxu0 0.0
        %5584 = vmatpush.msra.mxu0 0.0
        %5585 = vmatpush.msra.mxu0 0.0
        %5586 = vmatpush.msra.mxu0 0.0
        %5587 = vmatpush.msra.mxu0 0.0
        %5588 = vmatpush.msra.mxu0 0.0
        %5589 = vmatpush.msra.mxu0 0.0
        %5590 = vmatpush.msra.mxu0 0.0
        %5591 = vmatpush.msra.mxu0 0.0
        %5592 = vmatpush.msra.mxu0 0.0
        %5593 = vmatpush.msra.mxu0 0.0
        %5594 = vmatpush.msra.mxu0 0.0
        %v5595 = vand.u32 %v5516, 4294901760
        %v5596 = vsub.f32 %v5516, %v5595
        %5597 = vmatpush.msra.mxu0 %v5596
        %v5598 = vand.u32 %v5515, 4294901760
        %v5599 = vsub.f32 %v5515, %v5598
        %5600 = vmatpush.msra.mxu0 %v5599
        %v5601 = vand.u32 %v352, 4294901760
        %v5602 = vsub.f32 %v352, %v5601
        %5603 = vmatmul.f32.gmra.mxu0 %v5602
        %v5604 = vpop.f32.mrf.mxu0
        %v5605 = vadd.f32 %v5579, %v5604
        %5606 = vdwg.mxu0
        %5607 = vmatpush.msra.mxu0 0.0
        %5608 = vmatpush.msra.mxu0 0.0
        %5609 = vmatpush.msra.mxu0 0.0
        %5610 = vmatpush.msra.mxu0 0.0
        %5611 = vmatpush.msra.mxu0 0.0
        %5612 = vmatpush.msra.mxu0 0.0
        %5613 = vmatpush.msra.mxu0 0.0
        %5614 = vmatpush.msra.mxu0 0.0
        %5615 = vmatpush.msra.mxu0 0.0
        %5616 = vmatpush.msra.mxu0 0.0
        %5617 = vmatpush.msra.mxu0 0.0
        %5618 = vmatpush.msra.mxu0 0.0
        %5619 = vmatpush.msra.mxu0 0.0
        %5620 = vmatpush.msra.mxu0 0.0
        %v5621 = vand.u32 %v5516, 4294901760
        %5622 = vmatpush.msra.mxu0 %v5621
        %v5623 = vand.u32 %v5515, 4294901760
        %5624 = vmatpush.msra.mxu0 %v5623
        %v5625 = vand.u32 %v352, 4294901760
        %v5626 = vsub.f32 %v352, %v5625
        %v5627 = vand.u32 %v5626, 4294901760
        %5628 = vmatmul.f32.gmra.mxu0 %v5627
        %v5629 = vpop.f32.mrf.mxu0
        %v5630 = vadd.f32 %v5605, %v5629
        %5631 = vdwg.mxu0
        %5632 = vmatpush.msra.mxu0 0.0
        %5633 = vmatpush.msra.mxu0 0.0
        %5634 = vmatpush.msra.mxu0 0.0
        %5635 = vmatpush.msra.mxu0 0.0
        %5636 = vmatpush.msra.mxu0 0.0
        %5637 = vmatpush.msra.mxu0 0.0
        %5638 = vmatpush.msra.mxu0 0.0
        %5639 = vmatpush.msra.mxu0 0.0
        %5640 = vmatpush.msra.mxu0 0.0
        %5641 = vmatpush.msra.mxu0 0.0
        %5642 = vmatpush.msra.mxu0 0.0
        %5643 = vmatpush.msra.mxu0 0.0
        %5644 = vmatpush.msra.mxu0 0.0
        %5645 = vmatpush.msra.mxu0 0.0
        %v5646 = vand.u32 %v5516, 4294901760
        %v5647 = vsub.f32 %v5516, %v5646
        %v5648 = vand.u32 %v5647, 4294901760
        %5649 = vmatpush.msra.mxu0 %v5648
        %v5650 = vand.u32 %v5515, 4294901760
        %v5651 = vsub.f32 %v5515, %v5650
        %v5652 = vand.u32 %v5651, 4294901760
        %5653 = vmatpush.msra.mxu0 %v5652
        %v5654 = vand.u32 %v352, 4294901760
        %5655 = vmatmul.f32.gmra.mxu0 %v5654
        %v5656 = vpop.f32.mrf.mxu0
        %v5657 = vadd.f32 %v5630, %v5656
        %5658 = vdwg.mxu0
        %5659 = vmatpush.msra.mxu0 0.0
        %5660 = vmatpush.msra.mxu0 0.0
        %5661 = vmatpush.msra.mxu0 0.0
        %5662 = vmatpush.msra.mxu0 0.0
        %5663 = vmatpush.msra.mxu0 0.0
        %5664 = vmatpush.msra.mxu0 0.0
        %5665 = vmatpush.msra.mxu0 0.0
        %5666 = vmatpush.msra.mxu0 0.0
        %5667 = vmatpush.msra.mxu0 0.0
        %5668 = vmatpush.msra.mxu0 0.0
        %5669 = vmatpush.msra.mxu0 0.0
        %5670 = vmatpush.msra.mxu0 0.0
        %5671 = vmatpush.msra.mxu0 0.0
        %5672 = vmatpush.msra.mxu0 0.0
        %v5673 = vand.u32 %v5516, 4294901760
        %5674 = vmatpush.msra.mxu0 %v5673
        %v5675 = vand.u32 %v5515, 4294901760
        %5676 = vmatpush.msra.mxu0 %v5675
        %v5677 = vand.u32 %v352, 4294901760
        %5678 = vmatmul.f32.gmra.mxu0 %v5677
        %v5679 = vpop.f32.mrf.mxu0
        %v5680 = vadd.f32 %v5657, %v5679
        %5681 = vdwg.mxu0
        %5682 = vmatpush.msra.mxu0 0.0
        %5683 = vmatpush.msra.mxu0 0.0
        %5684 = vmatpush.msra.mxu0 0.0
        %5685 = vmatpush.msra.mxu0 0.0
        %5686 = vmatpush.msra.mxu0 0.0
        %5687 = vmatpush.msra.mxu0 0.0
        %5688 = vmatpush.msra.mxu0 0.0
        %5689 = vmatpush.msra.mxu0 0.0
        %5690 = vmatpush.msra.mxu0 0.0
        %5691 = vmatpush.msra.mxu0 0.0
        %5692 = vmatpush.msra.mxu0 0.0
        %5693 = vmatpush.msra.mxu0 0.0
        %5694 = vmatpush.msra.mxu0 0.0
        %5695 = vmatpush.msra.mxu0 0.0
        %v5696 = vand.u32 %v5518, 4294901760
        %5697 = vmatpush.msra.mxu0 %v5696
        %v5698 = vand.u32 %v5517, 4294901760
        %5699 = vmatpush.msra.mxu0 %v5698
        %v5700 = vand.u32 %v514, 4294901760
        %v5701 = vsub.f32 %v514, %v5700
        %v5702 = vand.u32 %v5701, 4294901760
        %v5703 = vsub.f32 %v5701, %v5702
        %v5704 = vand.u32 %v5703, 4294901760
        %5705 = vmatmul.f32.gmra.mxu0 %v5704
        %v5706 = vpop.f32.mrf.mxu0
        %v5707 = vadd.f32 0.0, %v5706
        %5708 = vdwg.mxu0
        %5709 = vmatpush.msra.mxu0 0.0
        %5710 = vmatpush.msra.mxu0 0.0
        %5711 = vmatpush.msra.mxu0 0.0
        %5712 = vmatpush.msra.mxu0 0.0
        %5713 = vmatpush.msra.mxu0 0.0
        %5714 = vmatpush.msra.mxu0 0.0
        %5715 = vmatpush.msra.mxu0 0.0
        %5716 = vmatpush.msra.mxu0 0.0
        %5717 = vmatpush.msra.mxu0 0.0
        %5718 = vmatpush.msra.mxu0 0.0
        %5719 = vmatpush.msra.mxu0 0.0
        %5720 = vmatpush.msra.mxu0 0.0
        %5721 = vmatpush.msra.mxu0 0.0
        %5722 = vmatpush.msra.mxu0 0.0
        %v5723 = vand.u32 %v5518, 4294901760
        %v5724 = vsub.f32 %v5518, %v5723
        %v5725 = vand.u32 %v5724, 4294901760
        %v5726 = vsub.f32 %v5724, %v5725
        %v5727 = vand.u32 %v5726, 4294901760
        %5728 = vmatpush.msra.mxu0 %v5727
        %v5729 = vand.u32 %v5517, 4294901760
        %v5730 = vsub.f32 %v5517, %v5729
        %v5731 = vand.u32 %v5730, 4294901760
        %v5732 = vsub.f32 %v5730, %v5731
        %v5733 = vand.u32 %v5732, 4294901760
        %5734 = vmatpush.msra.mxu0 %v5733
        %v5735 = vand.u32 %v514, 4294901760
        %5736 = vmatmul.f32.gmra.mxu0 %v5735
        %v5737 = vpop.f32.mrf.mxu0
        %v5738 = vadd.f32 %v5707, %v5737
        %5739 = vdwg.mxu0
        %5740 = vmatpush.msra.mxu0 0.0
        %5741 = vmatpush.msra.mxu0 0.0
        %5742 = vmatpush.msra.mxu0 0.0
        %5743 = vmatpush.msra.mxu0 0.0
        %5744 = vmatpush.msra.mxu0 0.0
        %5745 = vmatpush.msra.mxu0 0.0
        %5746 = vmatpush.msra.mxu0 0.0
        %5747 = vmatpush.msra.mxu0 0.0
        %5748 = vmatpush.msra.mxu0 0.0
        %5749 = vmatpush.msra.mxu0 0.0
        %5750 = vmatpush.msra.mxu0 0.0
        %5751 = vmatpush.msra.mxu0 0.0
        %5752 = vmatpush.msra.mxu0 0.0
        %5753 = vmatpush.msra.mxu0 0.0
        %v5754 = vand.u32 %v5518, 4294901760
        %v5755 = vsub.f32 %v5518, %v5754
        %5756 = vmatpush.msra.mxu0 %v5755
        %v5757 = vand.u32 %v5517, 4294901760
        %v5758 = vsub.f32 %v5517, %v5757
        %5759 = vmatpush.msra.mxu0 %v5758
        %v5760 = vand.u32 %v514, 4294901760
        %v5761 = vsub.f32 %v514, %v5760
        %5762 = vmatmul.f32.gmra.mxu0 %v5761
        %v5763 = vpop.f32.mrf.mxu0
        %v5764 = vadd.f32 %v5738, %v5763
        %5765 = vdwg.mxu0
        %5766 = vmatpush.msra.mxu0 0.0
        %5767 = vmatpush.msra.mxu0 0.0
        %5768 = vmatpush.msra.mxu0 0.0
        %5769 = vmatpush.msra.mxu0 0.0
        %5770 = vmatpush.msra.mxu0 0.0
        %5771 = vmatpush.msra.mxu0 0.0
        %5772 = vmatpush.msra.mxu0 0.0
        %5773 = vmatpush.msra.mxu0 0.0
        %5774 = vmatpush.msra.mxu0 0.0
        %5775 = vmatpush.msra.mxu0 0.0
        %5776 = vmatpush.msra.mxu0 0.0
        %5777 = vmatpush.msra.mxu0 0.0
        %5778 = vmatpush.msra.mxu0 0.0
        %5779 = vmatpush.msra.mxu0 0.0
        %v5780 = vand.u32 %v5518, 4294901760
        %5781 = vmatpush.msra.mxu0 %v5780
        %v5782 = vand.u32 %v5517, 4294901760
        %5783 = vmatpush.msra.mxu0 %v5782
        %v5784 = vand.u32 %v514, 4294901760
        %v5785 = vsub.f32 %v514, %v5784
        %v5786 = vand.u32 %v5785, 4294901760
        %5787 = vmatmul.f32.gmra.mxu0 %v5786
        %v5788 = vpop.f32.mrf.mxu0
        %v5789 = vadd.f32 %v5764, %v5788
        %5790 = vdwg.mxu0
        %5791 = vmatpush.msra.mxu0 0.0
        %5792 = vmatpush.msra.mxu0 0.0
        %5793 = vmatpush.msra.mxu0 0.0
        %5794 = vmatpush.msra.mxu0 0.0
        %5795 = vmatpush.msra.mxu0 0.0
        %5796 = vmatpush.msra.mxu0 0.0
        %5797 = vmatpush.msra.mxu0 0.0
        %5798 = vmatpush.msra.mxu0 0.0
        %5799 = vmatpush.msra.mxu0 0.0
        %5800 = vmatpush.msra.mxu0 0.0
        %5801 = vmatpush.msra.mxu0 0.0
        %5802 = vmatpush.msra.mxu0 0.0
        %5803 = vmatpush.msra.mxu0 0.0
        %5804 = vmatpush.msra.mxu0 0.0
        %v5805 = vand.u32 %v5518, 4294901760
        %v5806 = vsub.f32 %v5518, %v5805
        %v5807 = vand.u32 %v5806, 4294901760
        %5808 = vmatpush.msra.mxu0 %v5807
        %v5809 = vand.u32 %v5517, 4294901760
        %v5810 = vsub.f32 %v5517, %v5809
        %v5811 = vand.u32 %v5810, 4294901760
        %5812 = vmatpush.msra.mxu0 %v5811
        %v5813 = vand.u32 %v514, 4294901760
        %5814 = vmatmul.f32.gmra.mxu0 %v5813
        %v5815 = vpop.f32.mrf.mxu0
        %v5816 = vadd.f32 %v5789, %v5815
        %5817 = vdwg.mxu0
        %5818 = vmatpush.msra.mxu0 0.0
        %5819 = vmatpush.msra.mxu0 0.0
        %5820 = vmatpush.msra.mxu0 0.0
        %5821 = vmatpush.msra.mxu0 0.0
        %5822 = vmatpush.msra.mxu0 0.0
        %5823 = vmatpush.msra.mxu0 0.0
        %5824 = vmatpush.msra.mxu0 0.0
        %5825 = vmatpush.msra.mxu0 0.0
        %5826 = vmatpush.msra.mxu0 0.0
        %5827 = vmatpush.msra.mxu0 0.0
        %5828 = vmatpush.msra.mxu0 0.0
        %5829 = vmatpush.msra.mxu0 0.0
        %5830 = vmatpush.msra.mxu0 0.0
        %5831 = vmatpush.msra.mxu0 0.0
        %v5832 = vand.u32 %v5518, 4294901760
        %5833 = vmatpush.msra.mxu0 %v5832
        %v5834 = vand.u32 %v5517, 4294901760
        %5835 = vmatpush.msra.mxu0 %v5834
        %v5836 = vand.u32 %v514, 4294901760
        %5837 = vmatmul.f32.gmra.mxu0 %v5836
        %v5838 = vpop.f32.mrf.mxu0
        %v5839 = vadd.f32 %v5816, %v5838
        %5840 = vdwg.mxu0
        %5841 = vmatpush.msra.mxu0 0.0
        %5842 = vmatpush.msra.mxu0 0.0
        %5843 = vmatpush.msra.mxu0 0.0
        %5844 = vmatpush.msra.mxu0 0.0
        %5845 = vmatpush.msra.mxu0 0.0
        %5846 = vmatpush.msra.mxu0 0.0
        %5847 = vmatpush.msra.mxu0 0.0
        %5848 = vmatpush.msra.mxu0 0.0
        %5849 = vmatpush.msra.mxu0 0.0
        %5850 = vmatpush.msra.mxu0 0.0
        %5851 = vmatpush.msra.mxu0 0.0
        %5852 = vmatpush.msra.mxu0 0.0
        %5853 = vmatpush.msra.mxu0 0.0
        %5854 = vmatpush.msra.mxu0 0.0
        %v5855 = vand.u32 %v5520, 4294901760
        %5856 = vmatpush.msra.mxu0 %v5855
        %v5857 = vand.u32 %v5519, 4294901760
        %5858 = vmatpush.msra.mxu0 %v5857
        %v5859 = vand.u32 %v676, 4294901760
        %v5860 = vsub.f32 %v676, %v5859
        %v5861 = vand.u32 %v5860, 4294901760
        %v5862 = vsub.f32 %v5860, %v5861
        %v5863 = vand.u32 %v5862, 4294901760
        %5864 = vmatmul.f32.gmra.mxu0 %v5863
        %v5865 = vpop.f32.mrf.mxu0
        %v5866 = vadd.f32 0.0, %v5865
        %5867 = vdwg.mxu0
        %5868 = vmatpush.msra.mxu0 0.0
        %5869 = vmatpush.msra.mxu0 0.0
        %5870 = vmatpush.msra.mxu0 0.0
        %5871 = vmatpush.msra.mxu0 0.0
        %5872 = vmatpush.msra.mxu0 0.0
        %5873 = vmatpush.msra.mxu0 0.0
        %5874 = vmatpush.msra.mxu0 0.0
        %5875 = vmatpush.msra.mxu0 0.0
        %5876 = vmatpush.msra.mxu0 0.0
        %5877 = vmatpush.msra.mxu0 0.0
        %5878 = vmatpush.msra.mxu0 0.0
        %5879 = vmatpush.msra.mxu0 0.0
        %5880 = vmatpush.msra.mxu0 0.0
        %5881 = vmatpush.msra.mxu0 0.0
        %v5882 = vand.u32 %v5520, 4294901760
        %v5883 = vsub.f32 %v5520, %v5882
        %v5884 = vand.u32 %v5883, 4294901760
        %v5885 = vsub.f32 %v5883, %v5884
        %v5886 = vand.u32 %v5885, 4294901760
        %5887 = vmatpush.msra.mxu0 %v5886
        %v5888 = vand.u32 %v5519, 4294901760
        %v5889 = vsub.f32 %v5519, %v5888
        %v5890 = vand.u32 %v5889, 4294901760
        %v5891 = vsub.f32 %v5889, %v5890
        %v5892 = vand.u32 %v5891, 4294901760
        %5893 = vmatpush.msra.mxu0 %v5892
        %v5894 = vand.u32 %v676, 4294901760
        %5895 = vmatmul.f32.gmra.mxu0 %v5894
        %v5896 = vpop.f32.mrf.mxu0
        %v5897 = vadd.f32 %v5866, %v5896
        %5898 = vdwg.mxu0
        %5899 = vmatpush.msra.mxu0 0.0
        %5900 = vmatpush.msra.mxu0 0.0
        %5901 = vmatpush.msra.mxu0 0.0
        %5902 = vmatpush.msra.mxu0 0.0
        %5903 = vmatpush.msra.mxu0 0.0
        %5904 = vmatpush.msra.mxu0 0.0
        %5905 = vmatpush.msra.mxu0 0.0
        %5906 = vmatpush.msra.mxu0 0.0
        %5907 = vmatpush.msra.mxu0 0.0
        %5908 = vmatpush.msra.mxu0 0.0
        %5909 = vmatpush.msra.mxu0 0.0
        %5910 = vmatpush.msra.mxu0 0.0
        %5911 = vmatpush.msra.mxu0 0.0
        %5912 = vmatpush.msra.mxu0 0.0
        %v5913 = vand.u32 %v5520, 4294901760
        %v5914 = vsub.f32 %v5520, %v5913
        %5915 = vmatpush.msra.mxu0 %v5914
        %v5916 = vand.u32 %v5519, 4294901760
        %v5917 = vsub.f32 %v5519, %v5916
        %5918 = vmatpush.msra.mxu0 %v5917
        %v5919 = vand.u32 %v676, 4294901760
        %v5920 = vsub.f32 %v676, %v5919
        %5921 = vmatmul.f32.gmra.mxu0 %v5920
        %v5922 = vpop.f32.mrf.mxu0
        %v5923 = vadd.f32 %v5897, %v5922
        %5924 = vdwg.mxu0
        %5925 = vmatpush.msra.mxu0 0.0
        %5926 = vmatpush.msra.mxu0 0.0
        %5927 = vmatpush.msra.mxu0 0.0
        %5928 = vmatpush.msra.mxu0 0.0
        %5929 = vmatpush.msra.mxu0 0.0
        %5930 = vmatpush.msra.mxu0 0.0
        %5931 = vmatpush.msra.mxu0 0.0
        %5932 = vmatpush.msra.mxu0 0.0
        %5933 = vmatpush.msra.mxu0 0.0
        %5934 = vmatpush.msra.mxu0 0.0
        %5935 = vmatpush.msra.mxu0 0.0
        %5936 = vmatpush.msra.mxu0 0.0
        %5937 = vmatpush.msra.mxu0 0.0
        %5938 = vmatpush.msra.mxu0 0.0
        %v5939 = vand.u32 %v5520, 4294901760
        %5940 = vmatpush.msra.mxu0 %v5939
        %v5941 = vand.u32 %v5519, 4294901760
        %5942 = vmatpush.msra.mxu0 %v5941
        %v5943 = vand.u32 %v676, 4294901760
        %v5944 = vsub.f32 %v676, %v5943
        %v5945 = vand.u32 %v5944, 4294901760
        %5946 = vmatmul.f32.gmra.mxu0 %v5945
        %v5947 = vpop.f32.mrf.mxu0
        %v5948 = vadd.f32 %v5923, %v5947
        %5949 = vdwg.mxu0
        %5950 = vmatpush.msra.mxu0 0.0
        %5951 = vmatpush.msra.mxu0 0.0
        %5952 = vmatpush.msra.mxu0 0.0
        %5953 = vmatpush.msra.mxu0 0.0
        %5954 = vmatpush.msra.mxu0 0.0
        %5955 = vmatpush.msra.mxu0 0.0
        %5956 = vmatpush.msra.mxu0 0.0
        %5957 = vmatpush.msra.mxu0 0.0
        %5958 = vmatpush.msra.mxu0 0.0
        %5959 = vmatpush.msra.mxu0 0.0
        %5960 = vmatpush.msra.mxu0 0.0
        %5961 = vmatpush.msra.mxu0 0.0
        %5962 = vmatpush.msra.mxu0 0.0
        %5963 = vmatpush.msra.mxu0 0.0
        %v5964 = vand.u32 %v5520, 4294901760
        %v5965 = vsub.f32 %v5520, %v5964
        %v5966 = vand.u32 %v5965, 4294901760
        %5967 = vmatpush.msra.mxu0 %v5966
        %v5968 = vand.u32 %v5519, 4294901760
        %v5969 = vsub.f32 %v5519, %v5968
        %v5970 = vand.u32 %v5969, 4294901760
        %5971 = vmatpush.msra.mxu0 %v5970
        %v5972 = vand.u32 %v676, 4294901760
        %5973 = vmatmul.f32.gmra.mxu0 %v5972
        %v5974 = vpop.f32.mrf.mxu0
        %v5975 = vadd.f32 %v5948, %v5974
        %5976 = vdwg.mxu0
        %5977 = vmatpush.msra.mxu0 0.0
        %5978 = vmatpush.msra.mxu0 0.0
        %5979 = vmatpush.msra.mxu0 0.0
        %5980 = vmatpush.msra.mxu0 0.0
        %5981 = vmatpush.msra.mxu0 0.0
        %5982 = vmatpush.msra.mxu0 0.0
        %5983 = vmatpush.msra.mxu0 0.0
        %5984 = vmatpush.msra.mxu0 0.0
        %5985 = vmatpush.msra.mxu0 0.0
        %5986 = vmatpush.msra.mxu0 0.0
        %5987 = vmatpush.msra.mxu0 0.0
        %5988 = vmatpush.msra.mxu0 0.0
        %5989 = vmatpush.msra.mxu0 0.0
        %5990 = vmatpush.msra.mxu0 0.0
        %v5991 = vand.u32 %v5520, 4294901760
        %5992 = vmatpush.msra.mxu0 %v5991
        %v5993 = vand.u32 %v5519, 4294901760
        %5994 = vmatpush.msra.mxu0 %v5993
        %v5995 = vand.u32 %v676, 4294901760
        %5996 = vmatmul.f32.gmra.mxu0 %v5995
        %v5997 = vpop.f32.mrf.mxu0
        %v5998 = vadd.f32 %v5975, %v5997
        %5999 = vdwg.mxu0
        %6000 = vmatpush.msra.mxu0 0.0
        %6001 = vmatpush.msra.mxu0 0.0
        %6002 = vmatpush.msra.mxu0 0.0
        %6003 = vmatpush.msra.mxu0 0.0
        %6004 = vmatpush.msra.mxu0 0.0
        %6005 = vmatpush.msra.mxu0 0.0
        %6006 = vmatpush.msra.mxu0 0.0
        %6007 = vmatpush.msra.mxu0 0.0
        %6008 = vmatpush.msra.mxu0 0.0
        %6009 = vmatpush.msra.mxu0 0.0
        %6010 = vmatpush.msra.mxu0 0.0
        %6011 = vmatpush.msra.mxu0 0.0
        %6012 = vmatpush.msra.mxu0 0.0
        %6013 = vmatpush.msra.mxu0 0.0
        %v6014 = vand.u32 %v5522, 4294901760
        %6015 = vmatpush.msra.mxu0 %v6014
        %v6016 = vand.u32 %v5521, 4294901760
        %6017 = vmatpush.msra.mxu0 %v6016
        %v6018 = vand.u32 %v838, 4294901760
        %v6019 = vsub.f32 %v838, %v6018
        %v6020 = vand.u32 %v6019, 4294901760
        %v6021 = vsub.f32 %v6019, %v6020
        %v6022 = vand.u32 %v6021, 4294901760
        %6023 = vmatmul.f32.gmra.mxu0 %v6022
        %v6024 = vpop.f32.mrf.mxu0
        %v6025 = vadd.f32 0.0, %v6024
        %6026 = vdwg.mxu0
        %6027 = vmatpush.msra.mxu0 0.0
        %6028 = vmatpush.msra.mxu0 0.0
        %6029 = vmatpush.msra.mxu0 0.0
        %6030 = vmatpush.msra.mxu0 0.0
        %6031 = vmatpush.msra.mxu0 0.0
        %6032 = vmatpush.msra.mxu0 0.0
        %6033 = vmatpush.msra.mxu0 0.0
        %6034 = vmatpush.msra.mxu0 0.0
        %6035 = vmatpush.msra.mxu0 0.0
        %6036 = vmatpush.msra.mxu0 0.0
        %6037 = vmatpush.msra.mxu0 0.0
        %6038 = vmatpush.msra.mxu0 0.0
        %6039 = vmatpush.msra.mxu0 0.0
        %6040 = vmatpush.msra.mxu0 0.0
        %v6041 = vand.u32 %v5522, 4294901760
        %v6042 = vsub.f32 %v5522, %v6041
        %v6043 = vand.u32 %v6042, 4294901760
        %v6044 = vsub.f32 %v6042, %v6043
        %v6045 = vand.u32 %v6044, 4294901760
        %6046 = vmatpush.msra.mxu0 %v6045
        %v6047 = vand.u32 %v5521, 4294901760
        %v6048 = vsub.f32 %v5521, %v6047
        %v6049 = vand.u32 %v6048, 4294901760
        %v6050 = vsub.f32 %v6048, %v6049
        %v6051 = vand.u32 %v6050, 4294901760
        %6052 = vmatpush.msra.mxu0 %v6051
        %v6053 = vand.u32 %v838, 4294901760
        %6054 = vmatmul.f32.gmra.mxu0 %v6053
        %v6055 = vpop.f32.mrf.mxu0
        %v6056 = vadd.f32 %v6025, %v6055
        %6057 = vdwg.mxu0
        %6058 = vmatpush.msra.mxu0 0.0
        %6059 = vmatpush.msra.mxu0 0.0
        %6060 = vmatpush.msra.mxu0 0.0
        %6061 = vmatpush.msra.mxu0 0.0
        %6062 = vmatpush.msra.mxu0 0.0
        %6063 = vmatpush.msra.mxu0 0.0
        %6064 = vmatpush.msra.mxu0 0.0
        %6065 = vmatpush.msra.mxu0 0.0
        %6066 = vmatpush.msra.mxu0 0.0
        %6067 = vmatpush.msra.mxu0 0.0
        %6068 = vmatpush.msra.mxu0 0.0
        %6069 = vmatpush.msra.mxu0 0.0
        %6070 = vmatpush.msra.mxu0 0.0
        %6071 = vmatpush.msra.mxu0 0.0
        %v6072 = vand.u32 %v5522, 4294901760
        %v6073 = vsub.f32 %v5522, %v6072
        %6074 = vmatpush.msra.mxu0 %v6073
        %v6075 = vand.u32 %v5521, 4294901760
        %v6076 = vsub.f32 %v5521, %v6075
        %6077 = vmatpush.msra.mxu0 %v6076
        %v6078 = vand.u32 %v838, 4294901760
        %v6079 = vsub.f32 %v838, %v6078
        %6080 = vmatmul.f32.gmra.mxu0 %v6079
        %v6081 = vpop.f32.mrf.mxu0
        %v6082 = vadd.f32 %v6056, %v6081
        %6083 = vdwg.mxu0
        %6084 = vmatpush.msra.mxu0 0.0
        %6085 = vmatpush.msra.mxu0 0.0
        %6086 = vmatpush.msra.mxu0 0.0
        %6087 = vmatpush.msra.mxu0 0.0
        %6088 = vmatpush.msra.mxu0 0.0
        %6089 = vmatpush.msra.mxu0 0.0
        %6090 = vmatpush.msra.mxu0 0.0
        %6091 = vmatpush.msra.mxu0 0.0
        %6092 = vmatpush.msra.mxu0 0.0
        %6093 = vmatpush.msra.mxu0 0.0
        %6094 = vmatpush.msra.mxu0 0.0
        %6095 = vmatpush.msra.mxu0 0.0
        %6096 = vmatpush.msra.mxu0 0.0
        %6097 = vmatpush.msra.mxu0 0.0
        %v6098 = vand.u32 %v5522, 4294901760
        %6099 = vmatpush.msra.mxu0 %v6098
        %v6100 = vand.u32 %v5521, 4294901760
        %6101 = vmatpush.msra.mxu0 %v6100
        %v6102 = vand.u32 %v838, 4294901760
        %v6103 = vsub.f32 %v838, %v6102
        %v6104 = vand.u32 %v6103, 4294901760
        %6105 = vmatmul.f32.gmra.mxu0 %v6104
        %v6106 = vpop.f32.mrf.mxu0
        %v6107 = vadd.f32 %v6082, %v6106
        %6108 = vdwg.mxu0
        %6109 = vmatpush.msra.mxu0 0.0
        %6110 = vmatpush.msra.mxu0 0.0
        %6111 = vmatpush.msra.mxu0 0.0
        %6112 = vmatpush.msra.mxu0 0.0
        %6113 = vmatpush.msra.mxu0 0.0
        %6114 = vmatpush.msra.mxu0 0.0
        %6115 = vmatpush.msra.mxu0 0.0
        %6116 = vmatpush.msra.mxu0 0.0
        %6117 = vmatpush.msra.mxu0 0.0
        %6118 = vmatpush.msra.mxu0 0.0
        %6119 = vmatpush.msra.mxu0 0.0
        %6120 = vmatpush.msra.mxu0 0.0
        %6121 = vmatpush.msra.mxu0 0.0
        %6122 = vmatpush.msra.mxu0 0.0
        %v6123 = vand.u32 %v5522, 4294901760
        %v6124 = vsub.f32 %v5522, %v6123
        %v6125 = vand.u32 %v6124, 4294901760
        %6126 = vmatpush.msra.mxu0 %v6125
        %v6127 = vand.u32 %v5521, 4294901760
        %v6128 = vsub.f32 %v5521, %v6127
        %v6129 = vand.u32 %v6128, 4294901760
        %6130 = vmatpush.msra.mxu0 %v6129
        %v6131 = vand.u32 %v838, 4294901760
        %6132 = vmatmul.f32.gmra.mxu0 %v6131
        %v6133 = vpop.f32.mrf.mxu0
        %v6134 = vadd.f32 %v6107, %v6133
        %6135 = vdwg.mxu0
        %6136 = vmatpush.msra.mxu0 0.0
        %6137 = vmatpush.msra.mxu0 0.0
        %6138 = vmatpush.msra.mxu0 0.0
        %6139 = vmatpush.msra.mxu0 0.0
        %6140 = vmatpush.msra.mxu0 0.0
        %6141 = vmatpush.msra.mxu0 0.0
        %6142 = vmatpush.msra.mxu0 0.0
        %6143 = vmatpush.msra.mxu0 0.0
        %6144 = vmatpush.msra.mxu0 0.0
        %6145 = vmatpush.msra.mxu0 0.0
        %6146 = vmatpush.msra.mxu0 0.0
        %6147 = vmatpush.msra.mxu0 0.0
        %6148 = vmatpush.msra.mxu0 0.0
        %6149 = vmatpush.msra.mxu0 0.0
        %v6150 = vand.u32 %v5522, 4294901760
        %6151 = vmatpush.msra.mxu0 %v6150
        %v6152 = vand.u32 %v5521, 4294901760
        %6153 = vmatpush.msra.mxu0 %v6152
        %v6154 = vand.u32 %v838, 4294901760
        %6155 = vmatmul.f32.gmra.mxu0 %v6154
        %v6156 = vpop.f32.mrf.mxu0
        %v6157 = vadd.f32 %v6134, %v6156
        %6158 = vdwg.mxu0
        %v6160 = vsel %vm350, %v5680, 0
        %6162 = vmatpush.msra.mxu0 0.0
        %6163 = vmatpush.msra.mxu0 0.0
        %6164 = vmatpush.msra.mxu0 0.0
        %6165 = vmatpush.msra.mxu0 0.0
        %6166 = vmatpush.msra.mxu0 0.0
        %6167 = vmatpush.msra.mxu0 0.0
        %6168 = vmatpush.msra.mxu0 0.0
        %6169 = vmatpush.msra.mxu0 0.0
        %6170 = vmatpush.msra.mxu0 0.0
        %6171 = vmatpush.msra.mxu0 0.0
        %6172 = vmatpush.msra.mxu0 0.0
        %6173 = vmatpush.msra.mxu0 0.0
        %6174 = vmatpush.msra.mxu0 0.0
        %6175 = vmatpush.msra.mxu0 0.0
        %v6176 = vand.u32 %v343, 4294901760
        %6177 = vmatpush.msra.mxu0 %v6176
        %v6178 = vand.u32 %v342, 4294901760
        %6179 = vmatpush.msra.mxu0 %v6178
        %v6180 = vand.u32 %v6160, 4294901760
        %v6181 = vsub.f32 %v6160, %v6180
        %v6182 = vand.u32 %v6181, 4294901760
        %v6183 = vsub.f32 %v6181, %v6182
        %v6184 = vand.u32 %v6183, 4294901760
        %6185 = vmatmul.f32.gmra.mxu0 %v6184
        %v6186 = vpop.f32.mrf.mxu0
        %v6187 = vadd.f32 0.0, %v6186
        %6188 = vdwg.mxu0
        %6189 = vmatpush.msra.mxu0 0.0
        %6190 = vmatpush.msra.mxu0 0.0
        %6191 = vmatpush.msra.mxu0 0.0
        %6192 = vmatpush.msra.mxu0 0.0
        %6193 = vmatpush.msra.mxu0 0.0
        %6194 = vmatpush.msra.mxu0 0.0
        %6195 = vmatpush.msra.mxu0 0.0
        %6196 = vmatpush.msra.mxu0 0.0
        %6197 = vmatpush.msra.mxu0 0.0
        %6198 = vmatpush.msra.mxu0 0.0
        %6199 = vmatpush.msra.mxu0 0.0
        %6200 = vmatpush.msra.mxu0 0.0
        %6201 = vmatpush.msra.mxu0 0.0
        %6202 = vmatpush.msra.mxu0 0.0
        %v6203 = vand.u32 %v343, 4294901760
        %v6204 = vsub.f32 %v343, %v6203
        %v6205 = vand.u32 %v6204, 4294901760
        %v6206 = vsub.f32 %v6204, %v6205
        %v6207 = vand.u32 %v6206, 4294901760
        %6208 = vmatpush.msra.mxu0 %v6207
        %v6209 = vand.u32 %v342, 4294901760
        %v6210 = vsub.f32 %v342, %v6209
        %v6211 = vand.u32 %v6210, 4294901760
        %v6212 = vsub.f32 %v6210, %v6211
        %v6213 = vand.u32 %v6212, 4294901760
        %6214 = vmatpush.msra.mxu0 %v6213
        %v6215 = vand.u32 %v6160, 4294901760
        %6216 = vmatmul.f32.gmra.mxu0 %v6215
        %v6217 = vpop.f32.mrf.mxu0
        %v6218 = vadd.f32 %v6187, %v6217
        %6219 = vdwg.mxu0
        %6220 = vmatpush.msra.mxu0 0.0
        %6221 = vmatpush.msra.mxu0 0.0
        %6222 = vmatpush.msra.mxu0 0.0
        %6223 = vmatpush.msra.mxu0 0.0
        %6224 = vmatpush.msra.mxu0 0.0
        %6225 = vmatpush.msra.mxu0 0.0
        %6226 = vmatpush.msra.mxu0 0.0
        %6227 = vmatpush.msra.mxu0 0.0
        %6228 = vmatpush.msra.mxu0 0.0
        %6229 = vmatpush.msra.mxu0 0.0
        %6230 = vmatpush.msra.mxu0 0.0
        %6231 = vmatpush.msra.mxu0 0.0
        %6232 = vmatpush.msra.mxu0 0.0
        %6233 = vmatpush.msra.mxu0 0.0
        %v6234 = vand.u32 %v343, 4294901760
        %v6235 = vsub.f32 %v343, %v6234
        %6236 = vmatpush.msra.mxu0 %v6235
        %v6237 = vand.u32 %v342, 4294901760
        %v6238 = vsub.f32 %v342, %v6237
        %6239 = vmatpush.msra.mxu0 %v6238
        %v6240 = vand.u32 %v6160, 4294901760
        %v6241 = vsub.f32 %v6160, %v6240
        %6242 = vmatmul.f32.gmra.mxu0 %v6241
        %v6243 = vpop.f32.mrf.mxu0
        %v6244 = vadd.f32 %v6218, %v6243
        %6245 = vdwg.mxu0
        %6246 = vmatpush.msra.mxu0 0.0
        %6247 = vmatpush.msra.mxu0 0.0
        %6248 = vmatpush.msra.mxu0 0.0
        %6249 = vmatpush.msra.mxu0 0.0
        %6250 = vmatpush.msra.mxu0 0.0
        %6251 = vmatpush.msra.mxu0 0.0
        %6252 = vmatpush.msra.mxu0 0.0
        %6253 = vmatpush.msra.mxu0 0.0
        %6254 = vmatpush.msra.mxu0 0.0
        %6255 = vmatpush.msra.mxu0 0.0
        %6256 = vmatpush.msra.mxu0 0.0
        %6257 = vmatpush.msra.mxu0 0.0
        %6258 = vmatpush.msra.mxu0 0.0
        %6259 = vmatpush.msra.mxu0 0.0
        %v6260 = vand.u32 %v343, 4294901760
        %6261 = vmatpush.msra.mxu0 %v6260
        %v6262 = vand.u32 %v342, 4294901760
        %6263 = vmatpush.msra.mxu0 %v6262
        %v6264 = vand.u32 %v6160, 4294901760
        %v6265 = vsub.f32 %v6160, %v6264
        %v6266 = vand.u32 %v6265, 4294901760
        %6267 = vmatmul.f32.gmra.mxu0 %v6266
        %v6268 = vpop.f32.mrf.mxu0
        %v6269 = vadd.f32 %v6244, %v6268
        %6270 = vdwg.mxu0
        %6271 = vmatpush.msra.mxu0 0.0
        %6272 = vmatpush.msra.mxu0 0.0
        %6273 = vmatpush.msra.mxu0 0.0
        %6274 = vmatpush.msra.mxu0 0.0
        %6275 = vmatpush.msra.mxu0 0.0
        %6276 = vmatpush.msra.mxu0 0.0
        %6277 = vmatpush.msra.mxu0 0.0
        %6278 = vmatpush.msra.mxu0 0.0
        %6279 = vmatpush.msra.mxu0 0.0
        %6280 = vmatpush.msra.mxu0 0.0
        %6281 = vmatpush.msra.mxu0 0.0
        %6282 = vmatpush.msra.mxu0 0.0
        %6283 = vmatpush.msra.mxu0 0.0
        %6284 = vmatpush.msra.mxu0 0.0
        %v6285 = vand.u32 %v343, 4294901760
        %v6286 = vsub.f32 %v343, %v6285
        %v6287 = vand.u32 %v6286, 4294901760
        %6288 = vmatpush.msra.mxu0 %v6287
        %v6289 = vand.u32 %v342, 4294901760
        %v6290 = vsub.f32 %v342, %v6289
        %v6291 = vand.u32 %v6290, 4294901760
        %6292 = vmatpush.msra.mxu0 %v6291
        %v6293 = vand.u32 %v6160, 4294901760
        %6294 = vmatmul.f32.gmra.mxu0 %v6293
        %v6295 = vpop.f32.mrf.mxu0
        %v6296 = vadd.f32 %v6269, %v6295
        %6297 = vdwg.mxu0
        %6298 = vmatpush.msra.mxu0 0.0
        %6299 = vmatpush.msra.mxu0 0.0
        %6300 = vmatpush.msra.mxu0 0.0
        %6301 = vmatpush.msra.mxu0 0.0
        %6302 = vmatpush.msra.mxu0 0.0
        %6303 = vmatpush.msra.mxu0 0.0
        %6304 = vmatpush.msra.mxu0 0.0
        %6305 = vmatpush.msra.mxu0 0.0
        %6306 = vmatpush.msra.mxu0 0.0
        %6307 = vmatpush.msra.mxu0 0.0
        %6308 = vmatpush.msra.mxu0 0.0
        %6309 = vmatpush.msra.mxu0 0.0
        %6310 = vmatpush.msra.mxu0 0.0
        %6311 = vmatpush.msra.mxu0 0.0
        %v6312 = vand.u32 %v343, 4294901760
        %6313 = vmatpush.msra.mxu0 %v6312
        %v6314 = vand.u32 %v342, 4294901760
        %6315 = vmatpush.msra.mxu0 %v6314
        %v6316 = vand.u32 %v6160, 4294901760
        %6317 = vmatmul.f32.gmra.mxu0 %v6316
        %v6318 = vpop.f32.mrf.mxu0
        %v6319 = vadd.f32 %v6296, %v6318
        %6320 = vdwg.mxu0
        %v6322 = vsel %vm350, %v5839, 0
        %6324 = vmatpush.msra.mxu0 0.0
        %6325 = vmatpush.msra.mxu0 0.0
        %6326 = vmatpush.msra.mxu0 0.0
        %6327 = vmatpush.msra.mxu0 0.0
        %6328 = vmatpush.msra.mxu0 0.0
        %6329 = vmatpush.msra.mxu0 0.0
        %6330 = vmatpush.msra.mxu0 0.0
        %6331 = vmatpush.msra.mxu0 0.0
        %6332 = vmatpush.msra.mxu0 0.0
        %6333 = vmatpush.msra.mxu0 0.0
        %6334 = vmatpush.msra.mxu0 0.0
        %6335 = vmatpush.msra.mxu0 0.0
        %6336 = vmatpush.msra.mxu0 0.0
        %6337 = vmatpush.msra.mxu0 0.0
        %v6338 = vand.u32 %v345, 4294901760
        %6339 = vmatpush.msra.mxu0 %v6338
        %v6340 = vand.u32 %v344, 4294901760
        %6341 = vmatpush.msra.mxu0 %v6340
        %v6342 = vand.u32 %v6322, 4294901760
        %v6343 = vsub.f32 %v6322, %v6342
        %v6344 = vand.u32 %v6343, 4294901760
        %v6345 = vsub.f32 %v6343, %v6344
        %v6346 = vand.u32 %v6345, 4294901760
        %6347 = vmatmul.f32.gmra.mxu0 %v6346
        %v6348 = vpop.f32.mrf.mxu0
        %v6349 = vadd.f32 0.0, %v6348
        %6350 = vdwg.mxu0
        %6351 = vmatpush.msra.mxu0 0.0
        %6352 = vmatpush.msra.mxu0 0.0
        %6353 = vmatpush.msra.mxu0 0.0
        %6354 = vmatpush.msra.mxu0 0.0
        %6355 = vmatpush.msra.mxu0 0.0
        %6356 = vmatpush.msra.mxu0 0.0
        %6357 = vmatpush.msra.mxu0 0.0
        %6358 = vmatpush.msra.mxu0 0.0
        %6359 = vmatpush.msra.mxu0 0.0
        %6360 = vmatpush.msra.mxu0 0.0
        %6361 = vmatpush.msra.mxu0 0.0
        %6362 = vmatpush.msra.mxu0 0.0
        %6363 = vmatpush.msra.mxu0 0.0
        %6364 = vmatpush.msra.mxu0 0.0
        %v6365 = vand.u32 %v345, 4294901760
        %v6366 = vsub.f32 %v345, %v6365
        %v6367 = vand.u32 %v6366, 4294901760
        %v6368 = vsub.f32 %v6366, %v6367
        %v6369 = vand.u32 %v6368, 4294901760
        %6370 = vmatpush.msra.mxu0 %v6369
        %v6371 = vand.u32 %v344, 4294901760
        %v6372 = vsub.f32 %v344, %v6371
        %v6373 = vand.u32 %v6372, 4294901760
        %v6374 = vsub.f32 %v6372, %v6373
        %v6375 = vand.u32 %v6374, 4294901760
        %6376 = vmatpush.msra.mxu0 %v6375
        %v6377 = vand.u32 %v6322, 4294901760
        %6378 = vmatmul.f32.gmra.mxu0 %v6377
        %v6379 = vpop.f32.mrf.mxu0
        %v6380 = vadd.f32 %v6349, %v6379
        %6381 = vdwg.mxu0
        %6382 = vmatpush.msra.mxu0 0.0
        %6383 = vmatpush.msra.mxu0 0.0
        %6384 = vmatpush.msra.mxu0 0.0
        %6385 = vmatpush.msra.mxu0 0.0
        %6386 = vmatpush.msra.mxu0 0.0
        %6387 = vmatpush.msra.mxu0 0.0
        %6388 = vmatpush.msra.mxu0 0.0
        %6389 = vmatpush.msra.mxu0 0.0
        %6390 = vmatpush.msra.mxu0 0.0
        %6391 = vmatpush.msra.mxu0 0.0
        %6392 = vmatpush.msra.mxu0 0.0
        %6393 = vmatpush.msra.mxu0 0.0
        %6394 = vmatpush.msra.mxu0 0.0
        %6395 = vmatpush.msra.mxu0 0.0
        %v6396 = vand.u32 %v345, 4294901760
        %v6397 = vsub.f32 %v345, %v6396
        %6398 = vmatpush.msra.mxu0 %v6397
        %v6399 = vand.u32 %v344, 4294901760
        %v6400 = vsub.f32 %v344, %v6399
        %6401 = vmatpush.msra.mxu0 %v6400
        %v6402 = vand.u32 %v6322, 4294901760
        %v6403 = vsub.f32 %v6322, %v6402
        %6404 = vmatmul.f32.gmra.mxu0 %v6403
        %v6405 = vpop.f32.mrf.mxu0
        %v6406 = vadd.f32 %v6380, %v6405
        %6407 = vdwg.mxu0
        %6408 = vmatpush.msra.mxu0 0.0
        %6409 = vmatpush.msra.mxu0 0.0
        %6410 = vmatpush.msra.mxu0 0.0
        %6411 = vmatpush.msra.mxu0 0.0
        %6412 = vmatpush.msra.mxu0 0.0
        %6413 = vmatpush.msra.mxu0 0.0
        %6414 = vmatpush.msra.mxu0 0.0
        %6415 = vmatpush.msra.mxu0 0.0
        %6416 = vmatpush.msra.mxu0 0.0
        %6417 = vmatpush.msra.mxu0 0.0
        %6418 = vmatpush.msra.mxu0 0.0
        %6419 = vmatpush.msra.mxu0 0.0
        %6420 = vmatpush.msra.mxu0 0.0
        %6421 = vmatpush.msra.mxu0 0.0
        %v6422 = vand.u32 %v345, 4294901760
        %6423 = vmatpush.msra.mxu0 %v6422
        %v6424 = vand.u32 %v344, 4294901760
        %6425 = vmatpush.msra.mxu0 %v6424
        %v6426 = vand.u32 %v6322, 4294901760
        %v6427 = vsub.f32 %v6322, %v6426
        %v6428 = vand.u32 %v6427, 4294901760
        %6429 = vmatmul.f32.gmra.mxu0 %v6428
        %v6430 = vpop.f32.mrf.mxu0
        %v6431 = vadd.f32 %v6406, %v6430
        %6432 = vdwg.mxu0
        %6433 = vmatpush.msra.mxu0 0.0
        %6434 = vmatpush.msra.mxu0 0.0
        %6435 = vmatpush.msra.mxu0 0.0
        %6436 = vmatpush.msra.mxu0 0.0
        %6437 = vmatpush.msra.mxu0 0.0
        %6438 = vmatpush.msra.mxu0 0.0
        %6439 = vmatpush.msra.mxu0 0.0
        %6440 = vmatpush.msra.mxu0 0.0
        %6441 = vmatpush.msra.mxu0 0.0
        %6442 = vmatpush.msra.mxu0 0.0
        %6443 = vmatpush.msra.mxu0 0.0
        %6444 = vmatpush.msra.mxu0 0.0
        %6445 = vmatpush.msra.mxu0 0.0
        %6446 = vmatpush.msra.mxu0 0.0
        %v6447 = vand.u32 %v345, 4294901760
        %v6448 = vsub.f32 %v345, %v6447
        %v6449 = vand.u32 %v6448, 4294901760
        %6450 = vmatpush.msra.mxu0 %v6449
        %v6451 = vand.u32 %v344, 4294901760
        %v6452 = vsub.f32 %v344, %v6451
        %v6453 = vand.u32 %v6452, 4294901760
        %6454 = vmatpush.msra.mxu0 %v6453
        %v6455 = vand.u32 %v6322, 4294901760
        %6456 = vmatmul.f32.gmra.mxu0 %v6455
        %v6457 = vpop.f32.mrf.mxu0
        %v6458 = vadd.f32 %v6431, %v6457
        %6459 = vdwg.mxu0
        %6460 = vmatpush.msra.mxu0 0.0
        %6461 = vmatpush.msra.mxu0 0.0
        %6462 = vmatpush.msra.mxu0 0.0
        %6463 = vmatpush.msra.mxu0 0.0
        %6464 = vmatpush.msra.mxu0 0.0
        %6465 = vmatpush.msra.mxu0 0.0
        %6466 = vmatpush.msra.mxu0 0.0
        %6467 = vmatpush.msra.mxu0 0.0
        %6468 = vmatpush.msra.mxu0 0.0
        %6469 = vmatpush.msra.mxu0 0.0
        %6470 = vmatpush.msra.mxu0 0.0
        %6471 = vmatpush.msra.mxu0 0.0
        %6472 = vmatpush.msra.mxu0 0.0
        %6473 = vmatpush.msra.mxu0 0.0
        %v6474 = vand.u32 %v345, 4294901760
        %6475 = vmatpush.msra.mxu0 %v6474
        %v6476 = vand.u32 %v344, 4294901760
        %6477 = vmatpush.msra.mxu0 %v6476
        %v6478 = vand.u32 %v6322, 4294901760
        %6479 = vmatmul.f32.gmra.mxu0 %v6478
        %v6480 = vpop.f32.mrf.mxu0
        %v6481 = vadd.f32 %v6458, %v6480
        %6482 = vdwg.mxu0
        %v6484 = vsel %vm350, %v5998, 0
        %6486 = vmatpush.msra.mxu0 0.0
        %6487 = vmatpush.msra.mxu0 0.0
        %6488 = vmatpush.msra.mxu0 0.0
        %6489 = vmatpush.msra.mxu0 0.0
        %6490 = vmatpush.msra.mxu0 0.0
        %6491 = vmatpush.msra.mxu0 0.0
        %6492 = vmatpush.msra.mxu0 0.0
        %6493 = vmatpush.msra.mxu0 0.0
        %6494 = vmatpush.msra.mxu0 0.0
        %6495 = vmatpush.msra.mxu0 0.0
        %6496 = vmatpush.msra.mxu0 0.0
        %6497 = vmatpush.msra.mxu0 0.0
        %6498 = vmatpush.msra.mxu0 0.0
        %6499 = vmatpush.msra.mxu0 0.0
        %v6500 = vand.u32 %v347, 4294901760
        %6501 = vmatpush.msra.mxu0 %v6500
        %v6502 = vand.u32 %v346, 4294901760
        %6503 = vmatpush.msra.mxu0 %v6502
        %v6504 = vand.u32 %v6484, 4294901760
        %v6505 = vsub.f32 %v6484, %v6504
        %v6506 = vand.u32 %v6505, 4294901760
        %v6507 = vsub.f32 %v6505, %v6506
        %v6508 = vand.u32 %v6507, 4294901760
        %6509 = vmatmul.f32.gmra.mxu0 %v6508
        %v6510 = vpop.f32.mrf.mxu0
        %v6511 = vadd.f32 0.0, %v6510
        %6512 = vdwg.mxu0
        %6513 = vmatpush.msra.mxu0 0.0
        %6514 = vmatpush.msra.mxu0 0.0
        %6515 = vmatpush.msra.mxu0 0.0
        %6516 = vmatpush.msra.mxu0 0.0
        %6517 = vmatpush.msra.mxu0 0.0
        %6518 = vmatpush.msra.mxu0 0.0
        %6519 = vmatpush.msra.mxu0 0.0
        %6520 = vmatpush.msra.mxu0 0.0
        %6521 = vmatpush.msra.mxu0 0.0
        %6522 = vmatpush.msra.mxu0 0.0
        %6523 = vmatpush.msra.mxu0 0.0
        %6524 = vmatpush.msra.mxu0 0.0
        %6525 = vmatpush.msra.mxu0 0.0
        %6526 = vmatpush.msra.mxu0 0.0
        %v6527 = vand.u32 %v347, 4294901760
        %v6528 = vsub.f32 %v347, %v6527
        %v6529 = vand.u32 %v6528, 4294901760
        %v6530 = vsub.f32 %v6528, %v6529
        %v6531 = vand.u32 %v6530, 4294901760
        %6532 = vmatpush.msra.mxu0 %v6531
        %v6533 = vand.u32 %v346, 4294901760
        %v6534 = vsub.f32 %v346, %v6533
        %v6535 = vand.u32 %v6534, 4294901760
        %v6536 = vsub.f32 %v6534, %v6535
        %v6537 = vand.u32 %v6536, 4294901760
        %6538 = vmatpush.msra.mxu0 %v6537
        %v6539 = vand.u32 %v6484, 4294901760
        %6540 = vmatmul.f32.gmra.mxu0 %v6539
        %v6541 = vpop.f32.mrf.mxu0
        %v6542 = vadd.f32 %v6511, %v6541
        %6543 = vdwg.mxu0
        %6544 = vmatpush.msra.mxu0 0.0
        %6545 = vmatpush.msra.mxu0 0.0
        %6546 = vmatpush.msra.mxu0 0.0
        %6547 = vmatpush.msra.mxu0 0.0
        %6548 = vmatpush.msra.mxu0 0.0
        %6549 = vmatpush.msra.mxu0 0.0
        %6550 = vmatpush.msra.mxu0 0.0
        %6551 = vmatpush.msra.mxu0 0.0
        %6552 = vmatpush.msra.mxu0 0.0
        %6553 = vmatpush.msra.mxu0 0.0
        %6554 = vmatpush.msra.mxu0 0.0
        %6555 = vmatpush.msra.mxu0 0.0
        %6556 = vmatpush.msra.mxu0 0.0
        %6557 = vmatpush.msra.mxu0 0.0
        %v6558 = vand.u32 %v347, 4294901760
        %v6559 = vsub.f32 %v347, %v6558
        %6560 = vmatpush.msra.mxu0 %v6559
        %v6561 = vand.u32 %v346, 4294901760
        %v6562 = vsub.f32 %v346, %v6561
        %6563 = vmatpush.msra.mxu0 %v6562
        %v6564 = vand.u32 %v6484, 4294901760
        %v6565 = vsub.f32 %v6484, %v6564
        %6566 = vmatmul.f32.gmra.mxu0 %v6565
        %v6567 = vpop.f32.mrf.mxu0
        %v6568 = vadd.f32 %v6542, %v6567
        %6569 = vdwg.mxu0
        %6570 = vmatpush.msra.mxu0 0.0
        %6571 = vmatpush.msra.mxu0 0.0
        %6572 = vmatpush.msra.mxu0 0.0
        %6573 = vmatpush.msra.mxu0 0.0
        %6574 = vmatpush.msra.mxu0 0.0
        %6575 = vmatpush.msra.mxu0 0.0
        %6576 = vmatpush.msra.mxu0 0.0
        %6577 = vmatpush.msra.mxu0 0.0
        %6578 = vmatpush.msra.mxu0 0.0
        %6579 = vmatpush.msra.mxu0 0.0
        %6580 = vmatpush.msra.mxu0 0.0
        %6581 = vmatpush.msra.mxu0 0.0
        %6582 = vmatpush.msra.mxu0 0.0
        %6583 = vmatpush.msra.mxu0 0.0
        %v6584 = vand.u32 %v347, 4294901760
        %6585 = vmatpush.msra.mxu0 %v6584
        %v6586 = vand.u32 %v346, 4294901760
        %6587 = vmatpush.msra.mxu0 %v6586
        %v6588 = vand.u32 %v6484, 4294901760
        %v6589 = vsub.f32 %v6484, %v6588
        %v6590 = vand.u32 %v6589, 4294901760
        %6591 = vmatmul.f32.gmra.mxu0 %v6590
        %v6592 = vpop.f32.mrf.mxu0
        %v6593 = vadd.f32 %v6568, %v6592
        %6594 = vdwg.mxu0
        %6595 = vmatpush.msra.mxu0 0.0
        %6596 = vmatpush.msra.mxu0 0.0
        %6597 = vmatpush.msra.mxu0 0.0
        %6598 = vmatpush.msra.mxu0 0.0
        %6599 = vmatpush.msra.mxu0 0.0
        %6600 = vmatpush.msra.mxu0 0.0
        %6601 = vmatpush.msra.mxu0 0.0
        %6602 = vmatpush.msra.mxu0 0.0
        %6603 = vmatpush.msra.mxu0 0.0
        %6604 = vmatpush.msra.mxu0 0.0
        %6605 = vmatpush.msra.mxu0 0.0
        %6606 = vmatpush.msra.mxu0 0.0
        %6607 = vmatpush.msra.mxu0 0.0
        %6608 = vmatpush.msra.mxu0 0.0
        %v6609 = vand.u32 %v347, 4294901760
        %v6610 = vsub.f32 %v347, %v6609
        %v6611 = vand.u32 %v6610, 4294901760
        %6612 = vmatpush.msra.mxu0 %v6611
        %v6613 = vand.u32 %v346, 4294901760
        %v6614 = vsub.f32 %v346, %v6613
        %v6615 = vand.u32 %v6614, 4294901760
        %6616 = vmatpush.msra.mxu0 %v6615
        %v6617 = vand.u32 %v6484, 4294901760
        %6618 = vmatmul.f32.gmra.mxu0 %v6617
        %v6619 = vpop.f32.mrf.mxu0
        %v6620 = vadd.f32 %v6593, %v6619
        %6621 = vdwg.mxu0
        %6622 = vmatpush.msra.mxu0 0.0
        %6623 = vmatpush.msra.mxu0 0.0
        %6624 = vmatpush.msra.mxu0 0.0
        %6625 = vmatpush.msra.mxu0 0.0
        %6626 = vmatpush.msra.mxu0 0.0
        %6627 = vmatpush.msra.mxu0 0.0
        %6628 = vmatpush.msra.mxu0 0.0
        %6629 = vmatpush.msra.mxu0 0.0
        %6630 = vmatpush.msra.mxu0 0.0
        %6631 = vmatpush.msra.mxu0 0.0
        %6632 = vmatpush.msra.mxu0 0.0
        %6633 = vmatpush.msra.mxu0 0.0
        %6634 = vmatpush.msra.mxu0 0.0
        %6635 = vmatpush.msra.mxu0 0.0
        %v6636 = vand.u32 %v347, 4294901760
        %6637 = vmatpush.msra.mxu0 %v6636
        %v6638 = vand.u32 %v346, 4294901760
        %6639 = vmatpush.msra.mxu0 %v6638
        %v6640 = vand.u32 %v6484, 4294901760
        %6641 = vmatmul.f32.gmra.mxu0 %v6640
        %v6642 = vpop.f32.mrf.mxu0
        %v6643 = vadd.f32 %v6620, %v6642
        %6644 = vdwg.mxu0
        %v6646 = vsel %vm350, %v6157, 0
        %6648 = vmatpush.msra.mxu0 0.0
        %6649 = vmatpush.msra.mxu0 0.0
        %6650 = vmatpush.msra.mxu0 0.0
        %6651 = vmatpush.msra.mxu0 0.0
        %6652 = vmatpush.msra.mxu0 0.0
        %6653 = vmatpush.msra.mxu0 0.0
        %6654 = vmatpush.msra.mxu0 0.0
        %6655 = vmatpush.msra.mxu0 0.0
        %6656 = vmatpush.msra.mxu0 0.0
        %6657 = vmatpush.msra.mxu0 0.0
        %6658 = vmatpush.msra.mxu0 0.0
        %6659 = vmatpush.msra.mxu0 0.0
        %6660 = vmatpush.msra.mxu0 0.0
        %6661 = vmatpush.msra.mxu0 0.0
        %v6662 = vand.u32 %v349, 4294901760
        %6663 = vmatpush.msra.mxu0 %v6662
        %v6664 = vand.u32 %v348, 4294901760
        %6665 = vmatpush.msra.mxu0 %v6664
        %v6666 = vand.u32 %v6646, 4294901760
        %v6667 = vsub.f32 %v6646, %v6666
        %v6668 = vand.u32 %v6667, 4294901760
        %v6669 = vsub.f32 %v6667, %v6668
        %v6670 = vand.u32 %v6669, 4294901760
        %6671 = vmatmul.f32.gmra.mxu0 %v6670
        %v6672 = vpop.f32.mrf.mxu0
        %v6673 = vadd.f32 0.0, %v6672
        %6674 = vdwg.mxu0
        %6675 = vmatpush.msra.mxu0 0.0
        %6676 = vmatpush.msra.mxu0 0.0
        %6677 = vmatpush.msra.mxu0 0.0
        %6678 = vmatpush.msra.mxu0 0.0
        %6679 = vmatpush.msra.mxu0 0.0
        %6680 = vmatpush.msra.mxu0 0.0
        %6681 = vmatpush.msra.mxu0 0.0
        %6682 = vmatpush.msra.mxu0 0.0
        %6683 = vmatpush.msra.mxu0 0.0
        %6684 = vmatpush.msra.mxu0 0.0
        %6685 = vmatpush.msra.mxu0 0.0
        %6686 = vmatpush.msra.mxu0 0.0
        %6687 = vmatpush.msra.mxu0 0.0
        %6688 = vmatpush.msra.mxu0 0.0
        %v6689 = vand.u32 %v349, 4294901760
        %v6690 = vsub.f32 %v349, %v6689
        %v6691 = vand.u32 %v6690, 4294901760
        %v6692 = vsub.f32 %v6690, %v6691
        %v6693 = vand.u32 %v6692, 4294901760
        %6694 = vmatpush.msra.mxu0 %v6693
        %v6695 = vand.u32 %v348, 4294901760
        %v6696 = vsub.f32 %v348, %v6695
        %v6697 = vand.u32 %v6696, 4294901760
        %v6698 = vsub.f32 %v6696, %v6697
        %v6699 = vand.u32 %v6698, 4294901760
        %6700 = vmatpush.msra.mxu0 %v6699
        %v6701 = vand.u32 %v6646, 4294901760
        %6702 = vmatmul.f32.gmra.mxu0 %v6701
        %v6703 = vpop.f32.mrf.mxu0
        %v6704 = vadd.f32 %v6673, %v6703
        %6705 = vdwg.mxu0
        %6706 = vmatpush.msra.mxu0 0.0
        %6707 = vmatpush.msra.mxu0 0.0
        %6708 = vmatpush.msra.mxu0 0.0
        %6709 = vmatpush.msra.mxu0 0.0
        %6710 = vmatpush.msra.mxu0 0.0
        %6711 = vmatpush.msra.mxu0 0.0
        %6712 = vmatpush.msra.mxu0 0.0
        %6713 = vmatpush.msra.mxu0 0.0
        %6714 = vmatpush.msra.mxu0 0.0
        %6715 = vmatpush.msra.mxu0 0.0
        %6716 = vmatpush.msra.mxu0 0.0
        %6717 = vmatpush.msra.mxu0 0.0
        %6718 = vmatpush.msra.mxu0 0.0
        %6719 = vmatpush.msra.mxu0 0.0
        %v6720 = vand.u32 %v349, 4294901760
        %v6721 = vsub.f32 %v349, %v6720
        %6722 = vmatpush.msra.mxu0 %v6721
        %v6723 = vand.u32 %v348, 4294901760
        %v6724 = vsub.f32 %v348, %v6723
        %6725 = vmatpush.msra.mxu0 %v6724
        %v6726 = vand.u32 %v6646, 4294901760
        %v6727 = vsub.f32 %v6646, %v6726
        %6728 = vmatmul.f32.gmra.mxu0 %v6727
        %v6729 = vpop.f32.mrf.mxu0
        %v6730 = vadd.f32 %v6704, %v6729
        %6731 = vdwg.mxu0
        %6732 = vmatpush.msra.mxu0 0.0
        %6733 = vmatpush.msra.mxu0 0.0
        %6734 = vmatpush.msra.mxu0 0.0
        %6735 = vmatpush.msra.mxu0 0.0
        %6736 = vmatpush.msra.mxu0 0.0
        %6737 = vmatpush.msra.mxu0 0.0
        %6738 = vmatpush.msra.mxu0 0.0
        %6739 = vmatpush.msra.mxu0 0.0
        %6740 = vmatpush.msra.mxu0 0.0
        %6741 = vmatpush.msra.mxu0 0.0
        %6742 = vmatpush.msra.mxu0 0.0
        %6743 = vmatpush.msra.mxu0 0.0
        %6744 = vmatpush.msra.mxu0 0.0
        %6745 = vmatpush.msra.mxu0 0.0
        %v6746 = vand.u32 %v349, 4294901760
        %6747 = vmatpush.msra.mxu0 %v6746
        %v6748 = vand.u32 %v348, 4294901760
        %6749 = vmatpush.msra.mxu0 %v6748
        %v6750 = vand.u32 %v6646, 4294901760
        %v6751 = vsub.f32 %v6646, %v6750
        %v6752 = vand.u32 %v6751, 4294901760
        %6753 = vmatmul.f32.gmra.mxu0 %v6752
        %v6754 = vpop.f32.mrf.mxu0
        %v6755 = vadd.f32 %v6730, %v6754
        %6756 = vdwg.mxu0
        %6757 = vmatpush.msra.mxu0 0.0
        %6758 = vmatpush.msra.mxu0 0.0
        %6759 = vmatpush.msra.mxu0 0.0
        %6760 = vmatpush.msra.mxu0 0.0
        %6761 = vmatpush.msra.mxu0 0.0
        %6762 = vmatpush.msra.mxu0 0.0
        %6763 = vmatpush.msra.mxu0 0.0
        %6764 = vmatpush.msra.mxu0 0.0
        %6765 = vmatpush.msra.mxu0 0.0
        %6766 = vmatpush.msra.mxu0 0.0
        %6767 = vmatpush.msra.mxu0 0.0
        %6768 = vmatpush.msra.mxu0 0.0
        %6769 = vmatpush.msra.mxu0 0.0
        %6770 = vmatpush.msra.mxu0 0.0
        %v6771 = vand.u32 %v349, 4294901760
        %v6772 = vsub.f32 %v349, %v6771
        %v6773 = vand.u32 %v6772, 4294901760
        %6774 = vmatpush.msra.mxu0 %v6773
        %v6775 = vand.u32 %v348, 4294901760
        %v6776 = vsub.f32 %v348, %v6775
        %v6777 = vand.u32 %v6776, 4294901760
        %6778 = vmatpush.msra.mxu0 %v6777
        %v6779 = vand.u32 %v6646, 4294901760
        %6780 = vmatmul.f32.gmra.mxu0 %v6779
        %v6781 = vpop.f32.mrf.mxu0
        %v6782 = vadd.f32 %v6755, %v6781
        %6783 = vdwg.mxu0
        %6784 = vmatpush.msra.mxu0 0.0
        %6785 = vmatpush.msra.mxu0 0.0
        %6786 = vmatpush.msra.mxu0 0.0
        %6787 = vmatpush.msra.mxu0 0.0
        %6788 = vmatpush.msra.mxu0 0.0
        %6789 = vmatpush.msra.mxu0 0.0
        %6790 = vmatpush.msra.mxu0 0.0
        %6791 = vmatpush.msra.mxu0 0.0
        %6792 = vmatpush.msra.mxu0 0.0
        %6793 = vmatpush.msra.mxu0 0.0
        %6794 = vmatpush.msra.mxu0 0.0
        %6795 = vmatpush.msra.mxu0 0.0
        %6796 = vmatpush.msra.mxu0 0.0
        %6797 = vmatpush.msra.mxu0 0.0
        %v6798 = vand.u32 %v349, 4294901760
        %6799 = vmatpush.msra.mxu0 %v6798
        %v6800 = vand.u32 %v348, 4294901760
        %6801 = vmatpush.msra.mxu0 %v6800
        %v6802 = vand.u32 %v6646, 4294901760
        %6803 = vmatmul.f32.gmra.mxu0 %v6802
        %v6804 = vpop.f32.mrf.mxu0
        %v6805 = vadd.f32 %v6782, %v6804
        %6806 = vdwg.mxu0
        %s6807 = sld [smem:[#allocation2]]
        %s6808 = sld [smem:[#allocation2 + $0x1]]
        %v6809 = vmul.f32 %v1159, %v1159
        %v6810 = vmul.f32 %v1321, %v1321
        %v6811 = vmul.f32 %v1483, %v1483
        %v6812 = vmul.f32 %v1645, %v1645
        %v6813 = vmul.f32 %v2443, %v2443
        %v6814 = vmul.f32 %v2605, %v2605
        %v6815 = vmul.f32 %v2767, %v2767
        %v6816 = vmul.f32 %v2929, %v2929
        %v6817 = vmul.f32 %v1159, %v2443
        %v6818 = vmul.f32 %v1321, %v2605
        %v6819 = vmul.f32 %v1483, %v2767
        %v6820 = vmul.f32 %v1645, %v2929
        %v6821 = vsub.f32 %v3735, %v6809
        %v6822 = vsub.f32 %v3897, %v6810
        %v6823 = vsub.f32 %v4059, %v6811
        %v6824 = vsub.f32 %v4221, %v6812
        %v6825 = vsub.f32 %v5027, %v6813
        %v6826 = vsub.f32 %v5189, %v6814
        %v6827 = vsub.f32 %v5351, %v6815
        %v6828 = vsub.f32 %v5513, %v6816
        %v6829 = vsub.f32 %v6319, %v6817
        %v6830 = vsub.f32 %v6481, %v6818
        %v6831 = vsub.f32 %v6643, %v6819
        %v6832 = vsub.f32 %v6805, %v6820
        %v6833 = vmul.f32 %v6829, 2.0
        %v6834 = vmul.f32 %v6830, 2.0
        %v6835 = vmul.f32 %v6831, 2.0
        %v6836 = vmul.f32 %v6832, 2.0
        %v6837 = vstv %s6808
        %v6838 = vadd.f32 %v6833, %v6837
        %v6839 = vadd.f32 %v6834, %v6837
        %v6840 = vadd.f32 %v6835, %v6837
        %v6841 = vadd.f32 %v6836, %v6837
        %v6842 = vadd.f32 %v6821, %v6825
        %v6843 = vadd.f32 %v6822, %v6826
        %v6844 = vadd.f32 %v6823, %v6827
        %v6845 = vadd.f32 %v6824, %v6828
        %v6846 = vadd.f32 %v6842, %v6837
        %v6847 = vadd.f32 %v6843, %v6837
        %v6848 = vadd.f32 %v6844, %v6837
        %v6849 = vadd.f32 %v6845, %v6837
        %v6850 = vmul.f32 %v6817, 2.0
        %v6851 = vmul.f32 %v6818, 2.0
        %v6852 = vmul.f32 %v6819, 2.0
        %v6853 = vmul.f32 %v6820, 2.0
        %v6854 = vstv %s6807
        %v6855 = vadd.f32 %v6850, %v6854
        %v6856 = vadd.f32 %v6851, %v6854
        %v6857 = vadd.f32 %v6852, %v6854
        %v6858 = vadd.f32 %v6853, %v6854
        %v6859 = vmul.f32 %v6855, %v6838
        %v6860 = vmul.f32 %v6856, %v6839
        %v6861 = vmul.f32 %v6857, %v6840
        %v6862 = vmul.f32 %v6858, %v6841
        %v6863 = vadd.f32 %v6809, %v6813
        %v6864 = vadd.f32 %v6810, %v6814
        %v6865 = vadd.f32 %v6811, %v6815
        %v6866 = vadd.f32 %v6812, %v6816
        %v6867 = vadd.f32 %v6863, %v6854
        %v6868 = vadd.f32 %v6864, %v6854
        %v6869 = vadd.f32 %v6865, %v6854
        %v6870 = vadd.f32 %v6866, %v6854
        %v6871 = vmul.f32 %v6867, %v6846
        %v6872 = vmul.f32 %v6868, %v6847
        %v6873 = vmul.f32 %v6869, %v6848
        %v6874 = vmul.f32 %v6870, %v6849
        %v6875 = vrcp.pop %v6871
        %v6876 = vmul.f32 %v6871, %v6875
        %v6877 = vsub.f32 1.0, %v6876
        %v6878 = vmul.f32 %v6875, %v6877
        %v6879 = vadd.f32 %v6875, %v6878
        %vm6880 = vweird.f32 %v6871
        %vm6881 = vweird.f32 %v6875
        %vm6882 = vmor %vm6880, %vm6881
        %v6883 = vsel %vm6882, %v6875, %v6879
        %v6884 = vand.u32 2147483647, %v6871
        %vm6885 = vcmp.eq.f32.partialorder %v6884, 8.507059e+37
        %v6886 = vand.u32 %v6871, 2147483648
        %v6887 = vor.u32 1.1754944e-38, %v6886
        %v6888 = vsel %vm6885, %v6887, %v6883
        %v6889 = vmul.f32 %v6859, %v6888
        %v6890 = vrcp.pop %v6872
        %v6891 = vmul.f32 %v6872, %v6890
        %v6892 = vsub.f32 1.0, %v6891
        %v6893 = vmul.f32 %v6890, %v6892
        %v6894 = vadd.f32 %v6890, %v6893
        %vm6895 = vweird.f32 %v6872
        %vm6896 = vweird.f32 %v6890
        %vm6897 = vmor %vm6895, %vm6896
        %v6898 = vsel %vm6897, %v6890, %v6894
        %v6899 = vand.u32 2147483647, %v6872
        %vm6900 = vcmp.eq.f32.partialorder %v6899, 8.507059e+37
        %v6901 = vand.u32 %v6872, 2147483648
        %v6902 = vor.u32 1.1754944e-38, %v6901
        %v6903 = vsel %vm6900, %v6902, %v6898
        %v6904 = vmul.f32 %v6860, %v6903
        %v6905 = vrcp.pop %v6873
        %v6906 = vmul.f32 %v6873, %v6905
        %v6907 = vsub.f32 1.0, %v6906
        %v6908 = vmul.f32 %v6905, %v6907
        %v6909 = vadd.f32 %v6905, %v6908
        %vm6910 = vweird.f32 %v6873
        %vm6911 = vweird.f32 %v6905
        %vm6912 = vmor %vm6910, %vm6911
        %v6913 = vsel %vm6912, %v6905, %v6909
        %v6914 = vand.u32 2147483647, %v6873
        %vm6915 = vcmp.eq.f32.partialorder %v6914, 8.507059e+37
        %v6916 = vand.u32 %v6873, 2147483648
        %v6917 = vor.u32 1.1754944e-38, %v6916
        %v6918 = vsel %vm6915, %v6917, %v6913
        %v6919 = vmul.f32 %v6861, %v6918
        %v6920 = vrcp.pop %v6874
        %v6921 = vmul.f32 %v6874, %v6920
        %v6922 = vsub.f32 1.0, %v6921
        %v6923 = vmul.f32 %v6920, %v6922
        %v6924 = vadd.f32 %v6920, %v6923
        %vm6925 = vweird.f32 %v6874
        %vm6926 = vweird.f32 %v6920
        %vm6927 = vmor %vm6925, %vm6926
        %v6928 = vsel %vm6927, %v6920, %v6924
        %v6929 = vand.u32 2147483647, %v6874
        %vm6930 = vcmp.eq.f32.partialorder %v6929, 8.507059e+37
        %v6931 = vand.u32 %v6874, 2147483648
        %v6932 = vor.u32 1.1754944e-38, %v6931
        %v6933 = vsel %vm6930, %v6932, %v6928
        %v6934 = vmul.f32 %v6862, %v6933
        %vm6935 = vcmask 46080
        %v6936 = vsel %vm6935, %v6889, 0.0
        %v6937 = vsel %vm6935, %v6904, 0.0
        %v6938 = vadd.f32 %v6936, %v6937
        %v6939 = vsel %vm6935, %v6919, 0.0
        %v6940 = vadd.f32 %v6938, %v6939
        %v6941 = vsel %vm6935, %v6934, 0.0
        %v6942 = vadd.f32 %v6940, %v6941
        %6943 = vadd.xlane.f32.xlu0 %v6942
        %v6944 = vpop.xlane.xlu0 %6943
        %v6945 = vrot.slane %v6944, 4
        %v6946 = vadd.f32 %v6944, %v6945
        %v6947 = vrot.slane %v6946, 2
        %v6948 = vadd.f32 %v6946, %v6947
        %v6949 = vrot.slane %v6948, 1
        %v6950 = vadd.f32 %v6948, %v6949
        %s6951 = vtos %v6950
        %v6952 = vstv %s6951
        %vm6953 = vcmask 0
        %6954 = vst.msk [vmem:[%s321] sm:$0x1] %vm6953, %v6952
        %p6955 = scmp.lt.s32.totalorder %s24, 1
        %s6956 = scalar_select %p6955, %s24, 1
        %p6957 = scmp.lt.s32.totalorder %s25, 0
        %s6958 = scalar_select %p6957, %s25, 0
        %s6959 = sadd.s32 %s6958, %s6956
        %s6960 = scalar_lea.vmem %s5, %s6959
        // Predicated region
        $region49: #{tpu_custom_call.1} parent=39 // pred_check
          %p6961 = pneg %p171
        $region50: #{tpu_custom_call.1} parent=39 // pred_check_branch
          %6963 = sbr.rel (%p6961) target = $region52
        $region51: #{tpu_custom_call.1} parent=39 // pred_region
          _
        $region52: #{tpu_custom_call.1} parent=39 // pred_fallthru
          _
      $region40: #{tpu_custom_call.1} parent=5 // pred_fallthru
        _
      %p6964 = scmp.le.s32.totalorder 2, %s15
      // Predicated region
      $region53: #{tpu_custom_call.1} parent=5 // pred_check
        %p6965 = pneg %p6964
      $region54: #{tpu_custom_call.1} parent=5 // pred_check_branch
        %6967 = sbr.rel (%p6965) target = $region56
      $region55: #{tpu_custom_call.1} parent=5 // pred_region
        %s6968 = ssub.s32 %s15, 2
        // Predicated region
        $region57: #{tpu_custom_call.1} parent=55 // pred_check
          %p6969 = pneg %p177
        $region58: #{tpu_custom_call.1} parent=55 // pred_check_branch
          %6971 = sbr.rel (%p6969) target = $region60
        $region59: #{tpu_custom_call.1} parent=55 // pred_region
          %p6972 = scmp.lt.s32.totalorder %s26, 1
          %s6973 = scalar_select %p6972, %s26, 1
          %p6974 = scmp.lt.s32.totalorder %s27, 0
          %s6975 = scalar_select %p6974, %s27, 0
          %s6976 = sadd.s32 %s6975, %s6973
          %s6977 = scalar_lea.vmem %s5, %s6976
        $region60: #{tpu_custom_call.1} parent=55 // pred_fallthru
          _
      $region56: #{tpu_custom_call.1} parent=5 // pred_fallthru
        _
    $region6: #{tpu_custom_call.1} parent=1 // loop_footer
      %s19 = sadd.s32 1, %s15
    $region7: #{tpu_custom_call.1} parent=1 // loop_footer_branch
      %14 = sbr.rel target = $region3
    $region8: #{tpu_custom_call.1} parent=1 // loop_exit
      _
    %6978 = vsyncpa [#allocation3], 1
    %s6979 = scalar_lea.sflag [#allocation3], 1
    %6980 = vsyncpa %s6979, 1
    %6981 = vsyncpa [#allocation4], 1
    %s6982 = scalar_lea.sflag [#allocation4], 1
    %6983 = vsyncpa %s6982, 1

</llo_original>
